<compile_context>
chip_gen: v6e
topology: v6e:2x2x1
jax: 0.10.0
libtpu: 0.0.40
codegen_flags: <defaults>
</compile_context>

<pallas_src>
import functools

import jax
import jax.numpy as jnp
import numpy as np
from jax import lax
from jax.experimental import pallas as pl
from jax.experimental.pallas import tpu as pltpu


# ----------------------------------------------------------------------------
# Tiling helper
# ----------------------------------------------------------------------------
def _lane_tile(n, target):
    """Pick a lane-axis (last-dim) tile.  Single full-width block when n <= target,
    otherwise a multiple-of-128 tile with the axis padded up to a tile multiple."""
    if n <= target:
        return n, n
    tile = max(128, (target // 128) * 128)
    n_pad = ((n + tile - 1) // tile) * tile
    return tile, n_pad


# ----------------------------------------------------------------------------
# Pallas kernels
# ----------------------------------------------------------------------------
def _conv_bias_act_kernel(x_ref, w_ref, b_ref, o_ref, *, act):
    """Pointwise conv, channels-first: (Cout,Cin) @ (Cin,TN) + bias, optional ReLU.
    Output last dim is the (lane-dense) point axis."""
    y = jnp.dot(w_ref[...], x_ref[0, :, :], preferred_element_type=jnp.float32)
    y = y + b_ref[...]
    if act:
        y = jnp.maximum(y, 0.0)
    o_ref[0, :, :] = y


def _fused_grouped_attn_kernel(dp_ref, fj_ref, wdp_ref, wfj_ref, sh_ref,
                               o_ref, y_s, *, c1, ngrp, inv_tau, fj_per_point):
    """Fused SPALPA attention branch.

      y_g  = W_cat @ [dp_g ; fj_g] + shift     (W_cat = [W_attn ; W_conv], BN folded)
      attn = y[:c1], feat = y[c1:]
      out  = sum_g softmax_g(attn / tau) * feat   (softmax over the group axis)

    dp_ref : (1, NG, 3, TN)   relative positions per group
    fj_ref : (1, NG, C0, TN)  grouped per-point features      (fj_per_point=True)
             (1, C0, NG)      per-group features (broadcast over points) (False)
    y_s    : VMEM scratch (NG, 2*c1, TN); the group axis leads, so the softmax
             reduction is element-wise across lane-dense (c1, TN) slabs (no
             cross-lane work, no masked narrow stores).
    """
    wdp = wdp_ref[...]
    wfj = wfj_ref[...]
    sh = sh_ref[...]
    if not fj_per_point:
        # Per-group channel bias (2*C1, NG): avoids ever materialising the
        # broadcast (B, C0, Ns, NG) "global_fj" tensor in HBM.
        gterm = jnp.dot(wfj, fj_ref[0, :, :],
                        preferred_element_type=jnp.float32) + sh

    for g in range(ngrp):
        yg = jnp.dot(wdp, dp_ref[0, g, :, :], preferred_element_type=jnp.float32)
        if fj_per_point:
            yg = yg + jnp.dot(wfj, fj_ref[0, g, :, :],
                              preferred_element_type=jnp.float32) + sh
        else:
            yg = yg + gterm[:, g:g + 1]
        y_s[g, :, :] = yg

    # Softmax over groups + weighted channel sum: element-wise over (c1, TN) slabs.
    m = y_s[0, 0:c1, :]
    for g in range(1, ngrp):
        m = jnp.maximum(m, y_s[g, 0:c1, :])
    denom = jnp.zeros_like(m)
    num = jnp.zeros_like(m)
    for g in range(ngrp):
        e = jnp.exp((y_s[g, 0:c1, :] - m) * inv_tau)
        denom = denom + e
        num = num + e * y_s[g, c1:2 * c1, :]
    o_ref[0, :, :] = num * pl.reciprocal(denom, approx=True)


# ----------------------------------------------------------------------------
# Kernel wrappers
# ----------------------------------------------------------------------------
def pointwise_conv(f, w, bias, act, *, lane_target=1024):
    """Fused 1x1 conv (+ optional ReLU), channels-first.

    f: (B, Cin, N), w: (Cout, Cin) (any BN scale already folded), bias: (Cout,)."""
    B, cin, n = f.shape
    cout = w.shape[0]
    tn, n_pad = _lane_tile(n, lane_target)
    if n_pad != n:
        f = jnp.pad(f, ((0, 0), (0, 0), (0, n_pad - n)))
    out = pl.pallas_call(
        functools.partial(_conv_bias_act_kernel, act=act),
        out_shape=jax.ShapeDtypeStruct((B, cout, n_pad), jnp.float32),
        grid=(B, n_pad // tn),
        in_specs=[
            pl.BlockSpec((1, cin, tn), lambda b, j: (b, 0, j)),
            pl.BlockSpec((cout, cin), lambda b, j: (0, 0)),
            pl.BlockSpec((cout, 1), lambda b, j: (0, 0)),
        ],
        out_specs=pl.BlockSpec((1, cout, tn), lambda b, j: (b, 0, j)),
        compiler_params=pltpu.CompilerParams(
            dimension_semantics=("parallel", "parallel")),
    )(f, w, bias.reshape(cout, 1))
    return out[:, :, :n] if n_pad != n else out


def fused_grouped_attention(dp, fj, w_cat, shift_cat, tau, *, fj_per_point,
                            lane_target=256):
    """One SPALPA attention branch (attn conv + feature conv + softmax pooling).

    dp       : (B, NG, 3, Ns)
    fj       : (B, NG, C0, Ns) if fj_per_point else (B, C0, NG)
    w_cat    : (2*C1, 3 + C0)  rows = [attn conv ; feature conv], BN scale folded
    shift_cat: (2*C1,)         folded BN shifts
    returns  : (B, C1, Ns)
    """
    B, ng, _, ns = dp.shape
    two_c1, cin = w_cat.shape
    c1 = two_c1 // 2
    c0 = cin - 3
    w_dp = w_cat[:, :3]
    w_fj = w_cat[:, 3:]
    tn, ns_pad = _lane_tile(ns, lane_target)
    if ns_pad != ns:
        dp = jnp.pad(dp, ((0, 0), (0, 0), (0, 0), (0, ns_pad - ns)))
        if fj_per_point:
            fj = jnp.pad(fj, ((0, 0), (0, 0), (0, 0), (0, ns_pad - ns)))
    if fj_per_point:
        fj_spec = pl.BlockSpec((1, ng, c0, tn), lambda b, j: (b, 0, 0, j))
    else:
        fj_spec = pl.BlockSpec((1, c0, ng), lambda b, j: (b, 0, 0))
    out = pl.pallas_call(
        functools.partial(_fused_grouped_attn_kernel, c1=c1, ngrp=ng,
                          inv_tau=1.0 / float(tau), fj_per_point=fj_per_point),
        out_shape=jax.ShapeDtypeStruct((B, c1, ns_pad), jnp.float32),
        grid=(B, ns_pad // tn),
        in_specs=[
            pl.BlockSpec((1, ng, 3, tn), lambda b, j: (b, 0, 0, j)),
            fj_spec,
            pl.BlockSpec((two_c1, 3), lambda b, j: (0, 0)),
            pl.BlockSpec((two_c1, c0), lambda b, j: (0, 0)),
            pl.BlockSpec((two_c1, 1), lambda b, j: (0, 0)),
        ],
        out_specs=pl.BlockSpec((1, c1, tn), lambda b, j: (b, 0, j)),
        scratch_shapes=[pltpu.VMEM((ng, two_c1, tn), jnp.float32)],
        compiler_params=pltpu.CompilerParams(
            dimension_semantics=("parallel", "parallel"),
            vmem_limit_bytes=32 * 1024 * 1024),
    )(dp, fj, w_dp, w_fj, shift_cat.reshape(two_c1, 1))
    return out[:, :, :ns] if ns_pad != ns else out


def fold_bn_into_w(w, bn, eps=1e-5):
    """Fold eval-mode BatchNorm into the conv weight; return (w_scaled, shift)."""
    scale = bn["gamma"] / jnp.sqrt(bn["var"] + eps)
    return w * scale[:, None], bn["beta"] - bn["mean"] * scale


# ----------------------------------------------------------------------------
# Point-cloud glue: FPS sampling, ball-query grouping, gathers (plain JAX)
# ----------------------------------------------------------------------------
def furthest_point_sample(p, npoint):
    """p: (B, N, 3) -> int32 indices (B, npoint). Starts from index 0 (as CUDA fps)."""
    B, N, _ = p.shape
    idxs0 = jnp.zeros((B, npoint), jnp.int32)
    dists0 = jnp.full((B, N), 1e10, jnp.float32)
    last0 = jnp.zeros((B,), jnp.int32)

    def body(i, state):
        idxs, dists, last = state
        last_p = p[jnp.arange(B), last]                      # (B, 3)
        d = jnp.sum((p - last_p[:, None, :]) ** 2, axis=-1)  # (B, N)
        dists = jnp.minimum(dists, d)
        nxt = jnp.argmax(dists, axis=-1).astype(jnp.int32)
        idxs = lax.dynamic_update_slice_in_dim(idxs, nxt[:, None], i, axis=1)
        return idxs, dists, nxt

    idxs, _, _ = lax.fori_loop(1, npoint, body, (idxs0, dists0, last0))
    return idxs


def ball_query(new_p, p, radius, K):
    """new_p: (B, Ns, 3), p: (B, N, 3) -> neighbour indices (B, Ns, K).
    First K in-radius points (original order); padded with the first hit."""
    N = p.shape[1]
    d2 = jnp.sum((new_p[:, :, None, :] - p[:, None, :, :]) ** 2, axis=-1)
    mask = d2 <= radius * radius
    cand = jnp.where(mask, jnp.arange(N, dtype=jnp.int32)[None, None, :], N)
    order = jnp.sort(cand, axis=-1)[..., :K]
    first = order[..., :1]
    idx = jnp.where(order >= N, first, order)
    idx = jnp.where(idx >= N, 0, idx)   # degenerate fallback (never hit: query in set)
    return idx.astype(jnp.int32)


def gather_points(p, idx):
    # p: (B, N, D), idx: (B, S) -> (B, S, D)
    return jax.vmap(lambda pts, ix: pts[ix])(p, idx)


def gather_features(f, idx):
    # f: (B, C, N), idx: (B, S) -> (B, C, S)
    return jax.vmap(lambda ff, ix: ff[:, ix])(f, idx)


def gather_grouped(fc, nbr_t):
    # fc: (B, C, N), nbr_t: (B, NG, S) -> (B, NG, C, S)  (group-major layout)
    return jax.vmap(jax.vmap(lambda fb, ix: fb[:, ix], in_axes=(None, 0)))(fc, nbr_t)


# ----------------------------------------------------------------------------
# Parameters (deterministic synthetic init; shapes follow SPALPA __init__)
# ----------------------------------------------------------------------------
def init_params(key, cin=3, c0=8, c1=16, num_gp=16):
    ks = jax.random.split(key, 13)

    def conv_w(k, cout, cin_):
        return 0.1 * jax.random.normal(k, (cout, cin_), jnp.float32)

    def bn_params(k, c):
        k1, k2, k3, k4 = jax.random.split(k, 4)
        return dict(
            gamma=1.0 + 0.1 * jax.random.normal(k1, (c,), jnp.float32),
            beta=0.05 * jax.random.normal(k2, (c,), jnp.float32),
            mean=0.01 * jax.random.normal(k3, (c,), jnp.float32),
            var=1.0 + 0.1 * jax.random.uniform(k4, (c,), jnp.float32),
        )

    cin_agg = 3 + c0  # CHANNEL_MAP['dp_fj'](c0) = 3 + c0
    return dict(
        # stage 0: head conv1d (norm=None -> bias, no act)
        head_w=conv_w(ks[0], c0, cin),
        head_b=0.01 * jax.random.normal(ks[1], (c0,), jnp.float32),
        # stage 1
        skip_w=conv_w(ks[2], c1, c0),
        skip_b=0.01 * jax.random.normal(ks[3], (c1,), jnp.float32),
        convs_w=conv_w(ks[4], c1, cin_agg), convs_bn=bn_params(ks[5], c1),
        attnl_w=conv_w(ks[6], c1, cin_agg), attnl_bn=bn_params(ks[7], c1),
        gconvs_w=conv_w(ks[8], c1, cin_agg), gconvs_bn=bn_params(ks[9], c1),
        attng_w=conv_w(ks[10], c1, cin_agg), attng_bn=bn_params(ks[11], c1),
        z=jax.random.normal(ks[12], (num_gp, c0), jnp.float32),
        alpha=jnp.zeros((1,), jnp.float32),  # nn.Parameter(torch.zeros(1))
    )


# ----------------------------------------------------------------------------
# Encoder forward (== forward_seg_feat semantics: returns lists of p and f)
# ----------------------------------------------------------------------------
def spotr_encoder_forward(params, p0, f0=None, *, stride=4, nsample=8,
                          radius=0.2, gamma=16.0, tau_local=1.0, tau_delta=1.0):
    if f0 is None:
        f0 = jnp.transpose(p0, (0, 2, 1))          # f0 = p0.transpose(1, 2)
    p_list, f_list = [p0], [f0]

    # ---- stage 0: SPALPA head (is_head=True): f = convs(f), plain 1x1 conv1d ----
    f = pointwise_conv(f0, params["head_w"], params["head_b"], act=False)
    p = p0
    p_list.append(p)
    f_list.append(f)

    # ---- stage 1: SPALPA stride>1: local + global attention, residual ReLU ----
    B, N, _ = p.shape
    Ns = N // stride
    idx = furthest_point_sample(p, Ns)                       # (B, Ns)
    new_p = gather_points(p, idx)                            # (B, Ns, 3)
    fi = gather_features(f, idx)                             # (B, C0, Ns)

    # residual skip conv (no norm -> bias, no act)
    identity = pointwise_conv(fi, params["skip_w"], params["skip_b"], act=False)

    # ---------- local branch: ball-query grouping + fused attention ----------
    nbr = ball_query(new_p, p, radius, nsample)              # (B, Ns, K)
    nbr_t = jnp.transpose(nbr, (0, 2, 1))                    # (B, K, Ns)
    p_cf = jnp.transpose(p, (0, 2, 1))                       # (B, 3, N)
    new_p_cf = jnp.transpose(new_p, (0, 2, 1))               # (B, 3, Ns)
    grouped_p = gather_grouped(p_cf, nbr_t)                  # (B, K, 3, Ns)
    dp = grouped_p - new_p_cf[:, None, :, :]                 # (B, K, 3, Ns)
    fj = gather_grouped(f, nbr_t)                            # (B, K, C0, Ns)

    w_attn_l, sh_attn_l = fold_bn_into_w(params["attnl_w"], params["attnl_bn"])
    w_conv_l, sh_conv_l = fold_bn_into_w(params["convs_w"], params["convs_bn"])
    w_cat_l = jnp.concatenate([w_attn_l, w_conv_l], axis=0)
    sh_cat_l = jnp.concatenate([sh_attn_l, sh_conv_l], axis=0)
    local_f = fused_grouped_attention(dp, fj, w_cat_l, sh_cat_l, tau_local,
                                      fj_per_point=True)     # (B, C1, Ns)

    # ---------- global branch (num_gp global points) ----------
    z = params["z"]                                          # (M, C0)
    interp = jnp.einsum("md,bdn->bmn", z, fi)                # (B, M, Ns)
    soft = jax.nn.softmax(interp, axis=-1)
    gp = jnp.einsum("bmn,bnd->bmd", soft, new_p)             # (B, M, 3)
    dist2 = jnp.sum((gp[:, :, None, :] - new_p[:, None, :, :]) ** 2, axis=-1)
    g_kern = jnp.exp(-gamma * dist2)                         # (B, M, Ns)
    global_f = jnp.einsum("bdn,bmn->bdm", fi, soft * g_kern)  # (B, C0, M)
    gdp = gp[:, :, :, None] - new_p_cf[:, None, :, :]        # (B, M, 3, Ns)

    w_attn_g, sh_attn_g = fold_bn_into_w(params["attng_w"], params["attng_bn"])
    w_conv_g, sh_conv_g = fold_bn_into_w(params["gconvs_w"], params["gconvs_bn"])
    w_cat_g = jnp.concatenate([w_attn_g, w_conv_g], axis=0)
    sh_cat_g = jnp.concatenate([sh_attn_g, sh_conv_g], axis=0)
    global_out = fused_grouped_attention(gdp, global_f, w_cat_g, sh_cat_g,
                                         tau_delta, fj_per_point=False)

    alpha = jax.nn.sigmoid(params["alpha"])[0]
    fnew = local_f * (1.0 - alpha) + global_out * alpha
    fnew = jnp.maximum(fnew + identity, 0.0)                 # use_res: relu(f + id)

    p_list.append(new_p)
    f_list.append(fnew)
    return p_list, f_list


# ----------------------------------------------------------------------------
# Pure-JAX reference (mirrors the PyTorch math) for numeric validation
# ----------------------------------------------------------------------------
def spotr_encoder_reference(params, p0, *, stride=4, nsample=8, radius=0.2,
                            gamma=16.0, tau_local=1.0, tau_delta=1.0):
    f0 = jnp.transpose(p0, (0, 2, 1))
    f = jnp.einsum("oc,bcn->bon", params["head_w"], f0) + params["head_b"][None, :, None]
    p = p0
    B, N, _ = p.shape
    Ns = N // stride
    idx = furthest_point_sample(p, Ns)
    new_p = gather_points(p, idx)
    fi = gather_features(f, idx)
    identity = (jnp.einsum("oc,bcn->bon", params["skip_w"], fi)
                + params["skip_b"][None, :, None])

    def conv_bn4(x, w, bn):
        sc = bn["gamma"] / jnp.sqrt(bn["var"] + 1e-5)
        sh = bn["beta"] - bn["mean"] * sc
        y = jnp.einsum("oc,bcnk->bonk", w, x)
        return y * sc[None, :, None, None] + sh[None, :, None, None]

    nbr = ball_query(new_p, p, radius, nsample)
    grouped_p = jax.vmap(lambda pts, ix: pts[ix])(p, nbr)          # (B, Ns, K, 3)
    dp = jnp.transpose(grouped_p - new_p[:, :, None, :], (0, 3, 1, 2))
    fj = jax.vmap(lambda ff, ix: ff[:, ix])(f, nbr)                # (B, C0, Ns, K)
    fj_cat = jnp.concatenate([dp, fj], axis=1)
    attn = conv_bn4(fj_cat, params["attnl_w"], params["attnl_bn"])
    x = conv_bn4(fj_cat, params["convs_w"], params["convs_bn"])
    local_f = jnp.sum(jax.nn.softmax(attn / tau_local, axis=-1) * x, axis=-1)

    z = params["z"]
    interp = jnp.einsum("md,bdn->bmn", z, fi)
    soft = jax.nn.softmax(interp, axis=-1)
    gp = jnp.einsum("bmn,bnd->bmd", soft, new_p)
    dist2 = jnp.sum((gp[:, :, None, :] - new_p[:, None, :, :]) ** 2, axis=-1)
    g_kern = jnp.exp(-gamma * dist2)
    global_f = jnp.einsum("bdn,bmn->bdm", fi, soft * g_kern)        # (B, C0, M)
    M = global_f.shape[-1]
    gdp = jnp.transpose(gp[:, None, :, :] - new_p[:, :, None, :], (0, 3, 1, 2))
    gfj = jnp.broadcast_to(global_f[:, :, None, :], (B, global_f.shape[1], Ns, M))
    g_cat = jnp.concatenate([gdp, gfj], axis=1)
    gattn = conv_bn4(g_cat, params["attng_w"], params["attng_bn"])
    gx = conv_bn4(g_cat, params["gconvs_w"], params["gconvs_bn"])
    global_out = jnp.sum(jax.nn.softmax(gattn / tau_delta, axis=-1) * gx, axis=-1)

    alpha = jax.nn.sigmoid(params["alpha"])[0]
    fnew = local_f * (1.0 - alpha) + global_out * alpha
    fnew = jnp.maximum(fnew + identity, 0.0)
    return new_p, fnew


# ----------------------------------------------------------------------------
if __name__ == "__main__":
    key = jax.random.PRNGKey(0)
    kp, kparam = jax.random.split(key)

    B, N = 2, 64
    p0 = jax.random.uniform(kp, (B, N, 3), jnp.float32)   # point cloud positions
    params = init_params(kparam, cin=3, c0=8, c1=16, num_gp=16)

    fwd = jax.jit(functools.partial(
        spotr_encoder_forward, stride=4, nsample=8, radius=0.2,
        gamma=16.0, tau_local=1.0, tau_delta=1.0))
    p_list, f_list = fwd(params, p0)
    jax.block_until_ready(f_list[-1])

    assert p_list[-1].shape == (B, N // 4, 3)
    assert f_list[-1].shape == (B, 16, N // 4)

    # Numeric check against the pure-JAX reference of the same forward pass.
    ref_p, ref_f = jax.jit(functools.partial(
        spotr_encoder_reference, stride=4, nsample=8, radius=0.2,
        gamma=16.0, tau_local=1.0, tau_delta=1.0))(params, p0)
    np.testing.assert_allclose(np.asarray(p_list[-1]), np.asarray(ref_p),
                               rtol=1e-5, atol=1e-5)
    np.testing.assert_allclose(np.asarray(f_list[-1]), np.asarray(ref_f),
                               rtol=2e-2, atol=2e-3)

    print("KERNEL_OK")
</pallas_src>

<mosaic_0001>
module attributes {stable_mosaic.version = 11 : i64} {
  func.func @_conv_bias_act_kernel(%arg0: i32, %arg1: i32, %arg2: memref<1x3x64xf32, #tpu.memory_space<vmem>>, %arg3: memref<8x3xf32, #tpu.memory_space<vmem>>, %arg4: memref<8x1xf32, #tpu.memory_space<vmem>>, %arg5: memref<1x8x64xf32, #tpu.memory_space<vmem>>) attributes {dimension_semantics = [#tpu.dimension_semantics<parallel>, #tpu.dimension_semantics<parallel>], iteration_bounds = array<i64: 2, 1>, scalar_prefetch = 0 : i64, scratch_operands = 0 : i64, tpu.core_type = #tpu.core_type<tc>, window_params = [{transform_indices = @transform_0, window_bounds = array<i64: 1, 3, 64>}, {pipeline_mode = #tpu.pipeline_mode<synchronous>, transform_indices = @transform_1, window_bounds = array<i64: 8, 3>}, {pipeline_mode = #tpu.pipeline_mode<synchronous>, transform_indices = @transform_2, window_bounds = array<i64: 8, 1>}, {transform_indices = @transform_3, window_bounds = array<i64: 1, 8, 64>}]} {
    %c0 = arith.constant 0 : index
    %c0_0 = arith.constant 0 : index
    %0 = vector.load %arg3[%c0, %c0_0] : memref<8x3xf32, #tpu.memory_space<vmem>>, vector<8x3xf32>
    %c0_1 = arith.constant 0 : index
    %c0_2 = arith.constant 0 : index
    %c0_3 = arith.constant 0 : index
    %1 = vector.load %arg2[%c0_1, %c0_2, %c0_3] : memref<1x3x64xf32, #tpu.memory_space<vmem>>, vector<1x3x64xf32>
    %2 = vector.shape_cast %1 : vector<1x3x64xf32> to vector<3x64xf32>
    %cst = arith.constant dense<0.000000e+00> : vector<8x64xf32>
    %3 = tpu.matmul %0, %2, %cst {dimension_numbers = #tpu.dot_dimension_numbers<[1], [0], [0], [1], [0, 0, 1, 1], [], []>} : vector<8x3xf32>, vector<3x64xf32>, vector<8x64xf32> -> vector<8x64xf32>
    %c0_4 = arith.constant 0 : index
    %c0_5 = arith.constant 0 : index
    %4 = vector.load %arg4[%c0_4, %c0_5] : memref<8x1xf32, #tpu.memory_space<vmem>>, vector<8x1xf32>
    %5 = vector.broadcast %4 : vector<8x1xf32> to vector<8x64xf32>
    %6 = arith.addf %3, %5 : vector<8x64xf32>
    %c0_6 = arith.constant 0 : index
    %c0_7 = arith.constant 0 : index
    %c0_8 = arith.constant 0 : index
    %7 = vector.load %arg5[%c0_6, %c0_7, %c0_8] : memref<1x8x64xf32, #tpu.memory_space<vmem>>, vector<1x8x64xf32>
    %8 = vector.shape_cast %7 : vector<1x8x64xf32> to vector<8x64xf32>
    %9 = vector.shape_cast %6 : vector<8x64xf32> to vector<1x8x64xf32>
    tpu.vector_store %arg5[%c0_6, %c0_7, %c0_8], %9 {strides = array<i32>} : memref<1x8x64xf32, #tpu.memory_space<vmem>>, vector<1x8x64xf32>,
    return
  }
  func.func @transform_0(%arg0: i32, %arg1: i32) -> (i32, i32, i32) {
    %c0_i32 = arith.constant 0 : i32
    %c0_i32_0 = arith.constant 0 : i32
    return %arg0, %c0_i32, %arg1 : i32, i32, i32
  }
  func.func @transform_1(%arg0: i32, %arg1: i32) -> (i32, i32) {
    %c0_i32 = arith.constant 0 : i32
    %c0_i32_0 = arith.constant 0 : i32
    %c0_i32_1 = arith.constant 0 : i32
    return %c0_i32, %c0_i32_0 : i32, i32
  }
  func.func @transform_2(%arg0: i32, %arg1: i32) -> (i32, i32) {
    %c0_i32 = arith.constant 0 : i32
    %c0_i32_0 = arith.constant 0 : i32
    %c0_i32_1 = arith.constant 0 : i32
    return %c0_i32, %c0_i32_0 : i32, i32
  }
  func.func @transform_3(%arg0: i32, %arg1: i32) -> (i32, i32, i32) {
    %c0_i32 = arith.constant 0 : i32
    %c0_i32_0 = arith.constant 0 : i32
    return %arg0, %c0_i32, %arg1 : i32, i32, i32
  }
}

module attributes {stable_mosaic.version = 11 : i64} {
  func.func @_fused_grouped_attn_kernel(%arg0: i32, %arg1: i32, %arg2: memref<1x16x3x16xf32, #tpu.memory_space<vmem>>, %arg3: memref<1x8x16xf32, #tpu.memory_space<vmem>>, %arg4: memref<32x3xf32, #tpu.memory_space<vmem>>, %arg5: memref<32x8xf32, #tpu.memory_space<vmem>>, %arg6: memref<32x1xf32, #tpu.memory_space<vmem>>, %arg7: memref<1x16x16xf32, #tpu.memory_space<vmem>>, %arg8: memref<16x32x16xf32, #tpu.memory_space<vmem>>) attributes {dimension_semantics = [#tpu.dimension_semantics<parallel>, #tpu.dimension_semantics<parallel>], iteration_bounds = array<i64: 2, 1>, scalar_prefetch = 0 : i64, scratch_operands = 1 : i64, tpu.core_type = #tpu.core_type<tc>, window_params = [{transform_indices = @transform_0, window_bounds = array<i64: 1, 16, 3, 16>}, {transform_indices = @transform_1, window_bounds = array<i64: 1, 8, 16>}, {pipeline_mode = #tpu.pipeline_mode<synchronous>, transform_indices = @transform_2, window_bounds = array<i64: 32, 3>}, {pipeline_mode = #tpu.pipeline_mode<synchronous>, transform_indices = @transform_3, window_bounds = array<i64: 32, 8>}, {pipeline_mode = #tpu.pipeline_mode<synchronous>, transform_indices = @transform_4, window_bounds = array<i64: 32, 1>}, {transform_indices = @transform_5, window_bounds = array<i64: 1, 16, 16>}]} {
    %c0 = arith.constant 0 : index
    %c0_0 = arith.constant 0 : index
    %0 = vector.load %arg4[%c0, %c0_0] : memref<32x3xf32, #tpu.memory_space<vmem>>, vector<32x3xf32>
    %c0_1 = arith.constant 0 : index
    %c0_2 = arith.constant 0 : index
    %1 = vector.load %arg5[%c0_1, %c0_2] : memref<32x8xf32, #tpu.memory_space<vmem>>, vector<32x8xf32>
    %c0_3 = arith.constant 0 : index
    %c0_4 = arith.constant 0 : index
    %2 = vector.load %arg6[%c0_3, %c0_4] : memref<32x1xf32, #tpu.memory_space<vmem>>, vector<32x1xf32>
    %c0_5 = arith.constant 0 : index
    %c0_6 = arith.constant 0 : index
    %c0_7 = arith.constant 0 : index
    %3 = vector.load %arg3[%c0_5, %c0_6, %c0_7] : memref<1x8x16xf32, #tpu.memory_space<vmem>>, vector<1x8x16xf32>
    %4 = vector.shape_cast %3 : vector<1x8x16xf32> to vector<8x16xf32>
    %cst = arith.constant dense<0.000000e+00> : vector<32x16xf32>
    %5 = tpu.matmul %1, %4, %cst {dimension_numbers = #tpu.dot_dimension_numbers<[1], [0], [0], [1], [0, 0, 1, 1], [], []>} : vector<32x8xf32>, vector<8x16xf32>, vector<32x16xf32> -> vector<32x16xf32>
    %6 = vector.broadcast %2 : vector<32x1xf32> to vector<32x16xf32>
    %7 = arith.addf %5, %6 : vector<32x16xf32>
    %c0_8 = arith.constant 0 : index
    %c0_9 = arith.constant 0 : index
    %c0_10 = arith.constant 0 : index
    %c0_11 = arith.constant 0 : index
    %8 = vector.load %arg2[%c0_8, %c0_9, %c0_10, %c0_11] : memref<1x16x3x16xf32, #tpu.memory_space<vmem>>, vector<1x1x3x16xf32>
    %9 = vector.shape_cast %8 : vector<1x1x3x16xf32> to vector<3x16xf32>
    %cst_12 = arith.constant dense<0.000000e+00> : vector<32x16xf32>
    %10 = tpu.matmul %0, %9, %cst_12 {dimension_numbers = #tpu.dot_dimension_numbers<[1], [0], [0], [1], [0, 0, 1, 1], [], []>} : vector<32x3xf32>, vector<3x16xf32>, vector<32x16xf32> -> vector<32x16xf32>
    %11 = vector.extract_strided_slice %7 {offsets = [0, 0], sizes = [32, 1], strides = [1, 1]} : vector<32x16xf32> to vector<32x1xf32>
    %12 = vector.broadcast %11 : vector<32x1xf32> to vector<32x16xf32>
    %13 = arith.addf %10, %12 : vector<32x16xf32>
    %c0_13 = arith.constant 0 : index
    %c0_14 = arith.constant 0 : index
    %c0_15 = arith.constant 0 : index
    %14 = vector.load %arg8[%c0_13, %c0_14, %c0_15] : memref<16x32x16xf32, #tpu.memory_space<vmem>>, vector<1x32x16xf32>
    %15 = vector.shape_cast %14 : vector<1x32x16xf32> to vector<32x16xf32>
    %16 = vector.shape_cast %13 : vector<32x16xf32> to vector<1x32x16xf32>
    tpu.vector_store %arg8[%c0_13, %c0_14, %c0_15], %16 {strides = array<i32>} : memref<16x32x16xf32, #tpu.memory_space<vmem>>, vector<1x32x16xf32>,
    %c0_16 = arith.constant 0 : index
    %c1 = arith.constant 1 : index
    %c0_17 = arith.constant 0 : index
    %c0_18 = arith.constant 0 : index
    %17 = vector.load %arg2[%c0_16, %c1, %c0_17, %c0_18] : memref<1x16x3x16xf32, #tpu.memory_space<vmem>>, vector<1x1x3x16xf32>
    %18 = vector.shape_cast %17 : vector<1x1x3x16xf32> to vector<3x16xf32>
    %cst_19 = arith.constant dense<0.000000e+00> : vector<32x16xf32>
    %19 = tpu.matmul %0, %18, %cst_19 {dimension_numbers = #tpu.dot_dimension_numbers<[1], [0], [0], [1], [0, 0, 1, 1], [], []>} : vector<32x3xf32>, vector<3x16xf32>, vector<32x16xf32> -> vector<32x16xf32>
    %20 = vector.extract_strided_slice %7 {offsets = [0, 1], sizes = [32, 1], strides = [1, 1]} : vector<32x16xf32> to vector<32x1xf32>
    %21 = vector.broadcast %20 : vector<32x1xf32> to vector<32x16xf32>
    %22 = arith.addf %19, %21 : vector<32x16xf32>
    %c1_20 = arith.constant 1 : index
    %c0_21 = arith.constant 0 : index
    %c0_22 = arith.constant 0 : index
    %23 = vector.load %arg8[%c1_20, %c0_21, %c0_22] : memref<16x32x16xf32, #tpu.memory_space<vmem>>, vector<1x32x16xf32>
    %24 = vector.shape_cast %23 : vector<1x32x16xf32> to vector<32x16xf32>
    %25 = vector.shape_cast %22 : vector<32x16xf32> to vector<1x32x16xf32>
    tpu.vector_store %arg8[%c1_20, %c0_21, %c0_22], %25 {strides = array<i32>} : memref<16x32x16xf32, #tpu.memory_space<vmem>>, vector<1x32x16xf32>,
    %c0_23 = arith.constant 0 : index
    %c2 = arith.constant 2 : index
    %c0_24 = arith.constant 0 : index
    %c0_25 = arith.constant 0 : index
    %26 = vector.load %arg2[%c0_23, %c2, %c0_24, %c0_25] : memref<1x16x3x16xf32, #tpu.memory_space<vmem>>, vector<1x1x3x16xf32>
    %27 = vector.shape_cast %26 : vector<1x1x3x16xf32> to vector<3x16xf32>
    %cst_26 = arith.constant dense<0.000000e+00> : vector<32x16xf32>
    %28 = tpu.matmul %0, %27, %cst_26 {dimension_numbers = #tpu.dot_dimension_numbers<[1], [0], [0], [1], [0, 0, 1, 1], [], []>} : vector<32x3xf32>, vector<3x16xf32>, vector<32x16xf32> -> vector<32x16xf32>
    %29 = vector.extract_strided_slice %7 {offsets = [0, 2], sizes = [32, 1], strides = [1, 1]} : vector<32x16xf32> to vector<32x1xf32>
    %30 = vector.broadcast %29 : vector<32x1xf32> to vector<32x16xf32>
    %31 = arith.addf %28, %30 : vector<32x16xf32>
    %c2_27 = arith.constant 2 : index
    %c0_28 = arith.constant 0 : index
    %c0_29 = arith.constant 0 : index
    %32 = vector.load %arg8[%c2_27, %c0_28, %c0_29] : memref<16x32x16xf32, #tpu.memory_space<vmem>>, vector<1x32x16xf32>
    %33 = vector.shape_cast %32 : vector<1x32x16xf32> to vector<32x16xf32>
    %34 = vector.shape_cast %31 : vector<32x16xf32> to vector<1x32x16xf32>
    tpu.vector_store %arg8[%c2_27, %c0_28, %c0_29], %34 {strides = array<i32>} : memref<16x32x16xf32, #tpu.memory_space<vmem>>, vector<1x32x16xf32>,
    %c0_30 = arith.constant 0 : index
    %c3 = arith.constant 3 : index
    %c0_31 = arith.constant 0 : index
    %c0_32 = arith.constant 0 : index
    %35 = vector.load %arg2[%c0_30, %c3, %c0_31, %c0_32] : memref<1x16x3x16xf32, #tpu.memory_space<vmem>>, vector<1x1x3x16xf32>
    %36 = vector.shape_cast %35 : vector<1x1x3x16xf32> to vector<3x16xf32>
    %cst_33 = arith.constant dense<0.000000e+00> : vector<32x16xf32>
    %37 = tpu.matmul %0, %36, %cst_33 {dimension_numbers = #tpu.dot_dimension_numbers<[1], [0], [0], [1], [0, 0, 1, 1], [], []>} : vector<32x3xf32>, vector<3x16xf32>, vector<32x16xf32> -> vector<32x16xf32>
    %38 = vector.extract_strided_slice %7 {offsets = [0, 3], sizes = [32, 1], strides = [1, 1]} : vector<32x16xf32> to vector<32x1xf32>
    %39 = vector.broadcast %38 : vector<32x1xf32> to vector<32x16xf32>
    %40 = arith.addf %37, %39 : vector<32x16xf32>
    %c3_34 = arith.constant 3 : index
    %c0_35 = arith.constant 0 : index
    %c0_36 = arith.constant 0 : index
    %41 = vector.load %arg8[%c3_34, %c0_35, %c0_36] : memref<16x32x16xf32, #tpu.memory_space<vmem>>, vector<1x32x16xf32>
    %42 = vector.shape_cast %41 : vector<1x32x16xf32> to vector<32x16xf32>
    %43 = vector.shape_cast %40 : vector<32x16xf32> to vector<1x32x16xf32>
    tpu.vector_store %arg8[%c3_34, %c0_35, %c0_36], %43 {strides = array<i32>} : memref<16x32x16xf32, #tpu.memory_space<vmem>>, vector<1x32x16xf32>,
    %c0_37 = arith.constant 0 : index
    %c4 = arith.constant 4 : index
    %c0_38 = arith.constant 0 : index
    %c0_39 = arith.constant 0 : index
    %44 = vector.load %arg2[%c0_37, %c4, %c0_38, %c0_39] : memref<1x16x3x16xf32, #tpu.memory_space<vmem>>, vector<1x1x3x16xf32>
    %45 = vector.shape_cast %44 : vector<1x1x3x16xf32> to vector<3x16xf32>
    %cst_40 = arith.constant dense<0.000000e+00> : vector<32x16xf32>
    %46 = tpu.matmul %0, %45, %cst_40 {dimension_numbers = #tpu.dot_dimension_numbers<[1], [0], [0], [1], [0, 0, 1, 1], [], []>} : vector<32x3xf32>, vector<3x16xf32>, vector<32x16xf32> -> vector<32x16xf32>
    %47 = vector.extract_strided_slice %7 {offsets = [0, 4], sizes = [32, 1], strides = [1, 1]} : vector<32x16xf32> to vector<32x1xf32>
    %48 = vector.broadcast %47 : vector<32x1xf32> to vector<32x16xf32>
    %49 = arith.addf %46, %48 : vector<32x16xf32>
    %c4_41 = arith.constant 4 : index
    %c0_42 = arith.constant 0 : index
    %c0_43 = arith.constant 0 : index
    %50 = vector.load %arg8[%c4_41, %c0_42, %c0_43] : memref<16x32x16xf32, #tpu.memory_space<vmem>>, vector<1x32x16xf32>
    %51 = vector.shape_cast %50 : vector<1x32x16xf32> to vector<32x16xf32>
    %52 = vector.shape_cast %49 : vector<32x16xf32> to vector<1x32x16xf32>
    tpu.vector_store %arg8[%c4_41, %c0_42, %c0_43], %52 {strides = array<i32>} : memref<16x32x16xf32, #tpu.memory_space<vmem>>, vector<1x32x16xf32>,
    %c0_44 = arith.constant 0 : index
    %c5 = arith.constant 5 : index
    %c0_45 = arith.constant 0 : index
    %c0_46 = arith.constant 0 : index
    %53 = vector.load %arg2[%c0_44, %c5, %c0_45, %c0_46] : memref<1x16x3x16xf32, #tpu.memory_space<vmem>>, vector<1x1x3x16xf32>
    %54 = vector.shape_cast %53 : vector<1x1x3x16xf32> to vector<3x16xf32>
    %cst_47 = arith.constant dense<0.000000e+00> : vector<32x16xf32>
    %55 = tpu.matmul %0, %54, %cst_47 {dimension_numbers = #tpu.dot_dimension_numbers<[1], [0], [0], [1], [0, 0, 1, 1], [], []>} : vector<32x3xf32>, vector<3x16xf32>, vector<32x16xf32> -> vector<32x16xf32>
    %56 = vector.extract_strided_slice %7 {offsets = [0, 5], sizes = [32, 1], strides = [1, 1]} : vector<32x16xf32> to vector<32x1xf32>
    %57 = vector.broadcast %56 : vector<32x1xf32> to vector<32x16xf32>
    %58 = arith.addf %55, %57 : vector<32x16xf32>
    %c5_48 = arith.constant 5 : index
    %c0_49 = arith.constant 0 : index
    %c0_50 = arith.constant 0 : index
    %59 = vector.load %arg8[%c5_48, %c0_49, %c0_50] : memref<16x32x16xf32, #tpu.memory_space<vmem>>, vector<1x32x16xf32>
    %60 = vector.shape_cast %59 : vector<1x32x16xf32> to vector<32x16xf32>
    %61 = vector.shape_cast %58 : vector<32x16xf32> to vector<1x32x16xf32>
    tpu.vector_store %arg8[%c5_48, %c0_49, %c0_50], %61 {strides = array<i32>} : memref<16x32x16xf32, #tpu.memory_space<vmem>>, vector<1x32x16xf32>,
    %c0_51 = arith.constant 0 : index
    %c6 = arith.constant 6 : index
    %c0_52 = arith.constant 0 : index
    %c0_53 = arith.constant 0 : index
    %62 = vector.load %arg2[%c0_51, %c6, %c0_52, %c0_53] : memref<1x16x3x16xf32, #tpu.memory_space<vmem>>, vector<1x1x3x16xf32>
    %63 = vector.shape_cast %62 : vector<1x1x3x16xf32> to vector<3x16xf32>
    %cst_54 = arith.constant dense<0.000000e+00> : vector<32x16xf32>
    %64 = tpu.matmul %0, %63, %cst_54 {dimension_numbers = #tpu.dot_dimension_numbers<[1], [0], [0], [1], [0, 0, 1, 1], [], []>} : vector<32x3xf32>, vector<3x16xf32>, vector<32x16xf32> -> vector<32x16xf32>
    %65 = vector.extract_strided_slice %7 {offsets = [0, 6], sizes = [32, 1], strides = [1, 1]} : vector<32x16xf32> to vector<32x1xf32>
    %66 = vector.broadcast %65 : vector<32x1xf32> to vector<32x16xf32>
    %67 = arith.addf %64, %66 : vector<32x16xf32>
    %c6_55 = arith.constant 6 : index
    %c0_56 = arith.constant 0 : index
    %c0_57 = arith.constant 0 : index
    %68 = vector.load %arg8[%c6_55, %c0_56, %c0_57] : memref<16x32x16xf32, #tpu.memory_space<vmem>>, vector<1x32x16xf32>
    %69 = vector.shape_cast %68 : vector<1x32x16xf32> to vector<32x16xf32>
    %70 = vector.shape_cast %67 : vector<32x16xf32> to vector<1x32x16xf32>
    tpu.vector_store %arg8[%c6_55, %c0_56, %c0_57], %70 {strides = array<i32>} : memref<16x32x16xf32, #tpu.memory_space<vmem>>, vector<1x32x16xf32>,
    %c0_58 = arith.constant 0 : index
    %c7 = arith.constant 7 : index
    %c0_59 = arith.constant 0 : index
    %c0_60 = arith.constant 0 : index
    %71 = vector.load %arg2[%c0_58, %c7, %c0_59, %c0_60] : memref<1x16x3x16xf32, #tpu.memory_space<vmem>>, vector<1x1x3x16xf32>
    %72 = vector.shape_cast %71 : vector<1x1x3x16xf32> to vector<3x16xf32>
    %cst_61 = arith.constant dense<0.000000e+00> : vector<32x16xf32>
    %73 = tpu.matmul %0, %72, %cst_61 {dimension_numbers = #tpu.dot_dimension_numbers<[1], [0], [0], [1], [0, 0, 1, 1], [], []>} : vector<32x3xf32>, vector<3x16xf32>, vector<32x16xf32> -> vector<32x16xf32>
    %74 = vector.extract_strided_slice %7 {offsets = [0, 7], sizes = [32, 1], strides = [1, 1]} : vector<32x16xf32> to vector<32x1xf32>
    %75 = vector.broadcast %74 : vector<32x1xf32> to vector<32x16xf32>
    %76 = arith.addf %73, %75 : vector<32x16xf32>
    %c7_62 = arith.constant 7 : index
    %c0_63 = arith.constant 0 : index
    %c0_64 = arith.constant 0 : index
    %77 = vector.load %arg8[%c7_62, %c0_63, %c0_64] : memref<16x32x16xf32, #tpu.memory_space<vmem>>, vector<1x32x16xf32>
    %78 = vector.shape_cast %77 : vector<1x32x16xf32> to vector<32x16xf32>
    %79 = vector.shape_cast %76 : vector<32x16xf32> to vector<1x32x16xf32>
    tpu.vector_store %arg8[%c7_62, %c0_63, %c0_64], %79 {strides = array<i32>} : memref<16x32x16xf32, #tpu.memory_space<vmem>>, vector<1x32x16xf32>,
    %c0_65 = arith.constant 0 : index
    %c8 = arith.constant 8 : index
    %c0_66 = arith.constant 0 : index
    %c0_67 = arith.constant 0 : index
    %80 = vector.load %arg2[%c0_65, %c8, %c0_66, %c0_67] : memref<1x16x3x16xf32, #tpu.memory_space<vmem>>, vector<1x1x3x16xf32>
    %81 = vector.shape_cast %80 : vector<1x1x3x16xf32> to vector<3x16xf32>
    %cst_68 = arith.constant dense<0.000000e+00> : vector<32x16xf32>
    %82 = tpu.matmul %0, %81, %cst_68 {dimension_numbers = #tpu.dot_dimension_numbers<[1], [0], [0], [1], [0, 0, 1, 1], [], []>} : vector<32x3xf32>, vector<3x16xf32>, vector<32x16xf32> -> vector<32x16xf32>
    %83 = vector.extract_strided_slice %7 {offsets = [0, 8], sizes = [32, 1], strides = [1, 1]} : vector<32x16xf32> to vector<32x1xf32>
    %84 = vector.broadcast %83 : vector<32x1xf32> to vector<32x16xf32>
    %85 = arith.addf %82, %84 : vector<32x16xf32>
    %c8_69 = arith.constant 8 : index
    %c0_70 = arith.constant 0 : index
    %c0_71 = arith.constant 0 : index
    %86 = vector.load %arg8[%c8_69, %c0_70, %c0_71] : memref<16x32x16xf32, #tpu.memory_space<vmem>>, vector<1x32x16xf32>
    %87 = vector.shape_cast %86 : vector<1x32x16xf32> to vector<32x16xf32>
    %88 = vector.shape_cast %85 : vector<32x16xf32> to vector<1x32x16xf32>
    tpu.vector_store %arg8[%c8_69, %c0_70, %c0_71], %88 {strides = array<i32>} : memref<16x32x16xf32, #tpu.memory_space<vmem>>, vector<1x32x16xf32>,
    %c0_72 = arith.constant 0 : index
    %c9 = arith.constant 9 : index
    %c0_73 = arith.constant 0 : index
    %c0_74 = arith.constant 0 : index
    %89 = vector.load %arg2[%c0_72, %c9, %c0_73, %c0_74] : memref<1x16x3x16xf32, #tpu.memory_space<vmem>>, vector<1x1x3x16xf32>
    %90 = vector.shape_cast %89 : vector<1x1x3x16xf32> to vector<3x16xf32>
    %cst_75 = arith.constant dense<0.000000e+00> : vector<32x16xf32>
    %91 = tpu.matmul %0, %90, %cst_75 {dimension_numbers = #tpu.dot_dimension_numbers<[1], [0], [0], [1], [0, 0, 1, 1], [], []>} : vector<32x3xf32>, vector<3x16xf32>, vector<32x16xf32> -> vector<32x16xf32>
    %92 = vector.extract_strided_slice %7 {offsets = [0, 9], sizes = [32, 1], strides = [1, 1]} : vector<32x16xf32> to vector<32x1xf32>
    %93 = vector.broadcast %92 : vector<32x1xf32> to vector<32x16xf32>
    %94 = arith.addf %91, %93 : vector<32x16xf32>
    %c9_76 = arith.constant 9 : index
    %c0_77 = arith.constant 0 : index
    %c0_78 = arith.constant 0 : index
    %95 = vector.load %arg8[%c9_76, %c0_77, %c0_78] : memref<16x32x16xf32, #tpu.memory_space<vmem>>, vector<1x32x16xf32>
    %96 = vector.shape_cast %95 : vector<1x32x16xf32> to vector<32x16xf32>
    %97 = vector.shape_cast %94 : vector<32x16xf32> to vector<1x32x16xf32>
    tpu.vector_store %arg8[%c9_76, %c0_77, %c0_78], %97 {strides = array<i32>} : memref<16x32x16xf32, #tpu.memory_space<vmem>>, vector<1x32x16xf32>,
    %c0_79 = arith.constant 0 : index
    %c10 = arith.constant 10 : index
    %c0_80 = arith.constant 0 : index
    %c0_81 = arith.constant 0 : index
    %98 = vector.load %arg2[%c0_79, %c10, %c0_80, %c0_81] : memref<1x16x3x16xf32, #tpu.memory_space<vmem>>, vector<1x1x3x16xf32>
    %99 = vector.shape_cast %98 : vector<1x1x3x16xf32> to vector<3x16xf32>
    %cst_82 = arith.constant dense<0.000000e+00> : vector<32x16xf32>
    %100 = tpu.matmul %0, %99, %cst_82 {dimension_numbers = #tpu.dot_dimension_numbers<[1], [0], [0], [1], [0, 0, 1, 1], [], []>} : vector<32x3xf32>, vector<3x16xf32>, vector<32x16xf32> -> vector<32x16xf32>
    %101 = vector.extract_strided_slice %7 {offsets = [0, 10], sizes = [32, 1], strides = [1, 1]} : vector<32x16xf32> to vector<32x1xf32>
    %102 = vector.broadcast %101 : vector<32x1xf32> to vector<32x16xf32>
    %103 = arith.addf %100, %102 : vector<32x16xf32>
    %c10_83 = arith.constant 10 : index
    %c0_84 = arith.constant 0 : index
    %c0_85 = arith.constant 0 : index
    %104 = vector.load %arg8[%c10_83, %c0_84, %c0_85] : memref<16x32x16xf32, #tpu.memory_space<vmem>>, vector<1x32x16xf32>
    %105 = vector.shape_cast %104 : vector<1x32x16xf32> to vector<32x16xf32>
    %106 = vector.shape_cast %103 : vector<32x16xf32> to vector<1x32x16xf32>
    tpu.vector_store %arg8[%c10_83, %c0_84, %c0_85], %106 {strides = array<i32>} : memref<16x32x16xf32, #tpu.memory_space<vmem>>, vector<1x32x16xf32>,
    %c0_86 = arith.constant 0 : index
    %c11 = arith.constant 11 : index
    %c0_87 = arith.constant 0 : index
    %c0_88 = arith.constant 0 : index
    %107 = vector.load %arg2[%c0_86, %c11, %c0_87, %c0_88] : memref<1x16x3x16xf32, #tpu.memory_space<vmem>>, vector<1x1x3x16xf32>
    %108 = vector.shape_cast %107 : vector<1x1x3x16xf32> to vector<3x16xf32>
    %cst_89 = arith.constant dense<0.000000e+00> : vector<32x16xf32>
    %109 = tpu.matmul %0, %108, %cst_89 {dimension_numbers = #tpu.dot_dimension_numbers<[1], [0], [0], [1], [0, 0, 1, 1], [], []>} : vector<32x3xf32>, vector<3x16xf32>, vector<32x16xf32> -> vector<32x16xf32>
    %110 = vector.extract_strided_slice %7 {offsets = [0, 11], sizes = [32, 1], strides = [1, 1]} : vector<32x16xf32> to vector<32x1xf32>
    %111 = vector.broadcast %110 : vector<32x1xf32> to vector<32x16xf32>
    %112 = arith.addf %109, %111 : vector<32x16xf32>
    %c11_90 = arith.constant 11 : index
    %c0_91 = arith.constant 0 : index
    %c0_92 = arith.constant 0 : index
    %113 = vector.load %arg8[%c11_90, %c0_91, %c0_92] : memref<16x32x16xf32, #tpu.memory_space<vmem>>, vector<1x32x16xf32>
    %114 = vector.shape_cast %113 : vector<1x32x16xf32> to vector<32x16xf32>
    %115 = vector.shape_cast %112 : vector<32x16xf32> to vector<1x32x16xf32>
    tpu.vector_store %arg8[%c11_90, %c0_91, %c0_92], %115 {strides = array<i32>} : memref<16x32x16xf32, #tpu.memory_space<vmem>>, vector<1x32x16xf32>,
    %c0_93 = arith.constant 0 : index
    %c12 = arith.constant 12 : index
    %c0_94 = arith.constant 0 : index
    %c0_95 = arith.constant 0 : index
    %116 = vector.load %arg2[%c0_93, %c12, %c0_94, %c0_95] : memref<1x16x3x16xf32, #tpu.memory_space<vmem>>, vector<1x1x3x16xf32>
    %117 = vector.shape_cast %116 : vector<1x1x3x16xf32> to vector<3x16xf32>
    %cst_96 = arith.constant dense<0.000000e+00> : vector<32x16xf32>
    %118 = tpu.matmul %0, %117, %cst_96 {dimension_numbers = #tpu.dot_dimension_numbers<[1], [0], [0], [1], [0, 0, 1, 1], [], []>} : vector<32x3xf32>, vector<3x16xf32>, vector<32x16xf32> -> vector<32x16xf32>
    %119 = vector.extract_strided_slice %7 {offsets = [0, 12], sizes = [32, 1], strides = [1, 1]} : vector<32x16xf32> to vector<32x1xf32>
    %120 = vector.broadcast %119 : vector<32x1xf32> to vector<32x16xf32>
    %121 = arith.addf %118, %120 : vector<32x16xf32>
    %c12_97 = arith.constant 12 : index
    %c0_98 = arith.constant 0 : index
    %c0_99 = arith.constant 0 : index
    %122 = vector.load %arg8[%c12_97, %c0_98, %c0_99] : memref<16x32x16xf32, #tpu.memory_space<vmem>>, vector<1x32x16xf32>
    %123 = vector.shape_cast %122 : vector<1x32x16xf32> to vector<32x16xf32>
    %124 = vector.shape_cast %121 : vector<32x16xf32> to vector<1x32x16xf32>
    tpu.vector_store %arg8[%c12_97, %c0_98, %c0_99], %124 {strides = array<i32>} : memref<16x32x16xf32, #tpu.memory_space<vmem>>, vector<1x32x16xf32>,
    %c0_100 = arith.constant 0 : index
    %c13 = arith.constant 13 : index
    %c0_101 = arith.constant 0 : index
    %c0_102 = arith.constant 0 : index
    %125 = vector.load %arg2[%c0_100, %c13, %c0_101, %c0_102] : memref<1x16x3x16xf32, #tpu.memory_space<vmem>>, vector<1x1x3x16xf32>
    %126 = vector.shape_cast %125 : vector<1x1x3x16xf32> to vector<3x16xf32>
    %cst_103 = arith.constant dense<0.000000e+00> : vector<32x16xf32>
    %127 = tpu.matmul %0, %126, %cst_103 {dimension_numbers = #tpu.dot_dimension_numbers<[1], [0], [0], [1], [0, 0, 1, 1], [], []>} : vector<32x3xf32>, vector<3x16xf32>, vector<32x16xf32> -> vector<32x16xf32>
    %128 = vector.extract_strided_slice %7 {offsets = [0, 13], sizes = [32, 1], strides = [1, 1]} : vector<32x16xf32> to vector<32x1xf32>
    %129 = vector.broadcast %128 : vector<32x1xf32> to vector<32x16xf32>
    %130 = arith.addf %127, %129 : vector<32x16xf32>
    %c13_104 = arith.constant 13 : index
    %c0_105 = arith.constant 0 : index
    %c0_106 = arith.constant 0 : index
    %131 = vector.load %arg8[%c13_104, %c0_105, %c0_106] : memref<16x32x16xf32, #tpu.memory_space<vmem>>, vector<1x32x16xf32>
    %132 = vector.shape_cast %131 : vector<1x32x16xf32> to vector<32x16xf32>
    %133 = vector.shape_cast %130 : vector<32x16xf32> to vector<1x32x16xf32>
    tpu.vector_store %arg8[%c13_104, %c0_105, %c0_106], %133 {strides = array<i32>} : memref<16x32x16xf32, #tpu.memory_space<vmem>>, vector<1x32x16xf32>,
    %c0_107 = arith.constant 0 : index
    %c14 = arith.constant 14 : index
    %c0_108 = arith.constant 0 : index
    %c0_109 = arith.constant 0 : index
    %134 = vector.load %arg2[%c0_107, %c14, %c0_108, %c0_109] : memref<1x16x3x16xf32, #tpu.memory_space<vmem>>, vector<1x1x3x16xf32>
    %135 = vector.shape_cast %134 : vector<1x1x3x16xf32> to vector<3x16xf32>
    %cst_110 = arith.constant dense<0.000000e+00> : vector<32x16xf32>
    %136 = tpu.matmul %0, %135, %cst_110 {dimension_numbers = #tpu.dot_dimension_numbers<[1], [0], [0], [1], [0, 0, 1, 1], [], []>} : vector<32x3xf32>, vector<3x16xf32>, vector<32x16xf32> -> vector<32x16xf32>
    %137 = vector.extract_strided_slice %7 {offsets = [0, 14], sizes = [32, 1], strides = [1, 1]} : vector<32x16xf32> to vector<32x1xf32>
    %138 = vector.broadcast %137 : vector<32x1xf32> to vector<32x16xf32>
    %139 = arith.addf %136, %138 : vector<32x16xf32>
    %c14_111 = arith.constant 14 : index
    %c0_112 = arith.constant 0 : index
    %c0_113 = arith.constant 0 : index
    %140 = vector.load %arg8[%c14_111, %c0_112, %c0_113] : memref<16x32x16xf32, #tpu.memory_space<vmem>>, vector<1x32x16xf32>
    %141 = vector.shape_cast %140 : vector<1x32x16xf32> to vector<32x16xf32>
    %142 = vector.shape_cast %139 : vector<32x16xf32> to vector<1x32x16xf32>
    tpu.vector_store %arg8[%c14_111, %c0_112, %c0_113], %142 {strides = array<i32>} : memref<16x32x16xf32, #tpu.memory_space<vmem>>, vector<1x32x16xf32>,
    %c0_114 = arith.constant 0 : index
    %c15 = arith.constant 15 : index
    %c0_115 = arith.constant 0 : index
    %c0_116 = arith.constant 0 : index
    %143 = vector.load %arg2[%c0_114, %c15, %c0_115, %c0_116] : memref<1x16x3x16xf32, #tpu.memory_space<vmem>>, vector<1x1x3x16xf32>
    %144 = vector.shape_cast %143 : vector<1x1x3x16xf32> to vector<3x16xf32>
    %cst_117 = arith.constant dense<0.000000e+00> : vector<32x16xf32>
    %145 = tpu.matmul %0, %144, %cst_117 {dimension_numbers = #tpu.dot_dimension_numbers<[1], [0], [0], [1], [0, 0, 1, 1], [], []>} : vector<32x3xf32>, vector<3x16xf32>, vector<32x16xf32> -> vector<32x16xf32>
    %146 = vector.extract_strided_slice %7 {offsets = [0, 15], sizes = [32, 1], strides = [1, 1]} : vector<32x16xf32> to vector<32x1xf32>
    %147 = vector.broadcast %146 : vector<32x1xf32> to vector<32x16xf32>
    %148 = arith.addf %145, %147 : vector<32x16xf32>
    %c15_118 = arith.constant 15 : index
    %c0_119 = arith.constant 0 : index
    %c0_120 = arith.constant 0 : index
    %149 = vector.load %arg8[%c15_118, %c0_119, %c0_120] : memref<16x32x16xf32, #tpu.memory_space<vmem>>, vector<1x32x16xf32>
    %150 = vector.shape_cast %149 : vector<1x32x16xf32> to vector<32x16xf32>
    %151 = vector.shape_cast %148 : vector<32x16xf32> to vector<1x32x16xf32>
    tpu.vector_store %arg8[%c15_118, %c0_119, %c0_120], %151 {strides = array<i32>} : memref<16x32x16xf32, #tpu.memory_space<vmem>>, vector<1x32x16xf32>,
    %c0_121 = arith.constant 0 : index
    %c0_122 = arith.constant 0 : index
    %c0_123 = arith.constant 0 : index
    %152 = vector.load %arg8[%c0_121, %c0_122, %c0_123] : memref<16x32x16xf32, #tpu.memory_space<vmem>>, vector<1x16x16xf32>
    %153 = vector.shape_cast %152 : vector<1x16x16xf32> to vector<16x16xf32>
    %c1_124 = arith.constant 1 : index
    %c0_125 = arith.constant 0 : index
    %c0_126 = arith.constant 0 : index
    %154 = vector.load %arg8[%c1_124, %c0_125, %c0_126] : memref<16x32x16xf32, #tpu.memory_space<vmem>>, vector<1x16x16xf32>
    %155 = vector.shape_cast %154 : vector<1x16x16xf32> to vector<16x16xf32>
    %156 = arith.maximumf %153, %155 : vector<16x16xf32>
    %c2_127 = arith.constant 2 : index
    %c0_128 = arith.constant 0 : index
    %c0_129 = arith.constant 0 : index
    %157 = vector.load %arg8[%c2_127, %c0_128, %c0_129] : memref<16x32x16xf32, #tpu.memory_space<vmem>>, vector<1x16x16xf32>
    %158 = vector.shape_cast %157 : vector<1x16x16xf32> to vector<16x16xf32>
    %159 = arith.maximumf %156, %158 : vector<16x16xf32>
    %c3_130 = arith.constant 3 : index
    %c0_131 = arith.constant 0 : index
    %c0_132 = arith.constant 0 : index
    %160 = vector.load %arg8[%c3_130, %c0_131, %c0_132] : memref<16x32x16xf32, #tpu.memory_space<vmem>>, vector<1x16x16xf32>
    %161 = vector.shape_cast %160 : vector<1x16x16xf32> to vector<16x16xf32>
    %162 = arith.maximumf %159, %161 : vector<16x16xf32>
    %c4_133 = arith.constant 4 : index
    %c0_134 = arith.constant 0 : index
    %c0_135 = arith.constant 0 : index
    %163 = vector.load %arg8[%c4_133, %c0_134, %c0_135] : memref<16x32x16xf32, #tpu.memory_space<vmem>>, vector<1x16x16xf32>
    %164 = vector.shape_cast %163 : vector<1x16x16xf32> to vector<16x16xf32>
    %165 = arith.maximumf %162, %164 : vector<16x16xf32>
    %c5_136 = arith.constant 5 : index
    %c0_137 = arith.constant 0 : index
    %c0_138 = arith.constant 0 : index
    %166 = vector.load %arg8[%c5_136, %c0_137, %c0_138] : memref<16x32x16xf32, #tpu.memory_space<vmem>>, vector<1x16x16xf32>
    %167 = vector.shape_cast %166 : vector<1x16x16xf32> to vector<16x16xf32>
    %168 = arith.maximumf %165, %167 : vector<16x16xf32>
    %c6_139 = arith.constant 6 : index
    %c0_140 = arith.constant 0 : index
    %c0_141 = arith.constant 0 : index
    %169 = vector.load %arg8[%c6_139, %c0_140, %c0_141] : memref<16x32x16xf32, #tpu.memory_space<vmem>>, vector<1x16x16xf32>
    %170 = vector.shape_cast %169 : vector<1x16x16xf32> to vector<16x16xf32>
    %171 = arith.maximumf %168, %170 : vector<16x16xf32>
    %c7_142 = arith.constant 7 : index
    %c0_143 = arith.constant 0 : index
    %c0_144 = arith.constant 0 : index
    %172 = vector.load %arg8[%c7_142, %c0_143, %c0_144] : memref<16x32x16xf32, #tpu.memory_space<vmem>>, vector<1x16x16xf32>
    %173 = vector.shape_cast %172 : vector<1x16x16xf32> to vector<16x16xf32>
    %174 = arith.maximumf %171, %173 : vector<16x16xf32>
    %c8_145 = arith.constant 8 : index
    %c0_146 = arith.constant 0 : index
    %c0_147 = arith.constant 0 : index
    %175 = vector.load %arg8[%c8_145, %c0_146, %c0_147] : memref<16x32x16xf32, #tpu.memory_space<vmem>>, vector<1x16x16xf32>
    %176 = vector.shape_cast %175 : vector<1x16x16xf32> to vector<16x16xf32>
    %177 = arith.maximumf %174, %176 : vector<16x16xf32>
    %c9_148 = arith.constant 9 : index
    %c0_149 = arith.constant 0 : index
    %c0_150 = arith.constant 0 : index
    %178 = vector.load %arg8[%c9_148, %c0_149, %c0_150] : memref<16x32x16xf32, #tpu.memory_space<vmem>>, vector<1x16x16xf32>
    %179 = vector.shape_cast %178 : vector<1x16x16xf32> to vector<16x16xf32>
    %180 = arith.maximumf %177, %179 : vector<16x16xf32>
    %c10_151 = arith.constant 10 : index
    %c0_152 = arith.constant 0 : index
    %c0_153 = arith.constant 0 : index
    %181 = vector.load %arg8[%c10_151, %c0_152, %c0_153] : memref<16x32x16xf32, #tpu.memory_space<vmem>>, vector<1x16x16xf32>
    %182 = vector.shape_cast %181 : vector<1x16x16xf32> to vector<16x16xf32>
    %183 = arith.maximumf %180, %182 : vector<16x16xf32>
    %c11_154 = arith.constant 11 : index
    %c0_155 = arith.constant 0 : index
    %c0_156 = arith.constant 0 : index
    %184 = vector.load %arg8[%c11_154, %c0_155, %c0_156] : memref<16x32x16xf32, #tpu.memory_space<vmem>>, vector<1x16x16xf32>
    %185 = vector.shape_cast %184 : vector<1x16x16xf32> to vector<16x16xf32>
    %186 = arith.maximumf %183, %185 : vector<16x16xf32>
    %c12_157 = arith.constant 12 : index
    %c0_158 = arith.constant 0 : index
    %c0_159 = arith.constant 0 : index
    %187 = vector.load %arg8[%c12_157, %c0_158, %c0_159] : memref<16x32x16xf32, #tpu.memory_space<vmem>>, vector<1x16x16xf32>
    %188 = vector.shape_cast %187 : vector<1x16x16xf32> to vector<16x16xf32>
    %189 = arith.maximumf %186, %188 : vector<16x16xf32>
    %c13_160 = arith.constant 13 : index
    %c0_161 = arith.constant 0 : index
    %c0_162 = arith.constant 0 : index
    %190 = vector.load %arg8[%c13_160, %c0_161, %c0_162] : memref<16x32x16xf32, #tpu.memory_space<vmem>>, vector<1x16x16xf32>
    %191 = vector.shape_cast %190 : vector<1x16x16xf32> to vector<16x16xf32>
    %192 = arith.maximumf %189, %191 : vector<16x16xf32>
    %c14_163 = arith.constant 14 : index
    %c0_164 = arith.constant 0 : index
    %c0_165 = arith.constant 0 : index
    %193 = vector.load %arg8[%c14_163, %c0_164, %c0_165] : memref<16x32x16xf32, #tpu.memory_space<vmem>>, vector<1x16x16xf32>
    %194 = vector.shape_cast %193 : vector<1x16x16xf32> to vector<16x16xf32>
    %195 = arith.maximumf %192, %194 : vector<16x16xf32>
    %c15_166 = arith.constant 15 : index
    %c0_167 = arith.constant 0 : index
    %c0_168 = arith.constant 0 : index
    %196 = vector.load %arg8[%c15_166, %c0_167, %c0_168] : memref<16x32x16xf32, #tpu.memory_space<vmem>>, vector<1x16x16xf32>
    %197 = vector.shape_cast %196 : vector<1x16x16xf32> to vector<16x16xf32>
    %198 = arith.maximumf %195, %197 : vector<16x16xf32>
    %cst_169 = arith.constant 0.000000e+00 : f32
    %199 = vector.broadcast %cst_169 : f32 to vector<16x16xf32>
    %cst_170 = arith.constant 0.000000e+00 : f32
    %200 = vector.broadcast %cst_170 : f32 to vector<16x16xf32>
    %c0_171 = arith.constant 0 : index
    %c0_172 = arith.constant 0 : index
    %c0_173 = arith.constant 0 : index
    %201 = vector.load %arg8[%c0_171, %c0_172, %c0_173] : memref<16x32x16xf32, #tpu.memory_space<vmem>>, vector<1x16x16xf32>
    %202 = vector.shape_cast %201 : vector<1x16x16xf32> to vector<16x16xf32>
    %203 = arith.subf %202, %198 : vector<16x16xf32>
    %cst_174 = arith.constant 1.000000e+00 : f32
    %204 = vector.broadcast %cst_174 : f32 to vector<16x16xf32>
    %205 = arith.mulf %203, %204 : vector<16x16xf32>
    %206 = math.exp %205 : vector<16x16xf32>
    %207 = arith.addf %199, %206 : vector<16x16xf32>
    %c0_175 = arith.constant 0 : index
    %c16 = arith.constant 16 : index
    %c0_176 = arith.constant 0 : index
    %208 = vector.load %arg8[%c0_175, %c16, %c0_176] : memref<16x32x16xf32, #tpu.memory_space<vmem>>, vector<1x16x16xf32>
    %209 = vector.shape_cast %208 : vector<1x16x16xf32> to vector<16x16xf32>
    %210 = arith.mulf %206, %209 : vector<16x16xf32>
    %211 = arith.addf %200, %210 : vector<16x16xf32>
    %c1_177 = arith.constant 1 : index
    %c0_178 = arith.constant 0 : index
    %c0_179 = arith.constant 0 : index
    %212 = vector.load %arg8[%c1_177, %c0_178, %c0_179] : memref<16x32x16xf32, #tpu.memory_space<vmem>>, vector<1x16x16xf32>
    %213 = vector.shape_cast %212 : vector<1x16x16xf32> to vector<16x16xf32>
    %214 = arith.subf %213, %198 : vector<16x16xf32>
    %cst_180 = arith.constant 1.000000e+00 : f32
    %215 = vector.broadcast %cst_180 : f32 to vector<16x16xf32>
    %216 = arith.mulf %214, %215 : vector<16x16xf32>
    %217 = math.exp %216 : vector<16x16xf32>
    %218 = arith.addf %207, %217 : vector<16x16xf32>
    %c1_181 = arith.constant 1 : index
    %c16_182 = arith.constant 16 : index
    %c0_183 = arith.constant 0 : index
    %219 = vector.load %arg8[%c1_181, %c16_182, %c0_183] : memref<16x32x16xf32, #tpu.memory_space<vmem>>, vector<1x16x16xf32>
    %220 = vector.shape_cast %219 : vector<1x16x16xf32> to vector<16x16xf32>
    %221 = arith.mulf %217, %220 : vector<16x16xf32>
    %222 = arith.addf %211, %221 : vector<16x16xf32>
    %c2_184 = arith.constant 2 : index
    %c0_185 = arith.constant 0 : index
    %c0_186 = arith.constant 0 : index
    %223 = vector.load %arg8[%c2_184, %c0_185, %c0_186] : memref<16x32x16xf32, #tpu.memory_space<vmem>>, vector<1x16x16xf32>
    %224 = vector.shape_cast %223 : vector<1x16x16xf32> to vector<16x16xf32>
    %225 = arith.subf %224, %198 : vector<16x16xf32>
    %cst_187 = arith.constant 1.000000e+00 : f32
    %226 = vector.broadcast %cst_187 : f32 to vector<16x16xf32>
    %227 = arith.mulf %225, %226 : vector<16x16xf32>
    %228 = math.exp %227 : vector<16x16xf32>
    %229 = arith.addf %218, %228 : vector<16x16xf32>
    %c2_188 = arith.constant 2 : index
    %c16_189 = arith.constant 16 : index
    %c0_190 = arith.constant 0 : index
    %230 = vector.load %arg8[%c2_188, %c16_189, %c0_190] : memref<16x32x16xf32, #tpu.memory_space<vmem>>, vector<1x16x16xf32>
    %231 = vector.shape_cast %230 : vector<1x16x16xf32> to vector<16x16xf32>
    %232 = arith.mulf %228, %231 : vector<16x16xf32>
    %233 = arith.addf %222, %232 : vector<16x16xf32>
    %c3_191 = arith.constant 3 : index
    %c0_192 = arith.constant 0 : index
    %c0_193 = arith.constant 0 : index
    %234 = vector.load %arg8[%c3_191, %c0_192, %c0_193] : memref<16x32x16xf32, #tpu.memory_space<vmem>>, vector<1x16x16xf32>
    %235 = vector.shape_cast %234 : vector<1x16x16xf32> to vector<16x16xf32>
    %236 = arith.subf %235, %198 : vector<16x16xf32>
    %cst_194 = arith.constant 1.000000e+00 : f32
    %237 = vector.broadcast %cst_194 : f32 to vector<16x16xf32>
    %238 = arith.mulf %236, %237 : vector<16x16xf32>
    %239 = math.exp %238 : vector<16x16xf32>
    %240 = arith.addf %229, %239 : vector<16x16xf32>
    %c3_195 = arith.constant 3 : index
    %c16_196 = arith.constant 16 : index
    %c0_197 = arith.constant 0 : index
    %241 = vector.load %arg8[%c3_195, %c16_196, %c0_197] : memref<16x32x16xf32, #tpu.memory_space<vmem>>, vector<1x16x16xf32>
    %242 = vector.shape_cast %241 : vector<1x16x16xf32> to vector<16x16xf32>
    %243 = arith.mulf %239, %242 : vector<16x16xf32>
    %244 = arith.addf %233, %243 : vector<16x16xf32>
    %c4_198 = arith.constant 4 : index
    %c0_199 = arith.constant 0 : index
    %c0_200 = arith.constant 0 : index
    %245 = vector.load %arg8[%c4_198, %c0_199, %c0_200] : memref<16x32x16xf32, #tpu.memory_space<vmem>>, vector<1x16x16xf32>
    %246 = vector.shape_cast %245 : vector<1x16x16xf32> to vector<16x16xf32>
    %247 = arith.subf %246, %198 : vector<16x16xf32>
    %cst_201 = arith.constant 1.000000e+00 : f32
    %248 = vector.broadcast %cst_201 : f32 to vector<16x16xf32>
    %249 = arith.mulf %247, %248 : vector<16x16xf32>
    %250 = math.exp %249 : vector<16x16xf32>
    %251 = arith.addf %240, %250 : vector<16x16xf32>
    %c4_202 = arith.constant 4 : index
    %c16_203 = arith.constant 16 : index
    %c0_204 = arith.constant 0 : index
    %252 = vector.load %arg8[%c4_202, %c16_203, %c0_204] : memref<16x32x16xf32, #tpu.memory_space<vmem>>, vector<1x16x16xf32>
    %253 = vector.shape_cast %252 : vector<1x16x16xf32> to vector<16x16xf32>
    %254 = arith.mulf %250, %253 : vector<16x16xf32>
    %255 = arith.addf %244, %254 : vector<16x16xf32>
    %c5_205 = arith.constant 5 : index
    %c0_206 = arith.constant 0 : index
    %c0_207 = arith.constant 0 : index
    %256 = vector.load %arg8[%c5_205, %c0_206, %c0_207] : memref<16x32x16xf32, #tpu.memory_space<vmem>>, vector<1x16x16xf32>
    %257 = vector.shape_cast %256 : vector<1x16x16xf32> to vector<16x16xf32>
    %258 = arith.subf %257, %198 : vector<16x16xf32>
    %cst_208 = arith.constant 1.000000e+00 : f32
    %259 = vector.broadcast %cst_208 : f32 to vector<16x16xf32>
    %260 = arith.mulf %258, %259 : vector<16x16xf32>
    %261 = math.exp %260 : vector<16x16xf32>
    %262 = arith.addf %251, %261 : vector<16x16xf32>
    %c5_209 = arith.constant 5 : index
    %c16_210 = arith.constant 16 : index
    %c0_211 = arith.constant 0 : index
    %263 = vector.load %arg8[%c5_209, %c16_210, %c0_211] : memref<16x32x16xf32, #tpu.memory_space<vmem>>, vector<1x16x16xf32>
    %264 = vector.shape_cast %263 : vector<1x16x16xf32> to vector<16x16xf32>
    %265 = arith.mulf %261, %264 : vector<16x16xf32>
    %266 = arith.addf %255, %265 : vector<16x16xf32>
    %c6_212 = arith.constant 6 : index
    %c0_213 = arith.constant 0 : index
    %c0_214 = arith.constant 0 : index
    %267 = vector.load %arg8[%c6_212, %c0_213, %c0_214] : memref<16x32x16xf32, #tpu.memory_space<vmem>>, vector<1x16x16xf32>
    %268 = vector.shape_cast %267 : vector<1x16x16xf32> to vector<16x16xf32>
    %269 = arith.subf %268, %198 : vector<16x16xf32>
    %cst_215 = arith.constant 1.000000e+00 : f32
    %270 = vector.broadcast %cst_215 : f32 to vector<16x16xf32>
    %271 = arith.mulf %269, %270 : vector<16x16xf32>
    %272 = math.exp %271 : vector<16x16xf32>
    %273 = arith.addf %262, %272 : vector<16x16xf32>
    %c6_216 = arith.constant 6 : index
    %c16_217 = arith.constant 16 : index
    %c0_218 = arith.constant 0 : index
    %274 = vector.load %arg8[%c6_216, %c16_217, %c0_218] : memref<16x32x16xf32, #tpu.memory_space<vmem>>, vector<1x16x16xf32>
    %275 = vector.shape_cast %274 : vector<1x16x16xf32> to vector<16x16xf32>
    %276 = arith.mulf %272, %275 : vector<16x16xf32>
    %277 = arith.addf %266, %276 : vector<16x16xf32>
    %c7_219 = arith.constant 7 : index
    %c0_220 = arith.constant 0 : index
    %c0_221 = arith.constant 0 : index
    %278 = vector.load %arg8[%c7_219, %c0_220, %c0_221] : memref<16x32x16xf32, #tpu.memory_space<vmem>>, vector<1x16x16xf32>
    %279 = vector.shape_cast %278 : vector<1x16x16xf32> to vector<16x16xf32>
    %280 = arith.subf %279, %198 : vector<16x16xf32>
    %cst_222 = arith.constant 1.000000e+00 : f32
    %281 = vector.broadcast %cst_222 : f32 to vector<16x16xf32>
    %282 = arith.mulf %280, %281 : vector<16x16xf32>
    %283 = math.exp %282 : vector<16x16xf32>
    %284 = arith.addf %273, %283 : vector<16x16xf32>
    %c7_223 = arith.constant 7 : index
    %c16_224 = arith.constant 16 : index
    %c0_225 = arith.constant 0 : index
    %285 = vector.load %arg8[%c7_223, %c16_224, %c0_225] : memref<16x32x16xf32, #tpu.memory_space<vmem>>, vector<1x16x16xf32>
    %286 = vector.shape_cast %285 : vector<1x16x16xf32> to vector<16x16xf32>
    %287 = arith.mulf %283, %286 : vector<16x16xf32>
    %288 = arith.addf %277, %287 : vector<16x16xf32>
    %c8_226 = arith.constant 8 : index
    %c0_227 = arith.constant 0 : index
    %c0_228 = arith.constant 0 : index
    %289 = vector.load %arg8[%c8_226, %c0_227, %c0_228] : memref<16x32x16xf32, #tpu.memory_space<vmem>>, vector<1x16x16xf32>
    %290 = vector.shape_cast %289 : vector<1x16x16xf32> to vector<16x16xf32>
    %291 = arith.subf %290, %198 : vector<16x16xf32>
    %cst_229 = arith.constant 1.000000e+00 : f32
    %292 = vector.broadcast %cst_229 : f32 to vector<16x16xf32>
    %293 = arith.mulf %291, %292 : vector<16x16xf32>
    %294 = math.exp %293 : vector<16x16xf32>
    %295 = arith.addf %284, %294 : vector<16x16xf32>
    %c8_230 = arith.constant 8 : index
    %c16_231 = arith.constant 16 : index
    %c0_232 = arith.constant 0 : index
    %296 = vector.load %arg8[%c8_230, %c16_231, %c0_232] : memref<16x32x16xf32, #tpu.memory_space<vmem>>, vector<1x16x16xf32>
    %297 = vector.shape_cast %296 : vector<1x16x16xf32> to vector<16x16xf32>
    %298 = arith.mulf %294, %297 : vector<16x16xf32>
    %299 = arith.addf %288, %298 : vector<16x16xf32>
    %c9_233 = arith.constant 9 : index
    %c0_234 = arith.constant 0 : index
    %c0_235 = arith.constant 0 : index
    %300 = vector.load %arg8[%c9_233, %c0_234, %c0_235] : memref<16x32x16xf32, #tpu.memory_space<vmem>>, vector<1x16x16xf32>
    %301 = vector.shape_cast %300 : vector<1x16x16xf32> to vector<16x16xf32>
    %302 = arith.subf %301, %198 : vector<16x16xf32>
    %cst_236 = arith.constant 1.000000e+00 : f32
    %303 = vector.broadcast %cst_236 : f32 to vector<16x16xf32>
    %304 = arith.mulf %302, %303 : vector<16x16xf32>
    %305 = math.exp %304 : vector<16x16xf32>
    %306 = arith.addf %295, %305 : vector<16x16xf32>
    %c9_237 = arith.constant 9 : index
    %c16_238 = arith.constant 16 : index
    %c0_239 = arith.constant 0 : index
    %307 = vector.load %arg8[%c9_237, %c16_238, %c0_239] : memref<16x32x16xf32, #tpu.memory_space<vmem>>, vector<1x16x16xf32>
    %308 = vector.shape_cast %307 : vector<1x16x16xf32> to vector<16x16xf32>
    %309 = arith.mulf %305, %308 : vector<16x16xf32>
    %310 = arith.addf %299, %309 : vector<16x16xf32>
    %c10_240 = arith.constant 10 : index
    %c0_241 = arith.constant 0 : index
    %c0_242 = arith.constant 0 : index
    %311 = vector.load %arg8[%c10_240, %c0_241, %c0_242] : memref<16x32x16xf32, #tpu.memory_space<vmem>>, vector<1x16x16xf32>
    %312 = vector.shape_cast %311 : vector<1x16x16xf32> to vector<16x16xf32>
    %313 = arith.subf %312, %198 : vector<16x16xf32>
    %cst_243 = arith.constant 1.000000e+00 : f32
    %314 = vector.broadcast %cst_243 : f32 to vector<16x16xf32>
    %315 = arith.mulf %313, %314 : vector<16x16xf32>
    %316 = math.exp %315 : vector<16x16xf32>
    %317 = arith.addf %306, %316 : vector<16x16xf32>
    %c10_244 = arith.constant 10 : index
    %c16_245 = arith.constant 16 : index
    %c0_246 = arith.constant 0 : index
    %318 = vector.load %arg8[%c10_244, %c16_245, %c0_246] : memref<16x32x16xf32, #tpu.memory_space<vmem>>, vector<1x16x16xf32>
    %319 = vector.shape_cast %318 : vector<1x16x16xf32> to vector<16x16xf32>
    %320 = arith.mulf %316, %319 : vector<16x16xf32>
    %321 = arith.addf %310, %320 : vector<16x16xf32>
    %c11_247 = arith.constant 11 : index
    %c0_248 = arith.constant 0 : index
    %c0_249 = arith.constant 0 : index
    %322 = vector.load %arg8[%c11_247, %c0_248, %c0_249] : memref<16x32x16xf32, #tpu.memory_space<vmem>>, vector<1x16x16xf32>
    %323 = vector.shape_cast %322 : vector<1x16x16xf32> to vector<16x16xf32>
    %324 = arith.subf %323, %198 : vector<16x16xf32>
    %cst_250 = arith.constant 1.000000e+00 : f32
    %325 = vector.broadcast %cst_250 : f32 to vector<16x16xf32>
    %326 = arith.mulf %324, %325 : vector<16x16xf32>
    %327 = math.exp %326 : vector<16x16xf32>
    %328 = arith.addf %317, %327 : vector<16x16xf32>
    %c11_251 = arith.constant 11 : index
    %c16_252 = arith.constant 16 : index
    %c0_253 = arith.constant 0 : index
    %329 = vector.load %arg8[%c11_251, %c16_252, %c0_253] : memref<16x32x16xf32, #tpu.memory_space<vmem>>, vector<1x16x16xf32>
    %330 = vector.shape_cast %329 : vector<1x16x16xf32> to vector<16x16xf32>
    %331 = arith.mulf %327, %330 : vector<16x16xf32>
    %332 = arith.addf %321, %331 : vector<16x16xf32>
    %c12_254 = arith.constant 12 : index
    %c0_255 = arith.constant 0 : index
    %c0_256 = arith.constant 0 : index
    %333 = vector.load %arg8[%c12_254, %c0_255, %c0_256] : memref<16x32x16xf32, #tpu.memory_space<vmem>>, vector<1x16x16xf32>
    %334 = vector.shape_cast %333 : vector<1x16x16xf32> to vector<16x16xf32>
    %335 = arith.subf %334, %198 : vector<16x16xf32>
    %cst_257 = arith.constant 1.000000e+00 : f32
    %336 = vector.broadcast %cst_257 : f32 to vector<16x16xf32>
    %337 = arith.mulf %335, %336 : vector<16x16xf32>
    %338 = math.exp %337 : vector<16x16xf32>
    %339 = arith.addf %328, %338 : vector<16x16xf32>
    %c12_258 = arith.constant 12 : index
    %c16_259 = arith.constant 16 : index
    %c0_260 = arith.constant 0 : index
    %340 = vector.load %arg8[%c12_258, %c16_259, %c0_260] : memref<16x32x16xf32, #tpu.memory_space<vmem>>, vector<1x16x16xf32>
    %341 = vector.shape_cast %340 : vector<1x16x16xf32> to vector<16x16xf32>
    %342 = arith.mulf %338, %341 : vector<16x16xf32>
    %343 = arith.addf %332, %342 : vector<16x16xf32>
    %c13_261 = arith.constant 13 : index
    %c0_262 = arith.constant 0 : index
    %c0_263 = arith.constant 0 : index
    %344 = vector.load %arg8[%c13_261, %c0_262, %c0_263] : memref<16x32x16xf32, #tpu.memory_space<vmem>>, vector<1x16x16xf32>
    %345 = vector.shape_cast %344 : vector<1x16x16xf32> to vector<16x16xf32>
    %346 = arith.subf %345, %198 : vector<16x16xf32>
    %cst_264 = arith.constant 1.000000e+00 : f32
    %347 = vector.broadcast %cst_264 : f32 to vector<16x16xf32>
    %348 = arith.mulf %346, %347 : vector<16x16xf32>
    %349 = math.exp %348 : vector<16x16xf32>
    %350 = arith.addf %339, %349 : vector<16x16xf32>
    %c13_265 = arith.constant 13 : index
    %c16_266 = arith.constant 16 : index
    %c0_267 = arith.constant 0 : index
    %351 = vector.load %arg8[%c13_265, %c16_266, %c0_267] : memref<16x32x16xf32, #tpu.memory_space<vmem>>, vector<1x16x16xf32>
    %352 = vector.shape_cast %351 : vector<1x16x16xf32> to vector<16x16xf32>
    %353 = arith.mulf %349, %352 : vector<16x16xf32>
    %354 = arith.addf %343, %353 : vector<16x16xf32>
    %c14_268 = arith.constant 14 : index
    %c0_269 = arith.constant 0 : index
    %c0_270 = arith.constant 0 : index
    %355 = vector.load %arg8[%c14_268, %c0_269, %c0_270] : memref<16x32x16xf32, #tpu.memory_space<vmem>>, vector<1x16x16xf32>
    %356 = vector.shape_cast %355 : vector<1x16x16xf32> to vector<16x16xf32>
    %357 = arith.subf %356, %198 : vector<16x16xf32>
    %cst_271 = arith.constant 1.000000e+00 : f32
    %358 = vector.broadcast %cst_271 : f32 to vector<16x16xf32>
    %359 = arith.mulf %357, %358 : vector<16x16xf32>
    %360 = math.exp %359 : vector<16x16xf32>
    %361 = arith.addf %350, %360 : vector<16x16xf32>
    %c14_272 = arith.constant 14 : index
    %c16_273 = arith.constant 16 : index
    %c0_274 = arith.constant 0 : index
    %362 = vector.load %arg8[%c14_272, %c16_273, %c0_274] : memref<16x32x16xf32, #tpu.memory_space<vmem>>, vector<1x16x16xf32>
    %363 = vector.shape_cast %362 : vector<1x16x16xf32> to vector<16x16xf32>
    %364 = arith.mulf %360, %363 : vector<16x16xf32>
    %365 = arith.addf %354, %364 : vector<16x16xf32>
    %c15_275 = arith.constant 15 : index
    %c0_276 = arith.constant 0 : index
    %c0_277 = arith.constant 0 : index
    %366 = vector.load %arg8[%c15_275, %c0_276, %c0_277] : memref<16x32x16xf32, #tpu.memory_space<vmem>>, vector<1x16x16xf32>
    %367 = vector.shape_cast %366 : vector<1x16x16xf32> to vector<16x16xf32>
    %368 = arith.subf %367, %198 : vector<16x16xf32>
    %cst_278 = arith.constant 1.000000e+00 : f32
    %369 = vector.broadcast %cst_278 : f32 to vector<16x16xf32>
    %370 = arith.mulf %368, %369 : vector<16x16xf32>
    %371 = math.exp %370 : vector<16x16xf32>
    %372 = arith.addf %361, %371 : vector<16x16xf32>
    %c15_279 = arith.constant 15 : index
    %c16_280 = arith.constant 16 : index
    %c0_281 = arith.constant 0 : index
    %373 = vector.load %arg8[%c15_279, %c16_280, %c0_281] : memref<16x32x16xf32, #tpu.memory_space<vmem>>, vector<1x16x16xf32>
    %374 = vector.shape_cast %373 : vector<1x16x16xf32> to vector<16x16xf32>
    %375 = arith.mulf %371, %374 : vector<16x16xf32>
    %376 = arith.addf %365, %375 : vector<16x16xf32>
    %377 = tpu.reciprocal %372 {approx = true} : vector<16x16xf32> -> vector<16x16xf32>
    %378 = arith.mulf %376, %377 : vector<16x16xf32>
    %c0_282 = arith.constant 0 : index
    %c0_283 = arith.constant 0 : index
    %c0_284 = arith.constant 0 : index
    %379 = vector.load %arg7[%c0_282, %c0_283, %c0_284] : memref<1x16x16xf32, #tpu.memory_space<vmem>>, vector<1x16x16xf32>
    %380 = vector.shape_cast %379 : vector<1x16x16xf32> to vector<16x16xf32>
    %381 = vector.shape_cast %378 : vector<16x16xf32> to vector<1x16x16xf32>
    tpu.vector_store %arg7[%c0_282, %c0_283, %c0_284], %381 {strides = array<i32>} : memref<1x16x16xf32, #tpu.memory_space<vmem>>, vector<1x16x16xf32>,
    return
  }
  func.func @transform_0(%arg0: i32, %arg1: i32) -> (i32, i32, i32, i32) {
    %c0_i32 = arith.constant 0 : i32
    %c0_i32_0 = arith.constant 0 : i32
    %c0_i32_1 = arith.constant 0 : i32
    return %arg0, %c0_i32, %c0_i32_0, %arg1 : i32, i32, i32, i32
  }
  func.func @transform_1(%arg0: i32, %arg1: i32) -> (i32, i32, i32) {
    %c0_i32 = arith.constant 0 : i32
    %c0_i32_0 = arith.constant 0 : i32
    %c0_i32_1 = arith.constant 0 : i32
    return %arg0, %c0_i32, %c0_i32_0 : i32, i32, i32
  }
  func.func @transform_2(%arg0: i32, %arg1: i32) -> (i32, i32) {
    %c0_i32 = arith.constant 0 : i32
    %c0_i32_0 = arith.constant 0 : i32
    %c0_i32_1 = arith.constant 0 : i32
    return %c0_i32, %c0_i32_0 : i32, i32
  }
  func.func @transform_3(%arg0: i32, %arg1: i32) -> (i32, i32) {
    %c0_i32 = arith.constant 0 : i32
    %c0_i32_0 = arith.constant 0 : i32
    %c0_i32_1 = arith.constant 0 : i32
    return %c0_i32, %c0_i32_0 : i32, i32
  }
  func.func @transform_4(%arg0: i32, %arg1: i32) -> (i32, i32) {
    %c0_i32 = arith.constant 0 : i32
    %c0_i32_0 = arith.constant 0 : i32
    %c0_i32_1 = arith.constant 0 : i32
    return %c0_i32, %c0_i32_0 : i32, i32
  }
  func.func @transform_5(%arg0: i32, %arg1: i32) -> (i32, i32, i32) {
    %c0_i32 = arith.constant 0 : i32
    %c0_i32_0 = arith.constant 0 : i32
    return %arg0, %c0_i32, %arg1 : i32, i32, i32
  }
}

module attributes {stable_mosaic.version = 11 : i64} {
  func.func @_fused_grouped_attn_kernel(%arg0: i32, %arg1: i32, %arg2: memref<1x8x3x16xf32, #tpu.memory_space<vmem>>, %arg3: memref<1x8x8x16xf32, #tpu.memory_space<vmem>>, %arg4: memref<32x3xf32, #tpu.memory_space<vmem>>, %arg5: memref<32x8xf32, #tpu.memory_space<vmem>>, %arg6: memref<32x1xf32, #tpu.memory_space<vmem>>, %arg7: memref<1x16x16xf32, #tpu.memory_space<vmem>>, %arg8: memref<8x32x16xf32, #tpu.memory_space<vmem>>) attributes {dimension_semantics = [#tpu.dimension_semantics<parallel>, #tpu.dimension_semantics<parallel>], iteration_bounds = array<i64: 2, 1>, scalar_prefetch = 0 : i64, scratch_operands = 1 : i64, tpu.core_type = #tpu.core_type<tc>, window_params = [{transform_indices = @transform_0, window_bounds = array<i64: 1, 8, 3, 16>}, {transform_indices = @transform_1, window_bounds = array<i64: 1, 8, 8, 16>}, {pipeline_mode = #tpu.pipeline_mode<synchronous>, transform_indices = @transform_2, window_bounds = array<i64: 32, 3>}, {pipeline_mode = #tpu.pipeline_mode<synchronous>, transform_indices = @transform_3, window_bounds = array<i64: 32, 8>}, {pipeline_mode = #tpu.pipeline_mode<synchronous>, transform_indices = @transform_4, window_bounds = array<i64: 32, 1>}, {transform_indices = @transform_5, window_bounds = array<i64: 1, 16, 16>}]} {
    %c0 = arith.constant 0 : index
    %c0_0 = arith.constant 0 : index
    %0 = vector.load %arg4[%c0, %c0_0] : memref<32x3xf32, #tpu.memory_space<vmem>>, vector<32x3xf32>
    %c0_1 = arith.constant 0 : index
    %c0_2 = arith.constant 0 : index
    %1 = vector.load %arg5[%c0_1, %c0_2] : memref<32x8xf32, #tpu.memory_space<vmem>>, vector<32x8xf32>
    %c0_3 = arith.constant 0 : index
    %c0_4 = arith.constant 0 : index
    %2 = vector.load %arg6[%c0_3, %c0_4] : memref<32x1xf32, #tpu.memory_space<vmem>>, vector<32x1xf32>
    %c0_5 = arith.constant 0 : index
    %c0_6 = arith.constant 0 : index
    %c0_7 = arith.constant 0 : index
    %c0_8 = arith.constant 0 : index
    %3 = vector.load %arg2[%c0_5, %c0_6, %c0_7, %c0_8] : memref<1x8x3x16xf32, #tpu.memory_space<vmem>>, vector<1x1x3x16xf32>
    %4 = vector.shape_cast %3 : vector<1x1x3x16xf32> to vector<3x16xf32>
    %cst = arith.constant dense<0.000000e+00> : vector<32x16xf32>
    %5 = tpu.matmul %0, %4, %cst {dimension_numbers = #tpu.dot_dimension_numbers<[1], [0], [0], [1], [0, 0, 1, 1], [], []>} : vector<32x3xf32>, vector<3x16xf32>, vector<32x16xf32> -> vector<32x16xf32>
    %c0_9 = arith.constant 0 : index
    %c0_10 = arith.constant 0 : index
    %c0_11 = arith.constant 0 : index
    %c0_12 = arith.constant 0 : index
    %6 = vector.load %arg3[%c0_9, %c0_10, %c0_11, %c0_12] : memref<1x8x8x16xf32, #tpu.memory_space<vmem>>, vector<1x1x8x16xf32>
    %7 = vector.shape_cast %6 : vector<1x1x8x16xf32> to vector<8x16xf32>
    %cst_13 = arith.constant dense<0.000000e+00> : vector<32x16xf32>
    %8 = tpu.matmul %1, %7, %cst_13 {dimension_numbers = #tpu.dot_dimension_numbers<[1], [0], [0], [1], [0, 0, 1, 1], [], []>} : vector<32x8xf32>, vector<8x16xf32>, vector<32x16xf32> -> vector<32x16xf32>
    %9 = arith.addf %5, %8 : vector<32x16xf32>
    %10 = vector.broadcast %2 : vector<32x1xf32> to vector<32x16xf32>
    %11 = arith.addf %9, %10 : vector<32x16xf32>
    %c0_14 = arith.constant 0 : index
    %c0_15 = arith.constant 0 : index
    %c0_16 = arith.constant 0 : index
    %12 = vector.load %arg8[%c0_14, %c0_15, %c0_16] : memref<8x32x16xf32, #tpu.memory_space<vmem>>, vector<1x32x16xf32>
    %13 = vector.shape_cast %12 : vector<1x32x16xf32> to vector<32x16xf32>
    %14 = vector.shape_cast %11 : vector<32x16xf32> to vector<1x32x16xf32>
    tpu.vector_store %arg8[%c0_14, %c0_15, %c0_16], %14 {strides = array<i32>} : memref<8x32x16xf32, #tpu.memory_space<vmem>>, vector<1x32x16xf32>,
    %c0_17 = arith.constant 0 : index
    %c1 = arith.constant 1 : index
    %c0_18 = arith.constant 0 : index
    %c0_19 = arith.constant 0 : index
    %15 = vector.load %arg2[%c0_17, %c1, %c0_18, %c0_19] : memref<1x8x3x16xf32, #tpu.memory_space<vmem>>, vector<1x1x3x16xf32>
    %16 = vector.shape_cast %15 : vector<1x1x3x16xf32> to vector<3x16xf32>
    %cst_20 = arith.constant dense<0.000000e+00> : vector<32x16xf32>
    %17 = tpu.matmul %0, %16, %cst_20 {dimension_numbers = #tpu.dot_dimension_numbers<[1], [0], [0], [1], [0, 0, 1, 1], [], []>} : vector<32x3xf32>, vector<3x16xf32>, vector<32x16xf32> -> vector<32x16xf32>
    %c0_21 = arith.constant 0 : index
    %c1_22 = arith.constant 1 : index
    %c0_23 = arith.constant 0 : index
    %c0_24 = arith.constant 0 : index
    %18 = vector.load %arg3[%c0_21, %c1_22, %c0_23, %c0_24] : memref<1x8x8x16xf32, #tpu.memory_space<vmem>>, vector<1x1x8x16xf32>
    %19 = vector.shape_cast %18 : vector<1x1x8x16xf32> to vector<8x16xf32>
    %cst_25 = arith.constant dense<0.000000e+00> : vector<32x16xf32>
    %20 = tpu.matmul %1, %19, %cst_25 {dimension_numbers = #tpu.dot_dimension_numbers<[1], [0], [0], [1], [0, 0, 1, 1], [], []>} : vector<32x8xf32>, vector<8x16xf32>, vector<32x16xf32> -> vector<32x16xf32>
    %21 = arith.addf %17, %20 : vector<32x16xf32>
    %22 = vector.broadcast %2 : vector<32x1xf32> to vector<32x16xf32>
    %23 = arith.addf %21, %22 : vector<32x16xf32>
    %c1_26 = arith.constant 1 : index
    %c0_27 = arith.constant 0 : index
    %c0_28 = arith.constant 0 : index
    %24 = vector.load %arg8[%c1_26, %c0_27, %c0_28] : memref<8x32x16xf32, #tpu.memory_space<vmem>>, vector<1x32x16xf32>
    %25 = vector.shape_cast %24 : vector<1x32x16xf32> to vector<32x16xf32>
    %26 = vector.shape_cast %23 : vector<32x16xf32> to vector<1x32x16xf32>
    tpu.vector_store %arg8[%c1_26, %c0_27, %c0_28], %26 {strides = array<i32>} : memref<8x32x16xf32, #tpu.memory_space<vmem>>, vector<1x32x16xf32>,
    %c0_29 = arith.constant 0 : index
    %c2 = arith.constant 2 : index
    %c0_30 = arith.constant 0 : index
    %c0_31 = arith.constant 0 : index
    %27 = vector.load %arg2[%c0_29, %c2, %c0_30, %c0_31] : memref<1x8x3x16xf32, #tpu.memory_space<vmem>>, vector<1x1x3x16xf32>
    %28 = vector.shape_cast %27 : vector<1x1x3x16xf32> to vector<3x16xf32>
    %cst_32 = arith.constant dense<0.000000e+00> : vector<32x16xf32>
    %29 = tpu.matmul %0, %28, %cst_32 {dimension_numbers = #tpu.dot_dimension_numbers<[1], [0], [0], [1], [0, 0, 1, 1], [], []>} : vector<32x3xf32>, vector<3x16xf32>, vector<32x16xf32> -> vector<32x16xf32>
    %c0_33 = arith.constant 0 : index
    %c2_34 = arith.constant 2 : index
    %c0_35 = arith.constant 0 : index
    %c0_36 = arith.constant 0 : index
    %30 = vector.load %arg3[%c0_33, %c2_34, %c0_35, %c0_36] : memref<1x8x8x16xf32, #tpu.memory_space<vmem>>, vector<1x1x8x16xf32>
    %31 = vector.shape_cast %30 : vector<1x1x8x16xf32> to vector<8x16xf32>
    %cst_37 = arith.constant dense<0.000000e+00> : vector<32x16xf32>
    %32 = tpu.matmul %1, %31, %cst_37 {dimension_numbers = #tpu.dot_dimension_numbers<[1], [0], [0], [1], [0, 0, 1, 1], [], []>} : vector<32x8xf32>, vector<8x16xf32>, vector<32x16xf32> -> vector<32x16xf32>
    %33 = arith.addf %29, %32 : vector<32x16xf32>
    %34 = vector.broadcast %2 : vector<32x1xf32> to vector<32x16xf32>
    %35 = arith.addf %33, %34 : vector<32x16xf32>
    %c2_38 = arith.constant 2 : index
    %c0_39 = arith.constant 0 : index
    %c0_40 = arith.constant 0 : index
    %36 = vector.load %arg8[%c2_38, %c0_39, %c0_40] : memref<8x32x16xf32, #tpu.memory_space<vmem>>, vector<1x32x16xf32>
    %37 = vector.shape_cast %36 : vector<1x32x16xf32> to vector<32x16xf32>
    %38 = vector.shape_cast %35 : vector<32x16xf32> to vector<1x32x16xf32>
    tpu.vector_store %arg8[%c2_38, %c0_39, %c0_40], %38 {strides = array<i32>} : memref<8x32x16xf32, #tpu.memory_space<vmem>>, vector<1x32x16xf32>,
    %c0_41 = arith.constant 0 : index
    %c3 = arith.constant 3 : index
    %c0_42 = arith.constant 0 : index
    %c0_43 = arith.constant 0 : index
    %39 = vector.load %arg2[%c0_41, %c3, %c0_42, %c0_43] : memref<1x8x3x16xf32, #tpu.memory_space<vmem>>, vector<1x1x3x16xf32>
    %40 = vector.shape_cast %39 : vector<1x1x3x16xf32> to vector<3x16xf32>
    %cst_44 = arith.constant dense<0.000000e+00> : vector<32x16xf32>
    %41 = tpu.matmul %0, %40, %cst_44 {dimension_numbers = #tpu.dot_dimension_numbers<[1], [0], [0], [1], [0, 0, 1, 1], [], []>} : vector<32x3xf32>, vector<3x16xf32>, vector<32x16xf32> -> vector<32x16xf32>
    %c0_45 = arith.constant 0 : index
    %c3_46 = arith.constant 3 : index
    %c0_47 = arith.constant 0 : index
    %c0_48 = arith.constant 0 : index
    %42 = vector.load %arg3[%c0_45, %c3_46, %c0_47, %c0_48] : memref<1x8x8x16xf32, #tpu.memory_space<vmem>>, vector<1x1x8x16xf32>
    %43 = vector.shape_cast %42 : vector<1x1x8x16xf32> to vector<8x16xf32>
    %cst_49 = arith.constant dense<0.000000e+00> : vector<32x16xf32>
    %44 = tpu.matmul %1, %43, %cst_49 {dimension_numbers = #tpu.dot_dimension_numbers<[1], [0], [0], [1], [0, 0, 1, 1], [], []>} : vector<32x8xf32>, vector<8x16xf32>, vector<32x16xf32> -> vector<32x16xf32>
    %45 = arith.addf %41, %44 : vector<32x16xf32>
    %46 = vector.broadcast %2 : vector<32x1xf32> to vector<32x16xf32>
    %47 = arith.addf %45, %46 : vector<32x16xf32>
    %c3_50 = arith.constant 3 : index
    %c0_51 = arith.constant 0 : index
    %c0_52 = arith.constant 0 : index
    %48 = vector.load %arg8[%c3_50, %c0_51, %c0_52] : memref<8x32x16xf32, #tpu.memory_space<vmem>>, vector<1x32x16xf32>
    %49 = vector.shape_cast %48 : vector<1x32x16xf32> to vector<32x16xf32>
    %50 = vector.shape_cast %47 : vector<32x16xf32> to vector<1x32x16xf32>
    tpu.vector_store %arg8[%c3_50, %c0_51, %c0_52], %50 {strides = array<i32>} : memref<8x32x16xf32, #tpu.memory_space<vmem>>, vector<1x32x16xf32>,
    %c0_53 = arith.constant 0 : index
    %c4 = arith.constant 4 : index
    %c0_54 = arith.constant 0 : index
    %c0_55 = arith.constant 0 : index
    %51 = vector.load %arg2[%c0_53, %c4, %c0_54, %c0_55] : memref<1x8x3x16xf32, #tpu.memory_space<vmem>>, vector<1x1x3x16xf32>
    %52 = vector.shape_cast %51 : vector<1x1x3x16xf32> to vector<3x16xf32>
    %cst_56 = arith.constant dense<0.000000e+00> : vector<32x16xf32>
    %53 = tpu.matmul %0, %52, %cst_56 {dimension_numbers = #tpu.dot_dimension_numbers<[1], [0], [0], [1], [0, 0, 1, 1], [], []>} : vector<32x3xf32>, vector<3x16xf32>, vector<32x16xf32> -> vector<32x16xf32>
    %c0_57 = arith.constant 0 : index
    %c4_58 = arith.constant 4 : index
    %c0_59 = arith.constant 0 : index
    %c0_60 = arith.constant 0 : index
    %54 = vector.load %arg3[%c0_57, %c4_58, %c0_59, %c0_60] : memref<1x8x8x16xf32, #tpu.memory_space<vmem>>, vector<1x1x8x16xf32>
    %55 = vector.shape_cast %54 : vector<1x1x8x16xf32> to vector<8x16xf32>
    %cst_61 = arith.constant dense<0.000000e+00> : vector<32x16xf32>
    %56 = tpu.matmul %1, %55, %cst_61 {dimension_numbers = #tpu.dot_dimension_numbers<[1], [0], [0], [1], [0, 0, 1, 1], [], []>} : vector<32x8xf32>, vector<8x16xf32>, vector<32x16xf32> -> vector<32x16xf32>
    %57 = arith.addf %53, %56 : vector<32x16xf32>
    %58 = vector.broadcast %2 : vector<32x1xf32> to vector<32x16xf32>
    %59 = arith.addf %57, %58 : vector<32x16xf32>
    %c4_62 = arith.constant 4 : index
    %c0_63 = arith.constant 0 : index
    %c0_64 = arith.constant 0 : index
    %60 = vector.load %arg8[%c4_62, %c0_63, %c0_64] : memref<8x32x16xf32, #tpu.memory_space<vmem>>, vector<1x32x16xf32>
    %61 = vector.shape_cast %60 : vector<1x32x16xf32> to vector<32x16xf32>
    %62 = vector.shape_cast %59 : vector<32x16xf32> to vector<1x32x16xf32>
    tpu.vector_store %arg8[%c4_62, %c0_63, %c0_64], %62 {strides = array<i32>} : memref<8x32x16xf32, #tpu.memory_space<vmem>>, vector<1x32x16xf32>,
    %c0_65 = arith.constant 0 : index
    %c5 = arith.constant 5 : index
    %c0_66 = arith.constant 0 : index
    %c0_67 = arith.constant 0 : index
    %63 = vector.load %arg2[%c0_65, %c5, %c0_66, %c0_67] : memref<1x8x3x16xf32, #tpu.memory_space<vmem>>, vector<1x1x3x16xf32>
    %64 = vector.shape_cast %63 : vector<1x1x3x16xf32> to vector<3x16xf32>
    %cst_68 = arith.constant dense<0.000000e+00> : vector<32x16xf32>
    %65 = tpu.matmul %0, %64, %cst_68 {dimension_numbers = #tpu.dot_dimension_numbers<[1], [0], [0], [1], [0, 0, 1, 1], [], []>} : vector<32x3xf32>, vector<3x16xf32>, vector<32x16xf32> -> vector<32x16xf32>
    %c0_69 = arith.constant 0 : index
    %c5_70 = arith.constant 5 : index
    %c0_71 = arith.constant 0 : index
    %c0_72 = arith.constant 0 : index
    %66 = vector.load %arg3[%c0_69, %c5_70, %c0_71, %c0_72] : memref<1x8x8x16xf32, #tpu.memory_space<vmem>>, vector<1x1x8x16xf32>
    %67 = vector.shape_cast %66 : vector<1x1x8x16xf32> to vector<8x16xf32>
    %cst_73 = arith.constant dense<0.000000e+00> : vector<32x16xf32>
    %68 = tpu.matmul %1, %67, %cst_73 {dimension_numbers = #tpu.dot_dimension_numbers<[1], [0], [0], [1], [0, 0, 1, 1], [], []>} : vector<32x8xf32>, vector<8x16xf32>, vector<32x16xf32> -> vector<32x16xf32>
    %69 = arith.addf %65, %68 : vector<32x16xf32>
    %70 = vector.broadcast %2 : vector<32x1xf32> to vector<32x16xf32>
    %71 = arith.addf %69, %70 : vector<32x16xf32>
    %c5_74 = arith.constant 5 : index
    %c0_75 = arith.constant 0 : index
    %c0_76 = arith.constant 0 : index
    %72 = vector.load %arg8[%c5_74, %c0_75, %c0_76] : memref<8x32x16xf32, #tpu.memory_space<vmem>>, vector<1x32x16xf32>
    %73 = vector.shape_cast %72 : vector<1x32x16xf32> to vector<32x16xf32>
    %74 = vector.shape_cast %71 : vector<32x16xf32> to vector<1x32x16xf32>
    tpu.vector_store %arg8[%c5_74, %c0_75, %c0_76], %74 {strides = array<i32>} : memref<8x32x16xf32, #tpu.memory_space<vmem>>, vector<1x32x16xf32>,
    %c0_77 = arith.constant 0 : index
    %c6 = arith.constant 6 : index
    %c0_78 = arith.constant 0 : index
    %c0_79 = arith.constant 0 : index
    %75 = vector.load %arg2[%c0_77, %c6, %c0_78, %c0_79] : memref<1x8x3x16xf32, #tpu.memory_space<vmem>>, vector<1x1x3x16xf32>
    %76 = vector.shape_cast %75 : vector<1x1x3x16xf32> to vector<3x16xf32>
    %cst_80 = arith.constant dense<0.000000e+00> : vector<32x16xf32>
    %77 = tpu.matmul %0, %76, %cst_80 {dimension_numbers = #tpu.dot_dimension_numbers<[1], [0], [0], [1], [0, 0, 1, 1], [], []>} : vector<32x3xf32>, vector<3x16xf32>, vector<32x16xf32> -> vector<32x16xf32>
    %c0_81 = arith.constant 0 : index
    %c6_82 = arith.constant 6 : index
    %c0_83 = arith.constant 0 : index
    %c0_84 = arith.constant 0 : index
    %78 = vector.load %arg3[%c0_81, %c6_82, %c0_83, %c0_84] : memref<1x8x8x16xf32, #tpu.memory_space<vmem>>, vector<1x1x8x16xf32>
    %79 = vector.shape_cast %78 : vector<1x1x8x16xf32> to vector<8x16xf32>
    %cst_85 = arith.constant dense<0.000000e+00> : vector<32x16xf32>
    %80 = tpu.matmul %1, %79, %cst_85 {dimension_numbers = #tpu.dot_dimension_numbers<[1], [0], [0], [1], [0, 0, 1, 1], [], []>} : vector<32x8xf32>, vector<8x16xf32>, vector<32x16xf32> -> vector<32x16xf32>
    %81 = arith.addf %77, %80 : vector<32x16xf32>
    %82 = vector.broadcast %2 : vector<32x1xf32> to vector<32x16xf32>
    %83 = arith.addf %81, %82 : vector<32x16xf32>
    %c6_86 = arith.constant 6 : index
    %c0_87 = arith.constant 0 : index
    %c0_88 = arith.constant 0 : index
    %84 = vector.load %arg8[%c6_86, %c0_87, %c0_88] : memref<8x32x16xf32, #tpu.memory_space<vmem>>, vector<1x32x16xf32>
    %85 = vector.shape_cast %84 : vector<1x32x16xf32> to vector<32x16xf32>
    %86 = vector.shape_cast %83 : vector<32x16xf32> to vector<1x32x16xf32>
    tpu.vector_store %arg8[%c6_86, %c0_87, %c0_88], %86 {strides = array<i32>} : memref<8x32x16xf32, #tpu.memory_space<vmem>>, vector<1x32x16xf32>,
    %c0_89 = arith.constant 0 : index
    %c7 = arith.constant 7 : index
    %c0_90 = arith.constant 0 : index
    %c0_91 = arith.constant 0 : index
    %87 = vector.load %arg2[%c0_89, %c7, %c0_90, %c0_91] : memref<1x8x3x16xf32, #tpu.memory_space<vmem>>, vector<1x1x3x16xf32>
    %88 = vector.shape_cast %87 : vector<1x1x3x16xf32> to vector<3x16xf32>
    %cst_92 = arith.constant dense<0.000000e+00> : vector<32x16xf32>
    %89 = tpu.matmul %0, %88, %cst_92 {dimension_numbers = #tpu.dot_dimension_numbers<[1], [0], [0], [1], [0, 0, 1, 1], [], []>} : vector<32x3xf32>, vector<3x16xf32>, vector<32x16xf32> -> vector<32x16xf32>
    %c0_93 = arith.constant 0 : index
    %c7_94 = arith.constant 7 : index
    %c0_95 = arith.constant 0 : index
    %c0_96 = arith.constant 0 : index
    %90 = vector.load %arg3[%c0_93, %c7_94, %c0_95, %c0_96] : memref<1x8x8x16xf32, #tpu.memory_space<vmem>>, vector<1x1x8x16xf32>
    %91 = vector.shape_cast %90 : vector<1x1x8x16xf32> to vector<8x16xf32>
    %cst_97 = arith.constant dense<0.000000e+00> : vector<32x16xf32>
    %92 = tpu.matmul %1, %91, %cst_97 {dimension_numbers = #tpu.dot_dimension_numbers<[1], [0], [0], [1], [0, 0, 1, 1], [], []>} : vector<32x8xf32>, vector<8x16xf32>, vector<32x16xf32> -> vector<32x16xf32>
    %93 = arith.addf %89, %92 : vector<32x16xf32>
    %94 = vector.broadcast %2 : vector<32x1xf32> to vector<32x16xf32>
    %95 = arith.addf %93, %94 : vector<32x16xf32>
    %c7_98 = arith.constant 7 : index
    %c0_99 = arith.constant 0 : index
    %c0_100 = arith.constant 0 : index
    %96 = vector.load %arg8[%c7_98, %c0_99, %c0_100] : memref<8x32x16xf32, #tpu.memory_space<vmem>>, vector<1x32x16xf32>
    %97 = vector.shape_cast %96 : vector<1x32x16xf32> to vector<32x16xf32>
    %98 = vector.shape_cast %95 : vector<32x16xf32> to vector<1x32x16xf32>
    tpu.vector_store %arg8[%c7_98, %c0_99, %c0_100], %98 {strides = array<i32>} : memref<8x32x16xf32, #tpu.memory_space<vmem>>, vector<1x32x16xf32>,
    %c0_101 = arith.constant 0 : index
    %c0_102 = arith.constant 0 : index
    %c0_103 = arith.constant 0 : index
    %99 = vector.load %arg8[%c0_101, %c0_102, %c0_103] : memref<8x32x16xf32, #tpu.memory_space<vmem>>, vector<1x16x16xf32>
    %100 = vector.shape_cast %99 : vector<1x16x16xf32> to vector<16x16xf32>
    %c1_104 = arith.constant 1 : index
    %c0_105 = arith.constant 0 : index
    %c0_106 = arith.constant 0 : index
    %101 = vector.load %arg8[%c1_104, %c0_105, %c0_106] : memref<8x32x16xf32, #tpu.memory_space<vmem>>, vector<1x16x16xf32>
    %102 = vector.shape_cast %101 : vector<1x16x16xf32> to vector<16x16xf32>
    %103 = arith.maximumf %100, %102 : vector<16x16xf32>
    %c2_107 = arith.constant 2 : index
    %c0_108 = arith.constant 0 : index
    %c0_109 = arith.constant 0 : index
    %104 = vector.load %arg8[%c2_107, %c0_108, %c0_109] : memref<8x32x16xf32, #tpu.memory_space<vmem>>, vector<1x16x16xf32>
    %105 = vector.shape_cast %104 : vector<1x16x16xf32> to vector<16x16xf32>
    %106 = arith.maximumf %103, %105 : vector<16x16xf32>
    %c3_110 = arith.constant 3 : index
    %c0_111 = arith.constant 0 : index
    %c0_112 = arith.constant 0 : index
    %107 = vector.load %arg8[%c3_110, %c0_111, %c0_112] : memref<8x32x16xf32, #tpu.memory_space<vmem>>, vector<1x16x16xf32>
    %108 = vector.shape_cast %107 : vector<1x16x16xf32> to vector<16x16xf32>
    %109 = arith.maximumf %106, %108 : vector<16x16xf32>
    %c4_113 = arith.constant 4 : index
    %c0_114 = arith.constant 0 : index
    %c0_115 = arith.constant 0 : index
    %110 = vector.load %arg8[%c4_113, %c0_114, %c0_115] : memref<8x32x16xf32, #tpu.memory_space<vmem>>, vector<1x16x16xf32>
    %111 = vector.shape_cast %110 : vector<1x16x16xf32> to vector<16x16xf32>
    %112 = arith.maximumf %109, %111 : vector<16x16xf32>
    %c5_116 = arith.constant 5 : index
    %c0_117 = arith.constant 0 : index
    %c0_118 = arith.constant 0 : index
    %113 = vector.load %arg8[%c5_116, %c0_117, %c0_118] : memref<8x32x16xf32, #tpu.memory_space<vmem>>, vector<1x16x16xf32>
    %114 = vector.shape_cast %113 : vector<1x16x16xf32> to vector<16x16xf32>
    %115 = arith.maximumf %112, %114 : vector<16x16xf32>
    %c6_119 = arith.constant 6 : index
    %c0_120 = arith.constant 0 : index
    %c0_121 = arith.constant 0 : index
    %116 = vector.load %arg8[%c6_119, %c0_120, %c0_121] : memref<8x32x16xf32, #tpu.memory_space<vmem>>, vector<1x16x16xf32>
    %117 = vector.shape_cast %116 : vector<1x16x16xf32> to vector<16x16xf32>
    %118 = arith.maximumf %115, %117 : vector<16x16xf32>
    %c7_122 = arith.constant 7 : index
    %c0_123 = arith.constant 0 : index
    %c0_124 = arith.constant 0 : index
    %119 = vector.load %arg8[%c7_122, %c0_123, %c0_124] : memref<8x32x16xf32, #tpu.memory_space<vmem>>, vector<1x16x16xf32>
    %120 = vector.shape_cast %119 : vector<1x16x16xf32> to vector<16x16xf32>
    %121 = arith.maximumf %118, %120 : vector<16x16xf32>
    %cst_125 = arith.constant 0.000000e+00 : f32
    %122 = vector.broadcast %cst_125 : f32 to vector<16x16xf32>
    %cst_126 = arith.constant 0.000000e+00 : f32
    %123 = vector.broadcast %cst_126 : f32 to vector<16x16xf32>
    %c0_127 = arith.constant 0 : index
    %c0_128 = arith.constant 0 : index
    %c0_129 = arith.constant 0 : index
    %124 = vector.load %arg8[%c0_127, %c0_128, %c0_129] : memref<8x32x16xf32, #tpu.memory_space<vmem>>, vector<1x16x16xf32>
    %125 = vector.shape_cast %124 : vector<1x16x16xf32> to vector<16x16xf32>
    %126 = arith.subf %125, %121 : vector<16x16xf32>
    %cst_130 = arith.constant 1.000000e+00 : f32
    %127 = vector.broadcast %cst_130 : f32 to vector<16x16xf32>
    %128 = arith.mulf %126, %127 : vector<16x16xf32>
    %129 = math.exp %128 : vector<16x16xf32>
    %130 = arith.addf %122, %129 : vector<16x16xf32>
    %c0_131 = arith.constant 0 : index
    %c16 = arith.constant 16 : index
    %c0_132 = arith.constant 0 : index
    %131 = vector.load %arg8[%c0_131, %c16, %c0_132] : memref<8x32x16xf32, #tpu.memory_space<vmem>>, vector<1x16x16xf32>
    %132 = vector.shape_cast %131 : vector<1x16x16xf32> to vector<16x16xf32>
    %133 = arith.mulf %129, %132 : vector<16x16xf32>
    %134 = arith.addf %123, %133 : vector<16x16xf32>
    %c1_133 = arith.constant 1 : index
    %c0_134 = arith.constant 0 : index
    %c0_135 = arith.constant 0 : index
    %135 = vector.load %arg8[%c1_133, %c0_134, %c0_135] : memref<8x32x16xf32, #tpu.memory_space<vmem>>, vector<1x16x16xf32>
    %136 = vector.shape_cast %135 : vector<1x16x16xf32> to vector<16x16xf32>
    %137 = arith.subf %136, %121 : vector<16x16xf32>
    %cst_136 = arith.constant 1.000000e+00 : f32
    %138 = vector.broadcast %cst_136 : f32 to vector<16x16xf32>
    %139 = arith.mulf %137, %138 : vector<16x16xf32>
    %140 = math.exp %139 : vector<16x16xf32>
    %141 = arith.addf %130, %140 : vector<16x16xf32>
    %c1_137 = arith.constant 1 : index
    %c16_138 = arith.constant 16 : index
    %c0_139 = arith.constant 0 : index
    %142 = vector.load %arg8[%c1_137, %c16_138, %c0_139] : memref<8x32x16xf32, #tpu.memory_space<vmem>>, vector<1x16x16xf32>
    %143 = vector.shape_cast %142 : vector<1x16x16xf32> to vector<16x16xf32>
    %144 = arith.mulf %140, %143 : vector<16x16xf32>
    %145 = arith.addf %134, %144 : vector<16x16xf32>
    %c2_140 = arith.constant 2 : index
    %c0_141 = arith.constant 0 : index
    %c0_142 = arith.constant 0 : index
    %146 = vector.load %arg8[%c2_140, %c0_141, %c0_142] : memref<8x32x16xf32, #tpu.memory_space<vmem>>, vector<1x16x16xf32>
    %147 = vector.shape_cast %146 : vector<1x16x16xf32> to vector<16x16xf32>
    %148 = arith.subf %147, %121 : vector<16x16xf32>
    %cst_143 = arith.constant 1.000000e+00 : f32
    %149 = vector.broadcast %cst_143 : f32 to vector<16x16xf32>
    %150 = arith.mulf %148, %149 : vector<16x16xf32>
    %151 = math.exp %150 : vector<16x16xf32>
    %152 = arith.addf %141, %151 : vector<16x16xf32>
    %c2_144 = arith.constant 2 : index
    %c16_145 = arith.constant 16 : index
    %c0_146 = arith.constant 0 : index
    %153 = vector.load %arg8[%c2_144, %c16_145, %c0_146] : memref<8x32x16xf32, #tpu.memory_space<vmem>>, vector<1x16x16xf32>
    %154 = vector.shape_cast %153 : vector<1x16x16xf32> to vector<16x16xf32>
    %155 = arith.mulf %151, %154 : vector<16x16xf32>
    %156 = arith.addf %145, %155 : vector<16x16xf32>
    %c3_147 = arith.constant 3 : index
    %c0_148 = arith.constant 0 : index
    %c0_149 = arith.constant 0 : index
    %157 = vector.load %arg8[%c3_147, %c0_148, %c0_149] : memref<8x32x16xf32, #tpu.memory_space<vmem>>, vector<1x16x16xf32>
    %158 = vector.shape_cast %157 : vector<1x16x16xf32> to vector<16x16xf32>
    %159 = arith.subf %158, %121 : vector<16x16xf32>
    %cst_150 = arith.constant 1.000000e+00 : f32
    %160 = vector.broadcast %cst_150 : f32 to vector<16x16xf32>
    %161 = arith.mulf %159, %160 : vector<16x16xf32>
    %162 = math.exp %161 : vector<16x16xf32>
    %163 = arith.addf %152, %162 : vector<16x16xf32>
    %c3_151 = arith.constant 3 : index
    %c16_152 = arith.constant 16 : index
    %c0_153 = arith.constant 0 : index
    %164 = vector.load %arg8[%c3_151, %c16_152, %c0_153] : memref<8x32x16xf32, #tpu.memory_space<vmem>>, vector<1x16x16xf32>
    %165 = vector.shape_cast %164 : vector<1x16x16xf32> to vector<16x16xf32>
    %166 = arith.mulf %162, %165 : vector<16x16xf32>
    %167 = arith.addf %156, %166 : vector<16x16xf32>
    %c4_154 = arith.constant 4 : index
    %c0_155 = arith.constant 0 : index
    %c0_156 = arith.constant 0 : index
    %168 = vector.load %arg8[%c4_154, %c0_155, %c0_156] : memref<8x32x16xf32, #tpu.memory_space<vmem>>, vector<1x16x16xf32>
    %169 = vector.shape_cast %168 : vector<1x16x16xf32> to vector<16x16xf32>
    %170 = arith.subf %169, %121 : vector<16x16xf32>
    %cst_157 = arith.constant 1.000000e+00 : f32
    %171 = vector.broadcast %cst_157 : f32 to vector<16x16xf32>
    %172 = arith.mulf %170, %171 : vector<16x16xf32>
    %173 = math.exp %172 : vector<16x16xf32>
    %174 = arith.addf %163, %173 : vector<16x16xf32>
    %c4_158 = arith.constant 4 : index
    %c16_159 = arith.constant 16 : index
    %c0_160 = arith.constant 0 : index
    %175 = vector.load %arg8[%c4_158, %c16_159, %c0_160] : memref<8x32x16xf32, #tpu.memory_space<vmem>>, vector<1x16x16xf32>
    %176 = vector.shape_cast %175 : vector<1x16x16xf32> to vector<16x16xf32>
    %177 = arith.mulf %173, %176 : vector<16x16xf32>
    %178 = arith.addf %167, %177 : vector<16x16xf32>
    %c5_161 = arith.constant 5 : index
    %c0_162 = arith.constant 0 : index
    %c0_163 = arith.constant 0 : index
    %179 = vector.load %arg8[%c5_161, %c0_162, %c0_163] : memref<8x32x16xf32, #tpu.memory_space<vmem>>, vector<1x16x16xf32>
    %180 = vector.shape_cast %179 : vector<1x16x16xf32> to vector<16x16xf32>
    %181 = arith.subf %180, %121 : vector<16x16xf32>
    %cst_164 = arith.constant 1.000000e+00 : f32
    %182 = vector.broadcast %cst_164 : f32 to vector<16x16xf32>
    %183 = arith.mulf %181, %182 : vector<16x16xf32>
    %184 = math.exp %183 : vector<16x16xf32>
    %185 = arith.addf %174, %184 : vector<16x16xf32>
    %c5_165 = arith.constant 5 : index
    %c16_166 = arith.constant 16 : index
    %c0_167 = arith.constant 0 : index
    %186 = vector.load %arg8[%c5_165, %c16_166, %c0_167] : memref<8x32x16xf32, #tpu.memory_space<vmem>>, vector<1x16x16xf32>
    %187 = vector.shape_cast %186 : vector<1x16x16xf32> to vector<16x16xf32>
    %188 = arith.mulf %184, %187 : vector<16x16xf32>
    %189 = arith.addf %178, %188 : vector<16x16xf32>
    %c6_168 = arith.constant 6 : index
    %c0_169 = arith.constant 0 : index
    %c0_170 = arith.constant 0 : index
    %190 = vector.load %arg8[%c6_168, %c0_169, %c0_170] : memref<8x32x16xf32, #tpu.memory_space<vmem>>, vector<1x16x16xf32>
    %191 = vector.shape_cast %190 : vector<1x16x16xf32> to vector<16x16xf32>
    %192 = arith.subf %191, %121 : vector<16x16xf32>
    %cst_171 = arith.constant 1.000000e+00 : f32
    %193 = vector.broadcast %cst_171 : f32 to vector<16x16xf32>
    %194 = arith.mulf %192, %193 : vector<16x16xf32>
    %195 = math.exp %194 : vector<16x16xf32>
    %196 = arith.addf %185, %195 : vector<16x16xf32>
    %c6_172 = arith.constant 6 : index
    %c16_173 = arith.constant 16 : index
    %c0_174 = arith.constant 0 : index
    %197 = vector.load %arg8[%c6_172, %c16_173, %c0_174] : memref<8x32x16xf32, #tpu.memory_space<vmem>>, vector<1x16x16xf32>
    %198 = vector.shape_cast %197 : vector<1x16x16xf32> to vector<16x16xf32>
    %199 = arith.mulf %195, %198 : vector<16x16xf32>
    %200 = arith.addf %189, %199 : vector<16x16xf32>
    %c7_175 = arith.constant 7 : index
    %c0_176 = arith.constant 0 : index
    %c0_177 = arith.constant 0 : index
    %201 = vector.load %arg8[%c7_175, %c0_176, %c0_177] : memref<8x32x16xf32, #tpu.memory_space<vmem>>, vector<1x16x16xf32>
    %202 = vector.shape_cast %201 : vector<1x16x16xf32> to vector<16x16xf32>
    %203 = arith.subf %202, %121 : vector<16x16xf32>
    %cst_178 = arith.constant 1.000000e+00 : f32
    %204 = vector.broadcast %cst_178 : f32 to vector<16x16xf32>
    %205 = arith.mulf %203, %204 : vector<16x16xf32>
    %206 = math.exp %205 : vector<16x16xf32>
    %207 = arith.addf %196, %206 : vector<16x16xf32>
    %c7_179 = arith.constant 7 : index
    %c16_180 = arith.constant 16 : index
    %c0_181 = arith.constant 0 : index
    %208 = vector.load %arg8[%c7_179, %c16_180, %c0_181] : memref<8x32x16xf32, #tpu.memory_space<vmem>>, vector<1x16x16xf32>
    %209 = vector.shape_cast %208 : vector<1x16x16xf32> to vector<16x16xf32>
    %210 = arith.mulf %206, %209 : vector<16x16xf32>
    %211 = arith.addf %200, %210 : vector<16x16xf32>
    %212 = tpu.reciprocal %207 {approx = true} : vector<16x16xf32> -> vector<16x16xf32>
    %213 = arith.mulf %211, %212 : vector<16x16xf32>
    %c0_182 = arith.constant 0 : index
    %c0_183 = arith.constant 0 : index
    %c0_184 = arith.constant 0 : index
    %214 = vector.load %arg7[%c0_182, %c0_183, %c0_184] : memref<1x16x16xf32, #tpu.memory_space<vmem>>, vector<1x16x16xf32>
    %215 = vector.shape_cast %214 : vector<1x16x16xf32> to vector<16x16xf32>
    %216 = vector.shape_cast %213 : vector<16x16xf32> to vector<1x16x16xf32>
    tpu.vector_store %arg7[%c0_182, %c0_183, %c0_184], %216 {strides = array<i32>} : memref<1x16x16xf32, #tpu.memory_space<vmem>>, vector<1x16x16xf32>,
    return
  }
  func.func @transform_0(%arg0: i32, %arg1: i32) -> (i32, i32, i32, i32) {
    %c0_i32 = arith.constant 0 : i32
    %c0_i32_0 = arith.constant 0 : i32
    %c0_i32_1 = arith.constant 0 : i32
    return %arg0, %c0_i32, %c0_i32_0, %arg1 : i32, i32, i32, i32
  }
  func.func @transform_1(%arg0: i32, %arg1: i32) -> (i32, i32, i32, i32) {
    %c0_i32 = arith.constant 0 : i32
    %c0_i32_0 = arith.constant 0 : i32
    %c0_i32_1 = arith.constant 0 : i32
    return %arg0, %c0_i32, %c0_i32_0, %arg1 : i32, i32, i32, i32
  }
  func.func @transform_2(%arg0: i32, %arg1: i32) -> (i32, i32) {
    %c0_i32 = arith.constant 0 : i32
    %c0_i32_0 = arith.constant 0 : i32
    %c0_i32_1 = arith.constant 0 : i32
    return %c0_i32, %c0_i32_0 : i32, i32
  }
  func.func @transform_3(%arg0: i32, %arg1: i32) -> (i32, i32) {
    %c0_i32 = arith.constant 0 : i32
    %c0_i32_0 = arith.constant 0 : i32
    %c0_i32_1 = arith.constant 0 : i32
    return %c0_i32, %c0_i32_0 : i32, i32
  }
  func.func @transform_4(%arg0: i32, %arg1: i32) -> (i32, i32) {
    %c0_i32 = arith.constant 0 : i32
    %c0_i32_0 = arith.constant 0 : i32
    %c0_i32_1 = arith.constant 0 : i32
    return %c0_i32, %c0_i32_0 : i32, i32
  }
  func.func @transform_5(%arg0: i32, %arg1: i32) -> (i32, i32, i32) {
    %c0_i32 = arith.constant 0 : i32
    %c0_i32_0 = arith.constant 0 : i32
    return %arg0, %c0_i32, %arg1 : i32, i32, i32
  }
}

module attributes {stable_mosaic.version = 11 : i64} {
  func.func @_conv_bias_act_kernel(%arg0: i32, %arg1: i32, %arg2: memref<1x8x16xf32, #tpu.memory_space<vmem>>, %arg3: memref<16x8xf32, #tpu.memory_space<vmem>>, %arg4: memref<16x1xf32, #tpu.memory_space<vmem>>, %arg5: memref<1x16x16xf32, #tpu.memory_space<vmem>>) attributes {dimension_semantics = [#tpu.dimension_semantics<parallel>, #tpu.dimension_semantics<parallel>], iteration_bounds = array<i64: 2, 1>, scalar_prefetch = 0 : i64, scratch_operands = 0 : i64, tpu.core_type = #tpu.core_type<tc>, window_params = [{transform_indices = @transform_0, window_bounds = array<i64: 1, 8, 16>}, {pipeline_mode = #tpu.pipeline_mode<synchronous>, transform_indices = @transform_1, window_bounds = array<i64: 16, 8>}, {pipeline_mode = #tpu.pipeline_mode<synchronous>, transform_indices = @transform_2, window_bounds = array<i64: 16, 1>}, {transform_indices = @transform_3, window_bounds = array<i64: 1, 16, 16>}]} {
    %c0 = arith.constant 0 : index
    %c0_0 = arith.constant 0 : index
    %0 = vector.load %arg3[%c0, %c0_0] : memref<16x8xf32, #tpu.memory_space<vmem>>, vector<16x8xf32>
    %c0_1 = arith.constant 0 : index
    %c0_2 = arith.constant 0 : index
    %c0_3 = arith.constant 0 : index
    %1 = vector.load %arg2[%c0_1, %c0_2, %c0_3] : memref<1x8x16xf32, #tpu.memory_space<vmem>>, vector<1x8x16xf32>
    %2 = vector.shape_cast %1 : vector<1x8x16xf32> to vector<8x16xf32>
    %cst = arith.constant dense<0.000000e+00> : vector<16x16xf32>
    %3 = tpu.matmul %0, %2, %cst {dimension_numbers = #tpu.dot_dimension_numbers<[1], [0], [0], [1], [0, 0, 1, 1], [], []>} : vector<16x8xf32>, vector<8x16xf32>, vector<16x16xf32> -> vector<16x16xf32>
    %c0_4 = arith.constant 0 : index
    %c0_5 = arith.constant 0 : index
    %4 = vector.load %arg4[%c0_4, %c0_5] : memref<16x1xf32, #tpu.memory_space<vmem>>, vector<16x1xf32>
    %5 = vector.broadcast %4 : vector<16x1xf32> to vector<16x16xf32>
    %6 = arith.addf %3, %5 : vector<16x16xf32>
    %c0_6 = arith.constant 0 : index
    %c0_7 = arith.constant 0 : index
    %c0_8 = arith.constant 0 : index
    %7 = vector.load %arg5[%c0_6, %c0_7, %c0_8] : memref<1x16x16xf32, #tpu.memory_space<vmem>>, vector<1x16x16xf32>
    %8 = vector.shape_cast %7 : vector<1x16x16xf32> to vector<16x16xf32>
    %9 = vector.shape_cast %6 : vector<16x16xf32> to vector<1x16x16xf32>
    tpu.vector_store %arg5[%c0_6, %c0_7, %c0_8], %9 {strides = array<i32>} : memref<1x16x16xf32, #tpu.memory_space<vmem>>, vector<1x16x16xf32>,
    return
  }
  func.func @transform_0(%arg0: i32, %arg1: i32) -> (i32, i32, i32) {
    %c0_i32 = arith.constant 0 : i32
    %c0_i32_0 = arith.constant 0 : i32
    return %arg0, %c0_i32, %arg1 : i32, i32, i32
  }
  func.func @transform_1(%arg0: i32, %arg1: i32) -> (i32, i32) {
    %c0_i32 = arith.constant 0 : i32
    %c0_i32_0 = arith.constant 0 : i32
    %c0_i32_1 = arith.constant 0 : i32
    return %c0_i32, %c0_i32_0 : i32, i32
  }
  func.func @transform_2(%arg0: i32, %arg1: i32) -> (i32, i32) {
    %c0_i32 = arith.constant 0 : i32
    %c0_i32_0 = arith.constant 0 : i32
    %c0_i32_1 = arith.constant 0 : i32
    return %c0_i32, %c0_i32_0 : i32, i32
  }
  func.func @transform_3(%arg0: i32, %arg1: i32) -> (i32, i32, i32) {
    %c0_i32 = arith.constant 0 : i32
    %c0_i32_0 = arith.constant 0 : i32
    return %arg0, %c0_i32, %arg1 : i32, i32, i32
  }
}

</mosaic_0001>

<llo_original>
// kernel: custom-call.10
$region0: #{custom-call.10}
  %s0 = inlined_call_operand.vmem [shape: f32[2,64], index: 0, kind: output, shape index: {}]

// kernel: spotr_encoder_forward.4
$region0: #{spotr_encoder_forward.4}
  #allocation0 [shape = 'u32[]', space=smem, size = 0x4, offset = 0x4, fixed_abs, tag = 'smem constant byte address 0x4 - core index']
  #allocation1 [shape = 'u32[144,128]{1,0:T(1,128)}', space=vmem, size = 0x12000, scoped, tag = 'internal scratch']
  %s0 = inlined_call_operand.vmem [shape: f32[2,3,64], index: 0, kind: input, shape index: {}]
  %s1 = inlined_call_operand.vmem [shape: f32[8,3], index: 1, kind: input, shape index: {}]
  %s2 = inlined_call_operand.vmem [shape: f32[8,1], index: 2, kind: input, shape index: {}]
  %s3 = inlined_call_operand.vmem [shape: f32[2,8,64], index: 3, kind: output, shape index: {}]
  %s4 = sld [smem:[#allocation0]]
  $region45: #{spotr_encoder_forward.4} parent=0
    _
  %s6 = ssub.s32 1, %s4
  %s7 = scalar_select 0, %s6, %s4
  loop: start=0, step=1, limit=4
  $region2: #{spotr_encoder_forward.4} parent=0 // loop_pre_header
    _
  $region3: #{spotr_encoder_forward.4} parent=0 // loop_header
    %s9 = sphi 0, %s13
    %p10 = scmp.ge.s32.totalorder %s9, 4
    %s16 = sphi 0, %s28
    %s17 = sphi 0, %s24
    %s18 = sphi 0, %s16
    %s19 = sphi 0, %s17
    %s20 = sphi 0, %s18
    %s21 = sphi 0, %s19
    %s33 = sphi 0, %s35
    %s36 = sphi 0, %s33
    %s37 = sphi 0, %s36
    %s53 = sphi 0, %s37
    %s57 = sphi 0, %s57
    %s59 = sphi 0, %s57
    %s60 = sphi 0, %s59
    %s74 = sphi 0, %s60
    %s78 = sphi 0, %s78
    %s80 = sphi 0, %s78
    %s81 = sphi 0, %s80
    %s95 = sphi 0, %s81
    %s103 = sphi 0, %s105
    %s106 = sphi 0, %s103
    %s107 = sphi 0, %s106
    %s123 = sphi 0, %s107
  $region4: #{spotr_encoder_forward.4} parent=0 // loop_header_branch
    %12 = sbr.rel (%p10) target = $region8
  $region5: #{spotr_encoder_forward.4} parent=0 // loop_body
    %s14 = ssub.s32 %s9, 1
    %s15 = ssub.s32 %s9, 2
    %s22 = sadd.s32 1, %s17
    %p23 = scmp.ge.s32.totalorder %s22, 1
    %s24 = scalar_select %p23, 0, %s22
    %s25 = sadd.s32 1, %s16
    %s26 = scalar_select %p23, %s25, %s16
    %p27 = scmp.ge.s32.totalorder %s26, 2
    %s28 = scalar_select %p27, 0, %s26
    %s29 = ssub.s32 %s16, %s28
    %s30 = ssub.s32 %s17, %s24
    %s31 = sor.u32 %s29, %s30
    %p32 = scmp.eq.s32.totalorder %s31, 0
    %s34 = sadd.s32 %s33, 1
    %s35 = scalar_select %p32, %s33, %s34
    %p38 = pneg %p32
    %p39 = scmp.eq.s32.totalorder %s9, 1
    %p40 = por %p38, %p39
    %p41 = scmp.ne.s32.totalorder %s33, %s36
    %p42 = scmp.eq.s32.totalorder %s9, 0
    %p43 = por %p41, %p42
    %p44 = scmp.ne.s32.totalorder %s33, %s36
    %p45 = scmp.eq.s32.totalorder %s14, 1
    %p46 = por %p44, %p45
    %p47 = scmp.ne.s32.totalorder %s36, %s37
    %p48 = scmp.eq.s32.totalorder %s14, 0
    %p49 = por %p47, %p48
    %p50 = scmp.ne.s32.totalorder %s36, %s37
    %p51 = scmp.eq.s32.totalorder %s15, 1
    %p52 = por %p50, %p51
    %p54 = scmp.ne.s32.totalorder %s37, %s53
    %p55 = scmp.eq.s32.totalorder %s15, 0
    %p56 = por %p54, %p55
    %s58 = sadd.s32 %s57, 1
    %p61 = scmp.eq.s32.totalorder %s9, 1
    %p62 = scmp.ne.s32.totalorder %s57, %s59
    %p63 = scmp.eq.s32.totalorder %s9, 0
    %p64 = por %p62, %p63
    %p65 = scmp.ne.s32.totalorder %s57, %s59
    %p66 = scmp.eq.s32.totalorder %s14, 1
    %p67 = por %p65, %p66
    %p68 = scmp.ne.s32.totalorder %s59, %s60
    %p69 = scmp.eq.s32.totalorder %s14, 0
    %p70 = por %p68, %p69
    %p71 = scmp.ne.s32.totalorder %s59, %s60
    %p72 = scmp.eq.s32.totalorder %s15, 1
    %p73 = por %p71, %p72
    %p75 = scmp.ne.s32.totalorder %s60, %s74
    %p76 = scmp.eq.s32.totalorder %s15, 0
    %p77 = por %p75, %p76
    %s79 = sadd.s32 %s78, 1
    %p82 = scmp.eq.s32.totalorder %s9, 1
    %p83 = scmp.ne.s32.totalorder %s78, %s80
    %p84 = scmp.eq.s32.totalorder %s9, 0
    %p85 = por %p83, %p84
    %p86 = scmp.ne.s32.totalorder %s78, %s80
    %p87 = scmp.eq.s32.totalorder %s14, 1
    %p88 = por %p86, %p87
    %p89 = scmp.ne.s32.totalorder %s80, %s81
    %p90 = scmp.eq.s32.totalorder %s14, 0
    %p91 = por %p89, %p90
    %p92 = scmp.ne.s32.totalorder %s80, %s81
    %p93 = scmp.eq.s32.totalorder %s15, 1
    %p94 = por %p92, %p93
    %p96 = scmp.ne.s32.totalorder %s81, %s95
    %p97 = scmp.eq.s32.totalorder %s15, 0
    %p98 = por %p96, %p97
    %s99 = ssub.s32 %s16, %s28
    %s100 = ssub.s32 %s17, %s24
    %s101 = sor.u32 %s99, %s100
    %p102 = scmp.eq.s32.totalorder %s101, 0
    %s104 = sadd.s32 %s103, 1
    %s105 = scalar_select %p102, %s103, %s104
    %p108 = pneg %p102
    %p109 = scmp.eq.s32.totalorder %s9, 1
    %p110 = por %p108, %p109
    %p111 = scmp.ne.s32.totalorder %s103, %s106
    %p112 = scmp.eq.s32.totalorder %s9, 0
    %p113 = por %p111, %p112
    %p114 = scmp.ne.s32.totalorder %s103, %s106
    %p115 = scmp.eq.s32.totalorder %s14, 1
    %p116 = por %p114, %p115
    %p117 = scmp.ne.s32.totalorder %s106, %s107
    %p118 = scmp.eq.s32.totalorder %s14, 0
    %p119 = por %p117, %p118
    %p120 = scmp.ne.s32.totalorder %s106, %s107
    %p121 = scmp.eq.s32.totalorder %s15, 1
    %p122 = por %p120, %p121
    %p124 = scmp.ne.s32.totalorder %s107, %s123
    %p125 = scmp.eq.s32.totalorder %s15, 0
    %p126 = por %p124, %p125
    %p127 = scmp.le.s32.totalorder 1, %s9
    %p128 = scmp.lt.s32.totalorder %s9, 3
    %p129 = pnand %p127, %p128
    %p130 = pneg %p129
    // Predicated region
    $region9: #{spotr_encoder_forward.4} parent=5 // pred_check
      _
    $region10: #{spotr_encoder_forward.4} parent=5 // pred_check_branch
      %132 = sbr.rel (%p129) target = $region12
    $region11: #{spotr_encoder_forward.4} parent=5 // pred_region
      %s133 = ssub.s32 %s9, 1
      // Predicated region
      $region13: #{spotr_encoder_forward.4} parent=11 // pred_check
        %p134 = pneg %p70
      $region14: #{spotr_encoder_forward.4} parent=11 // pred_check_branch
        %136 = sbr.rel (%p134) target = $region16
      $region15: #{spotr_encoder_forward.4} parent=11 // pred_region
        _
      $region16: #{spotr_encoder_forward.4} parent=11 // pred_fallthru
        _
      // Predicated region
      $region17: #{spotr_encoder_forward.4} parent=11 // pred_check
        %p137 = pneg %p91
      $region18: #{spotr_encoder_forward.4} parent=11 // pred_check_branch
        %139 = sbr.rel (%p137) target = $region20
      $region19: #{spotr_encoder_forward.4} parent=11 // pred_region
        _
      $region20: #{spotr_encoder_forward.4} parent=11 // pred_fallthru
        _
    $region12: #{spotr_encoder_forward.4} parent=5 // pred_fallthru
      _
    %p140 = scmp.lt.s32.totalorder %s9, 2
    // Predicated region
    $region21: #{spotr_encoder_forward.4} parent=5 // pred_check
      %p141 = pneg %p140
    $region22: #{spotr_encoder_forward.4} parent=5 // pred_check_branch
      %143 = sbr.rel (%p141) target = $region24
    $region23: #{spotr_encoder_forward.4} parent=5 // pred_region
      // Predicated region
      $region25: #{spotr_encoder_forward.4} parent=23 // pred_check
        %p144 = pneg %p43
      $region26: #{spotr_encoder_forward.4} parent=23 // pred_check_branch
        %146 = sbr.rel (%p144) target = $region28
      $region27: #{spotr_encoder_forward.4} parent=23 // pred_region
        %p147 = scmp.lt.s32.totalorder %s16, 1
        %s148 = scalar_select %p147, %s16, 1
        %p149 = scmp.lt.s32.totalorder %s17, 0
        %s150 = scalar_select %p149, %s17, 0
        %s151 = sadd.s32 %s150, %s148
        %s152 = smul.addr %s151, 4
        %s153 = scalar_lea.vmem %s0, %s152
      $region28: #{spotr_encoder_forward.4} parent=23 // pred_fallthru
        _
    $region24: #{spotr_encoder_forward.4} parent=5 // pred_fallthru
      _
    %p154 = scmp.le.s32.totalorder 1, %s9
    %p155 = scmp.lt.s32.totalorder %s9, 3
    %p156 = pnand %p154, %p155
    %p157 = pneg %p156
    // Predicated region
    $region29: #{spotr_encoder_forward.4} parent=5 // pred_check
      _
    $region30: #{spotr_encoder_forward.4} parent=5 // pred_check_branch
      %159 = sbr.rel (%p156) target = $region32
    $region31: #{spotr_encoder_forward.4} parent=5 // pred_region
      %s160 = ssub.s32 %s9, 1
      %p161 = scmp.lt.s32.totalorder %s18, 1
      %s162 = scalar_select %p161, %s18, 1
      %p163 = scmp.lt.s32.totalorder %s19, 0
      %s164 = scalar_select %p163, %s19, 0
      %s165 = sadd.s32 %s164, %s162
      %s166 = smul.addr %s165, 4
      %s167 = scalar_lea.vmem %s0, %s166
      %p168 = pneg %p49
      %p169 = pneg %p46
      %p170 = pneg %p70
      %p171 = pneg %p67
      %p172 = pneg %p91
      %p173 = pneg %p88
      %p174 = pneg %p119
      %p175 = pneg %p116
      %p176 = scmp.lt.s32.totalorder %s18, 1
      %s177 = scalar_select %p176, %s18, 1
      %p178 = scmp.lt.s32.totalorder %s19, 0
      %s179 = scalar_select %p178, %s19, 0
      %s180 = sadd.s32 %s179, %s177
      %s181 = smul.addr %s180, 8
      %s182 = scalar_lea.vmem %s3, %s181
      %p183 = scmp.lt.s32.totalorder %s18, 1
      %s184 = scalar_select %p183, %s18, 1
      %p185 = scmp.lt.s32.totalorder %s19, 0
      %s186 = scalar_select %p185, %s19, 0
      %s187 = sadd.s32 %s186, %s184
      %s188 = smul.addr %s187, 4
      %s189 = scalar_lea.vmem %s0, %s188
      %p190 = scmp.lt.s32.totalorder %s18, 1
      %s191 = scalar_select %p190, %s18, 1
      %p192 = scmp.lt.s32.totalorder %s19, 0
      %s193 = scalar_select %p192, %s19, 0
      %s194 = sadd.s32 %s193, %s191
      %s195 = smul.addr %s194, 8
      %s196 = scalar_lea.vmem %s3, %s195
      %v197 = vld [vmem:[%s1] sm:$0xff]
      %v198 = vld [vmem:[%s189] sm:$0x7]
      %v199 = vld [vmem:[%s2] sm:$0xff]
      %201 = vset.pattern.permute.xlu0 0
      %202 = vperm.xlu0 %201, %v199
      %v203 = vpop.permute.xlu0 %202
      %vm205 = vcmask 23552
      %v207 = vsel %vm205, %v197, 0
      %vm209 = vcmask 1042432
      %v211 = vsel %vm209, %v198, 0
      %213 = vmatprep.subr.mxu0 0.0
      %214 = vmatpush1.msra.mxu0 0.0
      %215 = vmatprep.subr.mxu0 0.0
      %216 = vmatpush1.msra.mxu0 0.0
      %217 = vmatprep.subr.mxu0 0.0
      %218 = vmatpush1.msra.mxu0 0.0
      %219 = vmatprep.subr.mxu0 0.0
      %220 = vmatpush1.msra.mxu0 0.0
      %221 = vmatprep.subr.mxu0 0.0
      %222 = vmatpush1.msra.mxu0 0.0
      %223 = vmatprep.subr.mxu0 0.0
      %224 = vmatpush1.msra.mxu0 0.0
      %225 = vmatprep.subr.mxu0 0.0
      %226 = vmatpush1.msra.mxu0 0.0
      %227 = vmatprep.subr.mxu0 0.0
      %228 = vmatpush1.msra.mxu0 0.0
      %229 = vmatprep.subr.mxu0 0.0
      %230 = vmatpush1.msra.mxu0 0.0
      %231 = vmatprep.subr.mxu0 0.0
      %232 = vmatpush1.msra.mxu0 0.0
      %233 = vmatprep.subr.mxu0 0.0
      %234 = vmatpush1.msra.mxu0 0.0
      %235 = vmatprep.subr.mxu0 0.0
      %236 = vmatpush1.msra.mxu0 0.0
      %237 = vmatprep.subr.mxu0 0.0
      %238 = vmatpush1.msra.mxu0 0.0
      %239 = vmatprep.subr.mxu0 0.0
      %240 = vmatpush1.msra.mxu0 0.0
      %241 = vmatprep.subr.mxu0 0.0
      %242 = vmatpush1.msra.mxu0 0.0
      %243 = vmatprep.subr.mxu0 0.0
      %244 = vmatpush1.msra.mxu0 %v211
      %245 = vmatprep.subr.mxu0 0.0
      %246 = vmatpush2.msra.mxu0 0.0
      %247 = vmatprep.subr.mxu0 0.0
      %248 = vmatpush2.msra.mxu0 0.0
      %249 = vmatprep.subr.mxu0 0.0
      %250 = vmatpush2.msra.mxu0 0.0
      %251 = vmatprep.subr.mxu0 0.0
      %252 = vmatpush2.msra.mxu0 0.0
      %253 = vmatprep.subr.mxu0 0.0
      %254 = vmatpush2.msra.mxu0 0.0
      %255 = vmatprep.subr.mxu0 0.0
      %256 = vmatpush2.msra.mxu0 0.0
      %257 = vmatprep.subr.mxu0 0.0
      %258 = vmatpush2.msra.mxu0 0.0
      %259 = vmatprep.subr.mxu0 0.0
      %260 = vmatpush2.msra.mxu0 0.0
      %261 = vmatprep.subr.mxu0 0.0
      %262 = vmatpush2.msra.mxu0 0.0
      %263 = vmatprep.subr.mxu0 0.0
      %264 = vmatpush2.msra.mxu0 0.0
      %265 = vmatprep.subr.mxu0 0.0
      %266 = vmatpush2.msra.mxu0 0.0
      %267 = vmatprep.subr.mxu0 0.0
      %268 = vmatpush2.msra.mxu0 0.0
      %269 = vmatprep.subr.mxu0 0.0
      %270 = vmatpush2.msra.mxu0 0.0
      %271 = vmatprep.subr.mxu0 0.0
      %272 = vmatpush2.msra.mxu0 0.0
      %273 = vmatprep.subr.mxu0 0.0
      %274 = vmatpush2.msra.mxu0 0.0
      %275 = vmatprep.subr.mxu0 0.0
      %276 = vmatpush2.msra.mxu0 0.0
      %277 = vmatprep.mubr.f32.mxu0 0.0
      %278 = vmatmul.mubr.f32.gmra.mxu0 %v207
      %v279 = vpop.f32.mrf.mxu0
      %v280 = vadd.f32 %v203, %v279
      %v281 = vpop.f32.mrf.mxu0
      %282 = vdwg.mxu0
      %vm283 = vcmask 523264
      %284 = vst.msk [vmem:[%s196] sm:$0xff] %vm283, %v280
      %p285 = scmp.lt.s32.totalorder %s18, 1
      %s286 = scalar_select %p285, %s18, 1
      %p287 = scmp.lt.s32.totalorder %s19, 0
      %s288 = scalar_select %p287, %s19, 0
      %s289 = sadd.s32 %s288, %s286
      %s290 = smul.addr %s289, 8
      %s291 = scalar_lea.vmem %s3, %s290
      // Predicated region
      $region33: #{spotr_encoder_forward.4} parent=31 // pred_check
        %p292 = pneg %p116
      $region34: #{spotr_encoder_forward.4} parent=31 // pred_check_branch
        %294 = sbr.rel (%p292) target = $region36
      $region35: #{spotr_encoder_forward.4} parent=31 // pred_region
        _
      $region36: #{spotr_encoder_forward.4} parent=31 // pred_fallthru
        _
    $region32: #{spotr_encoder_forward.4} parent=5 // pred_fallthru
      _
    %p295 = scmp.le.s32.totalorder 2, %s9
    // Predicated region
    $region37: #{spotr_encoder_forward.4} parent=5 // pred_check
      %p296 = pneg %p295
    $region38: #{spotr_encoder_forward.4} parent=5 // pred_check_branch
      %298 = sbr.rel (%p296) target = $region40
    $region39: #{spotr_encoder_forward.4} parent=5 // pred_region
      %s299 = ssub.s32 %s9, 2
      // Predicated region
      $region41: #{spotr_encoder_forward.4} parent=39 // pred_check
        %p300 = pneg %p122
      $region42: #{spotr_encoder_forward.4} parent=39 // pred_check_branch
        %302 = sbr.rel (%p300) target = $region44
      $region43: #{spotr_encoder_forward.4} parent=39 // pred_region
        %p303 = scmp.lt.s32.totalorder %s20, 1
        %s304 = scalar_select %p303, %s20, 1
        %p305 = scmp.lt.s32.totalorder %s21, 0
        %s306 = scalar_select %p305, %s21, 0
        %s307 = sadd.s32 %s306, %s304
        %s308 = smul.addr %s307, 8
        %s309 = scalar_lea.vmem %s3, %s308
      $region44: #{spotr_encoder_forward.4} parent=39 // pred_fallthru
        _
    $region40: #{spotr_encoder_forward.4} parent=5 // pred_fallthru
      _
  $region6: #{spotr_encoder_forward.4} parent=0 // loop_footer
    %s13 = sadd.s32 1, %s9
  $region7: #{spotr_encoder_forward.4} parent=0 // loop_footer_branch
    %8 = sbr.rel target = $region3
  $region8: #{spotr_encoder_forward.4} parent=0 // loop_exit
    _

// kernel: spotr_encoder_forward.7
$region0: #{spotr_encoder_forward.7}
  #allocation0 [shape = 'u32[]', space=smem, size = 0x4, offset = 0x4, fixed_abs, tag = 'smem constant byte address 0x4 - core index']
  #allocation1 [shape = 'u32[144,128]{1,0:T(1,128)}', space=vmem, size = 0x12000, scoped, tag = 'internal scratch']
  #allocation2 [shape = 'f32[16,32,16]{2,1,0:T(8,128)}', space=vmem, size = 0x40000, scoped, tag = 'scratch operand']
  %s0 = inlined_call_operand.vmem [shape: f32[2,16,3,16], index: 0, kind: input, shape index: {}]
  %s1 = inlined_call_operand.vmem [shape: f32[2,8,16], index: 1, kind: input, shape index: {}]
  %s2 = inlined_call_operand.vmem [shape: f32[32,3], index: 2, kind: input, shape index: {}]
  %s3 = inlined_call_operand.vmem [shape: f32[32,8], index: 3, kind: input, shape index: {}]
  %s4 = inlined_call_operand.vmem [shape: f32[32,1], index: 4, kind: input, shape index: {}]
  %s5 = inlined_call_operand.vmem [shape: f32[2,16,16], index: 5, kind: output, shape index: {}]
  %s6 = sld [smem:[#allocation0]]
  $region53: #{spotr_encoder_forward.7} parent=0
    _
  %s8 = ssub.s32 1, %s6
  %s9 = scalar_select 0, %s8, %s6
  loop: start=0, step=1, limit=4
  $region2: #{spotr_encoder_forward.7} parent=0 // loop_pre_header
    _
  $region3: #{spotr_encoder_forward.7} parent=0 // loop_header
    %s11 = sphi 0, %s15
    %p12 = scmp.ge.s32.totalorder %s11, 4
    %s18 = sphi 0, %s30
    %s19 = sphi 0, %s26
    %s20 = sphi 0, %s18
    %s21 = sphi 0, %s19
    %s22 = sphi 0, %s20
    %s23 = sphi 0, %s21
    %s35 = sphi 0, %s37
    %s38 = sphi 0, %s35
    %s39 = sphi 0, %s38
    %s55 = sphi 0, %s39
    %s61 = sphi 0, %s63
    %s64 = sphi 0, %s61
    %s65 = sphi 0, %s64
    %s81 = sphi 0, %s65
    %s85 = sphi 0, %s85
    %s87 = sphi 0, %s85
    %s88 = sphi 0, %s87
    %s102 = sphi 0, %s88
    %s106 = sphi 0, %s106
    %s108 = sphi 0, %s106
    %s109 = sphi 0, %s108
    %s123 = sphi 0, %s109
    %s127 = sphi 0, %s127
    %s129 = sphi 0, %s127
    %s130 = sphi 0, %s129
    %s144 = sphi 0, %s130
    %s152 = sphi 0, %s154
    %s155 = sphi 0, %s152
    %s156 = sphi 0, %s155
    %s172 = sphi 0, %s156
  $region4: #{spotr_encoder_forward.7} parent=0 // loop_header_branch
    %14 = sbr.rel (%p12) target = $region8
  $region5: #{spotr_encoder_forward.7} parent=0 // loop_body
    %s16 = ssub.s32 %s11, 1
    %s17 = ssub.s32 %s11, 2
    %s24 = sadd.s32 1, %s19
    %p25 = scmp.ge.s32.totalorder %s24, 1
    %s26 = scalar_select %p25, 0, %s24
    %s27 = sadd.s32 1, %s18
    %s28 = scalar_select %p25, %s27, %s18
    %p29 = scmp.ge.s32.totalorder %s28, 2
    %s30 = scalar_select %p29, 0, %s28
    %s31 = ssub.s32 %s18, %s30
    %s32 = ssub.s32 %s19, %s26
    %s33 = sor.u32 %s31, %s32
    %p34 = scmp.eq.s32.totalorder %s33, 0
    %s36 = sadd.s32 %s35, 1
    %s37 = scalar_select %p34, %s35, %s36
    %p40 = pneg %p34
    %p41 = scmp.eq.s32.totalorder %s11, 1
    %p42 = por %p40, %p41
    %p43 = scmp.ne.s32.totalorder %s35, %s38
    %p44 = scmp.eq.s32.totalorder %s11, 0
    %p45 = por %p43, %p44
    %p46 = scmp.ne.s32.totalorder %s35, %s38
    %p47 = scmp.eq.s32.totalorder %s16, 1
    %p48 = por %p46, %p47
    %p49 = scmp.ne.s32.totalorder %s38, %s39
    %p50 = scmp.eq.s32.totalorder %s16, 0
    %p51 = por %p49, %p50
    %p52 = scmp.ne.s32.totalorder %s38, %s39
    %p53 = scmp.eq.s32.totalorder %s17, 1
    %p54 = por %p52, %p53
    %p56 = scmp.ne.s32.totalorder %s39, %s55
    %p57 = scmp.eq.s32.totalorder %s17, 0
    %p58 = por %p56, %p57
    %s59 = ssub.s32 %s18, %s30
    %p60 = scmp.eq.s32.totalorder %s59, 0
    %s62 = sadd.s32 %s61, 1
    %s63 = scalar_select %p60, %s61, %s62
    %p66 = pneg %p60
    %p67 = scmp.eq.s32.totalorder %s11, 1
    %p68 = por %p66, %p67
    %p69 = scmp.ne.s32.totalorder %s61, %s64
    %p70 = scmp.eq.s32.totalorder %s11, 0
    %p71 = por %p69, %p70
    %p72 = scmp.ne.s32.totalorder %s61, %s64
    %p73 = scmp.eq.s32.totalorder %s16, 1
    %p74 = por %p72, %p73
    %p75 = scmp.ne.s32.totalorder %s64, %s65
    %p76 = scmp.eq.s32.totalorder %s16, 0
    %p77 = por %p75, %p76
    %p78 = scmp.ne.s32.totalorder %s64, %s65
    %p79 = scmp.eq.s32.totalorder %s17, 1
    %p80 = por %p78, %p79
    %p82 = scmp.ne.s32.totalorder %s65, %s81
    %p83 = scmp.eq.s32.totalorder %s17, 0
    %p84 = por %p82, %p83
    %s86 = sadd.s32 %s85, 1
    %p89 = scmp.eq.s32.totalorder %s11, 1
    %p90 = scmp.ne.s32.totalorder %s85, %s87
    %p91 = scmp.eq.s32.totalorder %s11, 0
    %p92 = por %p90, %p91
    %p93 = scmp.ne.s32.totalorder %s85, %s87
    %p94 = scmp.eq.s32.totalorder %s16, 1
    %p95 = por %p93, %p94
    %p96 = scmp.ne.s32.totalorder %s87, %s88
    %p97 = scmp.eq.s32.totalorder %s16, 0
    %p98 = por %p96, %p97
    %p99 = scmp.ne.s32.totalorder %s87, %s88
    %p100 = scmp.eq.s32.totalorder %s17, 1
    %p101 = por %p99, %p100
    %p103 = scmp.ne.s32.totalorder %s88, %s102
    %p104 = scmp.eq.s32.totalorder %s17, 0
    %p105 = por %p103, %p104
    %s107 = sadd.s32 %s106, 1
    %p110 = scmp.eq.s32.totalorder %s11, 1
    %p111 = scmp.ne.s32.totalorder %s106, %s108
    %p112 = scmp.eq.s32.totalorder %s11, 0
    %p113 = por %p111, %p112
    %p114 = scmp.ne.s32.totalorder %s106, %s108
    %p115 = scmp.eq.s32.totalorder %s16, 1
    %p116 = por %p114, %p115
    %p117 = scmp.ne.s32.totalorder %s108, %s109
    %p118 = scmp.eq.s32.totalorder %s16, 0
    %p119 = por %p117, %p118
    %p120 = scmp.ne.s32.totalorder %s108, %s109
    %p121 = scmp.eq.s32.totalorder %s17, 1
    %p122 = por %p120, %p121
    %p124 = scmp.ne.s32.totalorder %s109, %s123
    %p125 = scmp.eq.s32.totalorder %s17, 0
    %p126 = por %p124, %p125
    %s128 = sadd.s32 %s127, 1
    %p131 = scmp.eq.s32.totalorder %s11, 1
    %p132 = scmp.ne.s32.totalorder %s127, %s129
    %p133 = scmp.eq.s32.totalorder %s11, 0
    %p134 = por %p132, %p133
    %p135 = scmp.ne.s32.totalorder %s127, %s129
    %p136 = scmp.eq.s32.totalorder %s16, 1
    %p137 = por %p135, %p136
    %p138 = scmp.ne.s32.totalorder %s129, %s130
    %p139 = scmp.eq.s32.totalorder %s16, 0
    %p140 = por %p138, %p139
    %p141 = scmp.ne.s32.totalorder %s129, %s130
    %p142 = scmp.eq.s32.totalorder %s17, 1
    %p143 = por %p141, %p142
    %p145 = scmp.ne.s32.totalorder %s130, %s144
    %p146 = scmp.eq.s32.totalorder %s17, 0
    %p147 = por %p145, %p146
    %s148 = ssub.s32 %s18, %s30
    %s149 = ssub.s32 %s19, %s26
    %s150 = sor.u32 %s148, %s149
    %p151 = scmp.eq.s32.totalorder %s150, 0
    %s153 = sadd.s32 %s152, 1
    %s154 = scalar_select %p151, %s152, %s153
    %p157 = pneg %p151
    %p158 = scmp.eq.s32.totalorder %s11, 1
    %p159 = por %p157, %p158
    %p160 = scmp.ne.s32.totalorder %s152, %s155
    %p161 = scmp.eq.s32.totalorder %s11, 0
    %p162 = por %p160, %p161
    %p163 = scmp.ne.s32.totalorder %s152, %s155
    %p164 = scmp.eq.s32.totalorder %s16, 1
    %p165 = por %p163, %p164
    %p166 = scmp.ne.s32.totalorder %s155, %s156
    %p167 = scmp.eq.s32.totalorder %s16, 0
    %p168 = por %p166, %p167
    %p169 = scmp.ne.s32.totalorder %s155, %s156
    %p170 = scmp.eq.s32.totalorder %s17, 1
    %p171 = por %p169, %p170
    %p173 = scmp.ne.s32.totalorder %s156, %s172
    %p174 = scmp.eq.s32.totalorder %s17, 0
    %p175 = por %p173, %p174
    %p176 = scmp.le.s32.totalorder 1, %s11
    %p177 = scmp.lt.s32.totalorder %s11, 3
    %p178 = pnand %p176, %p177
    %p179 = pneg %p178
    // Predicated region
    $region9: #{spotr_encoder_forward.7} parent=5 // pred_check
      _
    $region10: #{spotr_encoder_forward.7} parent=5 // pred_check_branch
      %181 = sbr.rel (%p178) target = $region12
    $region11: #{spotr_encoder_forward.7} parent=5 // pred_region
      %s182 = ssub.s32 %s11, 1
      // Predicated region
      $region13: #{spotr_encoder_forward.7} parent=11 // pred_check
        %p183 = pneg %p98
      $region14: #{spotr_encoder_forward.7} parent=11 // pred_check_branch
        %185 = sbr.rel (%p183) target = $region16
      $region15: #{spotr_encoder_forward.7} parent=11 // pred_region
        _
      $region16: #{spotr_encoder_forward.7} parent=11 // pred_fallthru
        _
      // Predicated region
      $region17: #{spotr_encoder_forward.7} parent=11 // pred_check
        %p186 = pneg %p119
      $region18: #{spotr_encoder_forward.7} parent=11 // pred_check_branch
        %188 = sbr.rel (%p186) target = $region20
      $region19: #{spotr_encoder_forward.7} parent=11 // pred_region
        _
      $region20: #{spotr_encoder_forward.7} parent=11 // pred_fallthru
        _
      // Predicated region
      $region21: #{spotr_encoder_forward.7} parent=11 // pred_check
        %p189 = pneg %p140
      $region22: #{spotr_encoder_forward.7} parent=11 // pred_check_branch
        %191 = sbr.rel (%p189) target = $region24
      $region23: #{spotr_encoder_forward.7} parent=11 // pred_region
        _
      $region24: #{spotr_encoder_forward.7} parent=11 // pred_fallthru
        _
    $region12: #{spotr_encoder_forward.7} parent=5 // pred_fallthru
      _
    %p192 = scmp.lt.s32.totalorder %s11, 2
    // Predicated region
    $region25: #{spotr_encoder_forward.7} parent=5 // pred_check
      %p193 = pneg %p192
    $region26: #{spotr_encoder_forward.7} parent=5 // pred_check_branch
      %195 = sbr.rel (%p193) target = $region28
    $region27: #{spotr_encoder_forward.7} parent=5 // pred_region
      // Predicated region
      $region29: #{spotr_encoder_forward.7} parent=27 // pred_check
        %p196 = pneg %p45
      $region30: #{spotr_encoder_forward.7} parent=27 // pred_check_branch
        %198 = sbr.rel (%p196) target = $region32
      $region31: #{spotr_encoder_forward.7} parent=27 // pred_region
        %p199 = scmp.lt.s32.totalorder %s18, 1
        %s200 = scalar_select %p199, %s18, 1
        %p201 = scmp.lt.s32.totalorder %s19, 0
        %s202 = scalar_select %p201, %s19, 0
        %s203 = smul.addr %s200, 16
        %s204 = sadd.s32 %s202, %s203
        %s205 = smul.addr %s204, 4
        %s206 = scalar_lea.vmem %s0, %s205
      $region32: #{spotr_encoder_forward.7} parent=27 // pred_fallthru
        _
      // Predicated region
      $region33: #{spotr_encoder_forward.7} parent=27 // pred_check
        %p207 = pneg %p71
      $region34: #{spotr_encoder_forward.7} parent=27 // pred_check_branch
        %209 = sbr.rel (%p207) target = $region36
      $region35: #{spotr_encoder_forward.7} parent=27 // pred_region
        %p210 = scmp.lt.s32.totalorder %s18, 1
        %s211 = scalar_select %p210, %s18, 1
        %s212 = smul.addr %s211, 8
        %s213 = scalar_lea.vmem %s1, %s212
      $region36: #{spotr_encoder_forward.7} parent=27 // pred_fallthru
        _
    $region28: #{spotr_encoder_forward.7} parent=5 // pred_fallthru
      _
    %p214 = scmp.le.s32.totalorder 1, %s11
    %p215 = scmp.lt.s32.totalorder %s11, 3
    %p216 = pnand %p214, %p215
    %p217 = pneg %p216
    // Predicated region
    $region37: #{spotr_encoder_forward.7} parent=5 // pred_check
      _
    $region38: #{spotr_encoder_forward.7} parent=5 // pred_check_branch
      %219 = sbr.rel (%p216) target = $region40
    $region39: #{spotr_encoder_forward.7} parent=5 // pred_region
      %s220 = ssub.s32 %s11, 1
      %p221 = scmp.lt.s32.totalorder %s20, 1
      %s222 = scalar_select %p221, %s20, 1
      %p223 = scmp.lt.s32.totalorder %s21, 0
      %s224 = scalar_select %p223, %s21, 0
      %s225 = smul.addr %s222, 16
      %s226 = sadd.s32 %s224, %s225
      %s227 = smul.addr %s226, 4
      %s228 = scalar_lea.vmem %s0, %s227
      %p229 = pneg %p51
      %p230 = pneg %p48
      %p231 = scmp.lt.s32.totalorder %s20, 1
      %s232 = scalar_select %p231, %s20, 1
      %s233 = smul.addr %s232, 8
      %s234 = scalar_lea.vmem %s1, %s233
      %p235 = pneg %p77
      %p236 = pneg %p74
      %p237 = pneg %p98
      %p238 = pneg %p95
      %p239 = pneg %p119
      %p240 = pneg %p116
      %p241 = pneg %p140
      %p242 = pneg %p137
      %p243 = pneg %p168
      %p244 = pneg %p165
      %p245 = scmp.lt.s32.totalorder %s20, 1
      %s246 = scalar_select %p245, %s20, 1
      %p247 = scmp.lt.s32.totalorder %s21, 0
      %s248 = scalar_select %p247, %s21, 0
      %s249 = smul.addr %s246, 2
      %s250 = sadd.s32 %s248, %s249
      %s251 = smul.addr %s250, 8
      %s252 = scalar_lea.vmem %s5, %s251
      %p253 = scmp.lt.s32.totalorder %s20, 1
      %s254 = scalar_select %p253, %s20, 1
      %p255 = scmp.lt.s32.totalorder %s21, 0
      %s256 = scalar_select %p255, %s21, 0
      %s257 = smul.addr %s254, 16
      %s258 = sadd.s32 %s256, %s257
      %s259 = smul.addr %s258, 4
      %s260 = scalar_lea.vmem %s0, %s259
      %p261 = scmp.lt.s32.totalorder %s20, 1
      %s262 = scalar_select %p261, %s20, 1
      %s263 = smul.addr %s262, 8
      %s264 = scalar_lea.vmem %s1, %s263
      %p265 = scmp.lt.s32.totalorder %s20, 1
      %s266 = scalar_select %p265, %s20, 1
      %p267 = scmp.lt.s32.totalorder %s21, 0
      %s268 = scalar_select %p267, %s21, 0
      %s269 = smul.addr %s266, 2
      %s270 = sadd.s32 %s268, %s269
      %s271 = smul.addr %s270, 8
      %s272 = scalar_lea.vmem %s5, %s271
      %v273 = vld [vmem:[%s2] sm:$0xff]
      %v274 = vld [vmem:[%s2 + $0x8] sm:$0xff]
      %v275 = vld [vmem:[%s2 + $0x10] sm:$0xff]
      %v276 = vld [vmem:[%s2 + $0x18] sm:$0xff]
      %v277 = vld [vmem:[%s3] sm:$0xff]
      %v278 = vld [vmem:[%s3 + $0x8] sm:$0xff]
      %v279 = vld [vmem:[%s3 + $0x10] sm:$0xff]
      %v280 = vld [vmem:[%s3 + $0x18] sm:$0xff]
      %v281 = vld [vmem:[%s4] sm:$0xff]
      %v282 = vld [vmem:[%s4 + $0x8] sm:$0xff]
      %v283 = vld [vmem:[%s4 + $0x10] sm:$0xff]
      %v284 = vld [vmem:[%s4 + $0x18] sm:$0xff]
      %v285 = vld [vmem:[%s264] sm:$0xff]
      %287 = vset.pattern.permute.xlu0 0
      %288 = vperm.xlu0 %287, %v281
      %v289 = vpop.permute.xlu0 %288
      %292 = vset.pattern.permute.xlu0 0
      %293 = vperm.xlu0 %292, %v282
      %v294 = vpop.permute.xlu0 %293
      %297 = vset.pattern.permute.xlu0 0
      %298 = vperm.xlu0 %297, %v283
      %v299 = vpop.permute.xlu0 %298
      %302 = vset.pattern.permute.xlu0 0
      %303 = vperm.xlu0 %302, %v284
      %v304 = vpop.permute.xlu0 %303
      %vm306 = vcmask 64512
      %v308 = vsel %vm306, %v277, 0
      %v311 = vsel %vm306, %v278, 0
      %v314 = vsel %vm306, %v279, 0
      %v317 = vsel %vm306, %v280, 0
      %319 = vmatprep.subr.mxu0 0.0
      %320 = vmatpush1.msra.mxu0 0.0
      %321 = vmatprep.subr.mxu0 0.0
      %322 = vmatpush1.msra.mxu0 0.0
      %323 = vmatprep.subr.mxu0 0.0
      %324 = vmatpush1.msra.mxu0 0.0
      %325 = vmatprep.subr.mxu0 0.0
      %326 = vmatpush1.msra.mxu0 0.0
      %327 = vmatprep.subr.mxu0 0.0
      %328 = vmatpush1.msra.mxu0 0.0
      %329 = vmatprep.subr.mxu0 0.0
      %330 = vmatpush1.msra.mxu0 0.0
      %331 = vmatprep.subr.mxu0 0.0
      %332 = vmatpush1.msra.mxu0 0.0
      %333 = vmatprep.subr.mxu0 0.0
      %334 = vmatpush1.msra.mxu0 0.0
      %335 = vmatprep.subr.mxu0 0.0
      %336 = vmatpush1.msra.mxu0 0.0
      %337 = vmatprep.subr.mxu0 0.0
      %338 = vmatpush1.msra.mxu0 0.0
      %339 = vmatprep.subr.mxu0 0.0
      %340 = vmatpush1.msra.mxu0 0.0
      %341 = vmatprep.subr.mxu0 0.0
      %342 = vmatpush1.msra.mxu0 0.0
      %343 = vmatprep.subr.mxu0 0.0
      %344 = vmatpush1.msra.mxu0 0.0
      %345 = vmatprep.subr.mxu0 0.0
      %346 = vmatpush1.msra.mxu0 0.0
      %347 = vmatprep.subr.mxu0 0.0
      %348 = vmatpush1.msra.mxu0 0.0
      %349 = vmatprep.subr.mxu0 0.0
      %350 = vmatpush1.msra.mxu0 %v285
      %351 = vmatprep.subr.mxu0 0.0
      %352 = vmatpush2.msra.mxu0 0.0
      %353 = vmatprep.subr.mxu0 0.0
      %354 = vmatpush2.msra.mxu0 0.0
      %355 = vmatprep.subr.mxu0 0.0
      %356 = vmatpush2.msra.mxu0 0.0
      %357 = vmatprep.subr.mxu0 0.0
      %358 = vmatpush2.msra.mxu0 0.0
      %359 = vmatprep.subr.mxu0 0.0
      %360 = vmatpush2.msra.mxu0 0.0
      %361 = vmatprep.subr.mxu0 0.0
      %362 = vmatpush2.msra.mxu0 0.0
      %363 = vmatprep.subr.mxu0 0.0
      %364 = vmatpush2.msra.mxu0 0.0
      %365 = vmatprep.subr.mxu0 0.0
      %366 = vmatpush2.msra.mxu0 0.0
      %367 = vmatprep.subr.mxu0 0.0
      %368 = vmatpush2.msra.mxu0 0.0
      %369 = vmatprep.subr.mxu0 0.0
      %370 = vmatpush2.msra.mxu0 0.0
      %371 = vmatprep.subr.mxu0 0.0
      %372 = vmatpush2.msra.mxu0 0.0
      %373 = vmatprep.subr.mxu0 0.0
      %374 = vmatpush2.msra.mxu0 0.0
      %375 = vmatprep.subr.mxu0 0.0
      %376 = vmatpush2.msra.mxu0 0.0
      %377 = vmatprep.subr.mxu0 0.0
      %378 = vmatpush2.msra.mxu0 0.0
      %379 = vmatprep.subr.mxu0 0.0
      %380 = vmatpush2.msra.mxu0 0.0
      %381 = vmatprep.subr.mxu0 0.0
      %382 = vmatpush2.msra.mxu0 0.0
      %383 = vmatprep.mubr.f32.mxu0 0.0
      %384 = vmatmul.mubr.f32.gmra.mxu0 %v308
      %v385 = vpop.f32.mrf.mxu0
      %v386 = vadd.f32 %v289, %v385
      %v387 = vpop.f32.mrf.mxu0
      %388 = vmatprep.mubr.f32.mxu0 0.0
      %389 = vmatmul.mubr.f32.gmra.mxu0 %v311
      %v390 = vpop.f32.mrf.mxu0
      %v391 = vadd.f32 %v294, %v390
      %v392 = vpop.f32.mrf.mxu0
      %393 = vmatprep.mubr.f32.mxu0 0.0
      %394 = vmatmul.mubr.f32.gmra.mxu0 %v314
      %v395 = vpop.f32.mrf.mxu0
      %v396 = vadd.f32 %v299, %v395
      %v397 = vpop.f32.mrf.mxu0
      %398 = vmatprep.mubr.f32.mxu0 0.0
      %399 = vmatmul.mubr.f32.gmra.mxu0 %v317
      %v400 = vpop.f32.mrf.mxu0
      %v401 = vadd.f32 %v304, %v400
      %v402 = vpop.f32.mrf.mxu0
      %403 = vdwg.mxu0
      %v404 = vld [vmem:[%s260] sm:$0x7]
      %406 = vset.pattern.permute.xlu0 0
      %407 = vperm.xlu0 %406, %v386
      %v408 = vpop.permute.xlu0 %407
      %411 = vset.pattern.permute.xlu0 0
      %412 = vperm.xlu0 %411, %v391
      %v413 = vpop.permute.xlu0 %412
      %416 = vset.pattern.permute.xlu0 0
      %417 = vperm.xlu0 %416, %v396
      %v418 = vpop.permute.xlu0 %417
      %421 = vset.pattern.permute.xlu0 0
      %422 = vperm.xlu0 %421, %v401
      %v423 = vpop.permute.xlu0 %422
      %vm425 = vcmask 23552
      %v427 = vsel %vm425, %v273, 0
      %v430 = vsel %vm425, %v274, 0
      %v433 = vsel %vm425, %v275, 0
      %v436 = vsel %vm425, %v276, 0
      %vm438 = vcmask 1042432
      %v440 = vsel %vm438, %v404, 0
      %442 = vmatprep.subr.mxu0 0.0
      %443 = vmatpush1.msra.mxu0 0.0
      %444 = vmatprep.subr.mxu0 0.0
      %445 = vmatpush1.msra.mxu0 0.0
      %446 = vmatprep.subr.mxu0 0.0
      %447 = vmatpush1.msra.mxu0 0.0
      %448 = vmatprep.subr.mxu0 0.0
      %449 = vmatpush1.msra.mxu0 0.0
      %450 = vmatprep.subr.mxu0 0.0
      %451 = vmatpush1.msra.mxu0 0.0
      %452 = vmatprep.subr.mxu0 0.0
      %453 = vmatpush1.msra.mxu0 0.0
      %454 = vmatprep.subr.mxu0 0.0
      %455 = vmatpush1.msra.mxu0 0.0
      %456 = vmatprep.subr.mxu0 0.0
      %457 = vmatpush1.msra.mxu0 0.0
      %458 = vmatprep.subr.mxu0 0.0
      %459 = vmatpush1.msra.mxu0 0.0
      %460 = vmatprep.subr.mxu0 0.0
      %461 = vmatpush1.msra.mxu0 0.0
      %462 = vmatprep.subr.mxu0 0.0
      %463 = vmatpush1.msra.mxu0 0.0
      %464 = vmatprep.subr.mxu0 0.0
      %465 = vmatpush1.msra.mxu0 0.0
      %466 = vmatprep.subr.mxu0 0.0
      %467 = vmatpush1.msra.mxu0 0.0
      %468 = vmatprep.subr.mxu0 0.0
      %469 = vmatpush1.msra.mxu0 0.0
      %470 = vmatprep.subr.mxu0 0.0
      %471 = vmatpush1.msra.mxu0 0.0
      %472 = vmatprep.subr.mxu0 0.0
      %473 = vmatpush1.msra.mxu0 %v440
      %474 = vmatprep.subr.mxu0 0.0
      %475 = vmatpush2.msra.mxu0 0.0
      %476 = vmatprep.subr.mxu0 0.0
      %477 = vmatpush2.msra.mxu0 0.0
      %478 = vmatprep.subr.mxu0 0.0
      %479 = vmatpush2.msra.mxu0 0.0
      %480 = vmatprep.subr.mxu0 0.0
      %481 = vmatpush2.msra.mxu0 0.0
      %482 = vmatprep.subr.mxu0 0.0
      %483 = vmatpush2.msra.mxu0 0.0
      %484 = vmatprep.subr.mxu0 0.0
      %485 = vmatpush2.msra.mxu0 0.0
      %486 = vmatprep.subr.mxu0 0.0
      %487 = vmatpush2.msra.mxu0 0.0
      %488 = vmatprep.subr.mxu0 0.0
      %489 = vmatpush2.msra.mxu0 0.0
      %490 = vmatprep.subr.mxu0 0.0
      %491 = vmatpush2.msra.mxu0 0.0
      %492 = vmatprep.subr.mxu0 0.0
      %493 = vmatpush2.msra.mxu0 0.0
      %494 = vmatprep.subr.mxu0 0.0
      %495 = vmatpush2.msra.mxu0 0.0
      %496 = vmatprep.subr.mxu0 0.0
      %497 = vmatpush2.msra.mxu0 0.0
      %498 = vmatprep.subr.mxu0 0.0
      %499 = vmatpush2.msra.mxu0 0.0
      %500 = vmatprep.subr.mxu0 0.0
      %501 = vmatpush2.msra.mxu0 0.0
      %502 = vmatprep.subr.mxu0 0.0
      %503 = vmatpush2.msra.mxu0 0.0
      %504 = vmatprep.subr.mxu0 0.0
      %505 = vmatpush2.msra.mxu0 0.0
      %506 = vmatprep.mubr.f32.mxu0 0.0
      %507 = vmatmul.mubr.f32.gmra.mxu0 %v427
      %v508 = vpop.f32.mrf.mxu0
      %v509 = vadd.f32 %v408, %v508
      %v510 = vpop.f32.mrf.mxu0
      %511 = vmatprep.mubr.f32.mxu0 0.0
      %512 = vmatmul.mubr.f32.gmra.mxu0 %v430
      %v513 = vpop.f32.mrf.mxu0
      %v514 = vadd.f32 %v413, %v513
      %v515 = vpop.f32.mrf.mxu0
      %516 = vmatprep.mubr.f32.mxu0 0.0
      %517 = vmatmul.mubr.f32.gmra.mxu0 %v433
      %v518 = vpop.f32.mrf.mxu0
      %v519 = vadd.f32 %v418, %v518
      %v520 = vpop.f32.mrf.mxu0
      %521 = vmatprep.mubr.f32.mxu0 0.0
      %522 = vmatmul.mubr.f32.gmra.mxu0 %v436
      %v523 = vpop.f32.mrf.mxu0
      %v524 = vadd.f32 %v423, %v523
      %v525 = vpop.f32.mrf.mxu0
      %526 = vdwg.mxu0
      %vm527 = vcmask 130048
      %528 = vst.msk [vmem:[#allocation2] sm:$0xff] %vm527, %v509
      %529 = vst.msk [vmem:[#allocation2 + $0x8] sm:$0xff] %vm527, %v514
      %530 = vst.msk [vmem:[#allocation2 + $0x10] sm:$0xff] %vm527, %v519
      %531 = vst.msk [vmem:[#allocation2 + $0x18] sm:$0xff] %vm527, %v524
      %s532 = scalar_lea.vmem %s260, 4
      %v533 = vld [vmem:[%s532] sm:$0x7]
      %534 = vset.pattern.permute.xlu0 1
      %535 = vperm.xlu0 %534, %v386
      %v536 = vpop.permute.xlu0 %535
      %538 = vset.pattern.permute.xlu0 1
      %539 = vperm.xlu0 %538, %v391
      %v540 = vpop.permute.xlu0 %539
      %542 = vset.pattern.permute.xlu0 1
      %543 = vperm.xlu0 %542, %v396
      %v544 = vpop.permute.xlu0 %543
      %546 = vset.pattern.permute.xlu0 1
      %547 = vperm.xlu0 %546, %v401
      %v548 = vpop.permute.xlu0 %547
      %v551 = vsel %vm438, %v533, 0
      %553 = vmatprep.subr.mxu0 0.0
      %554 = vmatpush1.msra.mxu0 0.0
      %555 = vmatprep.subr.mxu0 0.0
      %556 = vmatpush1.msra.mxu0 0.0
      %557 = vmatprep.subr.mxu0 0.0
      %558 = vmatpush1.msra.mxu0 0.0
      %559 = vmatprep.subr.mxu0 0.0
      %560 = vmatpush1.msra.mxu0 0.0
      %561 = vmatprep.subr.mxu0 0.0
      %562 = vmatpush1.msra.mxu0 0.0
      %563 = vmatprep.subr.mxu0 0.0
      %564 = vmatpush1.msra.mxu0 0.0
      %565 = vmatprep.subr.mxu0 0.0
      %566 = vmatpush1.msra.mxu0 0.0
      %567 = vmatprep.subr.mxu0 0.0
      %568 = vmatpush1.msra.mxu0 0.0
      %569 = vmatprep.subr.mxu0 0.0
      %570 = vmatpush1.msra.mxu0 0.0
      %571 = vmatprep.subr.mxu0 0.0
      %572 = vmatpush1.msra.mxu0 0.0
      %573 = vmatprep.subr.mxu0 0.0
      %574 = vmatpush1.msra.mxu0 0.0
      %575 = vmatprep.subr.mxu0 0.0
      %576 = vmatpush1.msra.mxu0 0.0
      %577 = vmatprep.subr.mxu0 0.0
      %578 = vmatpush1.msra.mxu0 0.0
      %579 = vmatprep.subr.mxu0 0.0
      %580 = vmatpush1.msra.mxu0 0.0
      %581 = vmatprep.subr.mxu0 0.0
      %582 = vmatpush1.msra.mxu0 0.0
      %583 = vmatprep.subr.mxu0 0.0
      %584 = vmatpush1.msra.mxu0 %v551
      %585 = vmatprep.subr.mxu0 0.0
      %586 = vmatpush2.msra.mxu0 0.0
      %587 = vmatprep.subr.mxu0 0.0
      %588 = vmatpush2.msra.mxu0 0.0
      %589 = vmatprep.subr.mxu0 0.0
      %590 = vmatpush2.msra.mxu0 0.0
      %591 = vmatprep.subr.mxu0 0.0
      %592 = vmatpush2.msra.mxu0 0.0
      %593 = vmatprep.subr.mxu0 0.0
      %594 = vmatpush2.msra.mxu0 0.0
      %595 = vmatprep.subr.mxu0 0.0
      %596 = vmatpush2.msra.mxu0 0.0
      %597 = vmatprep.subr.mxu0 0.0
      %598 = vmatpush2.msra.mxu0 0.0
      %599 = vmatprep.subr.mxu0 0.0
      %600 = vmatpush2.msra.mxu0 0.0
      %601 = vmatprep.subr.mxu0 0.0
      %602 = vmatpush2.msra.mxu0 0.0
      %603 = vmatprep.subr.mxu0 0.0
      %604 = vmatpush2.msra.mxu0 0.0
      %605 = vmatprep.subr.mxu0 0.0
      %606 = vmatpush2.msra.mxu0 0.0
      %607 = vmatprep.subr.mxu0 0.0
      %608 = vmatpush2.msra.mxu0 0.0
      %609 = vmatprep.subr.mxu0 0.0
      %610 = vmatpush2.msra.mxu0 0.0
      %611 = vmatprep.subr.mxu0 0.0
      %612 = vmatpush2.msra.mxu0 0.0
      %613 = vmatprep.subr.mxu0 0.0
      %614 = vmatpush2.msra.mxu0 0.0
      %615 = vmatprep.subr.mxu0 0.0
      %616 = vmatpush2.msra.mxu0 0.0
      %617 = vmatprep.mubr.f32.mxu0 0.0
      %618 = vmatmul.mubr.f32.gmra.mxu0 %v427
      %v619 = vpop.f32.mrf.mxu0
      %v620 = vadd.f32 %v536, %v619
      %v621 = vpop.f32.mrf.mxu0
      %622 = vmatprep.mubr.f32.mxu0 0.0
      %623 = vmatmul.mubr.f32.gmra.mxu0 %v430
      %v624 = vpop.f32.mrf.mxu0
      %v625 = vadd.f32 %v540, %v624
      %v626 = vpop.f32.mrf.mxu0
      %627 = vmatprep.mubr.f32.mxu0 0.0
      %628 = vmatmul.mubr.f32.gmra.mxu0 %v433
      %v629 = vpop.f32.mrf.mxu0
      %v630 = vadd.f32 %v544, %v629
      %v631 = vpop.f32.mrf.mxu0
      %632 = vmatprep.mubr.f32.mxu0 0.0
      %633 = vmatmul.mubr.f32.gmra.mxu0 %v436
      %v634 = vpop.f32.mrf.mxu0
      %v635 = vadd.f32 %v548, %v634
      %v636 = vpop.f32.mrf.mxu0
      %637 = vdwg.mxu0
      %s638 = scalar_lea.vmem [#allocation2], 32
      %639 = vst.msk [vmem:[%s638] sm:$0xff] %vm527, %v620
      %640 = vst.msk [vmem:[%s638 + $0x8] sm:$0xff] %vm527, %v625
      %641 = vst.msk [vmem:[%s638 + $0x10] sm:$0xff] %vm527, %v630
      %642 = vst.msk [vmem:[%s638 + $0x18] sm:$0xff] %vm527, %v635
      %s643 = scalar_lea.vmem %s260, 8
      %v644 = vld [vmem:[%s643] sm:$0x7]
      %645 = vset.pattern.permute.xlu0 2
      %646 = vperm.xlu0 %645, %v386
      %v647 = vpop.permute.xlu0 %646
      %649 = vset.pattern.permute.xlu0 2
      %650 = vperm.xlu0 %649, %v391
      %v651 = vpop.permute.xlu0 %650
      %653 = vset.pattern.permute.xlu0 2
      %654 = vperm.xlu0 %653, %v396
      %v655 = vpop.permute.xlu0 %654
      %657 = vset.pattern.permute.xlu0 2
      %658 = vperm.xlu0 %657, %v401
      %v659 = vpop.permute.xlu0 %658
      %v662 = vsel %vm438, %v644, 0
      %664 = vmatprep.subr.mxu0 0.0
      %665 = vmatpush1.msra.mxu0 0.0
      %666 = vmatprep.subr.mxu0 0.0
      %667 = vmatpush1.msra.mxu0 0.0
      %668 = vmatprep.subr.mxu0 0.0
      %669 = vmatpush1.msra.mxu0 0.0
      %670 = vmatprep.subr.mxu0 0.0
      %671 = vmatpush1.msra.mxu0 0.0
      %672 = vmatprep.subr.mxu0 0.0
      %673 = vmatpush1.msra.mxu0 0.0
      %674 = vmatprep.subr.mxu0 0.0
      %675 = vmatpush1.msra.mxu0 0.0
      %676 = vmatprep.subr.mxu0 0.0
      %677 = vmatpush1.msra.mxu0 0.0
      %678 = vmatprep.subr.mxu0 0.0
      %679 = vmatpush1.msra.mxu0 0.0
      %680 = vmatprep.subr.mxu0 0.0
      %681 = vmatpush1.msra.mxu0 0.0
      %682 = vmatprep.subr.mxu0 0.0
      %683 = vmatpush1.msra.mxu0 0.0
      %684 = vmatprep.subr.mxu0 0.0
      %685 = vmatpush1.msra.mxu0 0.0
      %686 = vmatprep.subr.mxu0 0.0
      %687 = vmatpush1.msra.mxu0 0.0
      %688 = vmatprep.subr.mxu0 0.0
      %689 = vmatpush1.msra.mxu0 0.0
      %690 = vmatprep.subr.mxu0 0.0
      %691 = vmatpush1.msra.mxu0 0.0
      %692 = vmatprep.subr.mxu0 0.0
      %693 = vmatpush1.msra.mxu0 0.0
      %694 = vmatprep.subr.mxu0 0.0
      %695 = vmatpush1.msra.mxu0 %v662
      %696 = vmatprep.subr.mxu0 0.0
      %697 = vmatpush2.msra.mxu0 0.0
      %698 = vmatprep.subr.mxu0 0.0
      %699 = vmatpush2.msra.mxu0 0.0
      %700 = vmatprep.subr.mxu0 0.0
      %701 = vmatpush2.msra.mxu0 0.0
      %702 = vmatprep.subr.mxu0 0.0
      %703 = vmatpush2.msra.mxu0 0.0
      %704 = vmatprep.subr.mxu0 0.0
      %705 = vmatpush2.msra.mxu0 0.0
      %706 = vmatprep.subr.mxu0 0.0
      %707 = vmatpush2.msra.mxu0 0.0
      %708 = vmatprep.subr.mxu0 0.0
      %709 = vmatpush2.msra.mxu0 0.0
      %710 = vmatprep.subr.mxu0 0.0
      %711 = vmatpush2.msra.mxu0 0.0
      %712 = vmatprep.subr.mxu0 0.0
      %713 = vmatpush2.msra.mxu0 0.0
      %714 = vmatprep.subr.mxu0 0.0
      %715 = vmatpush2.msra.mxu0 0.0
      %716 = vmatprep.subr.mxu0 0.0
      %717 = vmatpush2.msra.mxu0 0.0
      %718 = vmatprep.subr.mxu0 0.0
      %719 = vmatpush2.msra.mxu0 0.0
      %720 = vmatprep.subr.mxu0 0.0
      %721 = vmatpush2.msra.mxu0 0.0
      %722 = vmatprep.subr.mxu0 0.0
      %723 = vmatpush2.msra.mxu0 0.0
      %724 = vmatprep.subr.mxu0 0.0
      %725 = vmatpush2.msra.mxu0 0.0
      %726 = vmatprep.subr.mxu0 0.0
      %727 = vmatpush2.msra.mxu0 0.0
      %728 = vmatprep.mubr.f32.mxu0 0.0
      %729 = vmatmul.mubr.f32.gmra.mxu0 %v427
      %v730 = vpop.f32.mrf.mxu0
      %v731 = vadd.f32 %v647, %v730
      %v732 = vpop.f32.mrf.mxu0
      %733 = vmatprep.mubr.f32.mxu0 0.0
      %734 = vmatmul.mubr.f32.gmra.mxu0 %v430
      %v735 = vpop.f32.mrf.mxu0
      %v736 = vadd.f32 %v651, %v735
      %v737 = vpop.f32.mrf.mxu0
      %738 = vmatprep.mubr.f32.mxu0 0.0
      %739 = vmatmul.mubr.f32.gmra.mxu0 %v433
      %v740 = vpop.f32.mrf.mxu0
      %v741 = vadd.f32 %v655, %v740
      %v742 = vpop.f32.mrf.mxu0
      %743 = vmatprep.mubr.f32.mxu0 0.0
      %744 = vmatmul.mubr.f32.gmra.mxu0 %v436
      %v745 = vpop.f32.mrf.mxu0
      %v746 = vadd.f32 %v659, %v745
      %v747 = vpop.f32.mrf.mxu0
      %748 = vdwg.mxu0
      %s749 = scalar_lea.vmem [#allocation2], 64
      %750 = vst.msk [vmem:[%s749] sm:$0xff] %vm527, %v731
      %751 = vst.msk [vmem:[%s749 + $0x8] sm:$0xff] %vm527, %v736
      %752 = vst.msk [vmem:[%s749 + $0x10] sm:$0xff] %vm527, %v741
      %753 = vst.msk [vmem:[%s749 + $0x18] sm:$0xff] %vm527, %v746
      %s754 = scalar_lea.vmem %s260, 12
      %v755 = vld [vmem:[%s754] sm:$0x7]
      %756 = vset.pattern.permute.xlu0 3
      %757 = vperm.xlu0 %756, %v386
      %v758 = vpop.permute.xlu0 %757
      %760 = vset.pattern.permute.xlu0 3
      %761 = vperm.xlu0 %760, %v391
      %v762 = vpop.permute.xlu0 %761
      %764 = vset.pattern.permute.xlu0 3
      %765 = vperm.xlu0 %764, %v396
      %v766 = vpop.permute.xlu0 %765
      %768 = vset.pattern.permute.xlu0 3
      %769 = vperm.xlu0 %768, %v401
      %v770 = vpop.permute.xlu0 %769
      %v773 = vsel %vm438, %v755, 0
      %775 = vmatprep.subr.mxu0 0.0
      %776 = vmatpush1.msra.mxu0 0.0
      %777 = vmatprep.subr.mxu0 0.0
      %778 = vmatpush1.msra.mxu0 0.0
      %779 = vmatprep.subr.mxu0 0.0
      %780 = vmatpush1.msra.mxu0 0.0
      %781 = vmatprep.subr.mxu0 0.0
      %782 = vmatpush1.msra.mxu0 0.0
      %783 = vmatprep.subr.mxu0 0.0
      %784 = vmatpush1.msra.mxu0 0.0
      %785 = vmatprep.subr.mxu0 0.0
      %786 = vmatpush1.msra.mxu0 0.0
      %787 = vmatprep.subr.mxu0 0.0
      %788 = vmatpush1.msra.mxu0 0.0
      %789 = vmatprep.subr.mxu0 0.0
      %790 = vmatpush1.msra.mxu0 0.0
      %791 = vmatprep.subr.mxu0 0.0
      %792 = vmatpush1.msra.mxu0 0.0
      %793 = vmatprep.subr.mxu0 0.0
      %794 = vmatpush1.msra.mxu0 0.0
      %795 = vmatprep.subr.mxu0 0.0
      %796 = vmatpush1.msra.mxu0 0.0
      %797 = vmatprep.subr.mxu0 0.0
      %798 = vmatpush1.msra.mxu0 0.0
      %799 = vmatprep.subr.mxu0 0.0
      %800 = vmatpush1.msra.mxu0 0.0
      %801 = vmatprep.subr.mxu0 0.0
      %802 = vmatpush1.msra.mxu0 0.0
      %803 = vmatprep.subr.mxu0 0.0
      %804 = vmatpush1.msra.mxu0 0.0
      %805 = vmatprep.subr.mxu0 0.0
      %806 = vmatpush1.msra.mxu0 %v773
      %807 = vmatprep.subr.mxu0 0.0
      %808 = vmatpush2.msra.mxu0 0.0
      %809 = vmatprep.subr.mxu0 0.0
      %810 = vmatpush2.msra.mxu0 0.0
      %811 = vmatprep.subr.mxu0 0.0
      %812 = vmatpush2.msra.mxu0 0.0
      %813 = vmatprep.subr.mxu0 0.0
      %814 = vmatpush2.msra.mxu0 0.0
      %815 = vmatprep.subr.mxu0 0.0
      %816 = vmatpush2.msra.mxu0 0.0
      %817 = vmatprep.subr.mxu0 0.0
      %818 = vmatpush2.msra.mxu0 0.0
      %819 = vmatprep.subr.mxu0 0.0
      %820 = vmatpush2.msra.mxu0 0.0
      %821 = vmatprep.subr.mxu0 0.0
      %822 = vmatpush2.msra.mxu0 0.0
      %823 = vmatprep.subr.mxu0 0.0
      %824 = vmatpush2.msra.mxu0 0.0
      %825 = vmatprep.subr.mxu0 0.0
      %826 = vmatpush2.msra.mxu0 0.0
      %827 = vmatprep.subr.mxu0 0.0
      %828 = vmatpush2.msra.mxu0 0.0
      %829 = vmatprep.subr.mxu0 0.0
      %830 = vmatpush2.msra.mxu0 0.0
      %831 = vmatprep.subr.mxu0 0.0
      %832 = vmatpush2.msra.mxu0 0.0
      %833 = vmatprep.subr.mxu0 0.0
      %834 = vmatpush2.msra.mxu0 0.0
      %835 = vmatprep.subr.mxu0 0.0
      %836 = vmatpush2.msra.mxu0 0.0
      %837 = vmatprep.subr.mxu0 0.0
      %838 = vmatpush2.msra.mxu0 0.0
      %839 = vmatprep.mubr.f32.mxu0 0.0
      %840 = vmatmul.mubr.f32.gmra.mxu0 %v427
      %v841 = vpop.f32.mrf.mxu0
      %v842 = vadd.f32 %v758, %v841
      %v843 = vpop.f32.mrf.mxu0
      %844 = vmatprep.mubr.f32.mxu0 0.0
      %845 = vmatmul.mubr.f32.gmra.mxu0 %v430
      %v846 = vpop.f32.mrf.mxu0
      %v847 = vadd.f32 %v762, %v846
      %v848 = vpop.f32.mrf.mxu0
      %849 = vmatprep.mubr.f32.mxu0 0.0
      %850 = vmatmul.mubr.f32.gmra.mxu0 %v433
      %v851 = vpop.f32.mrf.mxu0
      %v852 = vadd.f32 %v766, %v851
      %v853 = vpop.f32.mrf.mxu0
      %854 = vmatprep.mubr.f32.mxu0 0.0
      %855 = vmatmul.mubr.f32.gmra.mxu0 %v436
      %v856 = vpop.f32.mrf.mxu0
      %v857 = vadd.f32 %v770, %v856
      %v858 = vpop.f32.mrf.mxu0
      %859 = vdwg.mxu0
      %s860 = scalar_lea.vmem [#allocation2], 96
      %861 = vst.msk [vmem:[%s860] sm:$0xff] %vm527, %v842
      %862 = vst.msk [vmem:[%s860 + $0x8] sm:$0xff] %vm527, %v847
      %863 = vst.msk [vmem:[%s860 + $0x10] sm:$0xff] %vm527, %v852
      %864 = vst.msk [vmem:[%s860 + $0x18] sm:$0xff] %vm527, %v857
      %s865 = scalar_lea.vmem %s260, 16
      %v866 = vld [vmem:[%s865] sm:$0x7]
      %867 = vset.pattern.permute.xlu0 4
      %868 = vperm.xlu0 %867, %v386
      %v869 = vpop.permute.xlu0 %868
      %871 = vset.pattern.permute.xlu0 4
      %872 = vperm.xlu0 %871, %v391
      %v873 = vpop.permute.xlu0 %872
      %875 = vset.pattern.permute.xlu0 4
      %876 = vperm.xlu0 %875, %v396
      %v877 = vpop.permute.xlu0 %876
      %879 = vset.pattern.permute.xlu0 4
      %880 = vperm.xlu0 %879, %v401
      %v881 = vpop.permute.xlu0 %880
      %v884 = vsel %vm438, %v866, 0
      %886 = vmatprep.subr.mxu0 0.0
      %887 = vmatpush1.msra.mxu0 0.0
      %888 = vmatprep.subr.mxu0 0.0
      %889 = vmatpush1.msra.mxu0 0.0
      %890 = vmatprep.subr.mxu0 0.0
      %891 = vmatpush1.msra.mxu0 0.0
      %892 = vmatprep.subr.mxu0 0.0
      %893 = vmatpush1.msra.mxu0 0.0
      %894 = vmatprep.subr.mxu0 0.0
      %895 = vmatpush1.msra.mxu0 0.0
      %896 = vmatprep.subr.mxu0 0.0
      %897 = vmatpush1.msra.mxu0 0.0
      %898 = vmatprep.subr.mxu0 0.0
      %899 = vmatpush1.msra.mxu0 0.0
      %900 = vmatprep.subr.mxu0 0.0
      %901 = vmatpush1.msra.mxu0 0.0
      %902 = vmatprep.subr.mxu0 0.0
      %903 = vmatpush1.msra.mxu0 0.0
      %904 = vmatprep.subr.mxu0 0.0
      %905 = vmatpush1.msra.mxu0 0.0
      %906 = vmatprep.subr.mxu0 0.0
      %907 = vmatpush1.msra.mxu0 0.0
      %908 = vmatprep.subr.mxu0 0.0
      %909 = vmatpush1.msra.mxu0 0.0
      %910 = vmatprep.subr.mxu0 0.0
      %911 = vmatpush1.msra.mxu0 0.0
      %912 = vmatprep.subr.mxu0 0.0
      %913 = vmatpush1.msra.mxu0 0.0
      %914 = vmatprep.subr.mxu0 0.0
      %915 = vmatpush1.msra.mxu0 0.0
      %916 = vmatprep.subr.mxu0 0.0
      %917 = vmatpush1.msra.mxu0 %v884
      %918 = vmatprep.subr.mxu0 0.0
      %919 = vmatpush2.msra.mxu0 0.0
      %920 = vmatprep.subr.mxu0 0.0
      %921 = vmatpush2.msra.mxu0 0.0
      %922 = vmatprep.subr.mxu0 0.0
      %923 = vmatpush2.msra.mxu0 0.0
      %924 = vmatprep.subr.mxu0 0.0
      %925 = vmatpush2.msra.mxu0 0.0
      %926 = vmatprep.subr.mxu0 0.0
      %927 = vmatpush2.msra.mxu0 0.0
      %928 = vmatprep.subr.mxu0 0.0
      %929 = vmatpush2.msra.mxu0 0.0
      %930 = vmatprep.subr.mxu0 0.0
      %931 = vmatpush2.msra.mxu0 0.0
      %932 = vmatprep.subr.mxu0 0.0
      %933 = vmatpush2.msra.mxu0 0.0
      %934 = vmatprep.subr.mxu0 0.0
      %935 = vmatpush2.msra.mxu0 0.0
      %936 = vmatprep.subr.mxu0 0.0
      %937 = vmatpush2.msra.mxu0 0.0
      %938 = vmatprep.subr.mxu0 0.0
      %939 = vmatpush2.msra.mxu0 0.0
      %940 = vmatprep.subr.mxu0 0.0
      %941 = vmatpush2.msra.mxu0 0.0
      %942 = vmatprep.subr.mxu0 0.0
      %943 = vmatpush2.msra.mxu0 0.0
      %944 = vmatprep.subr.mxu0 0.0
      %945 = vmatpush2.msra.mxu0 0.0
      %946 = vmatprep.subr.mxu0 0.0
      %947 = vmatpush2.msra.mxu0 0.0
      %948 = vmatprep.subr.mxu0 0.0
      %949 = vmatpush2.msra.mxu0 0.0
      %950 = vmatprep.mubr.f32.mxu0 0.0
      %951 = vmatmul.mubr.f32.gmra.mxu0 %v427
      %v952 = vpop.f32.mrf.mxu0
      %v953 = vadd.f32 %v869, %v952
      %v954 = vpop.f32.mrf.mxu0
      %955 = vmatprep.mubr.f32.mxu0 0.0
      %956 = vmatmul.mubr.f32.gmra.mxu0 %v430
      %v957 = vpop.f32.mrf.mxu0
      %v958 = vadd.f32 %v873, %v957
      %v959 = vpop.f32.mrf.mxu0
      %960 = vmatprep.mubr.f32.mxu0 0.0
      %961 = vmatmul.mubr.f32.gmra.mxu0 %v433
      %v962 = vpop.f32.mrf.mxu0
      %v963 = vadd.f32 %v877, %v962
      %v964 = vpop.f32.mrf.mxu0
      %965 = vmatprep.mubr.f32.mxu0 0.0
      %966 = vmatmul.mubr.f32.gmra.mxu0 %v436
      %v967 = vpop.f32.mrf.mxu0
      %v968 = vadd.f32 %v881, %v967
      %v969 = vpop.f32.mrf.mxu0
      %970 = vdwg.mxu0
      %s971 = scalar_lea.vmem [#allocation2], 128
      %972 = vst.msk [vmem:[%s971] sm:$0xff] %vm527, %v953
      %973 = vst.msk [vmem:[%s971 + $0x8] sm:$0xff] %vm527, %v958
      %974 = vst.msk [vmem:[%s971 + $0x10] sm:$0xff] %vm527, %v963
      %975 = vst.msk [vmem:[%s971 + $0x18] sm:$0xff] %vm527, %v968
      %s976 = scalar_lea.vmem %s260, 20
      %v977 = vld [vmem:[%s976] sm:$0x7]
      %978 = vset.pattern.permute.xlu0 5
      %979 = vperm.xlu0 %978, %v386
      %v980 = vpop.permute.xlu0 %979
      %982 = vset.pattern.permute.xlu0 5
      %983 = vperm.xlu0 %982, %v391
      %v984 = vpop.permute.xlu0 %983
      %986 = vset.pattern.permute.xlu0 5
      %987 = vperm.xlu0 %986, %v396
      %v988 = vpop.permute.xlu0 %987
      %990 = vset.pattern.permute.xlu0 5
      %991 = vperm.xlu0 %990, %v401
      %v992 = vpop.permute.xlu0 %991
      %v995 = vsel %vm438, %v977, 0
      %997 = vmatprep.subr.mxu0 0.0
      %998 = vmatpush1.msra.mxu0 0.0
      %999 = vmatprep.subr.mxu0 0.0
      %1000 = vmatpush1.msra.mxu0 0.0
      %1001 = vmatprep.subr.mxu0 0.0
      %1002 = vmatpush1.msra.mxu0 0.0
      %1003 = vmatprep.subr.mxu0 0.0
      %1004 = vmatpush1.msra.mxu0 0.0
      %1005 = vmatprep.subr.mxu0 0.0
      %1006 = vmatpush1.msra.mxu0 0.0
      %1007 = vmatprep.subr.mxu0 0.0
      %1008 = vmatpush1.msra.mxu0 0.0
      %1009 = vmatprep.subr.mxu0 0.0
      %1010 = vmatpush1.msra.mxu0 0.0
      %1011 = vmatprep.subr.mxu0 0.0
      %1012 = vmatpush1.msra.mxu0 0.0
      %1013 = vmatprep.subr.mxu0 0.0
      %1014 = vmatpush1.msra.mxu0 0.0
      %1015 = vmatprep.subr.mxu0 0.0
      %1016 = vmatpush1.msra.mxu0 0.0
      %1017 = vmatprep.subr.mxu0 0.0
      %1018 = vmatpush1.msra.mxu0 0.0
      %1019 = vmatprep.subr.mxu0 0.0
      %1020 = vmatpush1.msra.mxu0 0.0
      %1021 = vmatprep.subr.mxu0 0.0
      %1022 = vmatpush1.msra.mxu0 0.0
      %1023 = vmatprep.subr.mxu0 0.0
      %1024 = vmatpush1.msra.mxu0 0.0
      %1025 = vmatprep.subr.mxu0 0.0
      %1026 = vmatpush1.msra.mxu0 0.0
      %1027 = vmatprep.subr.mxu0 0.0
      %1028 = vmatpush1.msra.mxu0 %v995
      %1029 = vmatprep.subr.mxu0 0.0
      %1030 = vmatpush2.msra.mxu0 0.0
      %1031 = vmatprep.subr.mxu0 0.0
      %1032 = vmatpush2.msra.mxu0 0.0
      %1033 = vmatprep.subr.mxu0 0.0
      %1034 = vmatpush2.msra.mxu0 0.0
      %1035 = vmatprep.subr.mxu0 0.0
      %1036 = vmatpush2.msra.mxu0 0.0
      %1037 = vmatprep.subr.mxu0 0.0
      %1038 = vmatpush2.msra.mxu0 0.0
      %1039 = vmatprep.subr.mxu0 0.0
      %1040 = vmatpush2.msra.mxu0 0.0
      %1041 = vmatprep.subr.mxu0 0.0
      %1042 = vmatpush2.msra.mxu0 0.0
      %1043 = vmatprep.subr.mxu0 0.0
      %1044 = vmatpush2.msra.mxu0 0.0
      %1045 = vmatprep.subr.mxu0 0.0
      %1046 = vmatpush2.msra.mxu0 0.0
      %1047 = vmatprep.subr.mxu0 0.0
      %1048 = vmatpush2.msra.mxu0 0.0
      %1049 = vmatprep.subr.mxu0 0.0
      %1050 = vmatpush2.msra.mxu0 0.0
      %1051 = vmatprep.subr.mxu0 0.0
      %1052 = vmatpush2.msra.mxu0 0.0
      %1053 = vmatprep.subr.mxu0 0.0
      %1054 = vmatpush2.msra.mxu0 0.0
      %1055 = vmatprep.subr.mxu0 0.0
      %1056 = vmatpush2.msra.mxu0 0.0
      %1057 = vmatprep.subr.mxu0 0.0
      %1058 = vmatpush2.msra.mxu0 0.0
      %1059 = vmatprep.subr.mxu0 0.0
      %1060 = vmatpush2.msra.mxu0 0.0
      %1061 = vmatprep.mubr.f32.mxu0 0.0
      %1062 = vmatmul.mubr.f32.gmra.mxu0 %v427
      %v1063 = vpop.f32.mrf.mxu0
      %v1064 = vadd.f32 %v980, %v1063
      %v1065 = vpop.f32.mrf.mxu0
      %1066 = vmatprep.mubr.f32.mxu0 0.0
      %1067 = vmatmul.mubr.f32.gmra.mxu0 %v430
      %v1068 = vpop.f32.mrf.mxu0
      %v1069 = vadd.f32 %v984, %v1068
      %v1070 = vpop.f32.mrf.mxu0
      %1071 = vmatprep.mubr.f32.mxu0 0.0
      %1072 = vmatmul.mubr.f32.gmra.mxu0 %v433
      %v1073 = vpop.f32.mrf.mxu0
      %v1074 = vadd.f32 %v988, %v1073
      %v1075 = vpop.f32.mrf.mxu0
      %1076 = vmatprep.mubr.f32.mxu0 0.0
      %1077 = vmatmul.mubr.f32.gmra.mxu0 %v436
      %v1078 = vpop.f32.mrf.mxu0
      %v1079 = vadd.f32 %v992, %v1078
      %v1080 = vpop.f32.mrf.mxu0
      %1081 = vdwg.mxu0
      %s1082 = scalar_lea.vmem [#allocation2], 160
      %1083 = vst.msk [vmem:[%s1082] sm:$0xff] %vm527, %v1064
      %1084 = vst.msk [vmem:[%s1082 + $0x8] sm:$0xff] %vm527, %v1069
      %1085 = vst.msk [vmem:[%s1082 + $0x10] sm:$0xff] %vm527, %v1074
      %1086 = vst.msk [vmem:[%s1082 + $0x18] sm:$0xff] %vm527, %v1079
      %s1087 = scalar_lea.vmem %s260, 24
      %v1088 = vld [vmem:[%s1087] sm:$0x7]
      %1089 = vset.pattern.permute.xlu0 6
      %1090 = vperm.xlu0 %1089, %v386
      %v1091 = vpop.permute.xlu0 %1090
      %1093 = vset.pattern.permute.xlu0 6
      %1094 = vperm.xlu0 %1093, %v391
      %v1095 = vpop.permute.xlu0 %1094
      %1097 = vset.pattern.permute.xlu0 6
      %1098 = vperm.xlu0 %1097, %v396
      %v1099 = vpop.permute.xlu0 %1098
      %1101 = vset.pattern.permute.xlu0 6
      %1102 = vperm.xlu0 %1101, %v401
      %v1103 = vpop.permute.xlu0 %1102
      %v1106 = vsel %vm438, %v1088, 0
      %1108 = vmatprep.subr.mxu0 0.0
      %1109 = vmatpush1.msra.mxu0 0.0
      %1110 = vmatprep.subr.mxu0 0.0
      %1111 = vmatpush1.msra.mxu0 0.0
      %1112 = vmatprep.subr.mxu0 0.0
      %1113 = vmatpush1.msra.mxu0 0.0
      %1114 = vmatprep.subr.mxu0 0.0
      %1115 = vmatpush1.msra.mxu0 0.0
      %1116 = vmatprep.subr.mxu0 0.0
      %1117 = vmatpush1.msra.mxu0 0.0
      %1118 = vmatprep.subr.mxu0 0.0
      %1119 = vmatpush1.msra.mxu0 0.0
      %1120 = vmatprep.subr.mxu0 0.0
      %1121 = vmatpush1.msra.mxu0 0.0
      %1122 = vmatprep.subr.mxu0 0.0
      %1123 = vmatpush1.msra.mxu0 0.0
      %1124 = vmatprep.subr.mxu0 0.0
      %1125 = vmatpush1.msra.mxu0 0.0
      %1126 = vmatprep.subr.mxu0 0.0
      %1127 = vmatpush1.msra.mxu0 0.0
      %1128 = vmatprep.subr.mxu0 0.0
      %1129 = vmatpush1.msra.mxu0 0.0
      %1130 = vmatprep.subr.mxu0 0.0
      %1131 = vmatpush1.msra.mxu0 0.0
      %1132 = vmatprep.subr.mxu0 0.0
      %1133 = vmatpush1.msra.mxu0 0.0
      %1134 = vmatprep.subr.mxu0 0.0
      %1135 = vmatpush1.msra.mxu0 0.0
      %1136 = vmatprep.subr.mxu0 0.0
      %1137 = vmatpush1.msra.mxu0 0.0
      %1138 = vmatprep.subr.mxu0 0.0
      %1139 = vmatpush1.msra.mxu0 %v1106
      %1140 = vmatprep.subr.mxu0 0.0
      %1141 = vmatpush2.msra.mxu0 0.0
      %1142 = vmatprep.subr.mxu0 0.0
      %1143 = vmatpush2.msra.mxu0 0.0
      %1144 = vmatprep.subr.mxu0 0.0
      %1145 = vmatpush2.msra.mxu0 0.0
      %1146 = vmatprep.subr.mxu0 0.0
      %1147 = vmatpush2.msra.mxu0 0.0
      %1148 = vmatprep.subr.mxu0 0.0
      %1149 = vmatpush2.msra.mxu0 0.0
      %1150 = vmatprep.subr.mxu0 0.0
      %1151 = vmatpush2.msra.mxu0 0.0
      %1152 = vmatprep.subr.mxu0 0.0
      %1153 = vmatpush2.msra.mxu0 0.0
      %1154 = vmatprep.subr.mxu0 0.0
      %1155 = vmatpush2.msra.mxu0 0.0
      %1156 = vmatprep.subr.mxu0 0.0
      %1157 = vmatpush2.msra.mxu0 0.0
      %1158 = vmatprep.subr.mxu0 0.0
      %1159 = vmatpush2.msra.mxu0 0.0
      %1160 = vmatprep.subr.mxu0 0.0
      %1161 = vmatpush2.msra.mxu0 0.0
      %1162 = vmatprep.subr.mxu0 0.0
      %1163 = vmatpush2.msra.mxu0 0.0
      %1164 = vmatprep.subr.mxu0 0.0
      %1165 = vmatpush2.msra.mxu0 0.0
      %1166 = vmatprep.subr.mxu0 0.0
      %1167 = vmatpush2.msra.mxu0 0.0
      %1168 = vmatprep.subr.mxu0 0.0
      %1169 = vmatpush2.msra.mxu0 0.0
      %1170 = vmatprep.subr.mxu0 0.0
      %1171 = vmatpush2.msra.mxu0 0.0
      %1172 = vmatprep.mubr.f32.mxu0 0.0
      %1173 = vmatmul.mubr.f32.gmra.mxu0 %v427
      %v1174 = vpop.f32.mrf.mxu0
      %v1175 = vadd.f32 %v1091, %v1174
      %v1176 = vpop.f32.mrf.mxu0
      %1177 = vmatprep.mubr.f32.mxu0 0.0
      %1178 = vmatmul.mubr.f32.gmra.mxu0 %v430
      %v1179 = vpop.f32.mrf.mxu0
      %v1180 = vadd.f32 %v1095, %v1179
      %v1181 = vpop.f32.mrf.mxu0
      %1182 = vmatprep.mubr.f32.mxu0 0.0
      %1183 = vmatmul.mubr.f32.gmra.mxu0 %v433
      %v1184 = vpop.f32.mrf.mxu0
      %v1185 = vadd.f32 %v1099, %v1184
      %v1186 = vpop.f32.mrf.mxu0
      %1187 = vmatprep.mubr.f32.mxu0 0.0
      %1188 = vmatmul.mubr.f32.gmra.mxu0 %v436
      %v1189 = vpop.f32.mrf.mxu0
      %v1190 = vadd.f32 %v1103, %v1189
      %v1191 = vpop.f32.mrf.mxu0
      %1192 = vdwg.mxu0
      %s1193 = scalar_lea.vmem [#allocation2], 192
      %1194 = vst.msk [vmem:[%s1193] sm:$0xff] %vm527, %v1175
      %1195 = vst.msk [vmem:[%s1193 + $0x8] sm:$0xff] %vm527, %v1180
      %1196 = vst.msk [vmem:[%s1193 + $0x10] sm:$0xff] %vm527, %v1185
      %1197 = vst.msk [vmem:[%s1193 + $0x18] sm:$0xff] %vm527, %v1190
      %s1198 = scalar_lea.vmem %s260, 28
      %v1199 = vld [vmem:[%s1198] sm:$0x7]
      %1200 = vset.pattern.permute.xlu0 7
      %1201 = vperm.xlu0 %1200, %v386
      %v1202 = vpop.permute.xlu0 %1201
      %1204 = vset.pattern.permute.xlu0 7
      %1205 = vperm.xlu0 %1204, %v391
      %v1206 = vpop.permute.xlu0 %1205
      %1208 = vset.pattern.permute.xlu0 7
      %1209 = vperm.xlu0 %1208, %v396
      %v1210 = vpop.permute.xlu0 %1209
      %1212 = vset.pattern.permute.xlu0 7
      %1213 = vperm.xlu0 %1212, %v401
      %v1214 = vpop.permute.xlu0 %1213
      %v1217 = vsel %vm438, %v1199, 0
      %1219 = vmatprep.subr.mxu0 0.0
      %1220 = vmatpush1.msra.mxu0 0.0
      %1221 = vmatprep.subr.mxu0 0.0
      %1222 = vmatpush1.msra.mxu0 0.0
      %1223 = vmatprep.subr.mxu0 0.0
      %1224 = vmatpush1.msra.mxu0 0.0
      %1225 = vmatprep.subr.mxu0 0.0
      %1226 = vmatpush1.msra.mxu0 0.0
      %1227 = vmatprep.subr.mxu0 0.0
      %1228 = vmatpush1.msra.mxu0 0.0
      %1229 = vmatprep.subr.mxu0 0.0
      %1230 = vmatpush1.msra.mxu0 0.0
      %1231 = vmatprep.subr.mxu0 0.0
      %1232 = vmatpush1.msra.mxu0 0.0
      %1233 = vmatprep.subr.mxu0 0.0
      %1234 = vmatpush1.msra.mxu0 0.0
      %1235 = vmatprep.subr.mxu0 0.0
      %1236 = vmatpush1.msra.mxu0 0.0
      %1237 = vmatprep.subr.mxu0 0.0
      %1238 = vmatpush1.msra.mxu0 0.0
      %1239 = vmatprep.subr.mxu0 0.0
      %1240 = vmatpush1.msra.mxu0 0.0
      %1241 = vmatprep.subr.mxu0 0.0
      %1242 = vmatpush1.msra.mxu0 0.0
      %1243 = vmatprep.subr.mxu0 0.0
      %1244 = vmatpush1.msra.mxu0 0.0
      %1245 = vmatprep.subr.mxu0 0.0
      %1246 = vmatpush1.msra.mxu0 0.0
      %1247 = vmatprep.subr.mxu0 0.0
      %1248 = vmatpush1.msra.mxu0 0.0
      %1249 = vmatprep.subr.mxu0 0.0
      %1250 = vmatpush1.msra.mxu0 %v1217
      %1251 = vmatprep.subr.mxu0 0.0
      %1252 = vmatpush2.msra.mxu0 0.0
      %1253 = vmatprep.subr.mxu0 0.0
      %1254 = vmatpush2.msra.mxu0 0.0
      %1255 = vmatprep.subr.mxu0 0.0
      %1256 = vmatpush2.msra.mxu0 0.0
      %1257 = vmatprep.subr.mxu0 0.0
      %1258 = vmatpush2.msra.mxu0 0.0
      %1259 = vmatprep.subr.mxu0 0.0
      %1260 = vmatpush2.msra.mxu0 0.0
      %1261 = vmatprep.subr.mxu0 0.0
      %1262 = vmatpush2.msra.mxu0 0.0
      %1263 = vmatprep.subr.mxu0 0.0
      %1264 = vmatpush2.msra.mxu0 0.0
      %1265 = vmatprep.subr.mxu0 0.0
      %1266 = vmatpush2.msra.mxu0 0.0
      %1267 = vmatprep.subr.mxu0 0.0
      %1268 = vmatpush2.msra.mxu0 0.0
      %1269 = vmatprep.subr.mxu0 0.0
      %1270 = vmatpush2.msra.mxu0 0.0
      %1271 = vmatprep.subr.mxu0 0.0
      %1272 = vmatpush2.msra.mxu0 0.0
      %1273 = vmatprep.subr.mxu0 0.0
      %1274 = vmatpush2.msra.mxu0 0.0
      %1275 = vmatprep.subr.mxu0 0.0
      %1276 = vmatpush2.msra.mxu0 0.0
      %1277 = vmatprep.subr.mxu0 0.0
      %1278 = vmatpush2.msra.mxu0 0.0
      %1279 = vmatprep.subr.mxu0 0.0
      %1280 = vmatpush2.msra.mxu0 0.0
      %1281 = vmatprep.subr.mxu0 0.0
      %1282 = vmatpush2.msra.mxu0 0.0
      %1283 = vmatprep.mubr.f32.mxu0 0.0
      %1284 = vmatmul.mubr.f32.gmra.mxu0 %v427
      %v1285 = vpop.f32.mrf.mxu0
      %v1286 = vadd.f32 %v1202, %v1285
      %v1287 = vpop.f32.mrf.mxu0
      %1288 = vmatprep.mubr.f32.mxu0 0.0
      %1289 = vmatmul.mubr.f32.gmra.mxu0 %v430
      %v1290 = vpop.f32.mrf.mxu0
      %v1291 = vadd.f32 %v1206, %v1290
      %v1292 = vpop.f32.mrf.mxu0
      %1293 = vmatprep.mubr.f32.mxu0 0.0
      %1294 = vmatmul.mubr.f32.gmra.mxu0 %v433
      %v1295 = vpop.f32.mrf.mxu0
      %v1296 = vadd.f32 %v1210, %v1295
      %v1297 = vpop.f32.mrf.mxu0
      %1298 = vmatprep.mubr.f32.mxu0 0.0
      %1299 = vmatmul.mubr.f32.gmra.mxu0 %v436
      %v1300 = vpop.f32.mrf.mxu0
      %v1301 = vadd.f32 %v1214, %v1300
      %v1302 = vpop.f32.mrf.mxu0
      %1303 = vdwg.mxu0
      %s1304 = scalar_lea.vmem [#allocation2], 224
      %1305 = vst.msk [vmem:[%s1304] sm:$0xff] %vm527, %v1286
      %1306 = vst.msk [vmem:[%s1304 + $0x8] sm:$0xff] %vm527, %v1291
      %1307 = vst.msk [vmem:[%s1304 + $0x10] sm:$0xff] %vm527, %v1296
      %1308 = vst.msk [vmem:[%s1304 + $0x18] sm:$0xff] %vm527, %v1301
      %s1309 = scalar_lea.vmem %s260, 32
      %v1310 = vld [vmem:[%s1309] sm:$0x7]
      %1311 = vset.pattern.permute.xlu0 8
      %1312 = vperm.xlu0 %1311, %v386
      %v1313 = vpop.permute.xlu0 %1312
      %1315 = vset.pattern.permute.xlu0 8
      %1316 = vperm.xlu0 %1315, %v391
      %v1317 = vpop.permute.xlu0 %1316
      %1319 = vset.pattern.permute.xlu0 8
      %1320 = vperm.xlu0 %1319, %v396
      %v1321 = vpop.permute.xlu0 %1320
      %1323 = vset.pattern.permute.xlu0 8
      %1324 = vperm.xlu0 %1323, %v401
      %v1325 = vpop.permute.xlu0 %1324
      %v1328 = vsel %vm438, %v1310, 0
      %1330 = vmatprep.subr.mxu0 0.0
      %1331 = vmatpush1.msra.mxu0 0.0
      %1332 = vmatprep.subr.mxu0 0.0
      %1333 = vmatpush1.msra.mxu0 0.0
      %1334 = vmatprep.subr.mxu0 0.0
      %1335 = vmatpush1.msra.mxu0 0.0
      %1336 = vmatprep.subr.mxu0 0.0
      %1337 = vmatpush1.msra.mxu0 0.0
      %1338 = vmatprep.subr.mxu0 0.0
      %1339 = vmatpush1.msra.mxu0 0.0
      %1340 = vmatprep.subr.mxu0 0.0
      %1341 = vmatpush1.msra.mxu0 0.0
      %1342 = vmatprep.subr.mxu0 0.0
      %1343 = vmatpush1.msra.mxu0 0.0
      %1344 = vmatprep.subr.mxu0 0.0
      %1345 = vmatpush1.msra.mxu0 0.0
      %1346 = vmatprep.subr.mxu0 0.0
      %1347 = vmatpush1.msra.mxu0 0.0
      %1348 = vmatprep.subr.mxu0 0.0
      %1349 = vmatpush1.msra.mxu0 0.0
      %1350 = vmatprep.subr.mxu0 0.0
      %1351 = vmatpush1.msra.mxu0 0.0
      %1352 = vmatprep.subr.mxu0 0.0
      %1353 = vmatpush1.msra.mxu0 0.0
      %1354 = vmatprep.subr.mxu0 0.0
      %1355 = vmatpush1.msra.mxu0 0.0
      %1356 = vmatprep.subr.mxu0 0.0
      %1357 = vmatpush1.msra.mxu0 0.0
      %1358 = vmatprep.subr.mxu0 0.0
      %1359 = vmatpush1.msra.mxu0 0.0
      %1360 = vmatprep.subr.mxu0 0.0
      %1361 = vmatpush1.msra.mxu0 %v1328
      %1362 = vmatprep.subr.mxu0 0.0
      %1363 = vmatpush2.msra.mxu0 0.0
      %1364 = vmatprep.subr.mxu0 0.0
      %1365 = vmatpush2.msra.mxu0 0.0
      %1366 = vmatprep.subr.mxu0 0.0
      %1367 = vmatpush2.msra.mxu0 0.0
      %1368 = vmatprep.subr.mxu0 0.0
      %1369 = vmatpush2.msra.mxu0 0.0
      %1370 = vmatprep.subr.mxu0 0.0
      %1371 = vmatpush2.msra.mxu0 0.0
      %1372 = vmatprep.subr.mxu0 0.0
      %1373 = vmatpush2.msra.mxu0 0.0
      %1374 = vmatprep.subr.mxu0 0.0
      %1375 = vmatpush2.msra.mxu0 0.0
      %1376 = vmatprep.subr.mxu0 0.0
      %1377 = vmatpush2.msra.mxu0 0.0
      %1378 = vmatprep.subr.mxu0 0.0
      %1379 = vmatpush2.msra.mxu0 0.0
      %1380 = vmatprep.subr.mxu0 0.0
      %1381 = vmatpush2.msra.mxu0 0.0
      %1382 = vmatprep.subr.mxu0 0.0
      %1383 = vmatpush2.msra.mxu0 0.0
      %1384 = vmatprep.subr.mxu0 0.0
      %1385 = vmatpush2.msra.mxu0 0.0
      %1386 = vmatprep.subr.mxu0 0.0
      %1387 = vmatpush2.msra.mxu0 0.0
      %1388 = vmatprep.subr.mxu0 0.0
      %1389 = vmatpush2.msra.mxu0 0.0
      %1390 = vmatprep.subr.mxu0 0.0
      %1391 = vmatpush2.msra.mxu0 0.0
      %1392 = vmatprep.subr.mxu0 0.0
      %1393 = vmatpush2.msra.mxu0 0.0
      %1394 = vmatprep.mubr.f32.mxu0 0.0
      %1395 = vmatmul.mubr.f32.gmra.mxu0 %v427
      %v1396 = vpop.f32.mrf.mxu0
      %v1397 = vadd.f32 %v1313, %v1396
      %v1398 = vpop.f32.mrf.mxu0
      %1399 = vmatprep.mubr.f32.mxu0 0.0
      %1400 = vmatmul.mubr.f32.gmra.mxu0 %v430
      %v1401 = vpop.f32.mrf.mxu0
      %v1402 = vadd.f32 %v1317, %v1401
      %v1403 = vpop.f32.mrf.mxu0
      %1404 = vmatprep.mubr.f32.mxu0 0.0
      %1405 = vmatmul.mubr.f32.gmra.mxu0 %v433
      %v1406 = vpop.f32.mrf.mxu0
      %v1407 = vadd.f32 %v1321, %v1406
      %v1408 = vpop.f32.mrf.mxu0
      %1409 = vmatprep.mubr.f32.mxu0 0.0
      %1410 = vmatmul.mubr.f32.gmra.mxu0 %v436
      %v1411 = vpop.f32.mrf.mxu0
      %v1412 = vadd.f32 %v1325, %v1411
      %v1413 = vpop.f32.mrf.mxu0
      %1414 = vdwg.mxu0
      %s1415 = scalar_lea.vmem [#allocation2], 256
      %1416 = vst.msk [vmem:[%s1415] sm:$0xff] %vm527, %v1397
      %1417 = vst.msk [vmem:[%s1415 + $0x8] sm:$0xff] %vm527, %v1402
      %1418 = vst.msk [vmem:[%s1415 + $0x10] sm:$0xff] %vm527, %v1407
      %1419 = vst.msk [vmem:[%s1415 + $0x18] sm:$0xff] %vm527, %v1412
      %s1420 = scalar_lea.vmem %s260, 36
      %v1421 = vld [vmem:[%s1420] sm:$0x7]
      %1422 = vset.pattern.permute.xlu0 9
      %1423 = vperm.xlu0 %1422, %v386
      %v1424 = vpop.permute.xlu0 %1423
      %1426 = vset.pattern.permute.xlu0 9
      %1427 = vperm.xlu0 %1426, %v391
      %v1428 = vpop.permute.xlu0 %1427
      %1430 = vset.pattern.permute.xlu0 9
      %1431 = vperm.xlu0 %1430, %v396
      %v1432 = vpop.permute.xlu0 %1431
      %1434 = vset.pattern.permute.xlu0 9
      %1435 = vperm.xlu0 %1434, %v401
      %v1436 = vpop.permute.xlu0 %1435
      %v1439 = vsel %vm438, %v1421, 0
      %1441 = vmatprep.subr.mxu0 0.0
      %1442 = vmatpush1.msra.mxu0 0.0
      %1443 = vmatprep.subr.mxu0 0.0
      %1444 = vmatpush1.msra.mxu0 0.0
      %1445 = vmatprep.subr.mxu0 0.0
      %1446 = vmatpush1.msra.mxu0 0.0
      %1447 = vmatprep.subr.mxu0 0.0
      %1448 = vmatpush1.msra.mxu0 0.0
      %1449 = vmatprep.subr.mxu0 0.0
      %1450 = vmatpush1.msra.mxu0 0.0
      %1451 = vmatprep.subr.mxu0 0.0
      %1452 = vmatpush1.msra.mxu0 0.0
      %1453 = vmatprep.subr.mxu0 0.0
      %1454 = vmatpush1.msra.mxu0 0.0
      %1455 = vmatprep.subr.mxu0 0.0
      %1456 = vmatpush1.msra.mxu0 0.0
      %1457 = vmatprep.subr.mxu0 0.0
      %1458 = vmatpush1.msra.mxu0 0.0
      %1459 = vmatprep.subr.mxu0 0.0
      %1460 = vmatpush1.msra.mxu0 0.0
      %1461 = vmatprep.subr.mxu0 0.0
      %1462 = vmatpush1.msra.mxu0 0.0
      %1463 = vmatprep.subr.mxu0 0.0
      %1464 = vmatpush1.msra.mxu0 0.0
      %1465 = vmatprep.subr.mxu0 0.0
      %1466 = vmatpush1.msra.mxu0 0.0
      %1467 = vmatprep.subr.mxu0 0.0
      %1468 = vmatpush1.msra.mxu0 0.0
      %1469 = vmatprep.subr.mxu0 0.0
      %1470 = vmatpush1.msra.mxu0 0.0
      %1471 = vmatprep.subr.mxu0 0.0
      %1472 = vmatpush1.msra.mxu0 %v1439
      %1473 = vmatprep.subr.mxu0 0.0
      %1474 = vmatpush2.msra.mxu0 0.0
      %1475 = vmatprep.subr.mxu0 0.0
      %1476 = vmatpush2.msra.mxu0 0.0
      %1477 = vmatprep.subr.mxu0 0.0
      %1478 = vmatpush2.msra.mxu0 0.0
      %1479 = vmatprep.subr.mxu0 0.0
      %1480 = vmatpush2.msra.mxu0 0.0
      %1481 = vmatprep.subr.mxu0 0.0
      %1482 = vmatpush2.msra.mxu0 0.0
      %1483 = vmatprep.subr.mxu0 0.0
      %1484 = vmatpush2.msra.mxu0 0.0
      %1485 = vmatprep.subr.mxu0 0.0
      %1486 = vmatpush2.msra.mxu0 0.0
      %1487 = vmatprep.subr.mxu0 0.0
      %1488 = vmatpush2.msra.mxu0 0.0
      %1489 = vmatprep.subr.mxu0 0.0
      %1490 = vmatpush2.msra.mxu0 0.0
      %1491 = vmatprep.subr.mxu0 0.0
      %1492 = vmatpush2.msra.mxu0 0.0
      %1493 = vmatprep.subr.mxu0 0.0
      %1494 = vmatpush2.msra.mxu0 0.0
      %1495 = vmatprep.subr.mxu0 0.0
      %1496 = vmatpush2.msra.mxu0 0.0
      %1497 = vmatprep.subr.mxu0 0.0
      %1498 = vmatpush2.msra.mxu0 0.0
      %1499 = vmatprep.subr.mxu0 0.0
      %1500 = vmatpush2.msra.mxu0 0.0
      %1501 = vmatprep.subr.mxu0 0.0
      %1502 = vmatpush2.msra.mxu0 0.0
      %1503 = vmatprep.subr.mxu0 0.0
      %1504 = vmatpush2.msra.mxu0 0.0
      %1505 = vmatprep.mubr.f32.mxu0 0.0
      %1506 = vmatmul.mubr.f32.gmra.mxu0 %v427
      %v1507 = vpop.f32.mrf.mxu0
      %v1508 = vadd.f32 %v1424, %v1507
      %v1509 = vpop.f32.mrf.mxu0
      %1510 = vmatprep.mubr.f32.mxu0 0.0
      %1511 = vmatmul.mubr.f32.gmra.mxu0 %v430
      %v1512 = vpop.f32.mrf.mxu0
      %v1513 = vadd.f32 %v1428, %v1512
      %v1514 = vpop.f32.mrf.mxu0
      %1515 = vmatprep.mubr.f32.mxu0 0.0
      %1516 = vmatmul.mubr.f32.gmra.mxu0 %v433
      %v1517 = vpop.f32.mrf.mxu0
      %v1518 = vadd.f32 %v1432, %v1517
      %v1519 = vpop.f32.mrf.mxu0
      %1520 = vmatprep.mubr.f32.mxu0 0.0
      %1521 = vmatmul.mubr.f32.gmra.mxu0 %v436
      %v1522 = vpop.f32.mrf.mxu0
      %v1523 = vadd.f32 %v1436, %v1522
      %v1524 = vpop.f32.mrf.mxu0
      %1525 = vdwg.mxu0
      %s1526 = scalar_lea.vmem [#allocation2], 288
      %1527 = vst.msk [vmem:[%s1526] sm:$0xff] %vm527, %v1508
      %1528 = vst.msk [vmem:[%s1526 + $0x8] sm:$0xff] %vm527, %v1513
      %1529 = vst.msk [vmem:[%s1526 + $0x10] sm:$0xff] %vm527, %v1518
      %1530 = vst.msk [vmem:[%s1526 + $0x18] sm:$0xff] %vm527, %v1523
      %s1531 = scalar_lea.vmem %s260, 40
      %v1532 = vld [vmem:[%s1531] sm:$0x7]
      %1533 = vset.pattern.permute.xlu0 10
      %1534 = vperm.xlu0 %1533, %v386
      %v1535 = vpop.permute.xlu0 %1534
      %1537 = vset.pattern.permute.xlu0 10
      %1538 = vperm.xlu0 %1537, %v391
      %v1539 = vpop.permute.xlu0 %1538
      %1541 = vset.pattern.permute.xlu0 10
      %1542 = vperm.xlu0 %1541, %v396
      %v1543 = vpop.permute.xlu0 %1542
      %1545 = vset.pattern.permute.xlu0 10
      %1546 = vperm.xlu0 %1545, %v401
      %v1547 = vpop.permute.xlu0 %1546
      %v1550 = vsel %vm438, %v1532, 0
      %1552 = vmatprep.subr.mxu0 0.0
      %1553 = vmatpush1.msra.mxu0 0.0
      %1554 = vmatprep.subr.mxu0 0.0
      %1555 = vmatpush1.msra.mxu0 0.0
      %1556 = vmatprep.subr.mxu0 0.0
      %1557 = vmatpush1.msra.mxu0 0.0
      %1558 = vmatprep.subr.mxu0 0.0
      %1559 = vmatpush1.msra.mxu0 0.0
      %1560 = vmatprep.subr.mxu0 0.0
      %1561 = vmatpush1.msra.mxu0 0.0
      %1562 = vmatprep.subr.mxu0 0.0
      %1563 = vmatpush1.msra.mxu0 0.0
      %1564 = vmatprep.subr.mxu0 0.0
      %1565 = vmatpush1.msra.mxu0 0.0
      %1566 = vmatprep.subr.mxu0 0.0
      %1567 = vmatpush1.msra.mxu0 0.0
      %1568 = vmatprep.subr.mxu0 0.0
      %1569 = vmatpush1.msra.mxu0 0.0
      %1570 = vmatprep.subr.mxu0 0.0
      %1571 = vmatpush1.msra.mxu0 0.0
      %1572 = vmatprep.subr.mxu0 0.0
      %1573 = vmatpush1.msra.mxu0 0.0
      %1574 = vmatprep.subr.mxu0 0.0
      %1575 = vmatpush1.msra.mxu0 0.0
      %1576 = vmatprep.subr.mxu0 0.0
      %1577 = vmatpush1.msra.mxu0 0.0
      %1578 = vmatprep.subr.mxu0 0.0
      %1579 = vmatpush1.msra.mxu0 0.0
      %1580 = vmatprep.subr.mxu0 0.0
      %1581 = vmatpush1.msra.mxu0 0.0
      %1582 = vmatprep.subr.mxu0 0.0
      %1583 = vmatpush1.msra.mxu0 %v1550
      %1584 = vmatprep.subr.mxu0 0.0
      %1585 = vmatpush2.msra.mxu0 0.0
      %1586 = vmatprep.subr.mxu0 0.0
      %1587 = vmatpush2.msra.mxu0 0.0
      %1588 = vmatprep.subr.mxu0 0.0
      %1589 = vmatpush2.msra.mxu0 0.0
      %1590 = vmatprep.subr.mxu0 0.0
      %1591 = vmatpush2.msra.mxu0 0.0
      %1592 = vmatprep.subr.mxu0 0.0
      %1593 = vmatpush2.msra.mxu0 0.0
      %1594 = vmatprep.subr.mxu0 0.0
      %1595 = vmatpush2.msra.mxu0 0.0
      %1596 = vmatprep.subr.mxu0 0.0
      %1597 = vmatpush2.msra.mxu0 0.0
      %1598 = vmatprep.subr.mxu0 0.0
      %1599 = vmatpush2.msra.mxu0 0.0
      %1600 = vmatprep.subr.mxu0 0.0
      %1601 = vmatpush2.msra.mxu0 0.0
      %1602 = vmatprep.subr.mxu0 0.0
      %1603 = vmatpush2.msra.mxu0 0.0
      %1604 = vmatprep.subr.mxu0 0.0
      %1605 = vmatpush2.msra.mxu0 0.0
      %1606 = vmatprep.subr.mxu0 0.0
      %1607 = vmatpush2.msra.mxu0 0.0
      %1608 = vmatprep.subr.mxu0 0.0
      %1609 = vmatpush2.msra.mxu0 0.0
      %1610 = vmatprep.subr.mxu0 0.0
      %1611 = vmatpush2.msra.mxu0 0.0
      %1612 = vmatprep.subr.mxu0 0.0
      %1613 = vmatpush2.msra.mxu0 0.0
      %1614 = vmatprep.subr.mxu0 0.0
      %1615 = vmatpush2.msra.mxu0 0.0
      %1616 = vmatprep.mubr.f32.mxu0 0.0
      %1617 = vmatmul.mubr.f32.gmra.mxu0 %v427
      %v1618 = vpop.f32.mrf.mxu0
      %v1619 = vadd.f32 %v1535, %v1618
      %v1620 = vpop.f32.mrf.mxu0
      %1621 = vmatprep.mubr.f32.mxu0 0.0
      %1622 = vmatmul.mubr.f32.gmra.mxu0 %v430
      %v1623 = vpop.f32.mrf.mxu0
      %v1624 = vadd.f32 %v1539, %v1623
      %v1625 = vpop.f32.mrf.mxu0
      %1626 = vmatprep.mubr.f32.mxu0 0.0
      %1627 = vmatmul.mubr.f32.gmra.mxu0 %v433
      %v1628 = vpop.f32.mrf.mxu0
      %v1629 = vadd.f32 %v1543, %v1628
      %v1630 = vpop.f32.mrf.mxu0
      %1631 = vmatprep.mubr.f32.mxu0 0.0
      %1632 = vmatmul.mubr.f32.gmra.mxu0 %v436
      %v1633 = vpop.f32.mrf.mxu0
      %v1634 = vadd.f32 %v1547, %v1633
      %v1635 = vpop.f32.mrf.mxu0
      %1636 = vdwg.mxu0
      %s1637 = scalar_lea.vmem [#allocation2], 320
      %1638 = vst.msk [vmem:[%s1637] sm:$0xff] %vm527, %v1619
      %1639 = vst.msk [vmem:[%s1637 + $0x8] sm:$0xff] %vm527, %v1624
      %1640 = vst.msk [vmem:[%s1637 + $0x10] sm:$0xff] %vm527, %v1629
      %1641 = vst.msk [vmem:[%s1637 + $0x18] sm:$0xff] %vm527, %v1634
      %s1642 = scalar_lea.vmem %s260, 44
      %v1643 = vld [vmem:[%s1642] sm:$0x7]
      %1644 = vset.pattern.permute.xlu0 11
      %1645 = vperm.xlu0 %1644, %v386
      %v1646 = vpop.permute.xlu0 %1645
      %1648 = vset.pattern.permute.xlu0 11
      %1649 = vperm.xlu0 %1648, %v391
      %v1650 = vpop.permute.xlu0 %1649
      %1652 = vset.pattern.permute.xlu0 11
      %1653 = vperm.xlu0 %1652, %v396
      %v1654 = vpop.permute.xlu0 %1653
      %1656 = vset.pattern.permute.xlu0 11
      %1657 = vperm.xlu0 %1656, %v401
      %v1658 = vpop.permute.xlu0 %1657
      %v1661 = vsel %vm438, %v1643, 0
      %1663 = vmatprep.subr.mxu0 0.0
      %1664 = vmatpush1.msra.mxu0 0.0
      %1665 = vmatprep.subr.mxu0 0.0
      %1666 = vmatpush1.msra.mxu0 0.0
      %1667 = vmatprep.subr.mxu0 0.0
      %1668 = vmatpush1.msra.mxu0 0.0
      %1669 = vmatprep.subr.mxu0 0.0
      %1670 = vmatpush1.msra.mxu0 0.0
      %1671 = vmatprep.subr.mxu0 0.0
      %1672 = vmatpush1.msra.mxu0 0.0
      %1673 = vmatprep.subr.mxu0 0.0
      %1674 = vmatpush1.msra.mxu0 0.0
      %1675 = vmatprep.subr.mxu0 0.0
      %1676 = vmatpush1.msra.mxu0 0.0
      %1677 = vmatprep.subr.mxu0 0.0
      %1678 = vmatpush1.msra.mxu0 0.0
      %1679 = vmatprep.subr.mxu0 0.0
      %1680 = vmatpush1.msra.mxu0 0.0
      %1681 = vmatprep.subr.mxu0 0.0
      %1682 = vmatpush1.msra.mxu0 0.0
      %1683 = vmatprep.subr.mxu0 0.0
      %1684 = vmatpush1.msra.mxu0 0.0
      %1685 = vmatprep.subr.mxu0 0.0
      %1686 = vmatpush1.msra.mxu0 0.0
      %1687 = vmatprep.subr.mxu0 0.0
      %1688 = vmatpush1.msra.mxu0 0.0
      %1689 = vmatprep.subr.mxu0 0.0
      %1690 = vmatpush1.msra.mxu0 0.0
      %1691 = vmatprep.subr.mxu0 0.0
      %1692 = vmatpush1.msra.mxu0 0.0
      %1693 = vmatprep.subr.mxu0 0.0
      %1694 = vmatpush1.msra.mxu0 %v1661
      %1695 = vmatprep.subr.mxu0 0.0
      %1696 = vmatpush2.msra.mxu0 0.0
      %1697 = vmatprep.subr.mxu0 0.0
      %1698 = vmatpush2.msra.mxu0 0.0
      %1699 = vmatprep.subr.mxu0 0.0
      %1700 = vmatpush2.msra.mxu0 0.0
      %1701 = vmatprep.subr.mxu0 0.0
      %1702 = vmatpush2.msra.mxu0 0.0
      %1703 = vmatprep.subr.mxu0 0.0
      %1704 = vmatpush2.msra.mxu0 0.0
      %1705 = vmatprep.subr.mxu0 0.0
      %1706 = vmatpush2.msra.mxu0 0.0
      %1707 = vmatprep.subr.mxu0 0.0
      %1708 = vmatpush2.msra.mxu0 0.0
      %1709 = vmatprep.subr.mxu0 0.0
      %1710 = vmatpush2.msra.mxu0 0.0
      %1711 = vmatprep.subr.mxu0 0.0
      %1712 = vmatpush2.msra.mxu0 0.0
      %1713 = vmatprep.subr.mxu0 0.0
      %1714 = vmatpush2.msra.mxu0 0.0
      %1715 = vmatprep.subr.mxu0 0.0
      %1716 = vmatpush2.msra.mxu0 0.0
      %1717 = vmatprep.subr.mxu0 0.0
      %1718 = vmatpush2.msra.mxu0 0.0
      %1719 = vmatprep.subr.mxu0 0.0
      %1720 = vmatpush2.msra.mxu0 0.0
      %1721 = vmatprep.subr.mxu0 0.0
      %1722 = vmatpush2.msra.mxu0 0.0
      %1723 = vmatprep.subr.mxu0 0.0
      %1724 = vmatpush2.msra.mxu0 0.0
      %1725 = vmatprep.subr.mxu0 0.0
      %1726 = vmatpush2.msra.mxu0 0.0
      %1727 = vmatprep.mubr.f32.mxu0 0.0
      %1728 = vmatmul.mubr.f32.gmra.mxu0 %v427
      %v1729 = vpop.f32.mrf.mxu0
      %v1730 = vadd.f32 %v1646, %v1729
      %v1731 = vpop.f32.mrf.mxu0
      %1732 = vmatprep.mubr.f32.mxu0 0.0
      %1733 = vmatmul.mubr.f32.gmra.mxu0 %v430
      %v1734 = vpop.f32.mrf.mxu0
      %v1735 = vadd.f32 %v1650, %v1734
      %v1736 = vpop.f32.mrf.mxu0
      %1737 = vmatprep.mubr.f32.mxu0 0.0
      %1738 = vmatmul.mubr.f32.gmra.mxu0 %v433
      %v1739 = vpop.f32.mrf.mxu0
      %v1740 = vadd.f32 %v1654, %v1739
      %v1741 = vpop.f32.mrf.mxu0
      %1742 = vmatprep.mubr.f32.mxu0 0.0
      %1743 = vmatmul.mubr.f32.gmra.mxu0 %v436
      %v1744 = vpop.f32.mrf.mxu0
      %v1745 = vadd.f32 %v1658, %v1744
      %v1746 = vpop.f32.mrf.mxu0
      %1747 = vdwg.mxu0
      %s1748 = scalar_lea.vmem [#allocation2], 352
      %1749 = vst.msk [vmem:[%s1748] sm:$0xff] %vm527, %v1730
      %1750 = vst.msk [vmem:[%s1748 + $0x8] sm:$0xff] %vm527, %v1735
      %1751 = vst.msk [vmem:[%s1748 + $0x10] sm:$0xff] %vm527, %v1740
      %1752 = vst.msk [vmem:[%s1748 + $0x18] sm:$0xff] %vm527, %v1745
      %s1753 = scalar_lea.vmem %s260, 48
      %v1754 = vld [vmem:[%s1753] sm:$0x7]
      %1755 = vset.pattern.permute.xlu0 12
      %1756 = vperm.xlu0 %1755, %v386
      %v1757 = vpop.permute.xlu0 %1756
      %1759 = vset.pattern.permute.xlu0 12
      %1760 = vperm.xlu0 %1759, %v391
      %v1761 = vpop.permute.xlu0 %1760
      %1763 = vset.pattern.permute.xlu0 12
      %1764 = vperm.xlu0 %1763, %v396
      %v1765 = vpop.permute.xlu0 %1764
      %1767 = vset.pattern.permute.xlu0 12
      %1768 = vperm.xlu0 %1767, %v401
      %v1769 = vpop.permute.xlu0 %1768
      %v1772 = vsel %vm438, %v1754, 0
      %1774 = vmatprep.subr.mxu0 0.0
      %1775 = vmatpush1.msra.mxu0 0.0
      %1776 = vmatprep.subr.mxu0 0.0
      %1777 = vmatpush1.msra.mxu0 0.0
      %1778 = vmatprep.subr.mxu0 0.0
      %1779 = vmatpush1.msra.mxu0 0.0
      %1780 = vmatprep.subr.mxu0 0.0
      %1781 = vmatpush1.msra.mxu0 0.0
      %1782 = vmatprep.subr.mxu0 0.0
      %1783 = vmatpush1.msra.mxu0 0.0
      %1784 = vmatprep.subr.mxu0 0.0
      %1785 = vmatpush1.msra.mxu0 0.0
      %1786 = vmatprep.subr.mxu0 0.0
      %1787 = vmatpush1.msra.mxu0 0.0
      %1788 = vmatprep.subr.mxu0 0.0
      %1789 = vmatpush1.msra.mxu0 0.0
      %1790 = vmatprep.subr.mxu0 0.0
      %1791 = vmatpush1.msra.mxu0 0.0
      %1792 = vmatprep.subr.mxu0 0.0
      %1793 = vmatpush1.msra.mxu0 0.0
      %1794 = vmatprep.subr.mxu0 0.0
      %1795 = vmatpush1.msra.mxu0 0.0
      %1796 = vmatprep.subr.mxu0 0.0
      %1797 = vmatpush1.msra.mxu0 0.0
      %1798 = vmatprep.subr.mxu0 0.0
      %1799 = vmatpush1.msra.mxu0 0.0
      %1800 = vmatprep.subr.mxu0 0.0
      %1801 = vmatpush1.msra.mxu0 0.0
      %1802 = vmatprep.subr.mxu0 0.0
      %1803 = vmatpush1.msra.mxu0 0.0
      %1804 = vmatprep.subr.mxu0 0.0
      %1805 = vmatpush1.msra.mxu0 %v1772
      %1806 = vmatprep.subr.mxu0 0.0
      %1807 = vmatpush2.msra.mxu0 0.0
      %1808 = vmatprep.subr.mxu0 0.0
      %1809 = vmatpush2.msra.mxu0 0.0
      %1810 = vmatprep.subr.mxu0 0.0
      %1811 = vmatpush2.msra.mxu0 0.0
      %1812 = vmatprep.subr.mxu0 0.0
      %1813 = vmatpush2.msra.mxu0 0.0
      %1814 = vmatprep.subr.mxu0 0.0
      %1815 = vmatpush2.msra.mxu0 0.0
      %1816 = vmatprep.subr.mxu0 0.0
      %1817 = vmatpush2.msra.mxu0 0.0
      %1818 = vmatprep.subr.mxu0 0.0
      %1819 = vmatpush2.msra.mxu0 0.0
      %1820 = vmatprep.subr.mxu0 0.0
      %1821 = vmatpush2.msra.mxu0 0.0
      %1822 = vmatprep.subr.mxu0 0.0
      %1823 = vmatpush2.msra.mxu0 0.0
      %1824 = vmatprep.subr.mxu0 0.0
      %1825 = vmatpush2.msra.mxu0 0.0
      %1826 = vmatprep.subr.mxu0 0.0
      %1827 = vmatpush2.msra.mxu0 0.0
      %1828 = vmatprep.subr.mxu0 0.0
      %1829 = vmatpush2.msra.mxu0 0.0
      %1830 = vmatprep.subr.mxu0 0.0
      %1831 = vmatpush2.msra.mxu0 0.0
      %1832 = vmatprep.subr.mxu0 0.0
      %1833 = vmatpush2.msra.mxu0 0.0
      %1834 = vmatprep.subr.mxu0 0.0
      %1835 = vmatpush2.msra.mxu0 0.0
      %1836 = vmatprep.subr.mxu0 0.0
      %1837 = vmatpush2.msra.mxu0 0.0
      %1838 = vmatprep.mubr.f32.mxu0 0.0
      %1839 = vmatmul.mubr.f32.gmra.mxu0 %v427
      %v1840 = vpop.f32.mrf.mxu0
      %v1841 = vadd.f32 %v1757, %v1840
      %v1842 = vpop.f32.mrf.mxu0
      %1843 = vmatprep.mubr.f32.mxu0 0.0
      %1844 = vmatmul.mubr.f32.gmra.mxu0 %v430
      %v1845 = vpop.f32.mrf.mxu0
      %v1846 = vadd.f32 %v1761, %v1845
      %v1847 = vpop.f32.mrf.mxu0
      %1848 = vmatprep.mubr.f32.mxu0 0.0
      %1849 = vmatmul.mubr.f32.gmra.mxu0 %v433
      %v1850 = vpop.f32.mrf.mxu0
      %v1851 = vadd.f32 %v1765, %v1850
      %v1852 = vpop.f32.mrf.mxu0
      %1853 = vmatprep.mubr.f32.mxu0 0.0
      %1854 = vmatmul.mubr.f32.gmra.mxu0 %v436
      %v1855 = vpop.f32.mrf.mxu0
      %v1856 = vadd.f32 %v1769, %v1855
      %v1857 = vpop.f32.mrf.mxu0
      %1858 = vdwg.mxu0
      %s1859 = scalar_lea.vmem [#allocation2], 384
      %1860 = vst.msk [vmem:[%s1859] sm:$0xff] %vm527, %v1841
      %1861 = vst.msk [vmem:[%s1859 + $0x8] sm:$0xff] %vm527, %v1846
      %1862 = vst.msk [vmem:[%s1859 + $0x10] sm:$0xff] %vm527, %v1851
      %1863 = vst.msk [vmem:[%s1859 + $0x18] sm:$0xff] %vm527, %v1856
      %s1864 = scalar_lea.vmem %s260, 52
      %v1865 = vld [vmem:[%s1864] sm:$0x7]
      %1866 = vset.pattern.permute.xlu0 13
      %1867 = vperm.xlu0 %1866, %v386
      %v1868 = vpop.permute.xlu0 %1867
      %1870 = vset.pattern.permute.xlu0 13
      %1871 = vperm.xlu0 %1870, %v391
      %v1872 = vpop.permute.xlu0 %1871
      %1874 = vset.pattern.permute.xlu0 13
      %1875 = vperm.xlu0 %1874, %v396
      %v1876 = vpop.permute.xlu0 %1875
      %1878 = vset.pattern.permute.xlu0 13
      %1879 = vperm.xlu0 %1878, %v401
      %v1880 = vpop.permute.xlu0 %1879
      %v1883 = vsel %vm438, %v1865, 0
      %1885 = vmatprep.subr.mxu0 0.0
      %1886 = vmatpush1.msra.mxu0 0.0
      %1887 = vmatprep.subr.mxu0 0.0
      %1888 = vmatpush1.msra.mxu0 0.0
      %1889 = vmatprep.subr.mxu0 0.0
      %1890 = vmatpush1.msra.mxu0 0.0
      %1891 = vmatprep.subr.mxu0 0.0
      %1892 = vmatpush1.msra.mxu0 0.0
      %1893 = vmatprep.subr.mxu0 0.0
      %1894 = vmatpush1.msra.mxu0 0.0
      %1895 = vmatprep.subr.mxu0 0.0
      %1896 = vmatpush1.msra.mxu0 0.0
      %1897 = vmatprep.subr.mxu0 0.0
      %1898 = vmatpush1.msra.mxu0 0.0
      %1899 = vmatprep.subr.mxu0 0.0
      %1900 = vmatpush1.msra.mxu0 0.0
      %1901 = vmatprep.subr.mxu0 0.0
      %1902 = vmatpush1.msra.mxu0 0.0
      %1903 = vmatprep.subr.mxu0 0.0
      %1904 = vmatpush1.msra.mxu0 0.0
      %1905 = vmatprep.subr.mxu0 0.0
      %1906 = vmatpush1.msra.mxu0 0.0
      %1907 = vmatprep.subr.mxu0 0.0
      %1908 = vmatpush1.msra.mxu0 0.0
      %1909 = vmatprep.subr.mxu0 0.0
      %1910 = vmatpush1.msra.mxu0 0.0
      %1911 = vmatprep.subr.mxu0 0.0
      %1912 = vmatpush1.msra.mxu0 0.0
      %1913 = vmatprep.subr.mxu0 0.0
      %1914 = vmatpush1.msra.mxu0 0.0
      %1915 = vmatprep.subr.mxu0 0.0
      %1916 = vmatpush1.msra.mxu0 %v1883
      %1917 = vmatprep.subr.mxu0 0.0
      %1918 = vmatpush2.msra.mxu0 0.0
      %1919 = vmatprep.subr.mxu0 0.0
      %1920 = vmatpush2.msra.mxu0 0.0
      %1921 = vmatprep.subr.mxu0 0.0
      %1922 = vmatpush2.msra.mxu0 0.0
      %1923 = vmatprep.subr.mxu0 0.0
      %1924 = vmatpush2.msra.mxu0 0.0
      %1925 = vmatprep.subr.mxu0 0.0
      %1926 = vmatpush2.msra.mxu0 0.0
      %1927 = vmatprep.subr.mxu0 0.0
      %1928 = vmatpush2.msra.mxu0 0.0
      %1929 = vmatprep.subr.mxu0 0.0
      %1930 = vmatpush2.msra.mxu0 0.0
      %1931 = vmatprep.subr.mxu0 0.0
      %1932 = vmatpush2.msra.mxu0 0.0
      %1933 = vmatprep.subr.mxu0 0.0
      %1934 = vmatpush2.msra.mxu0 0.0
      %1935 = vmatprep.subr.mxu0 0.0
      %1936 = vmatpush2.msra.mxu0 0.0
      %1937 = vmatprep.subr.mxu0 0.0
      %1938 = vmatpush2.msra.mxu0 0.0
      %1939 = vmatprep.subr.mxu0 0.0
      %1940 = vmatpush2.msra.mxu0 0.0
      %1941 = vmatprep.subr.mxu0 0.0
      %1942 = vmatpush2.msra.mxu0 0.0
      %1943 = vmatprep.subr.mxu0 0.0
      %1944 = vmatpush2.msra.mxu0 0.0
      %1945 = vmatprep.subr.mxu0 0.0
      %1946 = vmatpush2.msra.mxu0 0.0
      %1947 = vmatprep.subr.mxu0 0.0
      %1948 = vmatpush2.msra.mxu0 0.0
      %1949 = vmatprep.mubr.f32.mxu0 0.0
      %1950 = vmatmul.mubr.f32.gmra.mxu0 %v427
      %v1951 = vpop.f32.mrf.mxu0
      %v1952 = vadd.f32 %v1868, %v1951
      %v1953 = vpop.f32.mrf.mxu0
      %1954 = vmatprep.mubr.f32.mxu0 0.0
      %1955 = vmatmul.mubr.f32.gmra.mxu0 %v430
      %v1956 = vpop.f32.mrf.mxu0
      %v1957 = vadd.f32 %v1872, %v1956
      %v1958 = vpop.f32.mrf.mxu0
      %1959 = vmatprep.mubr.f32.mxu0 0.0
      %1960 = vmatmul.mubr.f32.gmra.mxu0 %v433
      %v1961 = vpop.f32.mrf.mxu0
      %v1962 = vadd.f32 %v1876, %v1961
      %v1963 = vpop.f32.mrf.mxu0
      %1964 = vmatprep.mubr.f32.mxu0 0.0
      %1965 = vmatmul.mubr.f32.gmra.mxu0 %v436
      %v1966 = vpop.f32.mrf.mxu0
      %v1967 = vadd.f32 %v1880, %v1966
      %v1968 = vpop.f32.mrf.mxu0
      %1969 = vdwg.mxu0
      %s1970 = scalar_lea.vmem [#allocation2], 416
      %1971 = vst.msk [vmem:[%s1970] sm:$0xff] %vm527, %v1952
      %1972 = vst.msk [vmem:[%s1970 + $0x8] sm:$0xff] %vm527, %v1957
      %1973 = vst.msk [vmem:[%s1970 + $0x10] sm:$0xff] %vm527, %v1962
      %1974 = vst.msk [vmem:[%s1970 + $0x18] sm:$0xff] %vm527, %v1967
      %s1975 = scalar_lea.vmem %s260, 56
      %v1976 = vld [vmem:[%s1975] sm:$0x7]
      %1977 = vset.pattern.permute.xlu0 14
      %1978 = vperm.xlu0 %1977, %v386
      %v1979 = vpop.permute.xlu0 %1978
      %1981 = vset.pattern.permute.xlu0 14
      %1982 = vperm.xlu0 %1981, %v391
      %v1983 = vpop.permute.xlu0 %1982
      %1985 = vset.pattern.permute.xlu0 14
      %1986 = vperm.xlu0 %1985, %v396
      %v1987 = vpop.permute.xlu0 %1986
      %1989 = vset.pattern.permute.xlu0 14
      %1990 = vperm.xlu0 %1989, %v401
      %v1991 = vpop.permute.xlu0 %1990
      %v1994 = vsel %vm438, %v1976, 0
      %1996 = vmatprep.subr.mxu0 0.0
      %1997 = vmatpush1.msra.mxu0 0.0
      %1998 = vmatprep.subr.mxu0 0.0
      %1999 = vmatpush1.msra.mxu0 0.0
      %2000 = vmatprep.subr.mxu0 0.0
      %2001 = vmatpush1.msra.mxu0 0.0
      %2002 = vmatprep.subr.mxu0 0.0
      %2003 = vmatpush1.msra.mxu0 0.0
      %2004 = vmatprep.subr.mxu0 0.0
      %2005 = vmatpush1.msra.mxu0 0.0
      %2006 = vmatprep.subr.mxu0 0.0
      %2007 = vmatpush1.msra.mxu0 0.0
      %2008 = vmatprep.subr.mxu0 0.0
      %2009 = vmatpush1.msra.mxu0 0.0
      %2010 = vmatprep.subr.mxu0 0.0
      %2011 = vmatpush1.msra.mxu0 0.0
      %2012 = vmatprep.subr.mxu0 0.0
      %2013 = vmatpush1.msra.mxu0 0.0
      %2014 = vmatprep.subr.mxu0 0.0
      %2015 = vmatpush1.msra.mxu0 0.0
      %2016 = vmatprep.subr.mxu0 0.0
      %2017 = vmatpush1.msra.mxu0 0.0
      %2018 = vmatprep.subr.mxu0 0.0
      %2019 = vmatpush1.msra.mxu0 0.0
      %2020 = vmatprep.subr.mxu0 0.0
      %2021 = vmatpush1.msra.mxu0 0.0
      %2022 = vmatprep.subr.mxu0 0.0
      %2023 = vmatpush1.msra.mxu0 0.0
      %2024 = vmatprep.subr.mxu0 0.0
      %2025 = vmatpush1.msra.mxu0 0.0
      %2026 = vmatprep.subr.mxu0 0.0
      %2027 = vmatpush1.msra.mxu0 %v1994
      %2028 = vmatprep.subr.mxu0 0.0
      %2029 = vmatpush2.msra.mxu0 0.0
      %2030 = vmatprep.subr.mxu0 0.0
      %2031 = vmatpush2.msra.mxu0 0.0
      %2032 = vmatprep.subr.mxu0 0.0
      %2033 = vmatpush2.msra.mxu0 0.0
      %2034 = vmatprep.subr.mxu0 0.0
      %2035 = vmatpush2.msra.mxu0 0.0
      %2036 = vmatprep.subr.mxu0 0.0
      %2037 = vmatpush2.msra.mxu0 0.0
      %2038 = vmatprep.subr.mxu0 0.0
      %2039 = vmatpush2.msra.mxu0 0.0
      %2040 = vmatprep.subr.mxu0 0.0
      %2041 = vmatpush2.msra.mxu0 0.0
      %2042 = vmatprep.subr.mxu0 0.0
      %2043 = vmatpush2.msra.mxu0 0.0
      %2044 = vmatprep.subr.mxu0 0.0
      %2045 = vmatpush2.msra.mxu0 0.0
      %2046 = vmatprep.subr.mxu0 0.0
      %2047 = vmatpush2.msra.mxu0 0.0
      %2048 = vmatprep.subr.mxu0 0.0
      %2049 = vmatpush2.msra.mxu0 0.0
      %2050 = vmatprep.subr.mxu0 0.0
      %2051 = vmatpush2.msra.mxu0 0.0
      %2052 = vmatprep.subr.mxu0 0.0
      %2053 = vmatpush2.msra.mxu0 0.0
      %2054 = vmatprep.subr.mxu0 0.0
      %2055 = vmatpush2.msra.mxu0 0.0
      %2056 = vmatprep.subr.mxu0 0.0
      %2057 = vmatpush2.msra.mxu0 0.0
      %2058 = vmatprep.subr.mxu0 0.0
      %2059 = vmatpush2.msra.mxu0 0.0
      %2060 = vmatprep.mubr.f32.mxu0 0.0
      %2061 = vmatmul.mubr.f32.gmra.mxu0 %v427
      %v2062 = vpop.f32.mrf.mxu0
      %v2063 = vadd.f32 %v1979, %v2062
      %v2064 = vpop.f32.mrf.mxu0
      %2065 = vmatprep.mubr.f32.mxu0 0.0
      %2066 = vmatmul.mubr.f32.gmra.mxu0 %v430
      %v2067 = vpop.f32.mrf.mxu0
      %v2068 = vadd.f32 %v1983, %v2067
      %v2069 = vpop.f32.mrf.mxu0
      %2070 = vmatprep.mubr.f32.mxu0 0.0
      %2071 = vmatmul.mubr.f32.gmra.mxu0 %v433
      %v2072 = vpop.f32.mrf.mxu0
      %v2073 = vadd.f32 %v1987, %v2072
      %v2074 = vpop.f32.mrf.mxu0
      %2075 = vmatprep.mubr.f32.mxu0 0.0
      %2076 = vmatmul.mubr.f32.gmra.mxu0 %v436
      %v2077 = vpop.f32.mrf.mxu0
      %v2078 = vadd.f32 %v1991, %v2077
      %v2079 = vpop.f32.mrf.mxu0
      %2080 = vdwg.mxu0
      %s2081 = scalar_lea.vmem [#allocation2], 448
      %2082 = vst.msk [vmem:[%s2081] sm:$0xff] %vm527, %v2063
      %2083 = vst.msk [vmem:[%s2081 + $0x8] sm:$0xff] %vm527, %v2068
      %2084 = vst.msk [vmem:[%s2081 + $0x10] sm:$0xff] %vm527, %v2073
      %2085 = vst.msk [vmem:[%s2081 + $0x18] sm:$0xff] %vm527, %v2078
      %s2086 = scalar_lea.vmem %s260, 60
      %v2087 = vld [vmem:[%s2086] sm:$0x7]
      %2088 = vset.pattern.permute.xlu0 15
      %2089 = vperm.xlu0 %2088, %v386
      %v2090 = vpop.permute.xlu0 %2089
      %2092 = vset.pattern.permute.xlu0 15
      %2093 = vperm.xlu0 %2092, %v391
      %v2094 = vpop.permute.xlu0 %2093
      %2096 = vset.pattern.permute.xlu0 15
      %2097 = vperm.xlu0 %2096, %v396
      %v2098 = vpop.permute.xlu0 %2097
      %2100 = vset.pattern.permute.xlu0 15
      %2101 = vperm.xlu0 %2100, %v401
      %v2102 = vpop.permute.xlu0 %2101
      %v2105 = vsel %vm438, %v2087, 0
      %2107 = vmatprep.subr.mxu0 0.0
      %2108 = vmatpush1.msra.mxu0 0.0
      %2109 = vmatprep.subr.mxu0 0.0
      %2110 = vmatpush1.msra.mxu0 0.0
      %2111 = vmatprep.subr.mxu0 0.0
      %2112 = vmatpush1.msra.mxu0 0.0
      %2113 = vmatprep.subr.mxu0 0.0
      %2114 = vmatpush1.msra.mxu0 0.0
      %2115 = vmatprep.subr.mxu0 0.0
      %2116 = vmatpush1.msra.mxu0 0.0
      %2117 = vmatprep.subr.mxu0 0.0
      %2118 = vmatpush1.msra.mxu0 0.0
      %2119 = vmatprep.subr.mxu0 0.0
      %2120 = vmatpush1.msra.mxu0 0.0
      %2121 = vmatprep.subr.mxu0 0.0
      %2122 = vmatpush1.msra.mxu0 0.0
      %2123 = vmatprep.subr.mxu0 0.0
      %2124 = vmatpush1.msra.mxu0 0.0
      %2125 = vmatprep.subr.mxu0 0.0
      %2126 = vmatpush1.msra.mxu0 0.0
      %2127 = vmatprep.subr.mxu0 0.0
      %2128 = vmatpush1.msra.mxu0 0.0
      %2129 = vmatprep.subr.mxu0 0.0
      %2130 = vmatpush1.msra.mxu0 0.0
      %2131 = vmatprep.subr.mxu0 0.0
      %2132 = vmatpush1.msra.mxu0 0.0
      %2133 = vmatprep.subr.mxu0 0.0
      %2134 = vmatpush1.msra.mxu0 0.0
      %2135 = vmatprep.subr.mxu0 0.0
      %2136 = vmatpush1.msra.mxu0 0.0
      %2137 = vmatprep.subr.mxu0 0.0
      %2138 = vmatpush1.msra.mxu0 %v2105
      %2139 = vmatprep.subr.mxu0 0.0
      %2140 = vmatpush2.msra.mxu0 0.0
      %2141 = vmatprep.subr.mxu0 0.0
      %2142 = vmatpush2.msra.mxu0 0.0
      %2143 = vmatprep.subr.mxu0 0.0
      %2144 = vmatpush2.msra.mxu0 0.0
      %2145 = vmatprep.subr.mxu0 0.0
      %2146 = vmatpush2.msra.mxu0 0.0
      %2147 = vmatprep.subr.mxu0 0.0
      %2148 = vmatpush2.msra.mxu0 0.0
      %2149 = vmatprep.subr.mxu0 0.0
      %2150 = vmatpush2.msra.mxu0 0.0
      %2151 = vmatprep.subr.mxu0 0.0
      %2152 = vmatpush2.msra.mxu0 0.0
      %2153 = vmatprep.subr.mxu0 0.0
      %2154 = vmatpush2.msra.mxu0 0.0
      %2155 = vmatprep.subr.mxu0 0.0
      %2156 = vmatpush2.msra.mxu0 0.0
      %2157 = vmatprep.subr.mxu0 0.0
      %2158 = vmatpush2.msra.mxu0 0.0
      %2159 = vmatprep.subr.mxu0 0.0
      %2160 = vmatpush2.msra.mxu0 0.0
      %2161 = vmatprep.subr.mxu0 0.0
      %2162 = vmatpush2.msra.mxu0 0.0
      %2163 = vmatprep.subr.mxu0 0.0
      %2164 = vmatpush2.msra.mxu0 0.0
      %2165 = vmatprep.subr.mxu0 0.0
      %2166 = vmatpush2.msra.mxu0 0.0
      %2167 = vmatprep.subr.mxu0 0.0
      %2168 = vmatpush2.msra.mxu0 0.0
      %2169 = vmatprep.subr.mxu0 0.0
      %2170 = vmatpush2.msra.mxu0 0.0
      %2171 = vmatprep.mubr.f32.mxu0 0.0
      %2172 = vmatmul.mubr.f32.gmra.mxu0 %v427
      %v2173 = vpop.f32.mrf.mxu0
      %v2174 = vadd.f32 %v2090, %v2173
      %v2175 = vpop.f32.mrf.mxu0
      %2176 = vmatprep.mubr.f32.mxu0 0.0
      %2177 = vmatmul.mubr.f32.gmra.mxu0 %v430
      %v2178 = vpop.f32.mrf.mxu0
      %v2179 = vadd.f32 %v2094, %v2178
      %v2180 = vpop.f32.mrf.mxu0
      %2181 = vmatprep.mubr.f32.mxu0 0.0
      %2182 = vmatmul.mubr.f32.gmra.mxu0 %v433
      %v2183 = vpop.f32.mrf.mxu0
      %v2184 = vadd.f32 %v2098, %v2183
      %v2185 = vpop.f32.mrf.mxu0
      %2186 = vmatprep.mubr.f32.mxu0 0.0
      %2187 = vmatmul.mubr.f32.gmra.mxu0 %v436
      %v2188 = vpop.f32.mrf.mxu0
      %v2189 = vadd.f32 %v2102, %v2188
      %v2190 = vpop.f32.mrf.mxu0
      %2191 = vdwg.mxu0
      %s2192 = scalar_lea.vmem [#allocation2], 480
      %2193 = vst.msk [vmem:[%s2192] sm:$0xff] %vm527, %v2174
      %2194 = vst.msk [vmem:[%s2192 + $0x8] sm:$0xff] %vm527, %v2179
      %2195 = vst.msk [vmem:[%s2192 + $0x10] sm:$0xff] %vm527, %v2184
      %2196 = vst.msk [vmem:[%s2192 + $0x18] sm:$0xff] %vm527, %v2189
      %v2197 = vld [vmem:[#allocation2] sm:$0xff]
      %v2198 = vld [vmem:[#allocation2 + $0x8] sm:$0xff]
      %v2199 = vld [vmem:[%s638] sm:$0xff]
      %v2200 = vld [vmem:[%s638 + $0x8] sm:$0xff]
      %v2201 = vmax.f32 %v2197, %v2199
      %v2202 = vmax.f32 %v2198, %v2200
      %v2203 = vld [vmem:[%s749] sm:$0xff]
      %v2204 = vld [vmem:[%s749 + $0x8] sm:$0xff]
      %v2205 = vmax.f32 %v2201, %v2203
      %v2206 = vmax.f32 %v2202, %v2204
      %v2207 = vld [vmem:[%s860] sm:$0xff]
      %v2208 = vld [vmem:[%s860 + $0x8] sm:$0xff]
      %v2209 = vmax.f32 %v2205, %v2207
      %v2210 = vmax.f32 %v2206, %v2208
      %v2211 = vld [vmem:[%s971] sm:$0xff]
      %v2212 = vld [vmem:[%s971 + $0x8] sm:$0xff]
      %v2213 = vmax.f32 %v2209, %v2211
      %v2214 = vmax.f32 %v2210, %v2212
      %v2215 = vld [vmem:[%s1082] sm:$0xff]
      %v2216 = vld [vmem:[%s1082 + $0x8] sm:$0xff]
      %v2217 = vmax.f32 %v2213, %v2215
      %v2218 = vmax.f32 %v2214, %v2216
      %v2219 = vld [vmem:[%s1193] sm:$0xff]
      %v2220 = vld [vmem:[%s1193 + $0x8] sm:$0xff]
      %v2221 = vmax.f32 %v2217, %v2219
      %v2222 = vmax.f32 %v2218, %v2220
      %v2223 = vld [vmem:[%s1304] sm:$0xff]
      %v2224 = vld [vmem:[%s1304 + $0x8] sm:$0xff]
      %v2225 = vmax.f32 %v2221, %v2223
      %v2226 = vmax.f32 %v2222, %v2224
      %v2227 = vld [vmem:[%s1415] sm:$0xff]
      %v2228 = vld [vmem:[%s1415 + $0x8] sm:$0xff]
      %v2229 = vmax.f32 %v2225, %v2227
      %v2230 = vmax.f32 %v2226, %v2228
      %v2231 = vld [vmem:[%s1526] sm:$0xff]
      %v2232 = vld [vmem:[%s1526 + $0x8] sm:$0xff]
      %v2233 = vmax.f32 %v2229, %v2231
      %v2234 = vmax.f32 %v2230, %v2232
      %v2235 = vld [vmem:[%s1637] sm:$0xff]
      %v2236 = vld [vmem:[%s1637 + $0x8] sm:$0xff]
      %v2237 = vmax.f32 %v2233, %v2235
      %v2238 = vmax.f32 %v2234, %v2236
      %v2239 = vld [vmem:[%s1748] sm:$0xff]
      %v2240 = vld [vmem:[%s1748 + $0x8] sm:$0xff]
      %v2241 = vmax.f32 %v2237, %v2239
      %v2242 = vmax.f32 %v2238, %v2240
      %v2243 = vld [vmem:[%s1859] sm:$0xff]
      %v2244 = vld [vmem:[%s1859 + $0x8] sm:$0xff]
      %v2245 = vmax.f32 %v2241, %v2243
      %v2246 = vmax.f32 %v2242, %v2244
      %v2247 = vld [vmem:[%s1970] sm:$0xff]
      %v2248 = vld [vmem:[%s1970 + $0x8] sm:$0xff]
      %v2249 = vmax.f32 %v2245, %v2247
      %v2250 = vmax.f32 %v2246, %v2248
      %v2251 = vld [vmem:[%s2081] sm:$0xff]
      %v2252 = vld [vmem:[%s2081 + $0x8] sm:$0xff]
      %v2253 = vmax.f32 %v2249, %v2251
      %v2254 = vmax.f32 %v2250, %v2252
      %v2255 = vld [vmem:[%s2192] sm:$0xff]
      %v2256 = vld [vmem:[%s2192 + $0x8] sm:$0xff]
      %v2257 = vmax.f32 %v2253, %v2255
      %v2258 = vmax.f32 %v2254, %v2256
      %v2259 = vsub.f32 %v2197, %v2257
      %v2260 = vsub.f32 %v2198, %v2258
      %v2261 = vmul.f32 %v2259, 1.442695
      %v2262 = vpow.pop %v2261
      %v2263 = vmul.f32 %v2260, 1.442695
      %v2264 = vpow.pop %v2263
      %v2265 = vadd.f32 %v2262, 0.0
      %v2266 = vadd.f32 %v2264, 0.0
      %v2267 = vld [vmem:[#allocation2 + $0x10] sm:$0xff]
      %v2268 = vld [vmem:[#allocation2 + $0x18] sm:$0xff]
      %v2269 = vmul.f32 %v2262, %v2267
      %v2270 = vmul.f32 %v2264, %v2268
      %v2271 = vadd.f32 %v2269, 0.0
      %v2272 = vadd.f32 %v2270, 0.0
      %v2273 = vsub.f32 %v2199, %v2257
      %v2274 = vsub.f32 %v2200, %v2258
      %v2275 = vmul.f32 %v2273, 1.442695
      %v2276 = vpow.pop %v2275
      %v2277 = vmul.f32 %v2274, 1.442695
      %v2278 = vpow.pop %v2277
      %v2279 = vadd.f32 %v2265, %v2276
      %v2280 = vadd.f32 %v2266, %v2278
      %v2281 = vld [vmem:[%s638 + $0x10] sm:$0xff]
      %v2282 = vld [vmem:[%s638 + $0x18] sm:$0xff]
      %v2283 = vmul.f32 %v2276, %v2281
      %v2284 = vmul.f32 %v2278, %v2282
      %v2285 = vadd.f32 %v2271, %v2283
      %v2286 = vadd.f32 %v2272, %v2284
      %v2287 = vsub.f32 %v2203, %v2257
      %v2288 = vsub.f32 %v2204, %v2258
      %v2289 = vmul.f32 %v2287, 1.442695
      %v2290 = vpow.pop %v2289
      %v2291 = vmul.f32 %v2288, 1.442695
      %v2292 = vpow.pop %v2291
      %v2293 = vadd.f32 %v2279, %v2290
      %v2294 = vadd.f32 %v2280, %v2292
      %v2295 = vld [vmem:[%s749 + $0x10] sm:$0xff]
      %v2296 = vld [vmem:[%s749 + $0x18] sm:$0xff]
      %v2297 = vmul.f32 %v2290, %v2295
      %v2298 = vmul.f32 %v2292, %v2296
      %v2299 = vadd.f32 %v2285, %v2297
      %v2300 = vadd.f32 %v2286, %v2298
      %v2301 = vsub.f32 %v2207, %v2257
      %v2302 = vsub.f32 %v2208, %v2258
      %v2303 = vmul.f32 %v2301, 1.442695
      %v2304 = vpow.pop %v2303
      %v2305 = vmul.f32 %v2302, 1.442695
      %v2306 = vpow.pop %v2305
      %v2307 = vadd.f32 %v2293, %v2304
      %v2308 = vadd.f32 %v2294, %v2306
      %v2309 = vld [vmem:[%s860 + $0x10] sm:$0xff]
      %v2310 = vld [vmem:[%s860 + $0x18] sm:$0xff]
      %v2311 = vmul.f32 %v2304, %v2309
      %v2312 = vmul.f32 %v2306, %v2310
      %v2313 = vadd.f32 %v2299, %v2311
      %v2314 = vadd.f32 %v2300, %v2312
      %v2315 = vsub.f32 %v2211, %v2257
      %v2316 = vsub.f32 %v2212, %v2258
      %v2317 = vmul.f32 %v2315, 1.442695
      %v2318 = vpow.pop %v2317
      %v2319 = vmul.f32 %v2316, 1.442695
      %v2320 = vpow.pop %v2319
      %v2321 = vadd.f32 %v2307, %v2318
      %v2322 = vadd.f32 %v2308, %v2320
      %v2323 = vld [vmem:[%s971 + $0x10] sm:$0xff]
      %v2324 = vld [vmem:[%s971 + $0x18] sm:$0xff]
      %v2325 = vmul.f32 %v2318, %v2323
      %v2326 = vmul.f32 %v2320, %v2324
      %v2327 = vadd.f32 %v2313, %v2325
      %v2328 = vadd.f32 %v2314, %v2326
      %v2329 = vsub.f32 %v2215, %v2257
      %v2330 = vsub.f32 %v2216, %v2258
      %v2331 = vmul.f32 %v2329, 1.442695
      %v2332 = vpow.pop %v2331
      %v2333 = vmul.f32 %v2330, 1.442695
      %v2334 = vpow.pop %v2333
      %v2335 = vadd.f32 %v2321, %v2332
      %v2336 = vadd.f32 %v2322, %v2334
      %v2337 = vld [vmem:[%s1082 + $0x10] sm:$0xff]
      %v2338 = vld [vmem:[%s1082 + $0x18] sm:$0xff]
      %v2339 = vmul.f32 %v2332, %v2337
      %v2340 = vmul.f32 %v2334, %v2338
      %v2341 = vadd.f32 %v2327, %v2339
      %v2342 = vadd.f32 %v2328, %v2340
      %v2343 = vsub.f32 %v2219, %v2257
      %v2344 = vsub.f32 %v2220, %v2258
      %v2345 = vmul.f32 %v2343, 1.442695
      %v2346 = vpow.pop %v2345
      %v2347 = vmul.f32 %v2344, 1.442695
      %v2348 = vpow.pop %v2347
      %v2349 = vadd.f32 %v2335, %v2346
      %v2350 = vadd.f32 %v2336, %v2348
      %v2351 = vld [vmem:[%s1193 + $0x10] sm:$0xff]
      %v2352 = vld [vmem:[%s1193 + $0x18] sm:$0xff]
      %v2353 = vmul.f32 %v2346, %v2351
      %v2354 = vmul.f32 %v2348, %v2352
      %v2355 = vadd.f32 %v2341, %v2353
      %v2356 = vadd.f32 %v2342, %v2354
      %v2357 = vsub.f32 %v2223, %v2257
      %v2358 = vsub.f32 %v2224, %v2258
      %v2359 = vmul.f32 %v2357, 1.442695
      %v2360 = vpow.pop %v2359
      %v2361 = vmul.f32 %v2358, 1.442695
      %v2362 = vpow.pop %v2361
      %v2363 = vadd.f32 %v2349, %v2360
      %v2364 = vadd.f32 %v2350, %v2362
      %v2365 = vld [vmem:[%s1304 + $0x10] sm:$0xff]
      %v2366 = vld [vmem:[%s1304 + $0x18] sm:$0xff]
      %v2367 = vmul.f32 %v2360, %v2365
      %v2368 = vmul.f32 %v2362, %v2366
      %v2369 = vadd.f32 %v2355, %v2367
      %v2370 = vadd.f32 %v2356, %v2368
      %v2371 = vsub.f32 %v2227, %v2257
      %v2372 = vsub.f32 %v2228, %v2258
      %v2373 = vmul.f32 %v2371, 1.442695
      %v2374 = vpow.pop %v2373
      %v2375 = vmul.f32 %v2372, 1.442695
      %v2376 = vpow.pop %v2375
      %v2377 = vadd.f32 %v2363, %v2374
      %v2378 = vadd.f32 %v2364, %v2376
      %v2379 = vld [vmem:[%s1415 + $0x10] sm:$0xff]
      %v2380 = vld [vmem:[%s1415 + $0x18] sm:$0xff]
      %v2381 = vmul.f32 %v2374, %v2379
      %v2382 = vmul.f32 %v2376, %v2380
      %v2383 = vadd.f32 %v2369, %v2381
      %v2384 = vadd.f32 %v2370, %v2382
      %v2385 = vsub.f32 %v2231, %v2257
      %v2386 = vsub.f32 %v2232, %v2258
      %v2387 = vmul.f32 %v2385, 1.442695
      %v2388 = vpow.pop %v2387
      %v2389 = vmul.f32 %v2386, 1.442695
      %v2390 = vpow.pop %v2389
      %v2391 = vadd.f32 %v2377, %v2388
      %v2392 = vadd.f32 %v2378, %v2390
      %v2393 = vld [vmem:[%s1526 + $0x10] sm:$0xff]
      %v2394 = vld [vmem:[%s1526 + $0x18] sm:$0xff]
      %v2395 = vmul.f32 %v2388, %v2393
      %v2396 = vmul.f32 %v2390, %v2394
      %v2397 = vadd.f32 %v2383, %v2395
      %v2398 = vadd.f32 %v2384, %v2396
      %v2399 = vsub.f32 %v2235, %v2257
      %v2400 = vsub.f32 %v2236, %v2258
      %v2401 = vmul.f32 %v2399, 1.442695
      %v2402 = vpow.pop %v2401
      %v2403 = vmul.f32 %v2400, 1.442695
      %v2404 = vpow.pop %v2403
      %v2405 = vadd.f32 %v2391, %v2402
      %v2406 = vadd.f32 %v2392, %v2404
      %v2407 = vld [vmem:[%s1637 + $0x10] sm:$0xff]
      %v2408 = vld [vmem:[%s1637 + $0x18] sm:$0xff]
      %v2409 = vmul.f32 %v2402, %v2407
      %v2410 = vmul.f32 %v2404, %v2408
      %v2411 = vadd.f32 %v2397, %v2409
      %v2412 = vadd.f32 %v2398, %v2410
      %v2413 = vsub.f32 %v2239, %v2257
      %v2414 = vsub.f32 %v2240, %v2258
      %v2415 = vmul.f32 %v2413, 1.442695
      %v2416 = vpow.pop %v2415
      %v2417 = vmul.f32 %v2414, 1.442695
      %v2418 = vpow.pop %v2417
      %v2419 = vadd.f32 %v2405, %v2416
      %v2420 = vadd.f32 %v2406, %v2418
      %v2421 = vld [vmem:[%s1748 + $0x10] sm:$0xff]
      %v2422 = vld [vmem:[%s1748 + $0x18] sm:$0xff]
      %v2423 = vmul.f32 %v2416, %v2421
      %v2424 = vmul.f32 %v2418, %v2422
      %v2425 = vadd.f32 %v2411, %v2423
      %v2426 = vadd.f32 %v2412, %v2424
      %v2427 = vsub.f32 %v2243, %v2257
      %v2428 = vsub.f32 %v2244, %v2258
      %v2429 = vmul.f32 %v2427, 1.442695
      %v2430 = vpow.pop %v2429
      %v2431 = vmul.f32 %v2428, 1.442695
      %v2432 = vpow.pop %v2431
      %v2433 = vadd.f32 %v2419, %v2430
      %v2434 = vadd.f32 %v2420, %v2432
      %v2435 = vld [vmem:[%s1859 + $0x10] sm:$0xff]
      %v2436 = vld [vmem:[%s1859 + $0x18] sm:$0xff]
      %v2437 = vmul.f32 %v2430, %v2435
      %v2438 = vmul.f32 %v2432, %v2436
      %v2439 = vadd.f32 %v2425, %v2437
      %v2440 = vadd.f32 %v2426, %v2438
      %v2441 = vsub.f32 %v2247, %v2257
      %v2442 = vsub.f32 %v2248, %v2258
      %v2443 = vmul.f32 %v2441, 1.442695
      %v2444 = vpow.pop %v2443
      %v2445 = vmul.f32 %v2442, 1.442695
      %v2446 = vpow.pop %v2445
      %v2447 = vadd.f32 %v2433, %v2444
      %v2448 = vadd.f32 %v2434, %v2446
      %v2449 = vld [vmem:[%s1970 + $0x10] sm:$0xff]
      %v2450 = vld [vmem:[%s1970 + $0x18] sm:$0xff]
      %v2451 = vmul.f32 %v2444, %v2449
      %v2452 = vmul.f32 %v2446, %v2450
      %v2453 = vadd.f32 %v2439, %v2451
      %v2454 = vadd.f32 %v2440, %v2452
      %v2455 = vsub.f32 %v2251, %v2257
      %v2456 = vsub.f32 %v2252, %v2258
      %v2457 = vmul.f32 %v2455, 1.442695
      %v2458 = vpow.pop %v2457
      %v2459 = vmul.f32 %v2456, 1.442695
      %v2460 = vpow.pop %v2459
      %v2461 = vadd.f32 %v2447, %v2458
      %v2462 = vadd.f32 %v2448, %v2460
      %v2463 = vld [vmem:[%s2081 + $0x10] sm:$0xff]
      %v2464 = vld [vmem:[%s2081 + $0x18] sm:$0xff]
      %v2465 = vmul.f32 %v2458, %v2463
      %v2466 = vmul.f32 %v2460, %v2464
      %v2467 = vadd.f32 %v2453, %v2465
      %v2468 = vadd.f32 %v2454, %v2466
      %v2469 = vsub.f32 %v2255, %v2257
      %v2470 = vsub.f32 %v2256, %v2258
      %v2471 = vmul.f32 %v2469, 1.442695
      %v2472 = vpow.pop %v2471
      %v2473 = vmul.f32 %v2470, 1.442695
      %v2474 = vpow.pop %v2473
      %v2475 = vadd.f32 %v2461, %v2472
      %v2476 = vadd.f32 %v2462, %v2474
      %v2477 = vld [vmem:[%s2192 + $0x10] sm:$0xff]
      %v2478 = vld [vmem:[%s2192 + $0x18] sm:$0xff]
      %v2479 = vmul.f32 %v2472, %v2477
      %v2480 = vmul.f32 %v2474, %v2478
      %v2481 = vadd.f32 %v2467, %v2479
      %v2482 = vadd.f32 %v2468, %v2480
      %v2483 = vrcp.pop %v2475
      %v2484 = vrcp.pop %v2476
      %v2485 = vmul.f32 %v2481, %v2483
      %v2486 = vmul.f32 %v2482, %v2484
      %2487 = vst.msk [vmem:[%s272] sm:$0xff] %vm527, %v2485
      %2488 = vst.msk [vmem:[%s272 + $0x8] sm:$0xff] %vm527, %v2486
      %p2489 = scmp.lt.s32.totalorder %s20, 1
      %s2490 = scalar_select %p2489, %s20, 1
      %p2491 = scmp.lt.s32.totalorder %s21, 0
      %s2492 = scalar_select %p2491, %s21, 0
      %s2493 = smul.addr %s2490, 2
      %s2494 = sadd.s32 %s2492, %s2493
      %s2495 = smul.addr %s2494, 8
      %s2496 = scalar_lea.vmem %s5, %s2495
      // Predicated region
      $region41: #{spotr_encoder_forward.7} parent=39 // pred_check
        %p2497 = pneg %p165
      $region42: #{spotr_encoder_forward.7} parent=39 // pred_check_branch
        %2499 = sbr.rel (%p2497) target = $region44
      $region43: #{spotr_encoder_forward.7} parent=39 // pred_region
        _
      $region44: #{spotr_encoder_forward.7} parent=39 // pred_fallthru
        _
    $region40: #{spotr_encoder_forward.7} parent=5 // pred_fallthru
      _
    %p2500 = scmp.le.s32.totalorder 2, %s11
    // Predicated region
    $region45: #{spotr_encoder_forward.7} parent=5 // pred_check
      %p2501 = pneg %p2500
    $region46: #{spotr_encoder_forward.7} parent=5 // pred_check_branch
      %2503 = sbr.rel (%p2501) target = $region48
    $region47: #{spotr_encoder_forward.7} parent=5 // pred_region
      %s2504 = ssub.s32 %s11, 2
      // Predicated region
      $region49: #{spotr_encoder_forward.7} parent=47 // pred_check
        %p2505 = pneg %p171
      $region50: #{spotr_encoder_forward.7} parent=47 // pred_check_branch
        %2507 = sbr.rel (%p2505) target = $region52
      $region51: #{spotr_encoder_forward.7} parent=47 // pred_region
        %p2508 = scmp.lt.s32.totalorder %s22, 1
        %s2509 = scalar_select %p2508, %s22, 1
        %p2510 = scmp.lt.s32.totalorder %s23, 0
        %s2511 = scalar_select %p2510, %s23, 0
        %s2512 = smul.addr %s2509, 2
        %s2513 = sadd.s32 %s2511, %s2512
        %s2514 = smul.addr %s2513, 8
        %s2515 = scalar_lea.vmem %s5, %s2514
      $region52: #{spotr_encoder_forward.7} parent=47 // pred_fallthru
        _
    $region48: #{spotr_encoder_forward.7} parent=5 // pred_fallthru
      _
  $region6: #{spotr_encoder_forward.7} parent=0 // loop_footer
    %s15 = sadd.s32 1, %s11
  $region7: #{spotr_encoder_forward.7} parent=0 // loop_footer_branch
    %10 = sbr.rel target = $region3
  $region8: #{spotr_encoder_forward.7} parent=0 // loop_exit
    _

// kernel: spotr_encoder_forward.5
$region0: #{spotr_encoder_forward.5}
  #allocation0 [shape = 'u32[]', space=smem, size = 0x4, offset = 0x4, fixed_abs, tag = 'smem constant byte address 0x4 - core index']
  #allocation1 [shape = 'u32[144,128]{1,0:T(1,128)}', space=vmem, size = 0x12000, scoped, tag = 'internal scratch']
  %s0 = inlined_call_operand.vmem [shape: f32[2,8,16], index: 0, kind: input, shape index: {}]
  %s1 = inlined_call_operand.vmem [shape: f32[16,8], index: 1, kind: input, shape index: {}]
  %s2 = inlined_call_operand.vmem [shape: f32[16,1], index: 2, kind: input, shape index: {}]
  %s3 = inlined_call_operand.vmem [shape: f32[2,16,16], index: 3, kind: output, shape index: {}]
  %s4 = sld [smem:[#allocation0]]
  $region45: #{spotr_encoder_forward.5} parent=0
    _
  %s6 = ssub.s32 1, %s4
  %s7 = scalar_select 0, %s6, %s4
  loop: start=0, step=1, limit=4
  $region2: #{spotr_encoder_forward.5} parent=0 // loop_pre_header
    _
  $region3: #{spotr_encoder_forward.5} parent=0 // loop_header
    %s9 = sphi 0, %s13
    %p10 = scmp.ge.s32.totalorder %s9, 4
    %s16 = sphi 0, %s28
    %s17 = sphi 0, %s24
    %s18 = sphi 0, %s16
    %s19 = sphi 0, %s17
    %s20 = sphi 0, %s18
    %s21 = sphi 0, %s19
    %s33 = sphi 0, %s35
    %s36 = sphi 0, %s33
    %s37 = sphi 0, %s36
    %s53 = sphi 0, %s37
    %s57 = sphi 0, %s57
    %s59 = sphi 0, %s57
    %s60 = sphi 0, %s59
    %s74 = sphi 0, %s60
    %s78 = sphi 0, %s78
    %s80 = sphi 0, %s78
    %s81 = sphi 0, %s80
    %s95 = sphi 0, %s81
    %s103 = sphi 0, %s105
    %s106 = sphi 0, %s103
    %s107 = sphi 0, %s106
    %s123 = sphi 0, %s107
  $region4: #{spotr_encoder_forward.5} parent=0 // loop_header_branch
    %12 = sbr.rel (%p10) target = $region8
  $region5: #{spotr_encoder_forward.5} parent=0 // loop_body
    %s14 = ssub.s32 %s9, 1
    %s15 = ssub.s32 %s9, 2
    %s22 = sadd.s32 1, %s17
    %p23 = scmp.ge.s32.totalorder %s22, 1
    %s24 = scalar_select %p23, 0, %s22
    %s25 = sadd.s32 1, %s16
    %s26 = scalar_select %p23, %s25, %s16
    %p27 = scmp.ge.s32.totalorder %s26, 2
    %s28 = scalar_select %p27, 0, %s26
    %s29 = ssub.s32 %s16, %s28
    %s30 = ssub.s32 %s17, %s24
    %s31 = sor.u32 %s29, %s30
    %p32 = scmp.eq.s32.totalorder %s31, 0
    %s34 = sadd.s32 %s33, 1
    %s35 = scalar_select %p32, %s33, %s34
    %p38 = pneg %p32
    %p39 = scmp.eq.s32.totalorder %s9, 1
    %p40 = por %p38, %p39
    %p41 = scmp.ne.s32.totalorder %s33, %s36
    %p42 = scmp.eq.s32.totalorder %s9, 0
    %p43 = por %p41, %p42
    %p44 = scmp.ne.s32.totalorder %s33, %s36
    %p45 = scmp.eq.s32.totalorder %s14, 1
    %p46 = por %p44, %p45
    %p47 = scmp.ne.s32.totalorder %s36, %s37
    %p48 = scmp.eq.s32.totalorder %s14, 0
    %p49 = por %p47, %p48
    %p50 = scmp.ne.s32.totalorder %s36, %s37
    %p51 = scmp.eq.s32.totalorder %s15, 1
    %p52 = por %p50, %p51
    %p54 = scmp.ne.s32.totalorder %s37, %s53
    %p55 = scmp.eq.s32.totalorder %s15, 0
    %p56 = por %p54, %p55
    %s58 = sadd.s32 %s57, 1
    %p61 = scmp.eq.s32.totalorder %s9, 1
    %p62 = scmp.ne.s32.totalorder %s57, %s59
    %p63 = scmp.eq.s32.totalorder %s9, 0
    %p64 = por %p62, %p63
    %p65 = scmp.ne.s32.totalorder %s57, %s59
    %p66 = scmp.eq.s32.totalorder %s14, 1
    %p67 = por %p65, %p66
    %p68 = scmp.ne.s32.totalorder %s59, %s60
    %p69 = scmp.eq.s32.totalorder %s14, 0
    %p70 = por %p68, %p69
    %p71 = scmp.ne.s32.totalorder %s59, %s60
    %p72 = scmp.eq.s32.totalorder %s15, 1
    %p73 = por %p71, %p72
    %p75 = scmp.ne.s32.totalorder %s60, %s74
    %p76 = scmp.eq.s32.totalorder %s15, 0
    %p77 = por %p75, %p76
    %s79 = sadd.s32 %s78, 1
    %p82 = scmp.eq.s32.totalorder %s9, 1
    %p83 = scmp.ne.s32.totalorder %s78, %s80
    %p84 = scmp.eq.s32.totalorder %s9, 0
    %p85 = por %p83, %p84
    %p86 = scmp.ne.s32.totalorder %s78, %s80
    %p87 = scmp.eq.s32.totalorder %s14, 1
    %p88 = por %p86, %p87
    %p89 = scmp.ne.s32.totalorder %s80, %s81
    %p90 = scmp.eq.s32.totalorder %s14, 0
    %p91 = por %p89, %p90
    %p92 = scmp.ne.s32.totalorder %s80, %s81
    %p93 = scmp.eq.s32.totalorder %s15, 1
    %p94 = por %p92, %p93
    %p96 = scmp.ne.s32.totalorder %s81, %s95
    %p97 = scmp.eq.s32.totalorder %s15, 0
    %p98 = por %p96, %p97
    %s99 = ssub.s32 %s16, %s28
    %s100 = ssub.s32 %s17, %s24
    %s101 = sor.u32 %s99, %s100
    %p102 = scmp.eq.s32.totalorder %s101, 0
    %s104 = sadd.s32 %s103, 1
    %s105 = scalar_select %p102, %s103, %s104
    %p108 = pneg %p102
    %p109 = scmp.eq.s32.totalorder %s9, 1
    %p110 = por %p108, %p109
    %p111 = scmp.ne.s32.totalorder %s103, %s106
    %p112 = scmp.eq.s32.totalorder %s9, 0
    %p113 = por %p111, %p112
    %p114 = scmp.ne.s32.totalorder %s103, %s106
    %p115 = scmp.eq.s32.totalorder %s14, 1
    %p116 = por %p114, %p115
    %p117 = scmp.ne.s32.totalorder %s106, %s107
    %p118 = scmp.eq.s32.totalorder %s14, 0
    %p119 = por %p117, %p118
    %p120 = scmp.ne.s32.totalorder %s106, %s107
    %p121 = scmp.eq.s32.totalorder %s15, 1
    %p122 = por %p120, %p121
    %p124 = scmp.ne.s32.totalorder %s107, %s123
    %p125 = scmp.eq.s32.totalorder %s15, 0
    %p126 = por %p124, %p125
    %p127 = scmp.le.s32.totalorder 1, %s9
    %p128 = scmp.lt.s32.totalorder %s9, 3
    %p129 = pnand %p127, %p128
    %p130 = pneg %p129
    // Predicated region
    $region9: #{spotr_encoder_forward.5} parent=5 // pred_check
      _
    $region10: #{spotr_encoder_forward.5} parent=5 // pred_check_branch
      %132 = sbr.rel (%p129) target = $region12
    $region11: #{spotr_encoder_forward.5} parent=5 // pred_region
      %s133 = ssub.s32 %s9, 1
      // Predicated region
      $region13: #{spotr_encoder_forward.5} parent=11 // pred_check
        %p134 = pneg %p70
      $region14: #{spotr_encoder_forward.5} parent=11 // pred_check_branch
        %136 = sbr.rel (%p134) target = $region16
      $region15: #{spotr_encoder_forward.5} parent=11 // pred_region
        _
      $region16: #{spotr_encoder_forward.5} parent=11 // pred_fallthru
        _
      // Predicated region
      $region17: #{spotr_encoder_forward.5} parent=11 // pred_check
        %p137 = pneg %p91
      $region18: #{spotr_encoder_forward.5} parent=11 // pred_check_branch
        %139 = sbr.rel (%p137) target = $region20
      $region19: #{spotr_encoder_forward.5} parent=11 // pred_region
        _
      $region20: #{spotr_encoder_forward.5} parent=11 // pred_fallthru
        _
    $region12: #{spotr_encoder_forward.5} parent=5 // pred_fallthru
      _
    %p140 = scmp.lt.s32.totalorder %s9, 2
    // Predicated region
    $region21: #{spotr_encoder_forward.5} parent=5 // pred_check
      %p141 = pneg %p140
    $region22: #{spotr_encoder_forward.5} parent=5 // pred_check_branch
      %143 = sbr.rel (%p141) target = $region24
    $region23: #{spotr_encoder_forward.5} parent=5 // pred_region
      // Predicated region
      $region25: #{spotr_encoder_forward.5} parent=23 // pred_check
        %p144 = pneg %p43
      $region26: #{spotr_encoder_forward.5} parent=23 // pred_check_branch
        %146 = sbr.rel (%p144) target = $region28
      $region27: #{spotr_encoder_forward.5} parent=23 // pred_region
        %p147 = scmp.lt.s32.totalorder %s16, 1
        %s148 = scalar_select %p147, %s16, 1
        %p149 = scmp.lt.s32.totalorder %s17, 0
        %s150 = scalar_select %p149, %s17, 0
        %s151 = sadd.s32 %s150, %s148
        %s152 = smul.addr %s151, 8
        %s153 = scalar_lea.vmem %s0, %s152
      $region28: #{spotr_encoder_forward.5} parent=23 // pred_fallthru
        _
    $region24: #{spotr_encoder_forward.5} parent=5 // pred_fallthru
      _
    %p154 = scmp.le.s32.totalorder 1, %s9
    %p155 = scmp.lt.s32.totalorder %s9, 3
    %p156 = pnand %p154, %p155
    %p157 = pneg %p156
    // Predicated region
    $region29: #{spotr_encoder_forward.5} parent=5 // pred_check
      _
    $region30: #{spotr_encoder_forward.5} parent=5 // pred_check_branch
      %159 = sbr.rel (%p156) target = $region32
    $region31: #{spotr_encoder_forward.5} parent=5 // pred_region
      %s160 = ssub.s32 %s9, 1
      %p161 = scmp.lt.s32.totalorder %s18, 1
      %s162 = scalar_select %p161, %s18, 1
      %p163 = scmp.lt.s32.totalorder %s19, 0
      %s164 = scalar_select %p163, %s19, 0
      %s165 = sadd.s32 %s164, %s162
      %s166 = smul.addr %s165, 8
      %s167 = scalar_lea.vmem %s0, %s166
      %p168 = pneg %p49
      %p169 = pneg %p46
      %p170 = pneg %p70
      %p171 = pneg %p67
      %p172 = pneg %p91
      %p173 = pneg %p88
      %p174 = pneg %p119
      %p175 = pneg %p116
      %p176 = scmp.lt.s32.totalorder %s18, 1
      %s177 = scalar_select %p176, %s18, 1
      %p178 = scmp.lt.s32.totalorder %s19, 0
      %s179 = scalar_select %p178, %s19, 0
      %s180 = smul.addr %s177, 2
      %s181 = sadd.s32 %s179, %s180
      %s182 = smul.addr %s181, 8
      %s183 = scalar_lea.vmem %s3, %s182
      %p184 = scmp.lt.s32.totalorder %s18, 1
      %s185 = scalar_select %p184, %s18, 1
      %p186 = scmp.lt.s32.totalorder %s19, 0
      %s187 = scalar_select %p186, %s19, 0
      %s188 = sadd.s32 %s187, %s185
      %s189 = smul.addr %s188, 8
      %s190 = scalar_lea.vmem %s0, %s189
      %p191 = scmp.lt.s32.totalorder %s18, 1
      %s192 = scalar_select %p191, %s18, 1
      %p193 = scmp.lt.s32.totalorder %s19, 0
      %s194 = scalar_select %p193, %s19, 0
      %s195 = smul.addr %s192, 2
      %s196 = sadd.s32 %s194, %s195
      %s197 = smul.addr %s196, 8
      %s198 = scalar_lea.vmem %s3, %s197
      %v199 = vld [vmem:[%s1] sm:$0xff]
      %v200 = vld [vmem:[%s1 + $0x8] sm:$0xff]
      %v201 = vld [vmem:[%s190] sm:$0xff]
      %v202 = vld [vmem:[%s2] sm:$0xff]
      %v203 = vld [vmem:[%s2 + $0x8] sm:$0xff]
      %205 = vset.pattern.permute.xlu0 0
      %206 = vperm.xlu0 %205, %v202
      %v207 = vpop.permute.xlu0 %206
      %210 = vset.pattern.permute.xlu0 0
      %211 = vperm.xlu0 %210, %v203
      %v212 = vpop.permute.xlu0 %211
      %vm214 = vcmask 64512
      %v216 = vsel %vm214, %v199, 0
      %v219 = vsel %vm214, %v200, 0
      %221 = vmatprep.subr.mxu0 0.0
      %222 = vmatpush1.msra.mxu0 0.0
      %223 = vmatprep.subr.mxu0 0.0
      %224 = vmatpush1.msra.mxu0 0.0
      %225 = vmatprep.subr.mxu0 0.0
      %226 = vmatpush1.msra.mxu0 0.0
      %227 = vmatprep.subr.mxu0 0.0
      %228 = vmatpush1.msra.mxu0 0.0
      %229 = vmatprep.subr.mxu0 0.0
      %230 = vmatpush1.msra.mxu0 0.0
      %231 = vmatprep.subr.mxu0 0.0
      %232 = vmatpush1.msra.mxu0 0.0
      %233 = vmatprep.subr.mxu0 0.0
      %234 = vmatpush1.msra.mxu0 0.0
      %235 = vmatprep.subr.mxu0 0.0
      %236 = vmatpush1.msra.mxu0 0.0
      %237 = vmatprep.subr.mxu0 0.0
      %238 = vmatpush1.msra.mxu0 0.0
      %239 = vmatprep.subr.mxu0 0.0
      %240 = vmatpush1.msra.mxu0 0.0
      %241 = vmatprep.subr.mxu0 0.0
      %242 = vmatpush1.msra.mxu0 0.0
      %243 = vmatprep.subr.mxu0 0.0
      %244 = vmatpush1.msra.mxu0 0.0
      %245 = vmatprep.subr.mxu0 0.0
      %246 = vmatpush1.msra.mxu0 0.0
      %247 = vmatprep.subr.mxu0 0.0
      %248 = vmatpush1.msra.mxu0 0.0
      %249 = vmatprep.subr.mxu0 0.0
      %250 = vmatpush1.msra.mxu0 0.0
      %251 = vmatprep.subr.mxu0 0.0
      %252 = vmatpush1.msra.mxu0 %v201
      %253 = vmatprep.subr.mxu0 0.0
      %254 = vmatpush2.msra.mxu0 0.0
      %255 = vmatprep.subr.mxu0 0.0
      %256 = vmatpush2.msra.mxu0 0.0
      %257 = vmatprep.subr.mxu0 0.0
      %258 = vmatpush2.msra.mxu0 0.0
      %259 = vmatprep.subr.mxu0 0.0
      %260 = vmatpush2.msra.mxu0 0.0
      %261 = vmatprep.subr.mxu0 0.0
      %262 = vmatpush2.msra.mxu0 0.0
      %263 = vmatprep.subr.mxu0 0.0
      %264 = vmatpush2.msra.mxu0 0.0
      %265 = vmatprep.subr.mxu0 0.0
      %266 = vmatpush2.msra.mxu0 0.0
      %267 = vmatprep.subr.mxu0 0.0
      %268 = vmatpush2.msra.mxu0 0.0
      %269 = vmatprep.subr.mxu0 0.0
      %270 = vmatpush2.msra.mxu0 0.0
      %271 = vmatprep.subr.mxu0 0.0
      %272 = vmatpush2.msra.mxu0 0.0
      %273 = vmatprep.subr.mxu0 0.0
      %274 = vmatpush2.msra.mxu0 0.0
      %275 = vmatprep.subr.mxu0 0.0
      %276 = vmatpush2.msra.mxu0 0.0
      %277 = vmatprep.subr.mxu0 0.0
      %278 = vmatpush2.msra.mxu0 0.0
      %279 = vmatprep.subr.mxu0 0.0
      %280 = vmatpush2.msra.mxu0 0.0
      %281 = vmatprep.subr.mxu0 0.0
      %282 = vmatpush2.msra.mxu0 0.0
      %283 = vmatprep.subr.mxu0 0.0
      %284 = vmatpush2.msra.mxu0 0.0
      %285 = vmatprep.mubr.f32.mxu0 0.0
      %286 = vmatmul.mubr.f32.gmra.mxu0 %v216
      %v287 = vpop.f32.mrf.mxu0
      %v288 = vadd.f32 %v207, %v287
      %v289 = vpop.f32.mrf.mxu0
      %290 = vmatprep.mubr.f32.mxu0 0.0
      %291 = vmatmul.mubr.f32.gmra.mxu0 %v219
      %v292 = vpop.f32.mrf.mxu0
      %v293 = vadd.f32 %v212, %v292
      %v294 = vpop.f32.mrf.mxu0
      %295 = vdwg.mxu0
      %vm296 = vcmask 130048
      %297 = vst.msk [vmem:[%s198] sm:$0xff] %vm296, %v288
      %298 = vst.msk [vmem:[%s198 + $0x8] sm:$0xff] %vm296, %v293
      %p299 = scmp.lt.s32.totalorder %s18, 1
      %s300 = scalar_select %p299, %s18, 1
      %p301 = scmp.lt.s32.totalorder %s19, 0
      %s302 = scalar_select %p301, %s19, 0
      %s303 = smul.addr %s300, 2
      %s304 = sadd.s32 %s302, %s303
      %s305 = smul.addr %s304, 8
      %s306 = scalar_lea.vmem %s3, %s305
      // Predicated region
      $region33: #{spotr_encoder_forward.5} parent=31 // pred_check
        %p307 = pneg %p116
      $region34: #{spotr_encoder_forward.5} parent=31 // pred_check_branch
        %309 = sbr.rel (%p307) target = $region36
      $region35: #{spotr_encoder_forward.5} parent=31 // pred_region
        _
      $region36: #{spotr_encoder_forward.5} parent=31 // pred_fallthru
        _
    $region32: #{spotr_encoder_forward.5} parent=5 // pred_fallthru
      _
    %p310 = scmp.le.s32.totalorder 2, %s9
    // Predicated region
    $region37: #{spotr_encoder_forward.5} parent=5 // pred_check
      %p311 = pneg %p310
    $region38: #{spotr_encoder_forward.5} parent=5 // pred_check_branch
      %313 = sbr.rel (%p311) target = $region40
    $region39: #{spotr_encoder_forward.5} parent=5 // pred_region
      %s314 = ssub.s32 %s9, 2
      // Predicated region
      $region41: #{spotr_encoder_forward.5} parent=39 // pred_check
        %p315 = pneg %p122
      $region42: #{spotr_encoder_forward.5} parent=39 // pred_check_branch
        %317 = sbr.rel (%p315) target = $region44
      $region43: #{spotr_encoder_forward.5} parent=39 // pred_region
        %p318 = scmp.lt.s32.totalorder %s20, 1
        %s319 = scalar_select %p318, %s20, 1
        %p320 = scmp.lt.s32.totalorder %s21, 0
        %s321 = scalar_select %p320, %s21, 0
        %s322 = smul.addr %s319, 2
        %s323 = sadd.s32 %s321, %s322
        %s324 = smul.addr %s323, 8
        %s325 = scalar_lea.vmem %s3, %s324
      $region44: #{spotr_encoder_forward.5} parent=39 // pred_fallthru
        _
    $region40: #{spotr_encoder_forward.5} parent=5 // pred_fallthru
      _
  $region6: #{spotr_encoder_forward.5} parent=0 // loop_footer
    %s13 = sadd.s32 1, %s9
  $region7: #{spotr_encoder_forward.5} parent=0 // loop_footer_branch
    %8 = sbr.rel target = $region3
  $region8: #{spotr_encoder_forward.5} parent=0 // loop_exit
    _

// kernel: spotr_encoder_forward.6
$region0: #{spotr_encoder_forward.6}
  #allocation0 [shape = 'u32[]', space=smem, size = 0x4, offset = 0x4, fixed_abs, tag = 'smem constant byte address 0x4 - core index']
  #allocation1 [shape = 'u32[144,128]{1,0:T(1,128)}', space=vmem, size = 0x12000, scoped, tag = 'internal scratch']
  #allocation2 [shape = 'f32[8,32,16]{2,1,0:T(8,128)}', space=vmem, size = 0x20000, scoped, tag = 'scratch operand']
  %s0 = inlined_call_operand.vmem [shape: f32[2,8,3,16], index: 0, kind: input, shape index: {}]
  %s1 = inlined_call_operand.vmem [shape: f32[2,8,8,16], index: 1, kind: input, shape index: {}]
  %s2 = inlined_call_operand.vmem [shape: f32[32,3], index: 2, kind: input, shape index: {}]
  %s3 = inlined_call_operand.vmem [shape: f32[32,8], index: 3, kind: input, shape index: {}]
  %s4 = inlined_call_operand.vmem [shape: f32[32,1], index: 4, kind: input, shape index: {}]
  %s5 = inlined_call_operand.vmem [shape: f32[2,16,16], index: 5, kind: output, shape index: {}]
  %s6 = sld [smem:[#allocation0]]
  $region53: #{spotr_encoder_forward.6} parent=0
    _
  %s8 = ssub.s32 1, %s6
  %s9 = scalar_select 0, %s8, %s6
  loop: start=0, step=1, limit=4
  $region2: #{spotr_encoder_forward.6} parent=0 // loop_pre_header
    _
  $region3: #{spotr_encoder_forward.6} parent=0 // loop_header
    %s11 = sphi 0, %s15
    %p12 = scmp.ge.s32.totalorder %s11, 4
    %s18 = sphi 0, %s30
    %s19 = sphi 0, %s26
    %s20 = sphi 0, %s18
    %s21 = sphi 0, %s19
    %s22 = sphi 0, %s20
    %s23 = sphi 0, %s21
    %s35 = sphi 0, %s37
    %s38 = sphi 0, %s35
    %s39 = sphi 0, %s38
    %s55 = sphi 0, %s39
    %s63 = sphi 0, %s65
    %s66 = sphi 0, %s63
    %s67 = sphi 0, %s66
    %s83 = sphi 0, %s67
    %s87 = sphi 0, %s87
    %s89 = sphi 0, %s87
    %s90 = sphi 0, %s89
    %s104 = sphi 0, %s90
    %s108 = sphi 0, %s108
    %s110 = sphi 0, %s108
    %s111 = sphi 0, %s110
    %s125 = sphi 0, %s111
    %s129 = sphi 0, %s129
    %s131 = sphi 0, %s129
    %s132 = sphi 0, %s131
    %s146 = sphi 0, %s132
    %s154 = sphi 0, %s156
    %s157 = sphi 0, %s154
    %s158 = sphi 0, %s157
    %s174 = sphi 0, %s158
  $region4: #{spotr_encoder_forward.6} parent=0 // loop_header_branch
    %14 = sbr.rel (%p12) target = $region8
  $region5: #{spotr_encoder_forward.6} parent=0 // loop_body
    %s16 = ssub.s32 %s11, 1
    %s17 = ssub.s32 %s11, 2
    %s24 = sadd.s32 1, %s19
    %p25 = scmp.ge.s32.totalorder %s24, 1
    %s26 = scalar_select %p25, 0, %s24
    %s27 = sadd.s32 1, %s18
    %s28 = scalar_select %p25, %s27, %s18
    %p29 = scmp.ge.s32.totalorder %s28, 2
    %s30 = scalar_select %p29, 0, %s28
    %s31 = ssub.s32 %s18, %s30
    %s32 = ssub.s32 %s19, %s26
    %s33 = sor.u32 %s31, %s32
    %p34 = scmp.eq.s32.totalorder %s33, 0
    %s36 = sadd.s32 %s35, 1
    %s37 = scalar_select %p34, %s35, %s36
    %p40 = pneg %p34
    %p41 = scmp.eq.s32.totalorder %s11, 1
    %p42 = por %p40, %p41
    %p43 = scmp.ne.s32.totalorder %s35, %s38
    %p44 = scmp.eq.s32.totalorder %s11, 0
    %p45 = por %p43, %p44
    %p46 = scmp.ne.s32.totalorder %s35, %s38
    %p47 = scmp.eq.s32.totalorder %s16, 1
    %p48 = por %p46, %p47
    %p49 = scmp.ne.s32.totalorder %s38, %s39
    %p50 = scmp.eq.s32.totalorder %s16, 0
    %p51 = por %p49, %p50
    %p52 = scmp.ne.s32.totalorder %s38, %s39
    %p53 = scmp.eq.s32.totalorder %s17, 1
    %p54 = por %p52, %p53
    %p56 = scmp.ne.s32.totalorder %s39, %s55
    %p57 = scmp.eq.s32.totalorder %s17, 0
    %p58 = por %p56, %p57
    %s59 = ssub.s32 %s18, %s30
    %s60 = ssub.s32 %s19, %s26
    %s61 = sor.u32 %s59, %s60
    %p62 = scmp.eq.s32.totalorder %s61, 0
    %s64 = sadd.s32 %s63, 1
    %s65 = scalar_select %p62, %s63, %s64
    %p68 = pneg %p62
    %p69 = scmp.eq.s32.totalorder %s11, 1
    %p70 = por %p68, %p69
    %p71 = scmp.ne.s32.totalorder %s63, %s66
    %p72 = scmp.eq.s32.totalorder %s11, 0
    %p73 = por %p71, %p72
    %p74 = scmp.ne.s32.totalorder %s63, %s66
    %p75 = scmp.eq.s32.totalorder %s16, 1
    %p76 = por %p74, %p75
    %p77 = scmp.ne.s32.totalorder %s66, %s67
    %p78 = scmp.eq.s32.totalorder %s16, 0
    %p79 = por %p77, %p78
    %p80 = scmp.ne.s32.totalorder %s66, %s67
    %p81 = scmp.eq.s32.totalorder %s17, 1
    %p82 = por %p80, %p81
    %p84 = scmp.ne.s32.totalorder %s67, %s83
    %p85 = scmp.eq.s32.totalorder %s17, 0
    %p86 = por %p84, %p85
    %s88 = sadd.s32 %s87, 1
    %p91 = scmp.eq.s32.totalorder %s11, 1
    %p92 = scmp.ne.s32.totalorder %s87, %s89
    %p93 = scmp.eq.s32.totalorder %s11, 0
    %p94 = por %p92, %p93
    %p95 = scmp.ne.s32.totalorder %s87, %s89
    %p96 = scmp.eq.s32.totalorder %s16, 1
    %p97 = por %p95, %p96
    %p98 = scmp.ne.s32.totalorder %s89, %s90
    %p99 = scmp.eq.s32.totalorder %s16, 0
    %p100 = por %p98, %p99
    %p101 = scmp.ne.s32.totalorder %s89, %s90
    %p102 = scmp.eq.s32.totalorder %s17, 1
    %p103 = por %p101, %p102
    %p105 = scmp.ne.s32.totalorder %s90, %s104
    %p106 = scmp.eq.s32.totalorder %s17, 0
    %p107 = por %p105, %p106
    %s109 = sadd.s32 %s108, 1
    %p112 = scmp.eq.s32.totalorder %s11, 1
    %p113 = scmp.ne.s32.totalorder %s108, %s110
    %p114 = scmp.eq.s32.totalorder %s11, 0
    %p115 = por %p113, %p114
    %p116 = scmp.ne.s32.totalorder %s108, %s110
    %p117 = scmp.eq.s32.totalorder %s16, 1
    %p118 = por %p116, %p117
    %p119 = scmp.ne.s32.totalorder %s110, %s111
    %p120 = scmp.eq.s32.totalorder %s16, 0
    %p121 = por %p119, %p120
    %p122 = scmp.ne.s32.totalorder %s110, %s111
    %p123 = scmp.eq.s32.totalorder %s17, 1
    %p124 = por %p122, %p123
    %p126 = scmp.ne.s32.totalorder %s111, %s125
    %p127 = scmp.eq.s32.totalorder %s17, 0
    %p128 = por %p126, %p127
    %s130 = sadd.s32 %s129, 1
    %p133 = scmp.eq.s32.totalorder %s11, 1
    %p134 = scmp.ne.s32.totalorder %s129, %s131
    %p135 = scmp.eq.s32.totalorder %s11, 0
    %p136 = por %p134, %p135
    %p137 = scmp.ne.s32.totalorder %s129, %s131
    %p138 = scmp.eq.s32.totalorder %s16, 1
    %p139 = por %p137, %p138
    %p140 = scmp.ne.s32.totalorder %s131, %s132
    %p141 = scmp.eq.s32.totalorder %s16, 0
    %p142 = por %p140, %p141
    %p143 = scmp.ne.s32.totalorder %s131, %s132
    %p144 = scmp.eq.s32.totalorder %s17, 1
    %p145 = por %p143, %p144
    %p147 = scmp.ne.s32.totalorder %s132, %s146
    %p148 = scmp.eq.s32.totalorder %s17, 0
    %p149 = por %p147, %p148
    %s150 = ssub.s32 %s18, %s30
    %s151 = ssub.s32 %s19, %s26
    %s152 = sor.u32 %s150, %s151
    %p153 = scmp.eq.s32.totalorder %s152, 0
    %s155 = sadd.s32 %s154, 1
    %s156 = scalar_select %p153, %s154, %s155
    %p159 = pneg %p153
    %p160 = scmp.eq.s32.totalorder %s11, 1
    %p161 = por %p159, %p160
    %p162 = scmp.ne.s32.totalorder %s154, %s157
    %p163 = scmp.eq.s32.totalorder %s11, 0
    %p164 = por %p162, %p163
    %p165 = scmp.ne.s32.totalorder %s154, %s157
    %p166 = scmp.eq.s32.totalorder %s16, 1
    %p167 = por %p165, %p166
    %p168 = scmp.ne.s32.totalorder %s157, %s158
    %p169 = scmp.eq.s32.totalorder %s16, 0
    %p170 = por %p168, %p169
    %p171 = scmp.ne.s32.totalorder %s157, %s158
    %p172 = scmp.eq.s32.totalorder %s17, 1
    %p173 = por %p171, %p172
    %p175 = scmp.ne.s32.totalorder %s158, %s174
    %p176 = scmp.eq.s32.totalorder %s17, 0
    %p177 = por %p175, %p176
    %p178 = scmp.le.s32.totalorder 1, %s11
    %p179 = scmp.lt.s32.totalorder %s11, 3
    %p180 = pnand %p178, %p179
    %p181 = pneg %p180
    // Predicated region
    $region9: #{spotr_encoder_forward.6} parent=5 // pred_check
      _
    $region10: #{spotr_encoder_forward.6} parent=5 // pred_check_branch
      %183 = sbr.rel (%p180) target = $region12
    $region11: #{spotr_encoder_forward.6} parent=5 // pred_region
      %s184 = ssub.s32 %s11, 1
      // Predicated region
      $region13: #{spotr_encoder_forward.6} parent=11 // pred_check
        %p185 = pneg %p100
      $region14: #{spotr_encoder_forward.6} parent=11 // pred_check_branch
        %187 = sbr.rel (%p185) target = $region16
      $region15: #{spotr_encoder_forward.6} parent=11 // pred_region
        _
      $region16: #{spotr_encoder_forward.6} parent=11 // pred_fallthru
        _
      // Predicated region
      $region17: #{spotr_encoder_forward.6} parent=11 // pred_check
        %p188 = pneg %p121
      $region18: #{spotr_encoder_forward.6} parent=11 // pred_check_branch
        %190 = sbr.rel (%p188) target = $region20
      $region19: #{spotr_encoder_forward.6} parent=11 // pred_region
        _
      $region20: #{spotr_encoder_forward.6} parent=11 // pred_fallthru
        _
      // Predicated region
      $region21: #{spotr_encoder_forward.6} parent=11 // pred_check
        %p191 = pneg %p142
      $region22: #{spotr_encoder_forward.6} parent=11 // pred_check_branch
        %193 = sbr.rel (%p191) target = $region24
      $region23: #{spotr_encoder_forward.6} parent=11 // pred_region
        _
      $region24: #{spotr_encoder_forward.6} parent=11 // pred_fallthru
        _
    $region12: #{spotr_encoder_forward.6} parent=5 // pred_fallthru
      _
    %p194 = scmp.lt.s32.totalorder %s11, 2
    // Predicated region
    $region25: #{spotr_encoder_forward.6} parent=5 // pred_check
      %p195 = pneg %p194
    $region26: #{spotr_encoder_forward.6} parent=5 // pred_check_branch
      %197 = sbr.rel (%p195) target = $region28
    $region27: #{spotr_encoder_forward.6} parent=5 // pred_region
      // Predicated region
      $region29: #{spotr_encoder_forward.6} parent=27 // pred_check
        %p198 = pneg %p45
      $region30: #{spotr_encoder_forward.6} parent=27 // pred_check_branch
        %200 = sbr.rel (%p198) target = $region32
      $region31: #{spotr_encoder_forward.6} parent=27 // pred_region
        %p201 = scmp.lt.s32.totalorder %s18, 1
        %s202 = scalar_select %p201, %s18, 1
        %p203 = scmp.lt.s32.totalorder %s19, 0
        %s204 = scalar_select %p203, %s19, 0
        %s205 = smul.addr %s202, 8
        %s206 = sadd.s32 %s204, %s205
        %s207 = smul.addr %s206, 4
        %s208 = scalar_lea.vmem %s0, %s207
      $region32: #{spotr_encoder_forward.6} parent=27 // pred_fallthru
        _
      // Predicated region
      $region33: #{spotr_encoder_forward.6} parent=27 // pred_check
        %p209 = pneg %p73
      $region34: #{spotr_encoder_forward.6} parent=27 // pred_check_branch
        %211 = sbr.rel (%p209) target = $region36
      $region35: #{spotr_encoder_forward.6} parent=27 // pred_region
        %p212 = scmp.lt.s32.totalorder %s18, 1
        %s213 = scalar_select %p212, %s18, 1
        %p214 = scmp.lt.s32.totalorder %s19, 0
        %s215 = scalar_select %p214, %s19, 0
        %s216 = smul.addr %s213, 8
        %s217 = sadd.s32 %s215, %s216
        %s218 = smul.addr %s217, 8
        %s219 = scalar_lea.vmem %s1, %s218
      $region36: #{spotr_encoder_forward.6} parent=27 // pred_fallthru
        _
    $region28: #{spotr_encoder_forward.6} parent=5 // pred_fallthru
      _
    %p220 = scmp.le.s32.totalorder 1, %s11
    %p221 = scmp.lt.s32.totalorder %s11, 3
    %p222 = pnand %p220, %p221
    %p223 = pneg %p222
    // Predicated region
    $region37: #{spotr_encoder_forward.6} parent=5 // pred_check
      _
    $region38: #{spotr_encoder_forward.6} parent=5 // pred_check_branch
      %225 = sbr.rel (%p222) target = $region40
    $region39: #{spotr_encoder_forward.6} parent=5 // pred_region
      %s226 = ssub.s32 %s11, 1
      %p227 = scmp.lt.s32.totalorder %s20, 1
      %s228 = scalar_select %p227, %s20, 1
      %p229 = scmp.lt.s32.totalorder %s21, 0
      %s230 = scalar_select %p229, %s21, 0
      %s231 = smul.addr %s228, 8
      %s232 = sadd.s32 %s230, %s231
      %s233 = smul.addr %s232, 4
      %s234 = scalar_lea.vmem %s0, %s233
      %p235 = pneg %p51
      %p236 = pneg %p48
      %p237 = scmp.lt.s32.totalorder %s20, 1
      %s238 = scalar_select %p237, %s20, 1
      %p239 = scmp.lt.s32.totalorder %s21, 0
      %s240 = scalar_select %p239, %s21, 0
      %s241 = smul.addr %s238, 8
      %s242 = sadd.s32 %s240, %s241
      %s243 = smul.addr %s242, 8
      %s244 = scalar_lea.vmem %s1, %s243
      %p245 = pneg %p79
      %p246 = pneg %p76
      %p247 = pneg %p100
      %p248 = pneg %p97
      %p249 = pneg %p121
      %p250 = pneg %p118
      %p251 = pneg %p142
      %p252 = pneg %p139
      %p253 = pneg %p170
      %p254 = pneg %p167
      %p255 = scmp.lt.s32.totalorder %s20, 1
      %s256 = scalar_select %p255, %s20, 1
      %p257 = scmp.lt.s32.totalorder %s21, 0
      %s258 = scalar_select %p257, %s21, 0
      %s259 = smul.addr %s256, 2
      %s260 = sadd.s32 %s258, %s259
      %s261 = smul.addr %s260, 8
      %s262 = scalar_lea.vmem %s5, %s261
      %p263 = scmp.lt.s32.totalorder %s20, 1
      %s264 = scalar_select %p263, %s20, 1
      %p265 = scmp.lt.s32.totalorder %s21, 0
      %s266 = scalar_select %p265, %s21, 0
      %s267 = smul.addr %s264, 8
      %s268 = sadd.s32 %s266, %s267
      %s269 = smul.addr %s268, 4
      %s270 = scalar_lea.vmem %s0, %s269
      %p271 = scmp.lt.s32.totalorder %s20, 1
      %s272 = scalar_select %p271, %s20, 1
      %p273 = scmp.lt.s32.totalorder %s21, 0
      %s274 = scalar_select %p273, %s21, 0
      %s275 = smul.addr %s272, 8
      %s276 = sadd.s32 %s274, %s275
      %s277 = smul.addr %s276, 8
      %s278 = scalar_lea.vmem %s1, %s277
      %p279 = scmp.lt.s32.totalorder %s20, 1
      %s280 = scalar_select %p279, %s20, 1
      %p281 = scmp.lt.s32.totalorder %s21, 0
      %s282 = scalar_select %p281, %s21, 0
      %s283 = smul.addr %s280, 2
      %s284 = sadd.s32 %s282, %s283
      %s285 = smul.addr %s284, 8
      %s286 = scalar_lea.vmem %s5, %s285
      %v287 = vld [vmem:[%s2] sm:$0xff]
      %v288 = vld [vmem:[%s2 + $0x8] sm:$0xff]
      %v289 = vld [vmem:[%s2 + $0x10] sm:$0xff]
      %v290 = vld [vmem:[%s2 + $0x18] sm:$0xff]
      %v291 = vld [vmem:[%s3] sm:$0xff]
      %v292 = vld [vmem:[%s3 + $0x8] sm:$0xff]
      %v293 = vld [vmem:[%s3 + $0x10] sm:$0xff]
      %v294 = vld [vmem:[%s3 + $0x18] sm:$0xff]
      %v295 = vld [vmem:[%s4] sm:$0xff]
      %v296 = vld [vmem:[%s4 + $0x8] sm:$0xff]
      %v297 = vld [vmem:[%s4 + $0x10] sm:$0xff]
      %v298 = vld [vmem:[%s4 + $0x18] sm:$0xff]
      %v299 = vld [vmem:[%s270] sm:$0x7]
      %v300 = vld [vmem:[%s278] sm:$0xff]
      %vm301 = vcmask 64512
      %v303 = vsel %vm301, %v291, 0
      %v306 = vsel %vm301, %v292, 0
      %v309 = vsel %vm301, %v293, 0
      %v312 = vsel %vm301, %v294, 0
      %314 = vmatprep.subr.mxu0 0.0
      %315 = vmatpush1.msra.mxu0 0.0
      %316 = vmatprep.subr.mxu0 0.0
      %317 = vmatpush1.msra.mxu0 0.0
      %318 = vmatprep.subr.mxu0 0.0
      %319 = vmatpush1.msra.mxu0 0.0
      %320 = vmatprep.subr.mxu0 0.0
      %321 = vmatpush1.msra.mxu0 0.0
      %322 = vmatprep.subr.mxu0 0.0
      %323 = vmatpush1.msra.mxu0 0.0
      %324 = vmatprep.subr.mxu0 0.0
      %325 = vmatpush1.msra.mxu0 0.0
      %326 = vmatprep.subr.mxu0 0.0
      %327 = vmatpush1.msra.mxu0 0.0
      %328 = vmatprep.subr.mxu0 0.0
      %329 = vmatpush1.msra.mxu0 0.0
      %330 = vmatprep.subr.mxu0 0.0
      %331 = vmatpush1.msra.mxu0 0.0
      %332 = vmatprep.subr.mxu0 0.0
      %333 = vmatpush1.msra.mxu0 0.0
      %334 = vmatprep.subr.mxu0 0.0
      %335 = vmatpush1.msra.mxu0 0.0
      %336 = vmatprep.subr.mxu0 0.0
      %337 = vmatpush1.msra.mxu0 0.0
      %338 = vmatprep.subr.mxu0 0.0
      %339 = vmatpush1.msra.mxu0 0.0
      %340 = vmatprep.subr.mxu0 0.0
      %341 = vmatpush1.msra.mxu0 0.0
      %342 = vmatprep.subr.mxu0 0.0
      %343 = vmatpush1.msra.mxu0 0.0
      %344 = vmatprep.subr.mxu0 0.0
      %345 = vmatpush1.msra.mxu0 %v300
      %346 = vmatprep.subr.mxu0 0.0
      %347 = vmatpush2.msra.mxu0 0.0
      %348 = vmatprep.subr.mxu0 0.0
      %349 = vmatpush2.msra.mxu0 0.0
      %350 = vmatprep.subr.mxu0 0.0
      %351 = vmatpush2.msra.mxu0 0.0
      %352 = vmatprep.subr.mxu0 0.0
      %353 = vmatpush2.msra.mxu0 0.0
      %354 = vmatprep.subr.mxu0 0.0
      %355 = vmatpush2.msra.mxu0 0.0
      %356 = vmatprep.subr.mxu0 0.0
      %357 = vmatpush2.msra.mxu0 0.0
      %358 = vmatprep.subr.mxu0 0.0
      %359 = vmatpush2.msra.mxu0 0.0
      %360 = vmatprep.subr.mxu0 0.0
      %361 = vmatpush2.msra.mxu0 0.0
      %362 = vmatprep.subr.mxu0 0.0
      %363 = vmatpush2.msra.mxu0 0.0
      %364 = vmatprep.subr.mxu0 0.0
      %365 = vmatpush2.msra.mxu0 0.0
      %366 = vmatprep.subr.mxu0 0.0
      %367 = vmatpush2.msra.mxu0 0.0
      %368 = vmatprep.subr.mxu0 0.0
      %369 = vmatpush2.msra.mxu0 0.0
      %370 = vmatprep.subr.mxu0 0.0
      %371 = vmatpush2.msra.mxu0 0.0
      %372 = vmatprep.subr.mxu0 0.0
      %373 = vmatpush2.msra.mxu0 0.0
      %374 = vmatprep.subr.mxu0 0.0
      %375 = vmatpush2.msra.mxu0 0.0
      %376 = vmatprep.subr.mxu0 0.0
      %377 = vmatpush2.msra.mxu0 0.0
      %378 = vmatprep.mubr.f32.mxu0 0.0
      %379 = vmatmul.mubr.f32.gmra.mxu0 %v303
      %v380 = vpop.f32.mrf.mxu0
      %v381 = vadd.f32 0.0, %v380
      %v382 = vpop.f32.mrf.mxu0
      %383 = vmatprep.mubr.f32.mxu0 0.0
      %384 = vmatmul.mubr.f32.gmra.mxu0 %v306
      %v385 = vpop.f32.mrf.mxu0
      %v386 = vadd.f32 0.0, %v385
      %v387 = vpop.f32.mrf.mxu0
      %388 = vmatprep.mubr.f32.mxu0 0.0
      %389 = vmatmul.mubr.f32.gmra.mxu0 %v309
      %v390 = vpop.f32.mrf.mxu0
      %v391 = vadd.f32 0.0, %v390
      %v392 = vpop.f32.mrf.mxu0
      %393 = vmatprep.mubr.f32.mxu0 0.0
      %394 = vmatmul.mubr.f32.gmra.mxu0 %v312
      %v395 = vpop.f32.mrf.mxu0
      %v396 = vadd.f32 0.0, %v395
      %v397 = vpop.f32.mrf.mxu0
      %398 = vdwg.mxu0
      %vm399 = vcmask 23552
      %v401 = vsel %vm399, %v287, 0
      %v404 = vsel %vm399, %v288, 0
      %v407 = vsel %vm399, %v289, 0
      %v410 = vsel %vm399, %v290, 0
      %vm412 = vcmask 1042432
      %v414 = vsel %vm412, %v299, 0
      %416 = vmatprep.subr.mxu0 0.0
      %417 = vmatpush1.msra.mxu0 0.0
      %418 = vmatprep.subr.mxu0 0.0
      %419 = vmatpush1.msra.mxu0 0.0
      %420 = vmatprep.subr.mxu0 0.0
      %421 = vmatpush1.msra.mxu0 0.0
      %422 = vmatprep.subr.mxu0 0.0
      %423 = vmatpush1.msra.mxu0 0.0
      %424 = vmatprep.subr.mxu0 0.0
      %425 = vmatpush1.msra.mxu0 0.0
      %426 = vmatprep.subr.mxu0 0.0
      %427 = vmatpush1.msra.mxu0 0.0
      %428 = vmatprep.subr.mxu0 0.0
      %429 = vmatpush1.msra.mxu0 0.0
      %430 = vmatprep.subr.mxu0 0.0
      %431 = vmatpush1.msra.mxu0 0.0
      %432 = vmatprep.subr.mxu0 0.0
      %433 = vmatpush1.msra.mxu0 0.0
      %434 = vmatprep.subr.mxu0 0.0
      %435 = vmatpush1.msra.mxu0 0.0
      %436 = vmatprep.subr.mxu0 0.0
      %437 = vmatpush1.msra.mxu0 0.0
      %438 = vmatprep.subr.mxu0 0.0
      %439 = vmatpush1.msra.mxu0 0.0
      %440 = vmatprep.subr.mxu0 0.0
      %441 = vmatpush1.msra.mxu0 0.0
      %442 = vmatprep.subr.mxu0 0.0
      %443 = vmatpush1.msra.mxu0 0.0
      %444 = vmatprep.subr.mxu0 0.0
      %445 = vmatpush1.msra.mxu0 0.0
      %446 = vmatprep.subr.mxu0 0.0
      %447 = vmatpush1.msra.mxu0 %v414
      %448 = vmatprep.subr.mxu0 0.0
      %449 = vmatpush2.msra.mxu0 0.0
      %450 = vmatprep.subr.mxu0 0.0
      %451 = vmatpush2.msra.mxu0 0.0
      %452 = vmatprep.subr.mxu0 0.0
      %453 = vmatpush2.msra.mxu0 0.0
      %454 = vmatprep.subr.mxu0 0.0
      %455 = vmatpush2.msra.mxu0 0.0
      %456 = vmatprep.subr.mxu0 0.0
      %457 = vmatpush2.msra.mxu0 0.0
      %458 = vmatprep.subr.mxu0 0.0
      %459 = vmatpush2.msra.mxu0 0.0
      %460 = vmatprep.subr.mxu0 0.0
      %461 = vmatpush2.msra.mxu0 0.0
      %462 = vmatprep.subr.mxu0 0.0
      %463 = vmatpush2.msra.mxu0 0.0
      %464 = vmatprep.subr.mxu0 0.0
      %465 = vmatpush2.msra.mxu0 0.0
      %466 = vmatprep.subr.mxu0 0.0
      %467 = vmatpush2.msra.mxu0 0.0
      %468 = vmatprep.subr.mxu0 0.0
      %469 = vmatpush2.msra.mxu0 0.0
      %470 = vmatprep.subr.mxu0 0.0
      %471 = vmatpush2.msra.mxu0 0.0
      %472 = vmatprep.subr.mxu0 0.0
      %473 = vmatpush2.msra.mxu0 0.0
      %474 = vmatprep.subr.mxu0 0.0
      %475 = vmatpush2.msra.mxu0 0.0
      %476 = vmatprep.subr.mxu0 0.0
      %477 = vmatpush2.msra.mxu0 0.0
      %478 = vmatprep.subr.mxu0 0.0
      %479 = vmatpush2.msra.mxu0 0.0
      %480 = vmatprep.mubr.f32.mxu0 0.0
      %481 = vmatmul.mubr.f32.gmra.mxu0 %v401
      %v482 = vpop.f32.mrf.mxu0
      %v483 = vadd.f32 %v381, %v482
      %v484 = vpop.f32.mrf.mxu0
      %485 = vmatprep.mubr.f32.mxu0 0.0
      %486 = vmatmul.mubr.f32.gmra.mxu0 %v404
      %v487 = vpop.f32.mrf.mxu0
      %v488 = vadd.f32 %v386, %v487
      %v489 = vpop.f32.mrf.mxu0
      %490 = vmatprep.mubr.f32.mxu0 0.0
      %491 = vmatmul.mubr.f32.gmra.mxu0 %v407
      %v492 = vpop.f32.mrf.mxu0
      %v493 = vadd.f32 %v391, %v492
      %v494 = vpop.f32.mrf.mxu0
      %495 = vmatprep.mubr.f32.mxu0 0.0
      %496 = vmatmul.mubr.f32.gmra.mxu0 %v410
      %v497 = vpop.f32.mrf.mxu0
      %v498 = vadd.f32 %v396, %v497
      %v499 = vpop.f32.mrf.mxu0
      %500 = vdwg.mxu0
      %502 = vset.pattern.permute.xlu0 0
      %503 = vperm.xlu0 %502, %v295
      %v504 = vpop.permute.xlu0 %503
      %507 = vset.pattern.permute.xlu0 0
      %508 = vperm.xlu0 %507, %v296
      %v509 = vpop.permute.xlu0 %508
      %512 = vset.pattern.permute.xlu0 0
      %513 = vperm.xlu0 %512, %v297
      %v514 = vpop.permute.xlu0 %513
      %517 = vset.pattern.permute.xlu0 0
      %518 = vperm.xlu0 %517, %v298
      %v519 = vpop.permute.xlu0 %518
      %v521 = vadd.f32 %v483, %v504
      %v522 = vadd.f32 %v488, %v509
      %v523 = vadd.f32 %v493, %v514
      %v524 = vadd.f32 %v498, %v519
      %vm525 = vcmask 130048
      %526 = vst.msk [vmem:[#allocation2] sm:$0xff] %vm525, %v521
      %527 = vst.msk [vmem:[#allocation2 + $0x8] sm:$0xff] %vm525, %v522
      %528 = vst.msk [vmem:[#allocation2 + $0x10] sm:$0xff] %vm525, %v523
      %529 = vst.msk [vmem:[#allocation2 + $0x18] sm:$0xff] %vm525, %v524
      %s530 = scalar_lea.vmem %s270, 4
      %v531 = vld [vmem:[%s530] sm:$0x7]
      %s532 = scalar_lea.vmem %s278, 8
      %v533 = vld [vmem:[%s532] sm:$0xff]
      %534 = vmatprep.subr.mxu0 0.0
      %535 = vmatpush1.msra.mxu0 0.0
      %536 = vmatprep.subr.mxu0 0.0
      %537 = vmatpush1.msra.mxu0 0.0
      %538 = vmatprep.subr.mxu0 0.0
      %539 = vmatpush1.msra.mxu0 0.0
      %540 = vmatprep.subr.mxu0 0.0
      %541 = vmatpush1.msra.mxu0 0.0
      %542 = vmatprep.subr.mxu0 0.0
      %543 = vmatpush1.msra.mxu0 0.0
      %544 = vmatprep.subr.mxu0 0.0
      %545 = vmatpush1.msra.mxu0 0.0
      %546 = vmatprep.subr.mxu0 0.0
      %547 = vmatpush1.msra.mxu0 0.0
      %548 = vmatprep.subr.mxu0 0.0
      %549 = vmatpush1.msra.mxu0 0.0
      %550 = vmatprep.subr.mxu0 0.0
      %551 = vmatpush1.msra.mxu0 0.0
      %552 = vmatprep.subr.mxu0 0.0
      %553 = vmatpush1.msra.mxu0 0.0
      %554 = vmatprep.subr.mxu0 0.0
      %555 = vmatpush1.msra.mxu0 0.0
      %556 = vmatprep.subr.mxu0 0.0
      %557 = vmatpush1.msra.mxu0 0.0
      %558 = vmatprep.subr.mxu0 0.0
      %559 = vmatpush1.msra.mxu0 0.0
      %560 = vmatprep.subr.mxu0 0.0
      %561 = vmatpush1.msra.mxu0 0.0
      %562 = vmatprep.subr.mxu0 0.0
      %563 = vmatpush1.msra.mxu0 0.0
      %564 = vmatprep.subr.mxu0 0.0
      %565 = vmatpush1.msra.mxu0 %v533
      %566 = vmatprep.subr.mxu0 0.0
      %567 = vmatpush2.msra.mxu0 0.0
      %568 = vmatprep.subr.mxu0 0.0
      %569 = vmatpush2.msra.mxu0 0.0
      %570 = vmatprep.subr.mxu0 0.0
      %571 = vmatpush2.msra.mxu0 0.0
      %572 = vmatprep.subr.mxu0 0.0
      %573 = vmatpush2.msra.mxu0 0.0
      %574 = vmatprep.subr.mxu0 0.0
      %575 = vmatpush2.msra.mxu0 0.0
      %576 = vmatprep.subr.mxu0 0.0
      %577 = vmatpush2.msra.mxu0 0.0
      %578 = vmatprep.subr.mxu0 0.0
      %579 = vmatpush2.msra.mxu0 0.0
      %580 = vmatprep.subr.mxu0 0.0
      %581 = vmatpush2.msra.mxu0 0.0
      %582 = vmatprep.subr.mxu0 0.0
      %583 = vmatpush2.msra.mxu0 0.0
      %584 = vmatprep.subr.mxu0 0.0
      %585 = vmatpush2.msra.mxu0 0.0
      %586 = vmatprep.subr.mxu0 0.0
      %587 = vmatpush2.msra.mxu0 0.0
      %588 = vmatprep.subr.mxu0 0.0
      %589 = vmatpush2.msra.mxu0 0.0
      %590 = vmatprep.subr.mxu0 0.0
      %591 = vmatpush2.msra.mxu0 0.0
      %592 = vmatprep.subr.mxu0 0.0
      %593 = vmatpush2.msra.mxu0 0.0
      %594 = vmatprep.subr.mxu0 0.0
      %595 = vmatpush2.msra.mxu0 0.0
      %596 = vmatprep.subr.mxu0 0.0
      %597 = vmatpush2.msra.mxu0 0.0
      %598 = vmatprep.mubr.f32.mxu0 0.0
      %599 = vmatmul.mubr.f32.gmra.mxu0 %v303
      %v600 = vpop.f32.mrf.mxu0
      %v601 = vadd.f32 0.0, %v600
      %v602 = vpop.f32.mrf.mxu0
      %603 = vmatprep.mubr.f32.mxu0 0.0
      %604 = vmatmul.mubr.f32.gmra.mxu0 %v306
      %v605 = vpop.f32.mrf.mxu0
      %v606 = vadd.f32 0.0, %v605
      %v607 = vpop.f32.mrf.mxu0
      %608 = vmatprep.mubr.f32.mxu0 0.0
      %609 = vmatmul.mubr.f32.gmra.mxu0 %v309
      %v610 = vpop.f32.mrf.mxu0
      %v611 = vadd.f32 0.0, %v610
      %v612 = vpop.f32.mrf.mxu0
      %613 = vmatprep.mubr.f32.mxu0 0.0
      %614 = vmatmul.mubr.f32.gmra.mxu0 %v312
      %v615 = vpop.f32.mrf.mxu0
      %v616 = vadd.f32 0.0, %v615
      %v617 = vpop.f32.mrf.mxu0
      %618 = vdwg.mxu0
      %v620 = vsel %vm412, %v531, 0
      %622 = vmatprep.subr.mxu0 0.0
      %623 = vmatpush1.msra.mxu0 0.0
      %624 = vmatprep.subr.mxu0 0.0
      %625 = vmatpush1.msra.mxu0 0.0
      %626 = vmatprep.subr.mxu0 0.0
      %627 = vmatpush1.msra.mxu0 0.0
      %628 = vmatprep.subr.mxu0 0.0
      %629 = vmatpush1.msra.mxu0 0.0
      %630 = vmatprep.subr.mxu0 0.0
      %631 = vmatpush1.msra.mxu0 0.0
      %632 = vmatprep.subr.mxu0 0.0
      %633 = vmatpush1.msra.mxu0 0.0
      %634 = vmatprep.subr.mxu0 0.0
      %635 = vmatpush1.msra.mxu0 0.0
      %636 = vmatprep.subr.mxu0 0.0
      %637 = vmatpush1.msra.mxu0 0.0
      %638 = vmatprep.subr.mxu0 0.0
      %639 = vmatpush1.msra.mxu0 0.0
      %640 = vmatprep.subr.mxu0 0.0
      %641 = vmatpush1.msra.mxu0 0.0
      %642 = vmatprep.subr.mxu0 0.0
      %643 = vmatpush1.msra.mxu0 0.0
      %644 = vmatprep.subr.mxu0 0.0
      %645 = vmatpush1.msra.mxu0 0.0
      %646 = vmatprep.subr.mxu0 0.0
      %647 = vmatpush1.msra.mxu0 0.0
      %648 = vmatprep.subr.mxu0 0.0
      %649 = vmatpush1.msra.mxu0 0.0
      %650 = vmatprep.subr.mxu0 0.0
      %651 = vmatpush1.msra.mxu0 0.0
      %652 = vmatprep.subr.mxu0 0.0
      %653 = vmatpush1.msra.mxu0 %v620
      %654 = vmatprep.subr.mxu0 0.0
      %655 = vmatpush2.msra.mxu0 0.0
      %656 = vmatprep.subr.mxu0 0.0
      %657 = vmatpush2.msra.mxu0 0.0
      %658 = vmatprep.subr.mxu0 0.0
      %659 = vmatpush2.msra.mxu0 0.0
      %660 = vmatprep.subr.mxu0 0.0
      %661 = vmatpush2.msra.mxu0 0.0
      %662 = vmatprep.subr.mxu0 0.0
      %663 = vmatpush2.msra.mxu0 0.0
      %664 = vmatprep.subr.mxu0 0.0
      %665 = vmatpush2.msra.mxu0 0.0
      %666 = vmatprep.subr.mxu0 0.0
      %667 = vmatpush2.msra.mxu0 0.0
      %668 = vmatprep.subr.mxu0 0.0
      %669 = vmatpush2.msra.mxu0 0.0
      %670 = vmatprep.subr.mxu0 0.0
      %671 = vmatpush2.msra.mxu0 0.0
      %672 = vmatprep.subr.mxu0 0.0
      %673 = vmatpush2.msra.mxu0 0.0
      %674 = vmatprep.subr.mxu0 0.0
      %675 = vmatpush2.msra.mxu0 0.0
      %676 = vmatprep.subr.mxu0 0.0
      %677 = vmatpush2.msra.mxu0 0.0
      %678 = vmatprep.subr.mxu0 0.0
      %679 = vmatpush2.msra.mxu0 0.0
      %680 = vmatprep.subr.mxu0 0.0
      %681 = vmatpush2.msra.mxu0 0.0
      %682 = vmatprep.subr.mxu0 0.0
      %683 = vmatpush2.msra.mxu0 0.0
      %684 = vmatprep.subr.mxu0 0.0
      %685 = vmatpush2.msra.mxu0 0.0
      %686 = vmatprep.mubr.f32.mxu0 0.0
      %687 = vmatmul.mubr.f32.gmra.mxu0 %v401
      %v688 = vpop.f32.mrf.mxu0
      %v689 = vadd.f32 %v601, %v688
      %v690 = vpop.f32.mrf.mxu0
      %691 = vmatprep.mubr.f32.mxu0 0.0
      %692 = vmatmul.mubr.f32.gmra.mxu0 %v404
      %v693 = vpop.f32.mrf.mxu0
      %v694 = vadd.f32 %v606, %v693
      %v695 = vpop.f32.mrf.mxu0
      %696 = vmatprep.mubr.f32.mxu0 0.0
      %697 = vmatmul.mubr.f32.gmra.mxu0 %v407
      %v698 = vpop.f32.mrf.mxu0
      %v699 = vadd.f32 %v611, %v698
      %v700 = vpop.f32.mrf.mxu0
      %701 = vmatprep.mubr.f32.mxu0 0.0
      %702 = vmatmul.mubr.f32.gmra.mxu0 %v410
      %v703 = vpop.f32.mrf.mxu0
      %v704 = vadd.f32 %v616, %v703
      %v705 = vpop.f32.mrf.mxu0
      %706 = vdwg.mxu0
      %v707 = vadd.f32 %v689, %v504
      %v708 = vadd.f32 %v694, %v509
      %v709 = vadd.f32 %v699, %v514
      %v710 = vadd.f32 %v704, %v519
      %s711 = scalar_lea.vmem [#allocation2], 32
      %712 = vst.msk [vmem:[%s711] sm:$0xff] %vm525, %v707
      %713 = vst.msk [vmem:[%s711 + $0x8] sm:$0xff] %vm525, %v708
      %714 = vst.msk [vmem:[%s711 + $0x10] sm:$0xff] %vm525, %v709
      %715 = vst.msk [vmem:[%s711 + $0x18] sm:$0xff] %vm525, %v710
      %s716 = scalar_lea.vmem %s270, 8
      %v717 = vld [vmem:[%s716] sm:$0x7]
      %s718 = scalar_lea.vmem %s278, 16
      %v719 = vld [vmem:[%s718] sm:$0xff]
      %720 = vmatprep.subr.mxu0 0.0
      %721 = vmatpush1.msra.mxu0 0.0
      %722 = vmatprep.subr.mxu0 0.0
      %723 = vmatpush1.msra.mxu0 0.0
      %724 = vmatprep.subr.mxu0 0.0
      %725 = vmatpush1.msra.mxu0 0.0
      %726 = vmatprep.subr.mxu0 0.0
      %727 = vmatpush1.msra.mxu0 0.0
      %728 = vmatprep.subr.mxu0 0.0
      %729 = vmatpush1.msra.mxu0 0.0
      %730 = vmatprep.subr.mxu0 0.0
      %731 = vmatpush1.msra.mxu0 0.0
      %732 = vmatprep.subr.mxu0 0.0
      %733 = vmatpush1.msra.mxu0 0.0
      %734 = vmatprep.subr.mxu0 0.0
      %735 = vmatpush1.msra.mxu0 0.0
      %736 = vmatprep.subr.mxu0 0.0
      %737 = vmatpush1.msra.mxu0 0.0
      %738 = vmatprep.subr.mxu0 0.0
      %739 = vmatpush1.msra.mxu0 0.0
      %740 = vmatprep.subr.mxu0 0.0
      %741 = vmatpush1.msra.mxu0 0.0
      %742 = vmatprep.subr.mxu0 0.0
      %743 = vmatpush1.msra.mxu0 0.0
      %744 = vmatprep.subr.mxu0 0.0
      %745 = vmatpush1.msra.mxu0 0.0
      %746 = vmatprep.subr.mxu0 0.0
      %747 = vmatpush1.msra.mxu0 0.0
      %748 = vmatprep.subr.mxu0 0.0
      %749 = vmatpush1.msra.mxu0 0.0
      %750 = vmatprep.subr.mxu0 0.0
      %751 = vmatpush1.msra.mxu0 %v719
      %752 = vmatprep.subr.mxu0 0.0
      %753 = vmatpush2.msra.mxu0 0.0
      %754 = vmatprep.subr.mxu0 0.0
      %755 = vmatpush2.msra.mxu0 0.0
      %756 = vmatprep.subr.mxu0 0.0
      %757 = vmatpush2.msra.mxu0 0.0
      %758 = vmatprep.subr.mxu0 0.0
      %759 = vmatpush2.msra.mxu0 0.0
      %760 = vmatprep.subr.mxu0 0.0
      %761 = vmatpush2.msra.mxu0 0.0
      %762 = vmatprep.subr.mxu0 0.0
      %763 = vmatpush2.msra.mxu0 0.0
      %764 = vmatprep.subr.mxu0 0.0
      %765 = vmatpush2.msra.mxu0 0.0
      %766 = vmatprep.subr.mxu0 0.0
      %767 = vmatpush2.msra.mxu0 0.0
      %768 = vmatprep.subr.mxu0 0.0
      %769 = vmatpush2.msra.mxu0 0.0
      %770 = vmatprep.subr.mxu0 0.0
      %771 = vmatpush2.msra.mxu0 0.0
      %772 = vmatprep.subr.mxu0 0.0
      %773 = vmatpush2.msra.mxu0 0.0
      %774 = vmatprep.subr.mxu0 0.0
      %775 = vmatpush2.msra.mxu0 0.0
      %776 = vmatprep.subr.mxu0 0.0
      %777 = vmatpush2.msra.mxu0 0.0
      %778 = vmatprep.subr.mxu0 0.0
      %779 = vmatpush2.msra.mxu0 0.0
      %780 = vmatprep.subr.mxu0 0.0
      %781 = vmatpush2.msra.mxu0 0.0
      %782 = vmatprep.subr.mxu0 0.0
      %783 = vmatpush2.msra.mxu0 0.0
      %784 = vmatprep.mubr.f32.mxu0 0.0
      %785 = vmatmul.mubr.f32.gmra.mxu0 %v303
      %v786 = vpop.f32.mrf.mxu0
      %v787 = vadd.f32 0.0, %v786
      %v788 = vpop.f32.mrf.mxu0
      %789 = vmatprep.mubr.f32.mxu0 0.0
      %790 = vmatmul.mubr.f32.gmra.mxu0 %v306
      %v791 = vpop.f32.mrf.mxu0
      %v792 = vadd.f32 0.0, %v791
      %v793 = vpop.f32.mrf.mxu0
      %794 = vmatprep.mubr.f32.mxu0 0.0
      %795 = vmatmul.mubr.f32.gmra.mxu0 %v309
      %v796 = vpop.f32.mrf.mxu0
      %v797 = vadd.f32 0.0, %v796
      %v798 = vpop.f32.mrf.mxu0
      %799 = vmatprep.mubr.f32.mxu0 0.0
      %800 = vmatmul.mubr.f32.gmra.mxu0 %v312
      %v801 = vpop.f32.mrf.mxu0
      %v802 = vadd.f32 0.0, %v801
      %v803 = vpop.f32.mrf.mxu0
      %804 = vdwg.mxu0
      %v806 = vsel %vm412, %v717, 0
      %808 = vmatprep.subr.mxu0 0.0
      %809 = vmatpush1.msra.mxu0 0.0
      %810 = vmatprep.subr.mxu0 0.0
      %811 = vmatpush1.msra.mxu0 0.0
      %812 = vmatprep.subr.mxu0 0.0
      %813 = vmatpush1.msra.mxu0 0.0
      %814 = vmatprep.subr.mxu0 0.0
      %815 = vmatpush1.msra.mxu0 0.0
      %816 = vmatprep.subr.mxu0 0.0
      %817 = vmatpush1.msra.mxu0 0.0
      %818 = vmatprep.subr.mxu0 0.0
      %819 = vmatpush1.msra.mxu0 0.0
      %820 = vmatprep.subr.mxu0 0.0
      %821 = vmatpush1.msra.mxu0 0.0
      %822 = vmatprep.subr.mxu0 0.0
      %823 = vmatpush1.msra.mxu0 0.0
      %824 = vmatprep.subr.mxu0 0.0
      %825 = vmatpush1.msra.mxu0 0.0
      %826 = vmatprep.subr.mxu0 0.0
      %827 = vmatpush1.msra.mxu0 0.0
      %828 = vmatprep.subr.mxu0 0.0
      %829 = vmatpush1.msra.mxu0 0.0
      %830 = vmatprep.subr.mxu0 0.0
      %831 = vmatpush1.msra.mxu0 0.0
      %832 = vmatprep.subr.mxu0 0.0
      %833 = vmatpush1.msra.mxu0 0.0
      %834 = vmatprep.subr.mxu0 0.0
      %835 = vmatpush1.msra.mxu0 0.0
      %836 = vmatprep.subr.mxu0 0.0
      %837 = vmatpush1.msra.mxu0 0.0
      %838 = vmatprep.subr.mxu0 0.0
      %839 = vmatpush1.msra.mxu0 %v806
      %840 = vmatprep.subr.mxu0 0.0
      %841 = vmatpush2.msra.mxu0 0.0
      %842 = vmatprep.subr.mxu0 0.0
      %843 = vmatpush2.msra.mxu0 0.0
      %844 = vmatprep.subr.mxu0 0.0
      %845 = vmatpush2.msra.mxu0 0.0
      %846 = vmatprep.subr.mxu0 0.0
      %847 = vmatpush2.msra.mxu0 0.0
      %848 = vmatprep.subr.mxu0 0.0
      %849 = vmatpush2.msra.mxu0 0.0
      %850 = vmatprep.subr.mxu0 0.0
      %851 = vmatpush2.msra.mxu0 0.0
      %852 = vmatprep.subr.mxu0 0.0
      %853 = vmatpush2.msra.mxu0 0.0
      %854 = vmatprep.subr.mxu0 0.0
      %855 = vmatpush2.msra.mxu0 0.0
      %856 = vmatprep.subr.mxu0 0.0
      %857 = vmatpush2.msra.mxu0 0.0
      %858 = vmatprep.subr.mxu0 0.0
      %859 = vmatpush2.msra.mxu0 0.0
      %860 = vmatprep.subr.mxu0 0.0
      %861 = vmatpush2.msra.mxu0 0.0
      %862 = vmatprep.subr.mxu0 0.0
      %863 = vmatpush2.msra.mxu0 0.0
      %864 = vmatprep.subr.mxu0 0.0
      %865 = vmatpush2.msra.mxu0 0.0
      %866 = vmatprep.subr.mxu0 0.0
      %867 = vmatpush2.msra.mxu0 0.0
      %868 = vmatprep.subr.mxu0 0.0
      %869 = vmatpush2.msra.mxu0 0.0
      %870 = vmatprep.subr.mxu0 0.0
      %871 = vmatpush2.msra.mxu0 0.0
      %872 = vmatprep.mubr.f32.mxu0 0.0
      %873 = vmatmul.mubr.f32.gmra.mxu0 %v401
      %v874 = vpop.f32.mrf.mxu0
      %v875 = vadd.f32 %v787, %v874
      %v876 = vpop.f32.mrf.mxu0
      %877 = vmatprep.mubr.f32.mxu0 0.0
      %878 = vmatmul.mubr.f32.gmra.mxu0 %v404
      %v879 = vpop.f32.mrf.mxu0
      %v880 = vadd.f32 %v792, %v879
      %v881 = vpop.f32.mrf.mxu0
      %882 = vmatprep.mubr.f32.mxu0 0.0
      %883 = vmatmul.mubr.f32.gmra.mxu0 %v407
      %v884 = vpop.f32.mrf.mxu0
      %v885 = vadd.f32 %v797, %v884
      %v886 = vpop.f32.mrf.mxu0
      %887 = vmatprep.mubr.f32.mxu0 0.0
      %888 = vmatmul.mubr.f32.gmra.mxu0 %v410
      %v889 = vpop.f32.mrf.mxu0
      %v890 = vadd.f32 %v802, %v889
      %v891 = vpop.f32.mrf.mxu0
      %892 = vdwg.mxu0
      %v893 = vadd.f32 %v875, %v504
      %v894 = vadd.f32 %v880, %v509
      %v895 = vadd.f32 %v885, %v514
      %v896 = vadd.f32 %v890, %v519
      %s897 = scalar_lea.vmem [#allocation2], 64
      %898 = vst.msk [vmem:[%s897] sm:$0xff] %vm525, %v893
      %899 = vst.msk [vmem:[%s897 + $0x8] sm:$0xff] %vm525, %v894
      %900 = vst.msk [vmem:[%s897 + $0x10] sm:$0xff] %vm525, %v895
      %901 = vst.msk [vmem:[%s897 + $0x18] sm:$0xff] %vm525, %v896
      %s902 = scalar_lea.vmem %s270, 12
      %v903 = vld [vmem:[%s902] sm:$0x7]
      %s904 = scalar_lea.vmem %s278, 24
      %v905 = vld [vmem:[%s904] sm:$0xff]
      %906 = vmatprep.subr.mxu0 0.0
      %907 = vmatpush1.msra.mxu0 0.0
      %908 = vmatprep.subr.mxu0 0.0
      %909 = vmatpush1.msra.mxu0 0.0
      %910 = vmatprep.subr.mxu0 0.0
      %911 = vmatpush1.msra.mxu0 0.0
      %912 = vmatprep.subr.mxu0 0.0
      %913 = vmatpush1.msra.mxu0 0.0
      %914 = vmatprep.subr.mxu0 0.0
      %915 = vmatpush1.msra.mxu0 0.0
      %916 = vmatprep.subr.mxu0 0.0
      %917 = vmatpush1.msra.mxu0 0.0
      %918 = vmatprep.subr.mxu0 0.0
      %919 = vmatpush1.msra.mxu0 0.0
      %920 = vmatprep.subr.mxu0 0.0
      %921 = vmatpush1.msra.mxu0 0.0
      %922 = vmatprep.subr.mxu0 0.0
      %923 = vmatpush1.msra.mxu0 0.0
      %924 = vmatprep.subr.mxu0 0.0
      %925 = vmatpush1.msra.mxu0 0.0
      %926 = vmatprep.subr.mxu0 0.0
      %927 = vmatpush1.msra.mxu0 0.0
      %928 = vmatprep.subr.mxu0 0.0
      %929 = vmatpush1.msra.mxu0 0.0
      %930 = vmatprep.subr.mxu0 0.0
      %931 = vmatpush1.msra.mxu0 0.0
      %932 = vmatprep.subr.mxu0 0.0
      %933 = vmatpush1.msra.mxu0 0.0
      %934 = vmatprep.subr.mxu0 0.0
      %935 = vmatpush1.msra.mxu0 0.0
      %936 = vmatprep.subr.mxu0 0.0
      %937 = vmatpush1.msra.mxu0 %v905
      %938 = vmatprep.subr.mxu0 0.0
      %939 = vmatpush2.msra.mxu0 0.0
      %940 = vmatprep.subr.mxu0 0.0
      %941 = vmatpush2.msra.mxu0 0.0
      %942 = vmatprep.subr.mxu0 0.0
      %943 = vmatpush2.msra.mxu0 0.0
      %944 = vmatprep.subr.mxu0 0.0
      %945 = vmatpush2.msra.mxu0 0.0
      %946 = vmatprep.subr.mxu0 0.0
      %947 = vmatpush2.msra.mxu0 0.0
      %948 = vmatprep.subr.mxu0 0.0
      %949 = vmatpush2.msra.mxu0 0.0
      %950 = vmatprep.subr.mxu0 0.0
      %951 = vmatpush2.msra.mxu0 0.0
      %952 = vmatprep.subr.mxu0 0.0
      %953 = vmatpush2.msra.mxu0 0.0
      %954 = vmatprep.subr.mxu0 0.0
      %955 = vmatpush2.msra.mxu0 0.0
      %956 = vmatprep.subr.mxu0 0.0
      %957 = vmatpush2.msra.mxu0 0.0
      %958 = vmatprep.subr.mxu0 0.0
      %959 = vmatpush2.msra.mxu0 0.0
      %960 = vmatprep.subr.mxu0 0.0
      %961 = vmatpush2.msra.mxu0 0.0
      %962 = vmatprep.subr.mxu0 0.0
      %963 = vmatpush2.msra.mxu0 0.0
      %964 = vmatprep.subr.mxu0 0.0
      %965 = vmatpush2.msra.mxu0 0.0
      %966 = vmatprep.subr.mxu0 0.0
      %967 = vmatpush2.msra.mxu0 0.0
      %968 = vmatprep.subr.mxu0 0.0
      %969 = vmatpush2.msra.mxu0 0.0
      %970 = vmatprep.mubr.f32.mxu0 0.0
      %971 = vmatmul.mubr.f32.gmra.mxu0 %v303
      %v972 = vpop.f32.mrf.mxu0
      %v973 = vadd.f32 0.0, %v972
      %v974 = vpop.f32.mrf.mxu0
      %975 = vmatprep.mubr.f32.mxu0 0.0
      %976 = vmatmul.mubr.f32.gmra.mxu0 %v306
      %v977 = vpop.f32.mrf.mxu0
      %v978 = vadd.f32 0.0, %v977
      %v979 = vpop.f32.mrf.mxu0
      %980 = vmatprep.mubr.f32.mxu0 0.0
      %981 = vmatmul.mubr.f32.gmra.mxu0 %v309
      %v982 = vpop.f32.mrf.mxu0
      %v983 = vadd.f32 0.0, %v982
      %v984 = vpop.f32.mrf.mxu0
      %985 = vmatprep.mubr.f32.mxu0 0.0
      %986 = vmatmul.mubr.f32.gmra.mxu0 %v312
      %v987 = vpop.f32.mrf.mxu0
      %v988 = vadd.f32 0.0, %v987
      %v989 = vpop.f32.mrf.mxu0
      %990 = vdwg.mxu0
      %v992 = vsel %vm412, %v903, 0
      %994 = vmatprep.subr.mxu0 0.0
      %995 = vmatpush1.msra.mxu0 0.0
      %996 = vmatprep.subr.mxu0 0.0
      %997 = vmatpush1.msra.mxu0 0.0
      %998 = vmatprep.subr.mxu0 0.0
      %999 = vmatpush1.msra.mxu0 0.0
      %1000 = vmatprep.subr.mxu0 0.0
      %1001 = vmatpush1.msra.mxu0 0.0
      %1002 = vmatprep.subr.mxu0 0.0
      %1003 = vmatpush1.msra.mxu0 0.0
      %1004 = vmatprep.subr.mxu0 0.0
      %1005 = vmatpush1.msra.mxu0 0.0
      %1006 = vmatprep.subr.mxu0 0.0
      %1007 = vmatpush1.msra.mxu0 0.0
      %1008 = vmatprep.subr.mxu0 0.0
      %1009 = vmatpush1.msra.mxu0 0.0
      %1010 = vmatprep.subr.mxu0 0.0
      %1011 = vmatpush1.msra.mxu0 0.0
      %1012 = vmatprep.subr.mxu0 0.0
      %1013 = vmatpush1.msra.mxu0 0.0
      %1014 = vmatprep.subr.mxu0 0.0
      %1015 = vmatpush1.msra.mxu0 0.0
      %1016 = vmatprep.subr.mxu0 0.0
      %1017 = vmatpush1.msra.mxu0 0.0
      %1018 = vmatprep.subr.mxu0 0.0
      %1019 = vmatpush1.msra.mxu0 0.0
      %1020 = vmatprep.subr.mxu0 0.0
      %1021 = vmatpush1.msra.mxu0 0.0
      %1022 = vmatprep.subr.mxu0 0.0
      %1023 = vmatpush1.msra.mxu0 0.0
      %1024 = vmatprep.subr.mxu0 0.0
      %1025 = vmatpush1.msra.mxu0 %v992
      %1026 = vmatprep.subr.mxu0 0.0
      %1027 = vmatpush2.msra.mxu0 0.0
      %1028 = vmatprep.subr.mxu0 0.0
      %1029 = vmatpush2.msra.mxu0 0.0
      %1030 = vmatprep.subr.mxu0 0.0
      %1031 = vmatpush2.msra.mxu0 0.0
      %1032 = vmatprep.subr.mxu0 0.0
      %1033 = vmatpush2.msra.mxu0 0.0
      %1034 = vmatprep.subr.mxu0 0.0
      %1035 = vmatpush2.msra.mxu0 0.0
      %1036 = vmatprep.subr.mxu0 0.0
      %1037 = vmatpush2.msra.mxu0 0.0
      %1038 = vmatprep.subr.mxu0 0.0
      %1039 = vmatpush2.msra.mxu0 0.0
      %1040 = vmatprep.subr.mxu0 0.0
      %1041 = vmatpush2.msra.mxu0 0.0
      %1042 = vmatprep.subr.mxu0 0.0
      %1043 = vmatpush2.msra.mxu0 0.0
      %1044 = vmatprep.subr.mxu0 0.0
      %1045 = vmatpush2.msra.mxu0 0.0
      %1046 = vmatprep.subr.mxu0 0.0
      %1047 = vmatpush2.msra.mxu0 0.0
      %1048 = vmatprep.subr.mxu0 0.0
      %1049 = vmatpush2.msra.mxu0 0.0
      %1050 = vmatprep.subr.mxu0 0.0
      %1051 = vmatpush2.msra.mxu0 0.0
      %1052 = vmatprep.subr.mxu0 0.0
      %1053 = vmatpush2.msra.mxu0 0.0
      %1054 = vmatprep.subr.mxu0 0.0
      %1055 = vmatpush2.msra.mxu0 0.0
      %1056 = vmatprep.subr.mxu0 0.0
      %1057 = vmatpush2.msra.mxu0 0.0
      %1058 = vmatprep.mubr.f32.mxu0 0.0
      %1059 = vmatmul.mubr.f32.gmra.mxu0 %v401
      %v1060 = vpop.f32.mrf.mxu0
      %v1061 = vadd.f32 %v973, %v1060
      %v1062 = vpop.f32.mrf.mxu0
      %1063 = vmatprep.mubr.f32.mxu0 0.0
      %1064 = vmatmul.mubr.f32.gmra.mxu0 %v404
      %v1065 = vpop.f32.mrf.mxu0
      %v1066 = vadd.f32 %v978, %v1065
      %v1067 = vpop.f32.mrf.mxu0
      %1068 = vmatprep.mubr.f32.mxu0 0.0
      %1069 = vmatmul.mubr.f32.gmra.mxu0 %v407
      %v1070 = vpop.f32.mrf.mxu0
      %v1071 = vadd.f32 %v983, %v1070
      %v1072 = vpop.f32.mrf.mxu0
      %1073 = vmatprep.mubr.f32.mxu0 0.0
      %1074 = vmatmul.mubr.f32.gmra.mxu0 %v410
      %v1075 = vpop.f32.mrf.mxu0
      %v1076 = vadd.f32 %v988, %v1075
      %v1077 = vpop.f32.mrf.mxu0
      %1078 = vdwg.mxu0
      %v1079 = vadd.f32 %v1061, %v504
      %v1080 = vadd.f32 %v1066, %v509
      %v1081 = vadd.f32 %v1071, %v514
      %v1082 = vadd.f32 %v1076, %v519
      %s1083 = scalar_lea.vmem [#allocation2], 96
      %1084 = vst.msk [vmem:[%s1083] sm:$0xff] %vm525, %v1079
      %1085 = vst.msk [vmem:[%s1083 + $0x8] sm:$0xff] %vm525, %v1080
      %1086 = vst.msk [vmem:[%s1083 + $0x10] sm:$0xff] %vm525, %v1081
      %1087 = vst.msk [vmem:[%s1083 + $0x18] sm:$0xff] %vm525, %v1082
      %s1088 = scalar_lea.vmem %s270, 16
      %v1089 = vld [vmem:[%s1088] sm:$0x7]
      %s1090 = scalar_lea.vmem %s278, 32
      %v1091 = vld [vmem:[%s1090] sm:$0xff]
      %1092 = vmatprep.subr.mxu0 0.0
      %1093 = vmatpush1.msra.mxu0 0.0
      %1094 = vmatprep.subr.mxu0 0.0
      %1095 = vmatpush1.msra.mxu0 0.0
      %1096 = vmatprep.subr.mxu0 0.0
      %1097 = vmatpush1.msra.mxu0 0.0
      %1098 = vmatprep.subr.mxu0 0.0
      %1099 = vmatpush1.msra.mxu0 0.0
      %1100 = vmatprep.subr.mxu0 0.0
      %1101 = vmatpush1.msra.mxu0 0.0
      %1102 = vmatprep.subr.mxu0 0.0
      %1103 = vmatpush1.msra.mxu0 0.0
      %1104 = vmatprep.subr.mxu0 0.0
      %1105 = vmatpush1.msra.mxu0 0.0
      %1106 = vmatprep.subr.mxu0 0.0
      %1107 = vmatpush1.msra.mxu0 0.0
      %1108 = vmatprep.subr.mxu0 0.0
      %1109 = vmatpush1.msra.mxu0 0.0
      %1110 = vmatprep.subr.mxu0 0.0
      %1111 = vmatpush1.msra.mxu0 0.0
      %1112 = vmatprep.subr.mxu0 0.0
      %1113 = vmatpush1.msra.mxu0 0.0
      %1114 = vmatprep.subr.mxu0 0.0
      %1115 = vmatpush1.msra.mxu0 0.0
      %1116 = vmatprep.subr.mxu0 0.0
      %1117 = vmatpush1.msra.mxu0 0.0
      %1118 = vmatprep.subr.mxu0 0.0
      %1119 = vmatpush1.msra.mxu0 0.0
      %1120 = vmatprep.subr.mxu0 0.0
      %1121 = vmatpush1.msra.mxu0 0.0
      %1122 = vmatprep.subr.mxu0 0.0
      %1123 = vmatpush1.msra.mxu0 %v1091
      %1124 = vmatprep.subr.mxu0 0.0
      %1125 = vmatpush2.msra.mxu0 0.0
      %1126 = vmatprep.subr.mxu0 0.0
      %1127 = vmatpush2.msra.mxu0 0.0
      %1128 = vmatprep.subr.mxu0 0.0
      %1129 = vmatpush2.msra.mxu0 0.0
      %1130 = vmatprep.subr.mxu0 0.0
      %1131 = vmatpush2.msra.mxu0 0.0
      %1132 = vmatprep.subr.mxu0 0.0
      %1133 = vmatpush2.msra.mxu0 0.0
      %1134 = vmatprep.subr.mxu0 0.0
      %1135 = vmatpush2.msra.mxu0 0.0
      %1136 = vmatprep.subr.mxu0 0.0
      %1137 = vmatpush2.msra.mxu0 0.0
      %1138 = vmatprep.subr.mxu0 0.0
      %1139 = vmatpush2.msra.mxu0 0.0
      %1140 = vmatprep.subr.mxu0 0.0
      %1141 = vmatpush2.msra.mxu0 0.0
      %1142 = vmatprep.subr.mxu0 0.0
      %1143 = vmatpush2.msra.mxu0 0.0
      %1144 = vmatprep.subr.mxu0 0.0
      %1145 = vmatpush2.msra.mxu0 0.0
      %1146 = vmatprep.subr.mxu0 0.0
      %1147 = vmatpush2.msra.mxu0 0.0
      %1148 = vmatprep.subr.mxu0 0.0
      %1149 = vmatpush2.msra.mxu0 0.0
      %1150 = vmatprep.subr.mxu0 0.0
      %1151 = vmatpush2.msra.mxu0 0.0
      %1152 = vmatprep.subr.mxu0 0.0
      %1153 = vmatpush2.msra.mxu0 0.0
      %1154 = vmatprep.subr.mxu0 0.0
      %1155 = vmatpush2.msra.mxu0 0.0
      %1156 = vmatprep.mubr.f32.mxu0 0.0
      %1157 = vmatmul.mubr.f32.gmra.mxu0 %v303
      %v1158 = vpop.f32.mrf.mxu0
      %v1159 = vadd.f32 0.0, %v1158
      %v1160 = vpop.f32.mrf.mxu0
      %1161 = vmatprep.mubr.f32.mxu0 0.0
      %1162 = vmatmul.mubr.f32.gmra.mxu0 %v306
      %v1163 = vpop.f32.mrf.mxu0
      %v1164 = vadd.f32 0.0, %v1163
      %v1165 = vpop.f32.mrf.mxu0
      %1166 = vmatprep.mubr.f32.mxu0 0.0
      %1167 = vmatmul.mubr.f32.gmra.mxu0 %v309
      %v1168 = vpop.f32.mrf.mxu0
      %v1169 = vadd.f32 0.0, %v1168
      %v1170 = vpop.f32.mrf.mxu0
      %1171 = vmatprep.mubr.f32.mxu0 0.0
      %1172 = vmatmul.mubr.f32.gmra.mxu0 %v312
      %v1173 = vpop.f32.mrf.mxu0
      %v1174 = vadd.f32 0.0, %v1173
      %v1175 = vpop.f32.mrf.mxu0
      %1176 = vdwg.mxu0
      %v1178 = vsel %vm412, %v1089, 0
      %1180 = vmatprep.subr.mxu0 0.0
      %1181 = vmatpush1.msra.mxu0 0.0
      %1182 = vmatprep.subr.mxu0 0.0
      %1183 = vmatpush1.msra.mxu0 0.0
      %1184 = vmatprep.subr.mxu0 0.0
      %1185 = vmatpush1.msra.mxu0 0.0
      %1186 = vmatprep.subr.mxu0 0.0
      %1187 = vmatpush1.msra.mxu0 0.0
      %1188 = vmatprep.subr.mxu0 0.0
      %1189 = vmatpush1.msra.mxu0 0.0
      %1190 = vmatprep.subr.mxu0 0.0
      %1191 = vmatpush1.msra.mxu0 0.0
      %1192 = vmatprep.subr.mxu0 0.0
      %1193 = vmatpush1.msra.mxu0 0.0
      %1194 = vmatprep.subr.mxu0 0.0
      %1195 = vmatpush1.msra.mxu0 0.0
      %1196 = vmatprep.subr.mxu0 0.0
      %1197 = vmatpush1.msra.mxu0 0.0
      %1198 = vmatprep.subr.mxu0 0.0
      %1199 = vmatpush1.msra.mxu0 0.0
      %1200 = vmatprep.subr.mxu0 0.0
      %1201 = vmatpush1.msra.mxu0 0.0
      %1202 = vmatprep.subr.mxu0 0.0
      %1203 = vmatpush1.msra.mxu0 0.0
      %1204 = vmatprep.subr.mxu0 0.0
      %1205 = vmatpush1.msra.mxu0 0.0
      %1206 = vmatprep.subr.mxu0 0.0
      %1207 = vmatpush1.msra.mxu0 0.0
      %1208 = vmatprep.subr.mxu0 0.0
      %1209 = vmatpush1.msra.mxu0 0.0
      %1210 = vmatprep.subr.mxu0 0.0
      %1211 = vmatpush1.msra.mxu0 %v1178
      %1212 = vmatprep.subr.mxu0 0.0
      %1213 = vmatpush2.msra.mxu0 0.0
      %1214 = vmatprep.subr.mxu0 0.0
      %1215 = vmatpush2.msra.mxu0 0.0
      %1216 = vmatprep.subr.mxu0 0.0
      %1217 = vmatpush2.msra.mxu0 0.0
      %1218 = vmatprep.subr.mxu0 0.0
      %1219 = vmatpush2.msra.mxu0 0.0
      %1220 = vmatprep.subr.mxu0 0.0
      %1221 = vmatpush2.msra.mxu0 0.0
      %1222 = vmatprep.subr.mxu0 0.0
      %1223 = vmatpush2.msra.mxu0 0.0
      %1224 = vmatprep.subr.mxu0 0.0
      %1225 = vmatpush2.msra.mxu0 0.0
      %1226 = vmatprep.subr.mxu0 0.0
      %1227 = vmatpush2.msra.mxu0 0.0
      %1228 = vmatprep.subr.mxu0 0.0
      %1229 = vmatpush2.msra.mxu0 0.0
      %1230 = vmatprep.subr.mxu0 0.0
      %1231 = vmatpush2.msra.mxu0 0.0
      %1232 = vmatprep.subr.mxu0 0.0
      %1233 = vmatpush2.msra.mxu0 0.0
      %1234 = vmatprep.subr.mxu0 0.0
      %1235 = vmatpush2.msra.mxu0 0.0
      %1236 = vmatprep.subr.mxu0 0.0
      %1237 = vmatpush2.msra.mxu0 0.0
      %1238 = vmatprep.subr.mxu0 0.0
      %1239 = vmatpush2.msra.mxu0 0.0
      %1240 = vmatprep.subr.mxu0 0.0
      %1241 = vmatpush2.msra.mxu0 0.0
      %1242 = vmatprep.subr.mxu0 0.0
      %1243 = vmatpush2.msra.mxu0 0.0
      %1244 = vmatprep.mubr.f32.mxu0 0.0
      %1245 = vmatmul.mubr.f32.gmra.mxu0 %v401
      %v1246 = vpop.f32.mrf.mxu0
      %v1247 = vadd.f32 %v1159, %v1246
      %v1248 = vpop.f32.mrf.mxu0
      %1249 = vmatprep.mubr.f32.mxu0 0.0
      %1250 = vmatmul.mubr.f32.gmra.mxu0 %v404
      %v1251 = vpop.f32.mrf.mxu0
      %v1252 = vadd.f32 %v1164, %v1251
      %v1253 = vpop.f32.mrf.mxu0
      %1254 = vmatprep.mubr.f32.mxu0 0.0
      %1255 = vmatmul.mubr.f32.gmra.mxu0 %v407
      %v1256 = vpop.f32.mrf.mxu0
      %v1257 = vadd.f32 %v1169, %v1256
      %v1258 = vpop.f32.mrf.mxu0
      %1259 = vmatprep.mubr.f32.mxu0 0.0
      %1260 = vmatmul.mubr.f32.gmra.mxu0 %v410
      %v1261 = vpop.f32.mrf.mxu0
      %v1262 = vadd.f32 %v1174, %v1261
      %v1263 = vpop.f32.mrf.mxu0
      %1264 = vdwg.mxu0
      %v1265 = vadd.f32 %v1247, %v504
      %v1266 = vadd.f32 %v1252, %v509
      %v1267 = vadd.f32 %v1257, %v514
      %v1268 = vadd.f32 %v1262, %v519
      %s1269 = scalar_lea.vmem [#allocation2], 128
      %1270 = vst.msk [vmem:[%s1269] sm:$0xff] %vm525, %v1265
      %1271 = vst.msk [vmem:[%s1269 + $0x8] sm:$0xff] %vm525, %v1266
      %1272 = vst.msk [vmem:[%s1269 + $0x10] sm:$0xff] %vm525, %v1267
      %1273 = vst.msk [vmem:[%s1269 + $0x18] sm:$0xff] %vm525, %v1268
      %s1274 = scalar_lea.vmem %s270, 20
      %v1275 = vld [vmem:[%s1274] sm:$0x7]
      %s1276 = scalar_lea.vmem %s278, 40
      %v1277 = vld [vmem:[%s1276] sm:$0xff]
      %1278 = vmatprep.subr.mxu0 0.0
      %1279 = vmatpush1.msra.mxu0 0.0
      %1280 = vmatprep.subr.mxu0 0.0
      %1281 = vmatpush1.msra.mxu0 0.0
      %1282 = vmatprep.subr.mxu0 0.0
      %1283 = vmatpush1.msra.mxu0 0.0
      %1284 = vmatprep.subr.mxu0 0.0
      %1285 = vmatpush1.msra.mxu0 0.0
      %1286 = vmatprep.subr.mxu0 0.0
      %1287 = vmatpush1.msra.mxu0 0.0
      %1288 = vmatprep.subr.mxu0 0.0
      %1289 = vmatpush1.msra.mxu0 0.0
      %1290 = vmatprep.subr.mxu0 0.0
      %1291 = vmatpush1.msra.mxu0 0.0
      %1292 = vmatprep.subr.mxu0 0.0
      %1293 = vmatpush1.msra.mxu0 0.0
      %1294 = vmatprep.subr.mxu0 0.0
      %1295 = vmatpush1.msra.mxu0 0.0
      %1296 = vmatprep.subr.mxu0 0.0
      %1297 = vmatpush1.msra.mxu0 0.0
      %1298 = vmatprep.subr.mxu0 0.0
      %1299 = vmatpush1.msra.mxu0 0.0
      %1300 = vmatprep.subr.mxu0 0.0
      %1301 = vmatpush1.msra.mxu0 0.0
      %1302 = vmatprep.subr.mxu0 0.0
      %1303 = vmatpush1.msra.mxu0 0.0
      %1304 = vmatprep.subr.mxu0 0.0
      %1305 = vmatpush1.msra.mxu0 0.0
      %1306 = vmatprep.subr.mxu0 0.0
      %1307 = vmatpush1.msra.mxu0 0.0
      %1308 = vmatprep.subr.mxu0 0.0
      %1309 = vmatpush1.msra.mxu0 %v1277
      %1310 = vmatprep.subr.mxu0 0.0
      %1311 = vmatpush2.msra.mxu0 0.0
      %1312 = vmatprep.subr.mxu0 0.0
      %1313 = vmatpush2.msra.mxu0 0.0
      %1314 = vmatprep.subr.mxu0 0.0
      %1315 = vmatpush2.msra.mxu0 0.0
      %1316 = vmatprep.subr.mxu0 0.0
      %1317 = vmatpush2.msra.mxu0 0.0
      %1318 = vmatprep.subr.mxu0 0.0
      %1319 = vmatpush2.msra.mxu0 0.0
      %1320 = vmatprep.subr.mxu0 0.0
      %1321 = vmatpush2.msra.mxu0 0.0
      %1322 = vmatprep.subr.mxu0 0.0
      %1323 = vmatpush2.msra.mxu0 0.0
      %1324 = vmatprep.subr.mxu0 0.0
      %1325 = vmatpush2.msra.mxu0 0.0
      %1326 = vmatprep.subr.mxu0 0.0
      %1327 = vmatpush2.msra.mxu0 0.0
      %1328 = vmatprep.subr.mxu0 0.0
      %1329 = vmatpush2.msra.mxu0 0.0
      %1330 = vmatprep.subr.mxu0 0.0
      %1331 = vmatpush2.msra.mxu0 0.0
      %1332 = vmatprep.subr.mxu0 0.0
      %1333 = vmatpush2.msra.mxu0 0.0
      %1334 = vmatprep.subr.mxu0 0.0
      %1335 = vmatpush2.msra.mxu0 0.0
      %1336 = vmatprep.subr.mxu0 0.0
      %1337 = vmatpush2.msra.mxu0 0.0
      %1338 = vmatprep.subr.mxu0 0.0
      %1339 = vmatpush2.msra.mxu0 0.0
      %1340 = vmatprep.subr.mxu0 0.0
      %1341 = vmatpush2.msra.mxu0 0.0
      %1342 = vmatprep.mubr.f32.mxu0 0.0
      %1343 = vmatmul.mubr.f32.gmra.mxu0 %v303
      %v1344 = vpop.f32.mrf.mxu0
      %v1345 = vadd.f32 0.0, %v1344
      %v1346 = vpop.f32.mrf.mxu0
      %1347 = vmatprep.mubr.f32.mxu0 0.0
      %1348 = vmatmul.mubr.f32.gmra.mxu0 %v306
      %v1349 = vpop.f32.mrf.mxu0
      %v1350 = vadd.f32 0.0, %v1349
      %v1351 = vpop.f32.mrf.mxu0
      %1352 = vmatprep.mubr.f32.mxu0 0.0
      %1353 = vmatmul.mubr.f32.gmra.mxu0 %v309
      %v1354 = vpop.f32.mrf.mxu0
      %v1355 = vadd.f32 0.0, %v1354
      %v1356 = vpop.f32.mrf.mxu0
      %1357 = vmatprep.mubr.f32.mxu0 0.0
      %1358 = vmatmul.mubr.f32.gmra.mxu0 %v312
      %v1359 = vpop.f32.mrf.mxu0
      %v1360 = vadd.f32 0.0, %v1359
      %v1361 = vpop.f32.mrf.mxu0
      %1362 = vdwg.mxu0
      %v1364 = vsel %vm412, %v1275, 0
      %1366 = vmatprep.subr.mxu0 0.0
      %1367 = vmatpush1.msra.mxu0 0.0
      %1368 = vmatprep.subr.mxu0 0.0
      %1369 = vmatpush1.msra.mxu0 0.0
      %1370 = vmatprep.subr.mxu0 0.0
      %1371 = vmatpush1.msra.mxu0 0.0
      %1372 = vmatprep.subr.mxu0 0.0
      %1373 = vmatpush1.msra.mxu0 0.0
      %1374 = vmatprep.subr.mxu0 0.0
      %1375 = vmatpush1.msra.mxu0 0.0
      %1376 = vmatprep.subr.mxu0 0.0
      %1377 = vmatpush1.msra.mxu0 0.0
      %1378 = vmatprep.subr.mxu0 0.0
      %1379 = vmatpush1.msra.mxu0 0.0
      %1380 = vmatprep.subr.mxu0 0.0
      %1381 = vmatpush1.msra.mxu0 0.0
      %1382 = vmatprep.subr.mxu0 0.0
      %1383 = vmatpush1.msra.mxu0 0.0
      %1384 = vmatprep.subr.mxu0 0.0
      %1385 = vmatpush1.msra.mxu0 0.0
      %1386 = vmatprep.subr.mxu0 0.0
      %1387 = vmatpush1.msra.mxu0 0.0
      %1388 = vmatprep.subr.mxu0 0.0
      %1389 = vmatpush1.msra.mxu0 0.0
      %1390 = vmatprep.subr.mxu0 0.0
      %1391 = vmatpush1.msra.mxu0 0.0
      %1392 = vmatprep.subr.mxu0 0.0
      %1393 = vmatpush1.msra.mxu0 0.0
      %1394 = vmatprep.subr.mxu0 0.0
      %1395 = vmatpush1.msra.mxu0 0.0
      %1396 = vmatprep.subr.mxu0 0.0
      %1397 = vmatpush1.msra.mxu0 %v1364
      %1398 = vmatprep.subr.mxu0 0.0
      %1399 = vmatpush2.msra.mxu0 0.0
      %1400 = vmatprep.subr.mxu0 0.0
      %1401 = vmatpush2.msra.mxu0 0.0
      %1402 = vmatprep.subr.mxu0 0.0
      %1403 = vmatpush2.msra.mxu0 0.0
      %1404 = vmatprep.subr.mxu0 0.0
      %1405 = vmatpush2.msra.mxu0 0.0
      %1406 = vmatprep.subr.mxu0 0.0
      %1407 = vmatpush2.msra.mxu0 0.0
      %1408 = vmatprep.subr.mxu0 0.0
      %1409 = vmatpush2.msra.mxu0 0.0
      %1410 = vmatprep.subr.mxu0 0.0
      %1411 = vmatpush2.msra.mxu0 0.0
      %1412 = vmatprep.subr.mxu0 0.0
      %1413 = vmatpush2.msra.mxu0 0.0
      %1414 = vmatprep.subr.mxu0 0.0
      %1415 = vmatpush2.msra.mxu0 0.0
      %1416 = vmatprep.subr.mxu0 0.0
      %1417 = vmatpush2.msra.mxu0 0.0
      %1418 = vmatprep.subr.mxu0 0.0
      %1419 = vmatpush2.msra.mxu0 0.0
      %1420 = vmatprep.subr.mxu0 0.0
      %1421 = vmatpush2.msra.mxu0 0.0
      %1422 = vmatprep.subr.mxu0 0.0
      %1423 = vmatpush2.msra.mxu0 0.0
      %1424 = vmatprep.subr.mxu0 0.0
      %1425 = vmatpush2.msra.mxu0 0.0
      %1426 = vmatprep.subr.mxu0 0.0
      %1427 = vmatpush2.msra.mxu0 0.0
      %1428 = vmatprep.subr.mxu0 0.0
      %1429 = vmatpush2.msra.mxu0 0.0
      %1430 = vmatprep.mubr.f32.mxu0 0.0
      %1431 = vmatmul.mubr.f32.gmra.mxu0 %v401
      %v1432 = vpop.f32.mrf.mxu0
      %v1433 = vadd.f32 %v1345, %v1432
      %v1434 = vpop.f32.mrf.mxu0
      %1435 = vmatprep.mubr.f32.mxu0 0.0
      %1436 = vmatmul.mubr.f32.gmra.mxu0 %v404
      %v1437 = vpop.f32.mrf.mxu0
      %v1438 = vadd.f32 %v1350, %v1437
      %v1439 = vpop.f32.mrf.mxu0
      %1440 = vmatprep.mubr.f32.mxu0 0.0
      %1441 = vmatmul.mubr.f32.gmra.mxu0 %v407
      %v1442 = vpop.f32.mrf.mxu0
      %v1443 = vadd.f32 %v1355, %v1442
      %v1444 = vpop.f32.mrf.mxu0
      %1445 = vmatprep.mubr.f32.mxu0 0.0
      %1446 = vmatmul.mubr.f32.gmra.mxu0 %v410
      %v1447 = vpop.f32.mrf.mxu0
      %v1448 = vadd.f32 %v1360, %v1447
      %v1449 = vpop.f32.mrf.mxu0
      %1450 = vdwg.mxu0
      %v1451 = vadd.f32 %v1433, %v504
      %v1452 = vadd.f32 %v1438, %v509
      %v1453 = vadd.f32 %v1443, %v514
      %v1454 = vadd.f32 %v1448, %v519
      %s1455 = scalar_lea.vmem [#allocation2], 160
      %1456 = vst.msk [vmem:[%s1455] sm:$0xff] %vm525, %v1451
      %1457 = vst.msk [vmem:[%s1455 + $0x8] sm:$0xff] %vm525, %v1452
      %1458 = vst.msk [vmem:[%s1455 + $0x10] sm:$0xff] %vm525, %v1453
      %1459 = vst.msk [vmem:[%s1455 + $0x18] sm:$0xff] %vm525, %v1454
      %s1460 = scalar_lea.vmem %s270, 24
      %v1461 = vld [vmem:[%s1460] sm:$0x7]
      %s1462 = scalar_lea.vmem %s278, 48
      %v1463 = vld [vmem:[%s1462] sm:$0xff]
      %1464 = vmatprep.subr.mxu0 0.0
      %1465 = vmatpush1.msra.mxu0 0.0
      %1466 = vmatprep.subr.mxu0 0.0
      %1467 = vmatpush1.msra.mxu0 0.0
      %1468 = vmatprep.subr.mxu0 0.0
      %1469 = vmatpush1.msra.mxu0 0.0
      %1470 = vmatprep.subr.mxu0 0.0
      %1471 = vmatpush1.msra.mxu0 0.0
      %1472 = vmatprep.subr.mxu0 0.0
      %1473 = vmatpush1.msra.mxu0 0.0
      %1474 = vmatprep.subr.mxu0 0.0
      %1475 = vmatpush1.msra.mxu0 0.0
      %1476 = vmatprep.subr.mxu0 0.0
      %1477 = vmatpush1.msra.mxu0 0.0
      %1478 = vmatprep.subr.mxu0 0.0
      %1479 = vmatpush1.msra.mxu0 0.0
      %1480 = vmatprep.subr.mxu0 0.0
      %1481 = vmatpush1.msra.mxu0 0.0
      %1482 = vmatprep.subr.mxu0 0.0
      %1483 = vmatpush1.msra.mxu0 0.0
      %1484 = vmatprep.subr.mxu0 0.0
      %1485 = vmatpush1.msra.mxu0 0.0
      %1486 = vmatprep.subr.mxu0 0.0
      %1487 = vmatpush1.msra.mxu0 0.0
      %1488 = vmatprep.subr.mxu0 0.0
      %1489 = vmatpush1.msra.mxu0 0.0
      %1490 = vmatprep.subr.mxu0 0.0
      %1491 = vmatpush1.msra.mxu0 0.0
      %1492 = vmatprep.subr.mxu0 0.0
      %1493 = vmatpush1.msra.mxu0 0.0
      %1494 = vmatprep.subr.mxu0 0.0
      %1495 = vmatpush1.msra.mxu0 %v1463
      %1496 = vmatprep.subr.mxu0 0.0
      %1497 = vmatpush2.msra.mxu0 0.0
      %1498 = vmatprep.subr.mxu0 0.0
      %1499 = vmatpush2.msra.mxu0 0.0
      %1500 = vmatprep.subr.mxu0 0.0
      %1501 = vmatpush2.msra.mxu0 0.0
      %1502 = vmatprep.subr.mxu0 0.0
      %1503 = vmatpush2.msra.mxu0 0.0
      %1504 = vmatprep.subr.mxu0 0.0
      %1505 = vmatpush2.msra.mxu0 0.0
      %1506 = vmatprep.subr.mxu0 0.0
      %1507 = vmatpush2.msra.mxu0 0.0
      %1508 = vmatprep.subr.mxu0 0.0
      %1509 = vmatpush2.msra.mxu0 0.0
      %1510 = vmatprep.subr.mxu0 0.0
      %1511 = vmatpush2.msra.mxu0 0.0
      %1512 = vmatprep.subr.mxu0 0.0
      %1513 = vmatpush2.msra.mxu0 0.0
      %1514 = vmatprep.subr.mxu0 0.0
      %1515 = vmatpush2.msra.mxu0 0.0
      %1516 = vmatprep.subr.mxu0 0.0
      %1517 = vmatpush2.msra.mxu0 0.0
      %1518 = vmatprep.subr.mxu0 0.0
      %1519 = vmatpush2.msra.mxu0 0.0
      %1520 = vmatprep.subr.mxu0 0.0
      %1521 = vmatpush2.msra.mxu0 0.0
      %1522 = vmatprep.subr.mxu0 0.0
      %1523 = vmatpush2.msra.mxu0 0.0
      %1524 = vmatprep.subr.mxu0 0.0
      %1525 = vmatpush2.msra.mxu0 0.0
      %1526 = vmatprep.subr.mxu0 0.0
      %1527 = vmatpush2.msra.mxu0 0.0
      %1528 = vmatprep.mubr.f32.mxu0 0.0
      %1529 = vmatmul.mubr.f32.gmra.mxu0 %v303
      %v1530 = vpop.f32.mrf.mxu0
      %v1531 = vadd.f32 0.0, %v1530
      %v1532 = vpop.f32.mrf.mxu0
      %1533 = vmatprep.mubr.f32.mxu0 0.0
      %1534 = vmatmul.mubr.f32.gmra.mxu0 %v306
      %v1535 = vpop.f32.mrf.mxu0
      %v1536 = vadd.f32 0.0, %v1535
      %v1537 = vpop.f32.mrf.mxu0
      %1538 = vmatprep.mubr.f32.mxu0 0.0
      %1539 = vmatmul.mubr.f32.gmra.mxu0 %v309
      %v1540 = vpop.f32.mrf.mxu0
      %v1541 = vadd.f32 0.0, %v1540
      %v1542 = vpop.f32.mrf.mxu0
      %1543 = vmatprep.mubr.f32.mxu0 0.0
      %1544 = vmatmul.mubr.f32.gmra.mxu0 %v312
      %v1545 = vpop.f32.mrf.mxu0
      %v1546 = vadd.f32 0.0, %v1545
      %v1547 = vpop.f32.mrf.mxu0
      %1548 = vdwg.mxu0
      %v1550 = vsel %vm412, %v1461, 0
      %1552 = vmatprep.subr.mxu0 0.0
      %1553 = vmatpush1.msra.mxu0 0.0
      %1554 = vmatprep.subr.mxu0 0.0
      %1555 = vmatpush1.msra.mxu0 0.0
      %1556 = vmatprep.subr.mxu0 0.0
      %1557 = vmatpush1.msra.mxu0 0.0
      %1558 = vmatprep.subr.mxu0 0.0
      %1559 = vmatpush1.msra.mxu0 0.0
      %1560 = vmatprep.subr.mxu0 0.0
      %1561 = vmatpush1.msra.mxu0 0.0
      %1562 = vmatprep.subr.mxu0 0.0
      %1563 = vmatpush1.msra.mxu0 0.0
      %1564 = vmatprep.subr.mxu0 0.0
      %1565 = vmatpush1.msra.mxu0 0.0
      %1566 = vmatprep.subr.mxu0 0.0
      %1567 = vmatpush1.msra.mxu0 0.0
      %1568 = vmatprep.subr.mxu0 0.0
      %1569 = vmatpush1.msra.mxu0 0.0
      %1570 = vmatprep.subr.mxu0 0.0
      %1571 = vmatpush1.msra.mxu0 0.0
      %1572 = vmatprep.subr.mxu0 0.0
      %1573 = vmatpush1.msra.mxu0 0.0
      %1574 = vmatprep.subr.mxu0 0.0
      %1575 = vmatpush1.msra.mxu0 0.0
      %1576 = vmatprep.subr.mxu0 0.0
      %1577 = vmatpush1.msra.mxu0 0.0
      %1578 = vmatprep.subr.mxu0 0.0
      %1579 = vmatpush1.msra.mxu0 0.0
      %1580 = vmatprep.subr.mxu0 0.0
      %1581 = vmatpush1.msra.mxu0 0.0
      %1582 = vmatprep.subr.mxu0 0.0
      %1583 = vmatpush1.msra.mxu0 %v1550
      %1584 = vmatprep.subr.mxu0 0.0
      %1585 = vmatpush2.msra.mxu0 0.0
      %1586 = vmatprep.subr.mxu0 0.0
      %1587 = vmatpush2.msra.mxu0 0.0
      %1588 = vmatprep.subr.mxu0 0.0
      %1589 = vmatpush2.msra.mxu0 0.0
      %1590 = vmatprep.subr.mxu0 0.0
      %1591 = vmatpush2.msra.mxu0 0.0
      %1592 = vmatprep.subr.mxu0 0.0
      %1593 = vmatpush2.msra.mxu0 0.0
      %1594 = vmatprep.subr.mxu0 0.0
      %1595 = vmatpush2.msra.mxu0 0.0
      %1596 = vmatprep.subr.mxu0 0.0
      %1597 = vmatpush2.msra.mxu0 0.0
      %1598 = vmatprep.subr.mxu0 0.0
      %1599 = vmatpush2.msra.mxu0 0.0
      %1600 = vmatprep.subr.mxu0 0.0
      %1601 = vmatpush2.msra.mxu0 0.0
      %1602 = vmatprep.subr.mxu0 0.0
      %1603 = vmatpush2.msra.mxu0 0.0
      %1604 = vmatprep.subr.mxu0 0.0
      %1605 = vmatpush2.msra.mxu0 0.0
      %1606 = vmatprep.subr.mxu0 0.0
      %1607 = vmatpush2.msra.mxu0 0.0
      %1608 = vmatprep.subr.mxu0 0.0
      %1609 = vmatpush2.msra.mxu0 0.0
      %1610 = vmatprep.subr.mxu0 0.0
      %1611 = vmatpush2.msra.mxu0 0.0
      %1612 = vmatprep.subr.mxu0 0.0
      %1613 = vmatpush2.msra.mxu0 0.0
      %1614 = vmatprep.subr.mxu0 0.0
      %1615 = vmatpush2.msra.mxu0 0.0
      %1616 = vmatprep.mubr.f32.mxu0 0.0
      %1617 = vmatmul.mubr.f32.gmra.mxu0 %v401
      %v1618 = vpop.f32.mrf.mxu0
      %v1619 = vadd.f32 %v1531, %v1618
      %v1620 = vpop.f32.mrf.mxu0
      %1621 = vmatprep.mubr.f32.mxu0 0.0
      %1622 = vmatmul.mubr.f32.gmra.mxu0 %v404
      %v1623 = vpop.f32.mrf.mxu0
      %v1624 = vadd.f32 %v1536, %v1623
      %v1625 = vpop.f32.mrf.mxu0
      %1626 = vmatprep.mubr.f32.mxu0 0.0
      %1627 = vmatmul.mubr.f32.gmra.mxu0 %v407
      %v1628 = vpop.f32.mrf.mxu0
      %v1629 = vadd.f32 %v1541, %v1628
      %v1630 = vpop.f32.mrf.mxu0
      %1631 = vmatprep.mubr.f32.mxu0 0.0
      %1632 = vmatmul.mubr.f32.gmra.mxu0 %v410
      %v1633 = vpop.f32.mrf.mxu0
      %v1634 = vadd.f32 %v1546, %v1633
      %v1635 = vpop.f32.mrf.mxu0
      %1636 = vdwg.mxu0
      %v1637 = vadd.f32 %v1619, %v504
      %v1638 = vadd.f32 %v1624, %v509
      %v1639 = vadd.f32 %v1629, %v514
      %v1640 = vadd.f32 %v1634, %v519
      %s1641 = scalar_lea.vmem [#allocation2], 192
      %1642 = vst.msk [vmem:[%s1641] sm:$0xff] %vm525, %v1637
      %1643 = vst.msk [vmem:[%s1641 + $0x8] sm:$0xff] %vm525, %v1638
      %1644 = vst.msk [vmem:[%s1641 + $0x10] sm:$0xff] %vm525, %v1639
      %1645 = vst.msk [vmem:[%s1641 + $0x18] sm:$0xff] %vm525, %v1640
      %s1646 = scalar_lea.vmem %s270, 28
      %v1647 = vld [vmem:[%s1646] sm:$0x7]
      %s1648 = scalar_lea.vmem %s278, 56
      %v1649 = vld [vmem:[%s1648] sm:$0xff]
      %1650 = vmatprep.subr.mxu0 0.0
      %1651 = vmatpush1.msra.mxu0 0.0
      %1652 = vmatprep.subr.mxu0 0.0
      %1653 = vmatpush1.msra.mxu0 0.0
      %1654 = vmatprep.subr.mxu0 0.0
      %1655 = vmatpush1.msra.mxu0 0.0
      %1656 = vmatprep.subr.mxu0 0.0
      %1657 = vmatpush1.msra.mxu0 0.0
      %1658 = vmatprep.subr.mxu0 0.0
      %1659 = vmatpush1.msra.mxu0 0.0
      %1660 = vmatprep.subr.mxu0 0.0
      %1661 = vmatpush1.msra.mxu0 0.0
      %1662 = vmatprep.subr.mxu0 0.0
      %1663 = vmatpush1.msra.mxu0 0.0
      %1664 = vmatprep.subr.mxu0 0.0
      %1665 = vmatpush1.msra.mxu0 0.0
      %1666 = vmatprep.subr.mxu0 0.0
      %1667 = vmatpush1.msra.mxu0 0.0
      %1668 = vmatprep.subr.mxu0 0.0
      %1669 = vmatpush1.msra.mxu0 0.0
      %1670 = vmatprep.subr.mxu0 0.0
      %1671 = vmatpush1.msra.mxu0 0.0
      %1672 = vmatprep.subr.mxu0 0.0
      %1673 = vmatpush1.msra.mxu0 0.0
      %1674 = vmatprep.subr.mxu0 0.0
      %1675 = vmatpush1.msra.mxu0 0.0
      %1676 = vmatprep.subr.mxu0 0.0
      %1677 = vmatpush1.msra.mxu0 0.0
      %1678 = vmatprep.subr.mxu0 0.0
      %1679 = vmatpush1.msra.mxu0 0.0
      %1680 = vmatprep.subr.mxu0 0.0
      %1681 = vmatpush1.msra.mxu0 %v1649
      %1682 = vmatprep.subr.mxu0 0.0
      %1683 = vmatpush2.msra.mxu0 0.0
      %1684 = vmatprep.subr.mxu0 0.0
      %1685 = vmatpush2.msra.mxu0 0.0
      %1686 = vmatprep.subr.mxu0 0.0
      %1687 = vmatpush2.msra.mxu0 0.0
      %1688 = vmatprep.subr.mxu0 0.0
      %1689 = vmatpush2.msra.mxu0 0.0
      %1690 = vmatprep.subr.mxu0 0.0
      %1691 = vmatpush2.msra.mxu0 0.0
      %1692 = vmatprep.subr.mxu0 0.0
      %1693 = vmatpush2.msra.mxu0 0.0
      %1694 = vmatprep.subr.mxu0 0.0
      %1695 = vmatpush2.msra.mxu0 0.0
      %1696 = vmatprep.subr.mxu0 0.0
      %1697 = vmatpush2.msra.mxu0 0.0
      %1698 = vmatprep.subr.mxu0 0.0
      %1699 = vmatpush2.msra.mxu0 0.0
      %1700 = vmatprep.subr.mxu0 0.0
      %1701 = vmatpush2.msra.mxu0 0.0
      %1702 = vmatprep.subr.mxu0 0.0
      %1703 = vmatpush2.msra.mxu0 0.0
      %1704 = vmatprep.subr.mxu0 0.0
      %1705 = vmatpush2.msra.mxu0 0.0
      %1706 = vmatprep.subr.mxu0 0.0
      %1707 = vmatpush2.msra.mxu0 0.0
      %1708 = vmatprep.subr.mxu0 0.0
      %1709 = vmatpush2.msra.mxu0 0.0
      %1710 = vmatprep.subr.mxu0 0.0
      %1711 = vmatpush2.msra.mxu0 0.0
      %1712 = vmatprep.subr.mxu0 0.0
      %1713 = vmatpush2.msra.mxu0 0.0
      %1714 = vmatprep.mubr.f32.mxu0 0.0
      %1715 = vmatmul.mubr.f32.gmra.mxu0 %v303
      %v1716 = vpop.f32.mrf.mxu0
      %v1717 = vadd.f32 0.0, %v1716
      %v1718 = vpop.f32.mrf.mxu0
      %1719 = vmatprep.mubr.f32.mxu0 0.0
      %1720 = vmatmul.mubr.f32.gmra.mxu0 %v306
      %v1721 = vpop.f32.mrf.mxu0
      %v1722 = vadd.f32 0.0, %v1721
      %v1723 = vpop.f32.mrf.mxu0
      %1724 = vmatprep.mubr.f32.mxu0 0.0
      %1725 = vmatmul.mubr.f32.gmra.mxu0 %v309
      %v1726 = vpop.f32.mrf.mxu0
      %v1727 = vadd.f32 0.0, %v1726
      %v1728 = vpop.f32.mrf.mxu0
      %1729 = vmatprep.mubr.f32.mxu0 0.0
      %1730 = vmatmul.mubr.f32.gmra.mxu0 %v312
      %v1731 = vpop.f32.mrf.mxu0
      %v1732 = vadd.f32 0.0, %v1731
      %v1733 = vpop.f32.mrf.mxu0
      %1734 = vdwg.mxu0
      %v1736 = vsel %vm412, %v1647, 0
      %1738 = vmatprep.subr.mxu0 0.0
      %1739 = vmatpush1.msra.mxu0 0.0
      %1740 = vmatprep.subr.mxu0 0.0
      %1741 = vmatpush1.msra.mxu0 0.0
      %1742 = vmatprep.subr.mxu0 0.0
      %1743 = vmatpush1.msra.mxu0 0.0
      %1744 = vmatprep.subr.mxu0 0.0
      %1745 = vmatpush1.msra.mxu0 0.0
      %1746 = vmatprep.subr.mxu0 0.0
      %1747 = vmatpush1.msra.mxu0 0.0
      %1748 = vmatprep.subr.mxu0 0.0
      %1749 = vmatpush1.msra.mxu0 0.0
      %1750 = vmatprep.subr.mxu0 0.0
      %1751 = vmatpush1.msra.mxu0 0.0
      %1752 = vmatprep.subr.mxu0 0.0
      %1753 = vmatpush1.msra.mxu0 0.0
      %1754 = vmatprep.subr.mxu0 0.0
      %1755 = vmatpush1.msra.mxu0 0.0
      %1756 = vmatprep.subr.mxu0 0.0
      %1757 = vmatpush1.msra.mxu0 0.0
      %1758 = vmatprep.subr.mxu0 0.0
      %1759 = vmatpush1.msra.mxu0 0.0
      %1760 = vmatprep.subr.mxu0 0.0
      %1761 = vmatpush1.msra.mxu0 0.0
      %1762 = vmatprep.subr.mxu0 0.0
      %1763 = vmatpush1.msra.mxu0 0.0
      %1764 = vmatprep.subr.mxu0 0.0
      %1765 = vmatpush1.msra.mxu0 0.0
      %1766 = vmatprep.subr.mxu0 0.0
      %1767 = vmatpush1.msra.mxu0 0.0
      %1768 = vmatprep.subr.mxu0 0.0
      %1769 = vmatpush1.msra.mxu0 %v1736
      %1770 = vmatprep.subr.mxu0 0.0
      %1771 = vmatpush2.msra.mxu0 0.0
      %1772 = vmatprep.subr.mxu0 0.0
      %1773 = vmatpush2.msra.mxu0 0.0
      %1774 = vmatprep.subr.mxu0 0.0
      %1775 = vmatpush2.msra.mxu0 0.0
      %1776 = vmatprep.subr.mxu0 0.0
      %1777 = vmatpush2.msra.mxu0 0.0
      %1778 = vmatprep.subr.mxu0 0.0
      %1779 = vmatpush2.msra.mxu0 0.0
      %1780 = vmatprep.subr.mxu0 0.0
      %1781 = vmatpush2.msra.mxu0 0.0
      %1782 = vmatprep.subr.mxu0 0.0
      %1783 = vmatpush2.msra.mxu0 0.0
      %1784 = vmatprep.subr.mxu0 0.0
      %1785 = vmatpush2.msra.mxu0 0.0
      %1786 = vmatprep.subr.mxu0 0.0
      %1787 = vmatpush2.msra.mxu0 0.0
      %1788 = vmatprep.subr.mxu0 0.0
      %1789 = vmatpush2.msra.mxu0 0.0
      %1790 = vmatprep.subr.mxu0 0.0
      %1791 = vmatpush2.msra.mxu0 0.0
      %1792 = vmatprep.subr.mxu0 0.0
      %1793 = vmatpush2.msra.mxu0 0.0
      %1794 = vmatprep.subr.mxu0 0.0
      %1795 = vmatpush2.msra.mxu0 0.0
      %1796 = vmatprep.subr.mxu0 0.0
      %1797 = vmatpush2.msra.mxu0 0.0
      %1798 = vmatprep.subr.mxu0 0.0
      %1799 = vmatpush2.msra.mxu0 0.0
      %1800 = vmatprep.subr.mxu0 0.0
      %1801 = vmatpush2.msra.mxu0 0.0
      %1802 = vmatprep.mubr.f32.mxu0 0.0
      %1803 = vmatmul.mubr.f32.gmra.mxu0 %v401
      %v1804 = vpop.f32.mrf.mxu0
      %v1805 = vadd.f32 %v1717, %v1804
      %v1806 = vpop.f32.mrf.mxu0
      %1807 = vmatprep.mubr.f32.mxu0 0.0
      %1808 = vmatmul.mubr.f32.gmra.mxu0 %v404
      %v1809 = vpop.f32.mrf.mxu0
      %v1810 = vadd.f32 %v1722, %v1809
      %v1811 = vpop.f32.mrf.mxu0
      %1812 = vmatprep.mubr.f32.mxu0 0.0
      %1813 = vmatmul.mubr.f32.gmra.mxu0 %v407
      %v1814 = vpop.f32.mrf.mxu0
      %v1815 = vadd.f32 %v1727, %v1814
      %v1816 = vpop.f32.mrf.mxu0
      %1817 = vmatprep.mubr.f32.mxu0 0.0
      %1818 = vmatmul.mubr.f32.gmra.mxu0 %v410
      %v1819 = vpop.f32.mrf.mxu0
      %v1820 = vadd.f32 %v1732, %v1819
      %v1821 = vpop.f32.mrf.mxu0
      %1822 = vdwg.mxu0
      %v1823 = vadd.f32 %v1805, %v504
      %v1824 = vadd.f32 %v1810, %v509
      %v1825 = vadd.f32 %v1815, %v514
      %v1826 = vadd.f32 %v1820, %v519
      %s1827 = scalar_lea.vmem [#allocation2], 224
      %1828 = vst.msk [vmem:[%s1827] sm:$0xff] %vm525, %v1823
      %1829 = vst.msk [vmem:[%s1827 + $0x8] sm:$0xff] %vm525, %v1824
      %1830 = vst.msk [vmem:[%s1827 + $0x10] sm:$0xff] %vm525, %v1825
      %1831 = vst.msk [vmem:[%s1827 + $0x18] sm:$0xff] %vm525, %v1826
      %v1832 = vld [vmem:[#allocation2] sm:$0xff]
      %v1833 = vld [vmem:[#allocation2 + $0x8] sm:$0xff]
      %v1834 = vld [vmem:[%s711] sm:$0xff]
      %v1835 = vld [vmem:[%s711 + $0x8] sm:$0xff]
      %v1836 = vmax.f32 %v1832, %v1834
      %v1837 = vmax.f32 %v1833, %v1835
      %v1838 = vld [vmem:[%s897] sm:$0xff]
      %v1839 = vld [vmem:[%s897 + $0x8] sm:$0xff]
      %v1840 = vmax.f32 %v1836, %v1838
      %v1841 = vmax.f32 %v1837, %v1839
      %v1842 = vld [vmem:[%s1083] sm:$0xff]
      %v1843 = vld [vmem:[%s1083 + $0x8] sm:$0xff]
      %v1844 = vmax.f32 %v1840, %v1842
      %v1845 = vmax.f32 %v1841, %v1843
      %v1846 = vld [vmem:[%s1269] sm:$0xff]
      %v1847 = vld [vmem:[%s1269 + $0x8] sm:$0xff]
      %v1848 = vmax.f32 %v1844, %v1846
      %v1849 = vmax.f32 %v1845, %v1847
      %v1850 = vld [vmem:[%s1455] sm:$0xff]
      %v1851 = vld [vmem:[%s1455 + $0x8] sm:$0xff]
      %v1852 = vmax.f32 %v1848, %v1850
      %v1853 = vmax.f32 %v1849, %v1851
      %v1854 = vld [vmem:[%s1641] sm:$0xff]
      %v1855 = vld [vmem:[%s1641 + $0x8] sm:$0xff]
      %v1856 = vmax.f32 %v1852, %v1854
      %v1857 = vmax.f32 %v1853, %v1855
      %v1858 = vld [vmem:[%s1827] sm:$0xff]
      %v1859 = vld [vmem:[%s1827 + $0x8] sm:$0xff]
      %v1860 = vmax.f32 %v1856, %v1858
      %v1861 = vmax.f32 %v1857, %v1859
      %v1862 = vsub.f32 %v1832, %v1860
      %v1863 = vsub.f32 %v1833, %v1861
      %v1864 = vmul.f32 %v1862, 1.442695
      %v1865 = vpow.pop %v1864
      %v1866 = vmul.f32 %v1863, 1.442695
      %v1867 = vpow.pop %v1866
      %v1868 = vadd.f32 %v1865, 0.0
      %v1869 = vadd.f32 %v1867, 0.0
      %v1870 = vld [vmem:[#allocation2 + $0x10] sm:$0xff]
      %v1871 = vld [vmem:[#allocation2 + $0x18] sm:$0xff]
      %v1872 = vmul.f32 %v1865, %v1870
      %v1873 = vmul.f32 %v1867, %v1871
      %v1874 = vadd.f32 %v1872, 0.0
      %v1875 = vadd.f32 %v1873, 0.0
      %v1876 = vsub.f32 %v1834, %v1860
      %v1877 = vsub.f32 %v1835, %v1861
      %v1878 = vmul.f32 %v1876, 1.442695
      %v1879 = vpow.pop %v1878
      %v1880 = vmul.f32 %v1877, 1.442695
      %v1881 = vpow.pop %v1880
      %v1882 = vadd.f32 %v1868, %v1879
      %v1883 = vadd.f32 %v1869, %v1881
      %v1884 = vld [vmem:[%s711 + $0x10] sm:$0xff]
      %v1885 = vld [vmem:[%s711 + $0x18] sm:$0xff]
      %v1886 = vmul.f32 %v1879, %v1884
      %v1887 = vmul.f32 %v1881, %v1885
      %v1888 = vadd.f32 %v1874, %v1886
      %v1889 = vadd.f32 %v1875, %v1887
      %v1890 = vsub.f32 %v1838, %v1860
      %v1891 = vsub.f32 %v1839, %v1861
      %v1892 = vmul.f32 %v1890, 1.442695
      %v1893 = vpow.pop %v1892
      %v1894 = vmul.f32 %v1891, 1.442695
      %v1895 = vpow.pop %v1894
      %v1896 = vadd.f32 %v1882, %v1893
      %v1897 = vadd.f32 %v1883, %v1895
      %v1898 = vld [vmem:[%s897 + $0x10] sm:$0xff]
      %v1899 = vld [vmem:[%s897 + $0x18] sm:$0xff]
      %v1900 = vmul.f32 %v1893, %v1898
      %v1901 = vmul.f32 %v1895, %v1899
      %v1902 = vadd.f32 %v1888, %v1900
      %v1903 = vadd.f32 %v1889, %v1901
      %v1904 = vsub.f32 %v1842, %v1860
      %v1905 = vsub.f32 %v1843, %v1861
      %v1906 = vmul.f32 %v1904, 1.442695
      %v1907 = vpow.pop %v1906
      %v1908 = vmul.f32 %v1905, 1.442695
      %v1909 = vpow.pop %v1908
      %v1910 = vadd.f32 %v1896, %v1907
      %v1911 = vadd.f32 %v1897, %v1909
      %v1912 = vld [vmem:[%s1083 + $0x10] sm:$0xff]
      %v1913 = vld [vmem:[%s1083 + $0x18] sm:$0xff]
      %v1914 = vmul.f32 %v1907, %v1912
      %v1915 = vmul.f32 %v1909, %v1913
      %v1916 = vadd.f32 %v1902, %v1914
      %v1917 = vadd.f32 %v1903, %v1915
      %v1918 = vsub.f32 %v1846, %v1860
      %v1919 = vsub.f32 %v1847, %v1861
      %v1920 = vmul.f32 %v1918, 1.442695
      %v1921 = vpow.pop %v1920
      %v1922 = vmul.f32 %v1919, 1.442695
      %v1923 = vpow.pop %v1922
      %v1924 = vadd.f32 %v1910, %v1921
      %v1925 = vadd.f32 %v1911, %v1923
      %v1926 = vld [vmem:[%s1269 + $0x10] sm:$0xff]
      %v1927 = vld [vmem:[%s1269 + $0x18] sm:$0xff]
      %v1928 = vmul.f32 %v1921, %v1926
      %v1929 = vmul.f32 %v1923, %v1927
      %v1930 = vadd.f32 %v1916, %v1928
      %v1931 = vadd.f32 %v1917, %v1929
      %v1932 = vsub.f32 %v1850, %v1860
      %v1933 = vsub.f32 %v1851, %v1861
      %v1934 = vmul.f32 %v1932, 1.442695
      %v1935 = vpow.pop %v1934
      %v1936 = vmul.f32 %v1933, 1.442695
      %v1937 = vpow.pop %v1936
      %v1938 = vadd.f32 %v1924, %v1935
      %v1939 = vadd.f32 %v1925, %v1937
      %v1940 = vld [vmem:[%s1455 + $0x10] sm:$0xff]
      %v1941 = vld [vmem:[%s1455 + $0x18] sm:$0xff]
      %v1942 = vmul.f32 %v1935, %v1940
      %v1943 = vmul.f32 %v1937, %v1941
      %v1944 = vadd.f32 %v1930, %v1942
      %v1945 = vadd.f32 %v1931, %v1943
      %v1946 = vsub.f32 %v1854, %v1860
      %v1947 = vsub.f32 %v1855, %v1861
      %v1948 = vmul.f32 %v1946, 1.442695
      %v1949 = vpow.pop %v1948
      %v1950 = vmul.f32 %v1947, 1.442695
      %v1951 = vpow.pop %v1950
      %v1952 = vadd.f32 %v1938, %v1949
      %v1953 = vadd.f32 %v1939, %v1951
      %v1954 = vld [vmem:[%s1641 + $0x10] sm:$0xff]
      %v1955 = vld [vmem:[%s1641 + $0x18] sm:$0xff]
      %v1956 = vmul.f32 %v1949, %v1954
      %v1957 = vmul.f32 %v1951, %v1955
      %v1958 = vadd.f32 %v1944, %v1956
      %v1959 = vadd.f32 %v1945, %v1957
      %v1960 = vsub.f32 %v1858, %v1860
      %v1961 = vsub.f32 %v1859, %v1861
      %v1962 = vmul.f32 %v1960, 1.442695
      %v1963 = vpow.pop %v1962
      %v1964 = vmul.f32 %v1961, 1.442695
      %v1965 = vpow.pop %v1964
      %v1966 = vadd.f32 %v1952, %v1963
      %v1967 = vadd.f32 %v1953, %v1965
      %v1968 = vld [vmem:[%s1827 + $0x10] sm:$0xff]
      %v1969 = vld [vmem:[%s1827 + $0x18] sm:$0xff]
      %v1970 = vmul.f32 %v1963, %v1968
      %v1971 = vmul.f32 %v1965, %v1969
      %v1972 = vadd.f32 %v1958, %v1970
      %v1973 = vadd.f32 %v1959, %v1971
      %v1974 = vrcp.pop %v1966
      %v1975 = vrcp.pop %v1967
      %v1976 = vmul.f32 %v1972, %v1974
      %v1977 = vmul.f32 %v1973, %v1975
      %1978 = vst.msk [vmem:[%s286] sm:$0xff] %vm525, %v1976
      %1979 = vst.msk [vmem:[%s286 + $0x8] sm:$0xff] %vm525, %v1977
      %p1980 = scmp.lt.s32.totalorder %s20, 1
      %s1981 = scalar_select %p1980, %s20, 1
      %p1982 = scmp.lt.s32.totalorder %s21, 0
      %s1983 = scalar_select %p1982, %s21, 0
      %s1984 = smul.addr %s1981, 2
      %s1985 = sadd.s32 %s1983, %s1984
      %s1986 = smul.addr %s1985, 8
      %s1987 = scalar_lea.vmem %s5, %s1986
      // Predicated region
      $region41: #{spotr_encoder_forward.6} parent=39 // pred_check
        %p1988 = pneg %p167
      $region42: #{spotr_encoder_forward.6} parent=39 // pred_check_branch
        %1990 = sbr.rel (%p1988) target = $region44
      $region43: #{spotr_encoder_forward.6} parent=39 // pred_region
        _
      $region44: #{spotr_encoder_forward.6} parent=39 // pred_fallthru
        _
    $region40: #{spotr_encoder_forward.6} parent=5 // pred_fallthru
      _
    %p1991 = scmp.le.s32.totalorder 2, %s11
    // Predicated region
    $region45: #{spotr_encoder_forward.6} parent=5 // pred_check
      %p1992 = pneg %p1991
    $region46: #{spotr_encoder_forward.6} parent=5 // pred_check_branch
      %1994 = sbr.rel (%p1992) target = $region48
    $region47: #{spotr_encoder_forward.6} parent=5 // pred_region
      %s1995 = ssub.s32 %s11, 2
      // Predicated region
      $region49: #{spotr_encoder_forward.6} parent=47 // pred_check
        %p1996 = pneg %p173
      $region50: #{spotr_encoder_forward.6} parent=47 // pred_check_branch
        %1998 = sbr.rel (%p1996) target = $region52
      $region51: #{spotr_encoder_forward.6} parent=47 // pred_region
        %p1999 = scmp.lt.s32.totalorder %s22, 1
        %s2000 = scalar_select %p1999, %s22, 1
        %p2001 = scmp.lt.s32.totalorder %s23, 0
        %s2002 = scalar_select %p2001, %s23, 0
        %s2003 = smul.addr %s2000, 2
        %s2004 = sadd.s32 %s2002, %s2003
        %s2005 = smul.addr %s2004, 8
        %s2006 = scalar_lea.vmem %s5, %s2005
      $region52: #{spotr_encoder_forward.6} parent=47 // pred_fallthru
        _
    $region48: #{spotr_encoder_forward.6} parent=5 // pred_fallthru
      _
  $region6: #{spotr_encoder_forward.6} parent=0 // loop_footer
    %s15 = sadd.s32 1, %s11
  $region7: #{spotr_encoder_forward.6} parent=0 // loop_footer_branch
    %10 = sbr.rel target = $region3
  $region8: #{spotr_encoder_forward.6} parent=0 // loop_exit
    _

</llo_original>
